<compile_context>
chip_gen: v7x
topology: tpu7x:2x2x1
jax: 0.10.0
libtpu: 0.0.40
codegen_flags: <defaults>
</compile_context>

<pallas_src>
import functools

import jax
import jax.numpy as jnp
from jax import lax
from jax.experimental import pallas as pl
from jax.experimental.pallas import tpu as pltpu


# ---------------------------------------------------------------------------
# Fused kernel: expand -> depthwise -> project (+ residual), one batch element
# ---------------------------------------------------------------------------
def _fused_kernel(x_ref, w1_ref, b1_ref, wdw_ref, b2_ref, sr_ref, sl_ref,
                  w3_ref, b3_ref, o_ref, hbuf, *, D, H, W, Ch, use_res):
    # x_ref  : (D*H, W*Cin)   channels fastest within the lane fold
    # hbuf   : (D, H+2, W*Ch) VMEM scratch, lane-dense hidden activation w/ h-halo
    # o_ref  : (D*H, W*Cout)
    WC = W * Ch
    HIGH = lax.Precision.HIGHEST

    # ---- h-halo rows: zero only the halos, every step (interior is fully
    # rewritten below, so no full-slab clear; safe under "parallel" sharding). --
    zrow = jnp.zeros((D, 1, WC), jnp.float32)
    hbuf[:, 0:1, :] = zrow
    hbuf[:, H + 1:H + 2, :] = zrow

    # ---- stage 1: 1x1x1 expand + folded BN + ReLU6 (block-diag weights give
    # lane-dense (W*Ch)-wide rows straight out of the MXU) ----
    x2 = x_ref[...]                                          # (D*H, W*Cin)
    h2 = jnp.dot(x2, w1_ref[...], preferred_element_type=jnp.float32,
                 precision=HIGH)
    h2 = jnp.clip(h2 + b1_ref[...], 0.0, 6.0)                # (D*H, W*Ch)
    hbuf[:, 1:H + 1, :] = h2.reshape(D, H, WC)               # leading-dim split only

    wd = wdw_ref[...]                                        # (27, W*Ch)
    b2 = b2_ref[...]                                         # (1,  W*Ch)

    # ---- stage 2: depthwise 3x3x3 + BN + ReLU6.
    # kd handled by static plane skipping, kh by the zero halo rows, kw deferred
    # to the two constant lane-shift matmuls after the loop. ----
    s0_list, s1_list, s2_list = [], [], []
    for d in range(D):                                       # fully unrolled
        s0 = jnp.zeros((H, WC), jnp.float32)
        s1 = jnp.zeros((H, WC), jnp.float32)
        s2 = jnp.zeros((H, WC), jnp.float32)
        for kd in range(3):
            dp = d + kd - 1
            if dp < 0 or dp >= D:                            # static kd boundary
                continue
            plane = hbuf[dp]                                 # (H+2, W*Ch), 1 load/kd
            for kh in range(3):
                rows = plane[kh:kh + H, :]                   # (H, W*Ch)
                base = kd * 9 + kh * 3
                s0 = s0 + rows * wd[base + 0:base + 1, :]
                s1 = s1 + rows * wd[base + 1:base + 2, :]
                s2 = s2 + rows * wd[base + 2:base + 3, :]
        s0_list.append(s0)
        s1_list.append(s1)
        s2_list.append(s2)

    S0 = jnp.concatenate(s0_list, axis=0)                    # (D*H, W*Ch)
    S1 = jnp.concatenate(s1_list, axis=0)
    S2 = jnp.concatenate(s2_list, axis=0)
    # kw = 0 / 2 taps: shift lanes by +-Ch with zero fill at the W boundary,
    # expressed as matmuls against constant off-diagonal identity matrices.
    acc = (S1
           + jnp.dot(S0, sr_ref[...], preferred_element_type=jnp.float32,
                     precision=HIGH)
           + jnp.dot(S2, sl_ref[...], preferred_element_type=jnp.float32,
                     precision=HIGH))
    y = jnp.clip(acc + b2, 0.0, 6.0)                         # (D*H, W*Ch)

    # ---- stage 3: one batched 1x1x1 projection + BN (+ residual), one store ----
    out = jnp.dot(y, w3_ref[...], preferred_element_type=jnp.float32,
                  precision=HIGH) + b3_ref[...]              # (D*H, W*Cout)
    if use_res:
        out = out + x2                                       # Cin == Cout layout match
    o_ref[...] = out


# ---------------------------------------------------------------------------
# Wrapper
# ---------------------------------------------------------------------------
def inverted_residual_forward(x_ncdhw, params, use_res_connect=True):
    N, Cin, D, H, W = x_ncdhw.shape
    Ch = params["w1"].shape[1]
    Cout = params["w3"].shape[1]
    if use_res_connect:
        assert Cin == Cout, "residual connection requires inp == oup"

    WC, WCi, WCo = W * Ch, W * Cin, W * Cout

    # Fold BN scales into conv weights; build lane-fold (block-diagonal) forms.
    eyeW = jnp.eye(W, dtype=jnp.float32)
    w1b = jnp.kron(eyeW, (params["w1"] * params["s1"]).astype(jnp.float32))   # (W*Cin, W*Ch)
    w3b = jnp.kron(eyeW, (params["w3"] * params["s3"]).astype(jnp.float32))   # (W*Ch, W*Cout)
    wdwt = jnp.tile((params["wdw"] * params["s2"]).astype(jnp.float32), (1, W))  # (27, W*Ch)
    b1t = jnp.tile(params["b1"].astype(jnp.float32), (1, W))                  # (1, W*Ch)
    b2t = jnp.tile(params["b2"].astype(jnp.float32), (1, W))                  # (1, W*Ch)
    b3t = jnp.tile(params["b3"].astype(jnp.float32), (1, W))                  # (1, W*Cout)
    # Constant +-Ch lane-shift matrices (zero fill at the W boundary built in).
    sr = jnp.eye(WC, k=Ch, dtype=jnp.float32)      # kw=0: dest lane j <- src j-Ch
    sl = jnp.eye(WC, k=-Ch, dtype=jnp.float32)     # kw=2: dest lane j <- src j+Ch

    # NCDHW -> (N, D*H, W*Cin) with channels fastest inside the lane fold.
    x2 = jnp.transpose(x_ncdhw, (0, 2, 3, 4, 1)).reshape(N, D * H, WCi)

    kernel = functools.partial(_fused_kernel, D=D, H=H, W=W, Ch=Ch,
                               use_res=use_res_connect)
    rep = lambda n: (0, 0)                                   # replicated weights/bias

    out = pl.pallas_call(
        kernel,
        out_shape=jax.ShapeDtypeStruct((N, D * H, WCo), jnp.float32),
        grid=(N,),
        in_specs=[
            pl.BlockSpec((None, D * H, WCi), lambda n: (n, 0, 0)),
            pl.BlockSpec((WCi, WC), rep),
            pl.BlockSpec((1, WC), rep),
            pl.BlockSpec((27, WC), rep),
            pl.BlockSpec((1, WC), rep),
            pl.BlockSpec((WC, WC), rep),
            pl.BlockSpec((WC, WC), rep),
            pl.BlockSpec((WC, WCo), rep),
            pl.BlockSpec((1, WCo), rep),
        ],
        out_specs=pl.BlockSpec((None, D * H, WCo), lambda n: (n, 0, 0)),
        scratch_shapes=[pltpu.VMEM((D, H + 2, WC), jnp.float32)],
        compiler_params=pltpu.CompilerParams(
            dimension_semantics=("parallel",)),
    )(x2, w1b, b1t, wdwt, b2t, sr, sl, w3b, b3t)

    out = out.reshape(N, D, H, W, Cout)
    return jnp.transpose(out, (0, 4, 1, 2, 3))               # -> NCDHW


# ---------------------------------------------------------------------------
# Pure-JAX reference (mirrors the PyTorch module, eval-mode BN)
# ---------------------------------------------------------------------------
def reference_forward(x, params, eps=1e-5):
    dn = ("NCDHW", "OIDHW", "NCDHW")

    def bn(y, gamma, beta, mean, var):
        sh = (1, -1, 1, 1, 1)
        return (y - mean.reshape(sh)) / jnp.sqrt(var.reshape(sh) + eps) \
            * gamma.reshape(sh) + beta.reshape(sh)

    w1 = params["w1"].T[:, :, None, None, None]                       # (Ch,Cin,1,1,1)
    wdw = jnp.transpose(params["wdw_dhwc"], (3, 0, 1, 2))[:, None]    # (Ch,1,3,3,3)
    w3 = params["w3"].T[:, :, None, None, None]                       # (Cout,Ch,1,1,1)

    y = lax.conv_general_dilated(x, w1, (1, 1, 1), [(0, 0)] * 3,
                                 dimension_numbers=dn,
                                 precision=lax.Precision.HIGHEST)
    y = jnp.clip(bn(y, *params["bn1"]), 0.0, 6.0)
    y = lax.conv_general_dilated(y, wdw, (1, 1, 1), [(1, 1)] * 3,
                                 dimension_numbers=dn,
                                 feature_group_count=wdw.shape[0],
                                 precision=lax.Precision.HIGHEST)
    y = jnp.clip(bn(y, *params["bn2"]), 0.0, 6.0)
    y = lax.conv_general_dilated(y, w3, (1, 1, 1), [(0, 0)] * 3,
                                 dimension_numbers=dn,
                                 precision=lax.Precision.HIGHEST)
    y = bn(y, *params["bn3"])
    return x + y


# ---------------------------------------------------------------------------
# Parameter construction (deterministic, synthetic)
# ---------------------------------------------------------------------------
def make_params(key, inp, oup, expand_ratio, eps=1e-5):
    hidden = round(inp * expand_ratio)
    ks = jax.random.split(key, 12)

    def bn_params(k, c):
        k1, k2, k3, k4 = jax.random.split(k, 4)
        gamma = 1.0 + 0.1 * jax.random.normal(k1, (c,), jnp.float32)
        beta = 0.1 * jax.random.normal(k2, (c,), jnp.float32)
        mean = 0.1 * jax.random.normal(k3, (c,), jnp.float32)
        var = jnp.abs(jax.random.normal(k4, (c,), jnp.float32)) + 0.5
        return gamma, beta, mean, var

    def fold(bn):
        gamma, beta, mean, var = bn
        s = gamma / jnp.sqrt(var + eps)
        b = beta - mean * s
        return s.reshape(1, -1), b.reshape(1, -1)

    w1 = 0.1 * jax.random.normal(ks[0], (inp, hidden), jnp.float32)
    wdw_dhwc = 0.1 * jax.random.normal(ks[1], (3, 3, 3, hidden), jnp.float32)
    w3 = 0.1 * jax.random.normal(ks[2], (hidden, oup), jnp.float32)
    bn1, bn2, bn3 = bn_params(ks[3], hidden), bn_params(ks[4], hidden), bn_params(ks[5], oup)

    s1, b1 = fold(bn1)
    s2, b2 = fold(bn2)
    s3, b3 = fold(bn3)

    return {
        "w1": w1, "wdw": wdw_dhwc.reshape(27, hidden), "wdw_dhwc": wdw_dhwc, "w3": w3,
        "s1": s1, "b1": b1, "s2": s2, "b2": b2, "s3": s3, "b3": b3,
        "bn1": bn1, "bn2": bn2, "bn3": bn3,
    }


if __name__ == "__main__":
    # InvertedResidual(inp=8, oup=8, stride=(1,1,1), expand_ratio=4)
    N, Cin, Cout, D, H, W = 2, 8, 8, 4, 8, 8
    expand_ratio = 4

    key = jax.random.PRNGKey(0)
    kx, kp = jax.random.split(key)
    x = jax.random.normal(kx, (N, Cin, D, H, W), jnp.float32)   # NCDHW like PyTorch
    params = make_params(kp, Cin, Cout, expand_ratio)

    out = inverted_residual_forward(x, params, use_res_connect=True)
    out = jax.block_until_ready(out)

    ref = jax.block_until_ready(reference_forward(x, params))
    assert out.shape == ref.shape == (N, Cout, D, H, W)
    assert jnp.allclose(out, ref, atol=2e-3, rtol=2e-3), \
        f"max abs err {jnp.max(jnp.abs(out - ref))}"

    print("KERNEL_OK")
</pallas_src>

<mosaic_0001>
module attributes {stable_mosaic.version = 11 : i64} {
  func.func @_fused_kernel(%arg0: i32, %arg1: memref<1x32x64xf32, #tpu.memory_space<vmem>>, %arg2: memref<64x256xf32, #tpu.memory_space<vmem>>, %arg3: memref<1x256xf32, #tpu.memory_space<vmem>>, %arg4: memref<27x256xf32, #tpu.memory_space<vmem>>, %arg5: memref<1x256xf32, #tpu.memory_space<vmem>>, %arg6: memref<256x256xf32, #tpu.memory_space<vmem>>, %arg7: memref<256x256xf32, #tpu.memory_space<vmem>>, %arg8: memref<256x64xf32, #tpu.memory_space<vmem>>, %arg9: memref<1x64xf32, #tpu.memory_space<vmem>>, %arg10: memref<1x32x64xf32, #tpu.memory_space<vmem>>, %arg11: memref<4x10x256xf32, #tpu.memory_space<vmem>>) attributes {dimension_semantics = [#tpu.dimension_semantics<parallel>], iteration_bounds = array<i64: 2>, scalar_prefetch = 0 : i64, scratch_operands = 1 : i64, tpu.core_type = #tpu.core_type<tc>, window_params = [{transform_indices = @transform_0, window_bounds = array<i64: 1, 32, 64>}, {pipeline_mode = #tpu.pipeline_mode<synchronous>, transform_indices = @transform_1, window_bounds = array<i64: 64, 256>}, {pipeline_mode = #tpu.pipeline_mode<synchronous>, transform_indices = @transform_2, window_bounds = array<i64: 1, 256>}, {pipeline_mode = #tpu.pipeline_mode<synchronous>, transform_indices = @transform_3, window_bounds = array<i64: 27, 256>}, {pipeline_mode = #tpu.pipeline_mode<synchronous>, transform_indices = @transform_4, window_bounds = array<i64: 1, 256>}, {pipeline_mode = #tpu.pipeline_mode<synchronous>, transform_indices = @transform_5, window_bounds = array<i64: 256, 256>}, {pipeline_mode = #tpu.pipeline_mode<synchronous>, transform_indices = @transform_6, window_bounds = array<i64: 256, 256>}, {pipeline_mode = #tpu.pipeline_mode<synchronous>, transform_indices = @transform_7, window_bounds = array<i64: 256, 64>}, {pipeline_mode = #tpu.pipeline_mode<synchronous>, transform_indices = @transform_8, window_bounds = array<i64: 1, 64>}, {transform_indices = @transform_9, window_bounds = array<i64: 1, 32, 64>}]} {
    %cst = arith.constant 0.000000e+00 : f32
    %0 = vector.broadcast %cst : f32 to vector<4x1x256xf32>
    %c0 = arith.constant 0 : index
    %c0_0 = arith.constant 0 : index
    %c0_1 = arith.constant 0 : index
    %1 = vector.load %arg11[%c0, %c0_0, %c0_1] : memref<4x10x256xf32, #tpu.memory_space<vmem>>, vector<4x1x256xf32>
    tpu.vector_store %arg11[%c0, %c0_0, %c0_1], %0 {strides = array<i32>} : memref<4x10x256xf32, #tpu.memory_space<vmem>>, vector<4x1x256xf32>,
    %c0_2 = arith.constant 0 : index
    %c9 = arith.constant 9 : index
    %c0_3 = arith.constant 0 : index
    %2 = vector.load %arg11[%c0_2, %c9, %c0_3] : memref<4x10x256xf32, #tpu.memory_space<vmem>>, vector<4x1x256xf32>
    tpu.vector_store %arg11[%c0_2, %c9, %c0_3], %0 {strides = array<i32>} : memref<4x10x256xf32, #tpu.memory_space<vmem>>, vector<4x1x256xf32>,
    %c0_4 = arith.constant 0 : index
    %c0_5 = arith.constant 0 : index
    %c0_6 = arith.constant 0 : index
    %3 = vector.load %arg1[%c0_4, %c0_5, %c0_6] : memref<1x32x64xf32, #tpu.memory_space<vmem>>, vector<1x32x64xf32>
    %4 = vector.shape_cast %3 : vector<1x32x64xf32> to vector<32x64xf32>
    %c0_7 = arith.constant 0 : index
    %c0_8 = arith.constant 0 : index
    %5 = vector.load %arg2[%c0_7, %c0_8] : memref<64x256xf32, #tpu.memory_space<vmem>>, vector<64x256xf32>
    %cst_9 = arith.constant dense<0.000000e+00> : vector<32x256xf32>
    %6 = tpu.matmul %4, %5, %cst_9 {dimension_numbers = #tpu.dot_dimension_numbers<[1], [0], [0], [1], [0, 0, 1, 1], [], []>, precision = #tpu.contract_precision<fp32>} : vector<32x64xf32>, vector<64x256xf32>, vector<32x256xf32> -> vector<32x256xf32>
    %c0_10 = arith.constant 0 : index
    %c0_11 = arith.constant 0 : index
    %7 = vector.load %arg3[%c0_10, %c0_11] : memref<1x256xf32, #tpu.memory_space<vmem>>, vector<1x256xf32>
    %8 = vector.broadcast %7 : vector<1x256xf32> to vector<32x256xf32>
    %9 = arith.addf %6, %8 : vector<32x256xf32>
    %cst_12 = arith.constant 0.000000e+00 : f32
    %cst_13 = arith.constant 6.000000e+00 : f32
    %10 = vector.broadcast %cst_12 : f32 to vector<32x256xf32>
    %11 = arith.maximumf %10, %9 : vector<32x256xf32>
    %12 = vector.broadcast %cst_13 : f32 to vector<32x256xf32>
    %13 = arith.minimumf %12, %11 : vector<32x256xf32>
    %14 = vector.shape_cast %13 : vector<32x256xf32> to vector<4x8x256xf32>
    %c0_14 = arith.constant 0 : index
    %c1 = arith.constant 1 : index
    %c0_15 = arith.constant 0 : index
    %15 = vector.load %arg11[%c0_14, %c1, %c0_15] : memref<4x10x256xf32, #tpu.memory_space<vmem>>, vector<4x8x256xf32>
    tpu.vector_store %arg11[%c0_14, %c1, %c0_15], %14 {strides = array<i32>} : memref<4x10x256xf32, #tpu.memory_space<vmem>>, vector<4x8x256xf32>,
    %c0_16 = arith.constant 0 : index
    %c0_17 = arith.constant 0 : index
    %16 = vector.load %arg4[%c0_16, %c0_17] : memref<27x256xf32, #tpu.memory_space<vmem>>, vector<27x256xf32>
    %c0_18 = arith.constant 0 : index
    %c0_19 = arith.constant 0 : index
    %17 = vector.load %arg5[%c0_18, %c0_19] : memref<1x256xf32, #tpu.memory_space<vmem>>, vector<1x256xf32>
    %cst_20 = arith.constant 0.000000e+00 : f32
    %18 = vector.broadcast %cst_20 : f32 to vector<8x256xf32>
    %cst_21 = arith.constant 0.000000e+00 : f32
    %19 = vector.broadcast %cst_21 : f32 to vector<8x256xf32>
    %cst_22 = arith.constant 0.000000e+00 : f32
    %20 = vector.broadcast %cst_22 : f32 to vector<8x256xf32>
    %c0_23 = arith.constant 0 : index
    %c0_24 = arith.constant 0 : index
    %c0_25 = arith.constant 0 : index
    %21 = vector.load %arg11[%c0_23, %c0_24, %c0_25] : memref<4x10x256xf32, #tpu.memory_space<vmem>>, vector<1x10x256xf32>
    %22 = vector.shape_cast %21 : vector<1x10x256xf32> to vector<10x256xf32>
    %23 = vector.extract_strided_slice %22 {offsets = [0, 0], sizes = [8, 256], strides = [1, 1]} : vector<10x256xf32> to vector<8x256xf32>
    %24 = vector.extract_strided_slice %16 {offsets = [9, 0], sizes = [1, 256], strides = [1, 1]} : vector<27x256xf32> to vector<1x256xf32>
    %25 = vector.broadcast %24 : vector<1x256xf32> to vector<8x256xf32>
    %26 = arith.mulf %23, %25 : vector<8x256xf32>
    %27 = arith.addf %18, %26 : vector<8x256xf32>
    %28 = vector.extract_strided_slice %16 {offsets = [10, 0], sizes = [1, 256], strides = [1, 1]} : vector<27x256xf32> to vector<1x256xf32>
    %29 = vector.broadcast %28 : vector<1x256xf32> to vector<8x256xf32>
    %30 = arith.mulf %23, %29 : vector<8x256xf32>
    %31 = arith.addf %19, %30 : vector<8x256xf32>
    %32 = vector.extract_strided_slice %16 {offsets = [11, 0], sizes = [1, 256], strides = [1, 1]} : vector<27x256xf32> to vector<1x256xf32>
    %33 = vector.broadcast %32 : vector<1x256xf32> to vector<8x256xf32>
    %34 = arith.mulf %23, %33 : vector<8x256xf32>
    %35 = arith.addf %20, %34 : vector<8x256xf32>
    %36 = vector.extract_strided_slice %22 {offsets = [1, 0], sizes = [8, 256], strides = [1, 1]} : vector<10x256xf32> to vector<8x256xf32>
    %37 = vector.extract_strided_slice %16 {offsets = [12, 0], sizes = [1, 256], strides = [1, 1]} : vector<27x256xf32> to vector<1x256xf32>
    %38 = vector.broadcast %37 : vector<1x256xf32> to vector<8x256xf32>
    %39 = arith.mulf %36, %38 : vector<8x256xf32>
    %40 = arith.addf %27, %39 : vector<8x256xf32>
    %41 = vector.extract_strided_slice %16 {offsets = [13, 0], sizes = [1, 256], strides = [1, 1]} : vector<27x256xf32> to vector<1x256xf32>
    %42 = vector.broadcast %41 : vector<1x256xf32> to vector<8x256xf32>
    %43 = arith.mulf %36, %42 : vector<8x256xf32>
    %44 = arith.addf %31, %43 : vector<8x256xf32>
    %45 = vector.extract_strided_slice %16 {offsets = [14, 0], sizes = [1, 256], strides = [1, 1]} : vector<27x256xf32> to vector<1x256xf32>
    %46 = vector.broadcast %45 : vector<1x256xf32> to vector<8x256xf32>
    %47 = arith.mulf %36, %46 : vector<8x256xf32>
    %48 = arith.addf %35, %47 : vector<8x256xf32>
    %49 = vector.extract_strided_slice %22 {offsets = [2, 0], sizes = [8, 256], strides = [1, 1]} : vector<10x256xf32> to vector<8x256xf32>
    %50 = vector.extract_strided_slice %16 {offsets = [15, 0], sizes = [1, 256], strides = [1, 1]} : vector<27x256xf32> to vector<1x256xf32>
    %51 = vector.broadcast %50 : vector<1x256xf32> to vector<8x256xf32>
    %52 = arith.mulf %49, %51 : vector<8x256xf32>
    %53 = arith.addf %40, %52 : vector<8x256xf32>
    %54 = vector.extract_strided_slice %16 {offsets = [16, 0], sizes = [1, 256], strides = [1, 1]} : vector<27x256xf32> to vector<1x256xf32>
    %55 = vector.broadcast %54 : vector<1x256xf32> to vector<8x256xf32>
    %56 = arith.mulf %49, %55 : vector<8x256xf32>
    %57 = arith.addf %44, %56 : vector<8x256xf32>
    %58 = vector.extract_strided_slice %16 {offsets = [17, 0], sizes = [1, 256], strides = [1, 1]} : vector<27x256xf32> to vector<1x256xf32>
    %59 = vector.broadcast %58 : vector<1x256xf32> to vector<8x256xf32>
    %60 = arith.mulf %49, %59 : vector<8x256xf32>
    %61 = arith.addf %48, %60 : vector<8x256xf32>
    %c1_26 = arith.constant 1 : index
    %c0_27 = arith.constant 0 : index
    %c0_28 = arith.constant 0 : index
    %62 = vector.load %arg11[%c1_26, %c0_27, %c0_28] : memref<4x10x256xf32, #tpu.memory_space<vmem>>, vector<1x10x256xf32>
    %63 = vector.shape_cast %62 : vector<1x10x256xf32> to vector<10x256xf32>
    %64 = vector.extract_strided_slice %63 {offsets = [0, 0], sizes = [8, 256], strides = [1, 1]} : vector<10x256xf32> to vector<8x256xf32>
    %65 = vector.extract_strided_slice %16 {offsets = [18, 0], sizes = [1, 256], strides = [1, 1]} : vector<27x256xf32> to vector<1x256xf32>
    %66 = vector.broadcast %65 : vector<1x256xf32> to vector<8x256xf32>
    %67 = arith.mulf %64, %66 : vector<8x256xf32>
    %68 = arith.addf %53, %67 : vector<8x256xf32>
    %69 = vector.extract_strided_slice %16 {offsets = [19, 0], sizes = [1, 256], strides = [1, 1]} : vector<27x256xf32> to vector<1x256xf32>
    %70 = vector.broadcast %69 : vector<1x256xf32> to vector<8x256xf32>
    %71 = arith.mulf %64, %70 : vector<8x256xf32>
    %72 = arith.addf %57, %71 : vector<8x256xf32>
    %73 = vector.extract_strided_slice %16 {offsets = [20, 0], sizes = [1, 256], strides = [1, 1]} : vector<27x256xf32> to vector<1x256xf32>
    %74 = vector.broadcast %73 : vector<1x256xf32> to vector<8x256xf32>
    %75 = arith.mulf %64, %74 : vector<8x256xf32>
    %76 = arith.addf %61, %75 : vector<8x256xf32>
    %77 = vector.extract_strided_slice %63 {offsets = [1, 0], sizes = [8, 256], strides = [1, 1]} : vector<10x256xf32> to vector<8x256xf32>
    %78 = vector.extract_strided_slice %16 {offsets = [21, 0], sizes = [1, 256], strides = [1, 1]} : vector<27x256xf32> to vector<1x256xf32>
    %79 = vector.broadcast %78 : vector<1x256xf32> to vector<8x256xf32>
    %80 = arith.mulf %77, %79 : vector<8x256xf32>
    %81 = arith.addf %68, %80 : vector<8x256xf32>
    %82 = vector.extract_strided_slice %16 {offsets = [22, 0], sizes = [1, 256], strides = [1, 1]} : vector<27x256xf32> to vector<1x256xf32>
    %83 = vector.broadcast %82 : vector<1x256xf32> to vector<8x256xf32>
    %84 = arith.mulf %77, %83 : vector<8x256xf32>
    %85 = arith.addf %72, %84 : vector<8x256xf32>
    %86 = vector.extract_strided_slice %16 {offsets = [23, 0], sizes = [1, 256], strides = [1, 1]} : vector<27x256xf32> to vector<1x256xf32>
    %87 = vector.broadcast %86 : vector<1x256xf32> to vector<8x256xf32>
    %88 = arith.mulf %77, %87 : vector<8x256xf32>
    %89 = arith.addf %76, %88 : vector<8x256xf32>
    %90 = vector.extract_strided_slice %63 {offsets = [2, 0], sizes = [8, 256], strides = [1, 1]} : vector<10x256xf32> to vector<8x256xf32>
    %91 = vector.extract_strided_slice %16 {offsets = [24, 0], sizes = [1, 256], strides = [1, 1]} : vector<27x256xf32> to vector<1x256xf32>
    %92 = vector.broadcast %91 : vector<1x256xf32> to vector<8x256xf32>
    %93 = arith.mulf %90, %92 : vector<8x256xf32>
    %94 = arith.addf %81, %93 : vector<8x256xf32>
    %95 = vector.extract_strided_slice %16 {offsets = [25, 0], sizes = [1, 256], strides = [1, 1]} : vector<27x256xf32> to vector<1x256xf32>
    %96 = vector.broadcast %95 : vector<1x256xf32> to vector<8x256xf32>
    %97 = arith.mulf %90, %96 : vector<8x256xf32>
    %98 = arith.addf %85, %97 : vector<8x256xf32>
    %99 = vector.extract_strided_slice %16 {offsets = [26, 0], sizes = [1, 256], strides = [1, 1]} : vector<27x256xf32> to vector<1x256xf32>
    %100 = vector.broadcast %99 : vector<1x256xf32> to vector<8x256xf32>
    %101 = arith.mulf %90, %100 : vector<8x256xf32>
    %102 = arith.addf %89, %101 : vector<8x256xf32>
    %cst_29 = arith.constant 0.000000e+00 : f32
    %103 = vector.broadcast %cst_29 : f32 to vector<8x256xf32>
    %cst_30 = arith.constant 0.000000e+00 : f32
    %104 = vector.broadcast %cst_30 : f32 to vector<8x256xf32>
    %cst_31 = arith.constant 0.000000e+00 : f32
    %105 = vector.broadcast %cst_31 : f32 to vector<8x256xf32>
    %c0_32 = arith.constant 0 : index
    %c0_33 = arith.constant 0 : index
    %c0_34 = arith.constant 0 : index
    %106 = vector.load %arg11[%c0_32, %c0_33, %c0_34] : memref<4x10x256xf32, #tpu.memory_space<vmem>>, vector<1x10x256xf32>
    %107 = vector.shape_cast %106 : vector<1x10x256xf32> to vector<10x256xf32>
    %108 = vector.extract_strided_slice %107 {offsets = [0, 0], sizes = [8, 256], strides = [1, 1]} : vector<10x256xf32> to vector<8x256xf32>
    %109 = vector.extract_strided_slice %16 {offsets = [0, 0], sizes = [1, 256], strides = [1, 1]} : vector<27x256xf32> to vector<1x256xf32>
    %110 = vector.broadcast %109 : vector<1x256xf32> to vector<8x256xf32>
    %111 = arith.mulf %108, %110 : vector<8x256xf32>
    %112 = arith.addf %103, %111 : vector<8x256xf32>
    %113 = vector.extract_strided_slice %16 {offsets = [1, 0], sizes = [1, 256], strides = [1, 1]} : vector<27x256xf32> to vector<1x256xf32>
    %114 = vector.broadcast %113 : vector<1x256xf32> to vector<8x256xf32>
    %115 = arith.mulf %108, %114 : vector<8x256xf32>
    %116 = arith.addf %104, %115 : vector<8x256xf32>
    %117 = vector.extract_strided_slice %16 {offsets = [2, 0], sizes = [1, 256], strides = [1, 1]} : vector<27x256xf32> to vector<1x256xf32>
    %118 = vector.broadcast %117 : vector<1x256xf32> to vector<8x256xf32>
    %119 = arith.mulf %108, %118 : vector<8x256xf32>
    %120 = arith.addf %105, %119 : vector<8x256xf32>
    %121 = vector.extract_strided_slice %107 {offsets = [1, 0], sizes = [8, 256], strides = [1, 1]} : vector<10x256xf32> to vector<8x256xf32>
    %122 = vector.extract_strided_slice %16 {offsets = [3, 0], sizes = [1, 256], strides = [1, 1]} : vector<27x256xf32> to vector<1x256xf32>
    %123 = vector.broadcast %122 : vector<1x256xf32> to vector<8x256xf32>
    %124 = arith.mulf %121, %123 : vector<8x256xf32>
    %125 = arith.addf %112, %124 : vector<8x256xf32>
    %126 = vector.extract_strided_slice %16 {offsets = [4, 0], sizes = [1, 256], strides = [1, 1]} : vector<27x256xf32> to vector<1x256xf32>
    %127 = vector.broadcast %126 : vector<1x256xf32> to vector<8x256xf32>
    %128 = arith.mulf %121, %127 : vector<8x256xf32>
    %129 = arith.addf %116, %128 : vector<8x256xf32>
    %130 = vector.extract_strided_slice %16 {offsets = [5, 0], sizes = [1, 256], strides = [1, 1]} : vector<27x256xf32> to vector<1x256xf32>
    %131 = vector.broadcast %130 : vector<1x256xf32> to vector<8x256xf32>
    %132 = arith.mulf %121, %131 : vector<8x256xf32>
    %133 = arith.addf %120, %132 : vector<8x256xf32>
    %134 = vector.extract_strided_slice %107 {offsets = [2, 0], sizes = [8, 256], strides = [1, 1]} : vector<10x256xf32> to vector<8x256xf32>
    %135 = vector.extract_strided_slice %16 {offsets = [6, 0], sizes = [1, 256], strides = [1, 1]} : vector<27x256xf32> to vector<1x256xf32>
    %136 = vector.broadcast %135 : vector<1x256xf32> to vector<8x256xf32>
    %137 = arith.mulf %134, %136 : vector<8x256xf32>
    %138 = arith.addf %125, %137 : vector<8x256xf32>
    %139 = vector.extract_strided_slice %16 {offsets = [7, 0], sizes = [1, 256], strides = [1, 1]} : vector<27x256xf32> to vector<1x256xf32>
    %140 = vector.broadcast %139 : vector<1x256xf32> to vector<8x256xf32>
    %141 = arith.mulf %134, %140 : vector<8x256xf32>
    %142 = arith.addf %129, %141 : vector<8x256xf32>
    %143 = vector.extract_strided_slice %16 {offsets = [8, 0], sizes = [1, 256], strides = [1, 1]} : vector<27x256xf32> to vector<1x256xf32>
    %144 = vector.broadcast %143 : vector<1x256xf32> to vector<8x256xf32>
    %145 = arith.mulf %134, %144 : vector<8x256xf32>
    %146 = arith.addf %133, %145 : vector<8x256xf32>
    %c1_35 = arith.constant 1 : index
    %c0_36 = arith.constant 0 : index
    %c0_37 = arith.constant 0 : index
    %147 = vector.load %arg11[%c1_35, %c0_36, %c0_37] : memref<4x10x256xf32, #tpu.memory_space<vmem>>, vector<1x10x256xf32>
    %148 = vector.shape_cast %147 : vector<1x10x256xf32> to vector<10x256xf32>
    %149 = vector.extract_strided_slice %148 {offsets = [0, 0], sizes = [8, 256], strides = [1, 1]} : vector<10x256xf32> to vector<8x256xf32>
    %150 = vector.extract_strided_slice %16 {offsets = [9, 0], sizes = [1, 256], strides = [1, 1]} : vector<27x256xf32> to vector<1x256xf32>
    %151 = vector.broadcast %150 : vector<1x256xf32> to vector<8x256xf32>
    %152 = arith.mulf %149, %151 : vector<8x256xf32>
    %153 = arith.addf %138, %152 : vector<8x256xf32>
    %154 = vector.extract_strided_slice %16 {offsets = [10, 0], sizes = [1, 256], strides = [1, 1]} : vector<27x256xf32> to vector<1x256xf32>
    %155 = vector.broadcast %154 : vector<1x256xf32> to vector<8x256xf32>
    %156 = arith.mulf %149, %155 : vector<8x256xf32>
    %157 = arith.addf %142, %156 : vector<8x256xf32>
    %158 = vector.extract_strided_slice %16 {offsets = [11, 0], sizes = [1, 256], strides = [1, 1]} : vector<27x256xf32> to vector<1x256xf32>
    %159 = vector.broadcast %158 : vector<1x256xf32> to vector<8x256xf32>
    %160 = arith.mulf %149, %159 : vector<8x256xf32>
    %161 = arith.addf %146, %160 : vector<8x256xf32>
    %162 = vector.extract_strided_slice %148 {offsets = [1, 0], sizes = [8, 256], strides = [1, 1]} : vector<10x256xf32> to vector<8x256xf32>
    %163 = vector.extract_strided_slice %16 {offsets = [12, 0], sizes = [1, 256], strides = [1, 1]} : vector<27x256xf32> to vector<1x256xf32>
    %164 = vector.broadcast %163 : vector<1x256xf32> to vector<8x256xf32>
    %165 = arith.mulf %162, %164 : vector<8x256xf32>
    %166 = arith.addf %153, %165 : vector<8x256xf32>
    %167 = vector.extract_strided_slice %16 {offsets = [13, 0], sizes = [1, 256], strides = [1, 1]} : vector<27x256xf32> to vector<1x256xf32>
    %168 = vector.broadcast %167 : vector<1x256xf32> to vector<8x256xf32>
    %169 = arith.mulf %162, %168 : vector<8x256xf32>
    %170 = arith.addf %157, %169 : vector<8x256xf32>
    %171 = vector.extract_strided_slice %16 {offsets = [14, 0], sizes = [1, 256], strides = [1, 1]} : vector<27x256xf32> to vector<1x256xf32>
    %172 = vector.broadcast %171 : vector<1x256xf32> to vector<8x256xf32>
    %173 = arith.mulf %162, %172 : vector<8x256xf32>
    %174 = arith.addf %161, %173 : vector<8x256xf32>
    %175 = vector.extract_strided_slice %148 {offsets = [2, 0], sizes = [8, 256], strides = [1, 1]} : vector<10x256xf32> to vector<8x256xf32>
    %176 = vector.extract_strided_slice %16 {offsets = [15, 0], sizes = [1, 256], strides = [1, 1]} : vector<27x256xf32> to vector<1x256xf32>
    %177 = vector.broadcast %176 : vector<1x256xf32> to vector<8x256xf32>
    %178 = arith.mulf %175, %177 : vector<8x256xf32>
    %179 = arith.addf %166, %178 : vector<8x256xf32>
    %180 = vector.extract_strided_slice %16 {offsets = [16, 0], sizes = [1, 256], strides = [1, 1]} : vector<27x256xf32> to vector<1x256xf32>
    %181 = vector.broadcast %180 : vector<1x256xf32> to vector<8x256xf32>
    %182 = arith.mulf %175, %181 : vector<8x256xf32>
    %183 = arith.addf %170, %182 : vector<8x256xf32>
    %184 = vector.extract_strided_slice %16 {offsets = [17, 0], sizes = [1, 256], strides = [1, 1]} : vector<27x256xf32> to vector<1x256xf32>
    %185 = vector.broadcast %184 : vector<1x256xf32> to vector<8x256xf32>
    %186 = arith.mulf %175, %185 : vector<8x256xf32>
    %187 = arith.addf %174, %186 : vector<8x256xf32>
    %c2 = arith.constant 2 : index
    %c0_38 = arith.constant 0 : index
    %c0_39 = arith.constant 0 : index
    %188 = vector.load %arg11[%c2, %c0_38, %c0_39] : memref<4x10x256xf32, #tpu.memory_space<vmem>>, vector<1x10x256xf32>
    %189 = vector.shape_cast %188 : vector<1x10x256xf32> to vector<10x256xf32>
    %190 = vector.extract_strided_slice %189 {offsets = [0, 0], sizes = [8, 256], strides = [1, 1]} : vector<10x256xf32> to vector<8x256xf32>
    %191 = vector.extract_strided_slice %16 {offsets = [18, 0], sizes = [1, 256], strides = [1, 1]} : vector<27x256xf32> to vector<1x256xf32>
    %192 = vector.broadcast %191 : vector<1x256xf32> to vector<8x256xf32>
    %193 = arith.mulf %190, %192 : vector<8x256xf32>
    %194 = arith.addf %179, %193 : vector<8x256xf32>
    %195 = vector.extract_strided_slice %16 {offsets = [19, 0], sizes = [1, 256], strides = [1, 1]} : vector<27x256xf32> to vector<1x256xf32>
    %196 = vector.broadcast %195 : vector<1x256xf32> to vector<8x256xf32>
    %197 = arith.mulf %190, %196 : vector<8x256xf32>
    %198 = arith.addf %183, %197 : vector<8x256xf32>
    %199 = vector.extract_strided_slice %16 {offsets = [20, 0], sizes = [1, 256], strides = [1, 1]} : vector<27x256xf32> to vector<1x256xf32>
    %200 = vector.broadcast %199 : vector<1x256xf32> to vector<8x256xf32>
    %201 = arith.mulf %190, %200 : vector<8x256xf32>
    %202 = arith.addf %187, %201 : vector<8x256xf32>
    %203 = vector.extract_strided_slice %189 {offsets = [1, 0], sizes = [8, 256], strides = [1, 1]} : vector<10x256xf32> to vector<8x256xf32>
    %204 = vector.extract_strided_slice %16 {offsets = [21, 0], sizes = [1, 256], strides = [1, 1]} : vector<27x256xf32> to vector<1x256xf32>
    %205 = vector.broadcast %204 : vector<1x256xf32> to vector<8x256xf32>
    %206 = arith.mulf %203, %205 : vector<8x256xf32>
    %207 = arith.addf %194, %206 : vector<8x256xf32>
    %208 = vector.extract_strided_slice %16 {offsets = [22, 0], sizes = [1, 256], strides = [1, 1]} : vector<27x256xf32> to vector<1x256xf32>
    %209 = vector.broadcast %208 : vector<1x256xf32> to vector<8x256xf32>
    %210 = arith.mulf %203, %209 : vector<8x256xf32>
    %211 = arith.addf %198, %210 : vector<8x256xf32>
    %212 = vector.extract_strided_slice %16 {offsets = [23, 0], sizes = [1, 256], strides = [1, 1]} : vector<27x256xf32> to vector<1x256xf32>
    %213 = vector.broadcast %212 : vector<1x256xf32> to vector<8x256xf32>
    %214 = arith.mulf %203, %213 : vector<8x256xf32>
    %215 = arith.addf %202, %214 : vector<8x256xf32>
    %216 = vector.extract_strided_slice %189 {offsets = [2, 0], sizes = [8, 256], strides = [1, 1]} : vector<10x256xf32> to vector<8x256xf32>
    %217 = vector.extract_strided_slice %16 {offsets = [24, 0], sizes = [1, 256], strides = [1, 1]} : vector<27x256xf32> to vector<1x256xf32>
    %218 = vector.broadcast %217 : vector<1x256xf32> to vector<8x256xf32>
    %219 = arith.mulf %216, %218 : vector<8x256xf32>
    %220 = arith.addf %207, %219 : vector<8x256xf32>
    %221 = vector.extract_strided_slice %16 {offsets = [25, 0], sizes = [1, 256], strides = [1, 1]} : vector<27x256xf32> to vector<1x256xf32>
    %222 = vector.broadcast %221 : vector<1x256xf32> to vector<8x256xf32>
    %223 = arith.mulf %216, %222 : vector<8x256xf32>
    %224 = arith.addf %211, %223 : vector<8x256xf32>
    %225 = vector.extract_strided_slice %16 {offsets = [26, 0], sizes = [1, 256], strides = [1, 1]} : vector<27x256xf32> to vector<1x256xf32>
    %226 = vector.broadcast %225 : vector<1x256xf32> to vector<8x256xf32>
    %227 = arith.mulf %216, %226 : vector<8x256xf32>
    %228 = arith.addf %215, %227 : vector<8x256xf32>
    %cst_40 = arith.constant 0.000000e+00 : f32
    %229 = vector.broadcast %cst_40 : f32 to vector<8x256xf32>
    %cst_41 = arith.constant 0.000000e+00 : f32
    %230 = vector.broadcast %cst_41 : f32 to vector<8x256xf32>
    %cst_42 = arith.constant 0.000000e+00 : f32
    %231 = vector.broadcast %cst_42 : f32 to vector<8x256xf32>
    %c1_43 = arith.constant 1 : index
    %c0_44 = arith.constant 0 : index
    %c0_45 = arith.constant 0 : index
    %232 = vector.load %arg11[%c1_43, %c0_44, %c0_45] : memref<4x10x256xf32, #tpu.memory_space<vmem>>, vector<1x10x256xf32>
    %233 = vector.shape_cast %232 : vector<1x10x256xf32> to vector<10x256xf32>
    %234 = vector.extract_strided_slice %233 {offsets = [0, 0], sizes = [8, 256], strides = [1, 1]} : vector<10x256xf32> to vector<8x256xf32>
    %235 = vector.extract_strided_slice %16 {offsets = [0, 0], sizes = [1, 256], strides = [1, 1]} : vector<27x256xf32> to vector<1x256xf32>
    %236 = vector.broadcast %235 : vector<1x256xf32> to vector<8x256xf32>
    %237 = arith.mulf %234, %236 : vector<8x256xf32>
    %238 = arith.addf %229, %237 : vector<8x256xf32>
    %239 = vector.extract_strided_slice %16 {offsets = [1, 0], sizes = [1, 256], strides = [1, 1]} : vector<27x256xf32> to vector<1x256xf32>
    %240 = vector.broadcast %239 : vector<1x256xf32> to vector<8x256xf32>
    %241 = arith.mulf %234, %240 : vector<8x256xf32>
    %242 = arith.addf %230, %241 : vector<8x256xf32>
    %243 = vector.extract_strided_slice %16 {offsets = [2, 0], sizes = [1, 256], strides = [1, 1]} : vector<27x256xf32> to vector<1x256xf32>
    %244 = vector.broadcast %243 : vector<1x256xf32> to vector<8x256xf32>
    %245 = arith.mulf %234, %244 : vector<8x256xf32>
    %246 = arith.addf %231, %245 : vector<8x256xf32>
    %247 = vector.extract_strided_slice %233 {offsets = [1, 0], sizes = [8, 256], strides = [1, 1]} : vector<10x256xf32> to vector<8x256xf32>
    %248 = vector.extract_strided_slice %16 {offsets = [3, 0], sizes = [1, 256], strides = [1, 1]} : vector<27x256xf32> to vector<1x256xf32>
    %249 = vector.broadcast %248 : vector<1x256xf32> to vector<8x256xf32>
    %250 = arith.mulf %247, %249 : vector<8x256xf32>
    %251 = arith.addf %238, %250 : vector<8x256xf32>
    %252 = vector.extract_strided_slice %16 {offsets = [4, 0], sizes = [1, 256], strides = [1, 1]} : vector<27x256xf32> to vector<1x256xf32>
    %253 = vector.broadcast %252 : vector<1x256xf32> to vector<8x256xf32>
    %254 = arith.mulf %247, %253 : vector<8x256xf32>
    %255 = arith.addf %242, %254 : vector<8x256xf32>
    %256 = vector.extract_strided_slice %16 {offsets = [5, 0], sizes = [1, 256], strides = [1, 1]} : vector<27x256xf32> to vector<1x256xf32>
    %257 = vector.broadcast %256 : vector<1x256xf32> to vector<8x256xf32>
    %258 = arith.mulf %247, %257 : vector<8x256xf32>
    %259 = arith.addf %246, %258 : vector<8x256xf32>
    %260 = vector.extract_strided_slice %233 {offsets = [2, 0], sizes = [8, 256], strides = [1, 1]} : vector<10x256xf32> to vector<8x256xf32>
    %261 = vector.extract_strided_slice %16 {offsets = [6, 0], sizes = [1, 256], strides = [1, 1]} : vector<27x256xf32> to vector<1x256xf32>
    %262 = vector.broadcast %261 : vector<1x256xf32> to vector<8x256xf32>
    %263 = arith.mulf %260, %262 : vector<8x256xf32>
    %264 = arith.addf %251, %263 : vector<8x256xf32>
    %265 = vector.extract_strided_slice %16 {offsets = [7, 0], sizes = [1, 256], strides = [1, 1]} : vector<27x256xf32> to vector<1x256xf32>
    %266 = vector.broadcast %265 : vector<1x256xf32> to vector<8x256xf32>
    %267 = arith.mulf %260, %266 : vector<8x256xf32>
    %268 = arith.addf %255, %267 : vector<8x256xf32>
    %269 = vector.extract_strided_slice %16 {offsets = [8, 0], sizes = [1, 256], strides = [1, 1]} : vector<27x256xf32> to vector<1x256xf32>
    %270 = vector.broadcast %269 : vector<1x256xf32> to vector<8x256xf32>
    %271 = arith.mulf %260, %270 : vector<8x256xf32>
    %272 = arith.addf %259, %271 : vector<8x256xf32>
    %c2_46 = arith.constant 2 : index
    %c0_47 = arith.constant 0 : index
    %c0_48 = arith.constant 0 : index
    %273 = vector.load %arg11[%c2_46, %c0_47, %c0_48] : memref<4x10x256xf32, #tpu.memory_space<vmem>>, vector<1x10x256xf32>
    %274 = vector.shape_cast %273 : vector<1x10x256xf32> to vector<10x256xf32>
    %275 = vector.extract_strided_slice %274 {offsets = [0, 0], sizes = [8, 256], strides = [1, 1]} : vector<10x256xf32> to vector<8x256xf32>
    %276 = vector.extract_strided_slice %16 {offsets = [9, 0], sizes = [1, 256], strides = [1, 1]} : vector<27x256xf32> to vector<1x256xf32>
    %277 = vector.broadcast %276 : vector<1x256xf32> to vector<8x256xf32>
    %278 = arith.mulf %275, %277 : vector<8x256xf32>
    %279 = arith.addf %264, %278 : vector<8x256xf32>
    %280 = vector.extract_strided_slice %16 {offsets = [10, 0], sizes = [1, 256], strides = [1, 1]} : vector<27x256xf32> to vector<1x256xf32>
    %281 = vector.broadcast %280 : vector<1x256xf32> to vector<8x256xf32>
    %282 = arith.mulf %275, %281 : vector<8x256xf32>
    %283 = arith.addf %268, %282 : vector<8x256xf32>
    %284 = vector.extract_strided_slice %16 {offsets = [11, 0], sizes = [1, 256], strides = [1, 1]} : vector<27x256xf32> to vector<1x256xf32>
    %285 = vector.broadcast %284 : vector<1x256xf32> to vector<8x256xf32>
    %286 = arith.mulf %275, %285 : vector<8x256xf32>
    %287 = arith.addf %272, %286 : vector<8x256xf32>
    %288 = vector.extract_strided_slice %274 {offsets = [1, 0], sizes = [8, 256], strides = [1, 1]} : vector<10x256xf32> to vector<8x256xf32>
    %289 = vector.extract_strided_slice %16 {offsets = [12, 0], sizes = [1, 256], strides = [1, 1]} : vector<27x256xf32> to vector<1x256xf32>
    %290 = vector.broadcast %289 : vector<1x256xf32> to vector<8x256xf32>
    %291 = arith.mulf %288, %290 : vector<8x256xf32>
    %292 = arith.addf %279, %291 : vector<8x256xf32>
    %293 = vector.extract_strided_slice %16 {offsets = [13, 0], sizes = [1, 256], strides = [1, 1]} : vector<27x256xf32> to vector<1x256xf32>
    %294 = vector.broadcast %293 : vector<1x256xf32> to vector<8x256xf32>
    %295 = arith.mulf %288, %294 : vector<8x256xf32>
    %296 = arith.addf %283, %295 : vector<8x256xf32>
    %297 = vector.extract_strided_slice %16 {offsets = [14, 0], sizes = [1, 256], strides = [1, 1]} : vector<27x256xf32> to vector<1x256xf32>
    %298 = vector.broadcast %297 : vector<1x256xf32> to vector<8x256xf32>
    %299 = arith.mulf %288, %298 : vector<8x256xf32>
    %300 = arith.addf %287, %299 : vector<8x256xf32>
    %301 = vector.extract_strided_slice %274 {offsets = [2, 0], sizes = [8, 256], strides = [1, 1]} : vector<10x256xf32> to vector<8x256xf32>
    %302 = vector.extract_strided_slice %16 {offsets = [15, 0], sizes = [1, 256], strides = [1, 1]} : vector<27x256xf32> to vector<1x256xf32>
    %303 = vector.broadcast %302 : vector<1x256xf32> to vector<8x256xf32>
    %304 = arith.mulf %301, %303 : vector<8x256xf32>
    %305 = arith.addf %292, %304 : vector<8x256xf32>
    %306 = vector.extract_strided_slice %16 {offsets = [16, 0], sizes = [1, 256], strides = [1, 1]} : vector<27x256xf32> to vector<1x256xf32>
    %307 = vector.broadcast %306 : vector<1x256xf32> to vector<8x256xf32>
    %308 = arith.mulf %301, %307 : vector<8x256xf32>
    %309 = arith.addf %296, %308 : vector<8x256xf32>
    %310 = vector.extract_strided_slice %16 {offsets = [17, 0], sizes = [1, 256], strides = [1, 1]} : vector<27x256xf32> to vector<1x256xf32>
    %311 = vector.broadcast %310 : vector<1x256xf32> to vector<8x256xf32>
    %312 = arith.mulf %301, %311 : vector<8x256xf32>
    %313 = arith.addf %300, %312 : vector<8x256xf32>
    %c3 = arith.constant 3 : index
    %c0_49 = arith.constant 0 : index
    %c0_50 = arith.constant 0 : index
    %314 = vector.load %arg11[%c3, %c0_49, %c0_50] : memref<4x10x256xf32, #tpu.memory_space<vmem>>, vector<1x10x256xf32>
    %315 = vector.shape_cast %314 : vector<1x10x256xf32> to vector<10x256xf32>
    %316 = vector.extract_strided_slice %315 {offsets = [0, 0], sizes = [8, 256], strides = [1, 1]} : vector<10x256xf32> to vector<8x256xf32>
    %317 = vector.extract_strided_slice %16 {offsets = [18, 0], sizes = [1, 256], strides = [1, 1]} : vector<27x256xf32> to vector<1x256xf32>
    %318 = vector.broadcast %317 : vector<1x256xf32> to vector<8x256xf32>
    %319 = arith.mulf %316, %318 : vector<8x256xf32>
    %320 = arith.addf %305, %319 : vector<8x256xf32>
    %321 = vector.extract_strided_slice %16 {offsets = [19, 0], sizes = [1, 256], strides = [1, 1]} : vector<27x256xf32> to vector<1x256xf32>
    %322 = vector.broadcast %321 : vector<1x256xf32> to vector<8x256xf32>
    %323 = arith.mulf %316, %322 : vector<8x256xf32>
    %324 = arith.addf %309, %323 : vector<8x256xf32>
    %325 = vector.extract_strided_slice %16 {offsets = [20, 0], sizes = [1, 256], strides = [1, 1]} : vector<27x256xf32> to vector<1x256xf32>
    %326 = vector.broadcast %325 : vector<1x256xf32> to vector<8x256xf32>
    %327 = arith.mulf %316, %326 : vector<8x256xf32>
    %328 = arith.addf %313, %327 : vector<8x256xf32>
    %329 = vector.extract_strided_slice %315 {offsets = [1, 0], sizes = [8, 256], strides = [1, 1]} : vector<10x256xf32> to vector<8x256xf32>
    %330 = vector.extract_strided_slice %16 {offsets = [21, 0], sizes = [1, 256], strides = [1, 1]} : vector<27x256xf32> to vector<1x256xf32>
    %331 = vector.broadcast %330 : vector<1x256xf32> to vector<8x256xf32>
    %332 = arith.mulf %329, %331 : vector<8x256xf32>
    %333 = arith.addf %320, %332 : vector<8x256xf32>
    %334 = vector.extract_strided_slice %16 {offsets = [22, 0], sizes = [1, 256], strides = [1, 1]} : vector<27x256xf32> to vector<1x256xf32>
    %335 = vector.broadcast %334 : vector<1x256xf32> to vector<8x256xf32>
    %336 = arith.mulf %329, %335 : vector<8x256xf32>
    %337 = arith.addf %324, %336 : vector<8x256xf32>
    %338 = vector.extract_strided_slice %16 {offsets = [23, 0], sizes = [1, 256], strides = [1, 1]} : vector<27x256xf32> to vector<1x256xf32>
    %339 = vector.broadcast %338 : vector<1x256xf32> to vector<8x256xf32>
    %340 = arith.mulf %329, %339 : vector<8x256xf32>
    %341 = arith.addf %328, %340 : vector<8x256xf32>
    %342 = vector.extract_strided_slice %315 {offsets = [2, 0], sizes = [8, 256], strides = [1, 1]} : vector<10x256xf32> to vector<8x256xf32>
    %343 = vector.extract_strided_slice %16 {offsets = [24, 0], sizes = [1, 256], strides = [1, 1]} : vector<27x256xf32> to vector<1x256xf32>
    %344 = vector.broadcast %343 : vector<1x256xf32> to vector<8x256xf32>
    %345 = arith.mulf %342, %344 : vector<8x256xf32>
    %346 = arith.addf %333, %345 : vector<8x256xf32>
    %347 = vector.extract_strided_slice %16 {offsets = [25, 0], sizes = [1, 256], strides = [1, 1]} : vector<27x256xf32> to vector<1x256xf32>
    %348 = vector.broadcast %347 : vector<1x256xf32> to vector<8x256xf32>
    %349 = arith.mulf %342, %348 : vector<8x256xf32>
    %350 = arith.addf %337, %349 : vector<8x256xf32>
    %351 = vector.extract_strided_slice %16 {offsets = [26, 0], sizes = [1, 256], strides = [1, 1]} : vector<27x256xf32> to vector<1x256xf32>
    %352 = vector.broadcast %351 : vector<1x256xf32> to vector<8x256xf32>
    %353 = arith.mulf %342, %352 : vector<8x256xf32>
    %354 = arith.addf %341, %353 : vector<8x256xf32>
    %cst_51 = arith.constant 0.000000e+00 : f32
    %355 = vector.broadcast %cst_51 : f32 to vector<8x256xf32>
    %cst_52 = arith.constant 0.000000e+00 : f32
    %356 = vector.broadcast %cst_52 : f32 to vector<8x256xf32>
    %cst_53 = arith.constant 0.000000e+00 : f32
    %357 = vector.broadcast %cst_53 : f32 to vector<8x256xf32>
    %c2_54 = arith.constant 2 : index
    %c0_55 = arith.constant 0 : index
    %c0_56 = arith.constant 0 : index
    %358 = vector.load %arg11[%c2_54, %c0_55, %c0_56] : memref<4x10x256xf32, #tpu.memory_space<vmem>>, vector<1x10x256xf32>
    %359 = vector.shape_cast %358 : vector<1x10x256xf32> to vector<10x256xf32>
    %360 = vector.extract_strided_slice %359 {offsets = [0, 0], sizes = [8, 256], strides = [1, 1]} : vector<10x256xf32> to vector<8x256xf32>
    %361 = vector.extract_strided_slice %16 {offsets = [0, 0], sizes = [1, 256], strides = [1, 1]} : vector<27x256xf32> to vector<1x256xf32>
    %362 = vector.broadcast %361 : vector<1x256xf32> to vector<8x256xf32>
    %363 = arith.mulf %360, %362 : vector<8x256xf32>
    %364 = arith.addf %355, %363 : vector<8x256xf32>
    %365 = vector.extract_strided_slice %16 {offsets = [1, 0], sizes = [1, 256], strides = [1, 1]} : vector<27x256xf32> to vector<1x256xf32>
    %366 = vector.broadcast %365 : vector<1x256xf32> to vector<8x256xf32>
    %367 = arith.mulf %360, %366 : vector<8x256xf32>
    %368 = arith.addf %356, %367 : vector<8x256xf32>
    %369 = vector.extract_strided_slice %16 {offsets = [2, 0], sizes = [1, 256], strides = [1, 1]} : vector<27x256xf32> to vector<1x256xf32>
    %370 = vector.broadcast %369 : vector<1x256xf32> to vector<8x256xf32>
    %371 = arith.mulf %360, %370 : vector<8x256xf32>
    %372 = arith.addf %357, %371 : vector<8x256xf32>
    %373 = vector.extract_strided_slice %359 {offsets = [1, 0], sizes = [8, 256], strides = [1, 1]} : vector<10x256xf32> to vector<8x256xf32>
    %374 = vector.extract_strided_slice %16 {offsets = [3, 0], sizes = [1, 256], strides = [1, 1]} : vector<27x256xf32> to vector<1x256xf32>
    %375 = vector.broadcast %374 : vector<1x256xf32> to vector<8x256xf32>
    %376 = arith.mulf %373, %375 : vector<8x256xf32>
    %377 = arith.addf %364, %376 : vector<8x256xf32>
    %378 = vector.extract_strided_slice %16 {offsets = [4, 0], sizes = [1, 256], strides = [1, 1]} : vector<27x256xf32> to vector<1x256xf32>
    %379 = vector.broadcast %378 : vector<1x256xf32> to vector<8x256xf32>
    %380 = arith.mulf %373, %379 : vector<8x256xf32>
    %381 = arith.addf %368, %380 : vector<8x256xf32>
    %382 = vector.extract_strided_slice %16 {offsets = [5, 0], sizes = [1, 256], strides = [1, 1]} : vector<27x256xf32> to vector<1x256xf32>
    %383 = vector.broadcast %382 : vector<1x256xf32> to vector<8x256xf32>
    %384 = arith.mulf %373, %383 : vector<8x256xf32>
    %385 = arith.addf %372, %384 : vector<8x256xf32>
    %386 = vector.extract_strided_slice %359 {offsets = [2, 0], sizes = [8, 256], strides = [1, 1]} : vector<10x256xf32> to vector<8x256xf32>
    %387 = vector.extract_strided_slice %16 {offsets = [6, 0], sizes = [1, 256], strides = [1, 1]} : vector<27x256xf32> to vector<1x256xf32>
    %388 = vector.broadcast %387 : vector<1x256xf32> to vector<8x256xf32>
    %389 = arith.mulf %386, %388 : vector<8x256xf32>
    %390 = arith.addf %377, %389 : vector<8x256xf32>
    %391 = vector.extract_strided_slice %16 {offsets = [7, 0], sizes = [1, 256], strides = [1, 1]} : vector<27x256xf32> to vector<1x256xf32>
    %392 = vector.broadcast %391 : vector<1x256xf32> to vector<8x256xf32>
    %393 = arith.mulf %386, %392 : vector<8x256xf32>
    %394 = arith.addf %381, %393 : vector<8x256xf32>
    %395 = vector.extract_strided_slice %16 {offsets = [8, 0], sizes = [1, 256], strides = [1, 1]} : vector<27x256xf32> to vector<1x256xf32>
    %396 = vector.broadcast %395 : vector<1x256xf32> to vector<8x256xf32>
    %397 = arith.mulf %386, %396 : vector<8x256xf32>
    %398 = arith.addf %385, %397 : vector<8x256xf32>
    %c3_57 = arith.constant 3 : index
    %c0_58 = arith.constant 0 : index
    %c0_59 = arith.constant 0 : index
    %399 = vector.load %arg11[%c3_57, %c0_58, %c0_59] : memref<4x10x256xf32, #tpu.memory_space<vmem>>, vector<1x10x256xf32>
    %400 = vector.shape_cast %399 : vector<1x10x256xf32> to vector<10x256xf32>
    %401 = vector.extract_strided_slice %400 {offsets = [0, 0], sizes = [8, 256], strides = [1, 1]} : vector<10x256xf32> to vector<8x256xf32>
    %402 = vector.extract_strided_slice %16 {offsets = [9, 0], sizes = [1, 256], strides = [1, 1]} : vector<27x256xf32> to vector<1x256xf32>
    %403 = vector.broadcast %402 : vector<1x256xf32> to vector<8x256xf32>
    %404 = arith.mulf %401, %403 : vector<8x256xf32>
    %405 = arith.addf %390, %404 : vector<8x256xf32>
    %406 = vector.extract_strided_slice %16 {offsets = [10, 0], sizes = [1, 256], strides = [1, 1]} : vector<27x256xf32> to vector<1x256xf32>
    %407 = vector.broadcast %406 : vector<1x256xf32> to vector<8x256xf32>
    %408 = arith.mulf %401, %407 : vector<8x256xf32>
    %409 = arith.addf %394, %408 : vector<8x256xf32>
    %410 = vector.extract_strided_slice %16 {offsets = [11, 0], sizes = [1, 256], strides = [1, 1]} : vector<27x256xf32> to vector<1x256xf32>
    %411 = vector.broadcast %410 : vector<1x256xf32> to vector<8x256xf32>
    %412 = arith.mulf %401, %411 : vector<8x256xf32>
    %413 = arith.addf %398, %412 : vector<8x256xf32>
    %414 = vector.extract_strided_slice %400 {offsets = [1, 0], sizes = [8, 256], strides = [1, 1]} : vector<10x256xf32> to vector<8x256xf32>
    %415 = vector.extract_strided_slice %16 {offsets = [12, 0], sizes = [1, 256], strides = [1, 1]} : vector<27x256xf32> to vector<1x256xf32>
    %416 = vector.broadcast %415 : vector<1x256xf32> to vector<8x256xf32>
    %417 = arith.mulf %414, %416 : vector<8x256xf32>
    %418 = arith.addf %405, %417 : vector<8x256xf32>
    %419 = vector.extract_strided_slice %16 {offsets = [13, 0], sizes = [1, 256], strides = [1, 1]} : vector<27x256xf32> to vector<1x256xf32>
    %420 = vector.broadcast %419 : vector<1x256xf32> to vector<8x256xf32>
    %421 = arith.mulf %414, %420 : vector<8x256xf32>
    %422 = arith.addf %409, %421 : vector<8x256xf32>
    %423 = vector.extract_strided_slice %16 {offsets = [14, 0], sizes = [1, 256], strides = [1, 1]} : vector<27x256xf32> to vector<1x256xf32>
    %424 = vector.broadcast %423 : vector<1x256xf32> to vector<8x256xf32>
    %425 = arith.mulf %414, %424 : vector<8x256xf32>
    %426 = arith.addf %413, %425 : vector<8x256xf32>
    %427 = vector.extract_strided_slice %400 {offsets = [2, 0], sizes = [8, 256], strides = [1, 1]} : vector<10x256xf32> to vector<8x256xf32>
    %428 = vector.extract_strided_slice %16 {offsets = [15, 0], sizes = [1, 256], strides = [1, 1]} : vector<27x256xf32> to vector<1x256xf32>
    %429 = vector.broadcast %428 : vector<1x256xf32> to vector<8x256xf32>
    %430 = arith.mulf %427, %429 : vector<8x256xf32>
    %431 = arith.addf %418, %430 : vector<8x256xf32>
    %432 = vector.extract_strided_slice %16 {offsets = [16, 0], sizes = [1, 256], strides = [1, 1]} : vector<27x256xf32> to vector<1x256xf32>
    %433 = vector.broadcast %432 : vector<1x256xf32> to vector<8x256xf32>
    %434 = arith.mulf %427, %433 : vector<8x256xf32>
    %435 = arith.addf %422, %434 : vector<8x256xf32>
    %436 = vector.extract_strided_slice %16 {offsets = [17, 0], sizes = [1, 256], strides = [1, 1]} : vector<27x256xf32> to vector<1x256xf32>
    %437 = vector.broadcast %436 : vector<1x256xf32> to vector<8x256xf32>
    %438 = arith.mulf %427, %437 : vector<8x256xf32>
    %439 = arith.addf %426, %438 : vector<8x256xf32>
    %440 = tpu.concatenate %94, %220, %346, %431 in 0 : vector<8x256xf32>, vector<8x256xf32>, vector<8x256xf32>, vector<8x256xf32> -> vector<32x256xf32>
    %441 = tpu.concatenate %98, %224, %350, %435 in 0 : vector<8x256xf32>, vector<8x256xf32>, vector<8x256xf32>, vector<8x256xf32> -> vector<32x256xf32>
    %442 = tpu.concatenate %102, %228, %354, %439 in 0 : vector<8x256xf32>, vector<8x256xf32>, vector<8x256xf32>, vector<8x256xf32> -> vector<32x256xf32>
    %c0_60 = arith.constant 0 : index
    %c0_61 = arith.constant 0 : index
    %443 = vector.load %arg6[%c0_60, %c0_61] : memref<256x256xf32, #tpu.memory_space<vmem>>, vector<256x256xf32>
    %cst_62 = arith.constant dense<0.000000e+00> : vector<32x256xf32>
    %444 = tpu.matmul %440, %443, %cst_62 {dimension_numbers = #tpu.dot_dimension_numbers<[1], [0], [0], [1], [0, 0, 1, 1], [], []>, precision = #tpu.contract_precision<fp32>} : vector<32x256xf32>, vector<256x256xf32>, vector<32x256xf32> -> vector<32x256xf32>
    %445 = arith.addf %441, %444 : vector<32x256xf32>
    %c0_63 = arith.constant 0 : index
    %c0_64 = arith.constant 0 : index
    %446 = vector.load %arg7[%c0_63, %c0_64] : memref<256x256xf32, #tpu.memory_space<vmem>>, vector<256x256xf32>
    %cst_65 = arith.constant dense<0.000000e+00> : vector<32x256xf32>
    %447 = tpu.matmul %442, %446, %cst_65 {dimension_numbers = #tpu.dot_dimension_numbers<[1], [0], [0], [1], [0, 0, 1, 1], [], []>, precision = #tpu.contract_precision<fp32>} : vector<32x256xf32>, vector<256x256xf32>, vector<32x256xf32> -> vector<32x256xf32>
    %448 = arith.addf %445, %447 : vector<32x256xf32>
    %449 = vector.broadcast %17 : vector<1x256xf32> to vector<32x256xf32>
    %450 = arith.addf %448, %449 : vector<32x256xf32>
    %cst_66 = arith.constant 0.000000e+00 : f32
    %cst_67 = arith.constant 6.000000e+00 : f32
    %451 = vector.broadcast %cst_66 : f32 to vector<32x256xf32>
    %452 = arith.maximumf %451, %450 : vector<32x256xf32>
    %453 = vector.broadcast %cst_67 : f32 to vector<32x256xf32>
    %454 = arith.minimumf %453, %452 : vector<32x256xf32>
    %c0_68 = arith.constant 0 : index
    %c0_69 = arith.constant 0 : index
    %455 = vector.load %arg8[%c0_68, %c0_69] : memref<256x64xf32, #tpu.memory_space<vmem>>, vector<256x64xf32>
    %cst_70 = arith.constant dense<0.000000e+00> : vector<32x64xf32>
    %456 = tpu.matmul %454, %455, %cst_70 {dimension_numbers = #tpu.dot_dimension_numbers<[1], [0], [0], [1], [0, 0, 1, 1], [], []>, precision = #tpu.contract_precision<fp32>} : vector<32x256xf32>, vector<256x64xf32>, vector<32x64xf32> -> vector<32x64xf32>
    %c0_71 = arith.constant 0 : index
    %c0_72 = arith.constant 0 : index
    %457 = vector.load %arg9[%c0_71, %c0_72] : memref<1x64xf32, #tpu.memory_space<vmem>>, vector<1x64xf32>
    %458 = vector.broadcast %457 : vector<1x64xf32> to vector<32x64xf32>
    %459 = arith.addf %456, %458 : vector<32x64xf32>
    %460 = arith.addf %459, %4 : vector<32x64xf32>
    %c0_73 = arith.constant 0 : index
    %c0_74 = arith.constant 0 : index
    %c0_75 = arith.constant 0 : index
    %461 = vector.load %arg10[%c0_73, %c0_74, %c0_75] : memref<1x32x64xf32, #tpu.memory_space<vmem>>, vector<1x32x64xf32>
    %462 = vector.shape_cast %461 : vector<1x32x64xf32> to vector<32x64xf32>
    %463 = vector.shape_cast %460 : vector<32x64xf32> to vector<1x32x64xf32>
    tpu.vector_store %arg10[%c0_73, %c0_74, %c0_75], %463 {strides = array<i32>} : memref<1x32x64xf32, #tpu.memory_space<vmem>>, vector<1x32x64xf32>,
    return
  }
  func.func @transform_0(%arg0: i32) -> (i32, i32, i32) {
    %c0_i32 = arith.constant 0 : i32
    %c0_i32_0 = arith.constant 0 : i32
    %c0_i32_1 = arith.constant 0 : i32
    return %arg0, %c0_i32, %c0_i32_0 : i32, i32, i32
  }
  func.func @transform_1(%arg0: i32) -> (i32, i32) {
    %c0_i32 = arith.constant 0 : i32
    %c0_i32_0 = arith.constant 0 : i32
    %c0_i32_1 = arith.constant 0 : i32
    return %c0_i32, %c0_i32_0 : i32, i32
  }
  func.func @transform_2(%arg0: i32) -> (i32, i32) {
    %c0_i32 = arith.constant 0 : i32
    %c0_i32_0 = arith.constant 0 : i32
    %c0_i32_1 = arith.constant 0 : i32
    return %c0_i32, %c0_i32_0 : i32, i32
  }
  func.func @transform_3(%arg0: i32) -> (i32, i32) {
    %c0_i32 = arith.constant 0 : i32
    %c0_i32_0 = arith.constant 0 : i32
    %c0_i32_1 = arith.constant 0 : i32
    return %c0_i32, %c0_i32_0 : i32, i32
  }
  func.func @transform_4(%arg0: i32) -> (i32, i32) {
    %c0_i32 = arith.constant 0 : i32
    %c0_i32_0 = arith.constant 0 : i32
    %c0_i32_1 = arith.constant 0 : i32
    return %c0_i32, %c0_i32_0 : i32, i32
  }
  func.func @transform_5(%arg0: i32) -> (i32, i32) {
    %c0_i32 = arith.constant 0 : i32
    %c0_i32_0 = arith.constant 0 : i32
    %c0_i32_1 = arith.constant 0 : i32
    return %c0_i32, %c0_i32_0 : i32, i32
  }
  func.func @transform_6(%arg0: i32) -> (i32, i32) {
    %c0_i32 = arith.constant 0 : i32
    %c0_i32_0 = arith.constant 0 : i32
    %c0_i32_1 = arith.constant 0 : i32
    return %c0_i32, %c0_i32_0 : i32, i32
  }
  func.func @transform_7(%arg0: i32) -> (i32, i32) {
    %c0_i32 = arith.constant 0 : i32
    %c0_i32_0 = arith.constant 0 : i32
    %c0_i32_1 = arith.constant 0 : i32
    return %c0_i32, %c0_i32_0 : i32, i32
  }
  func.func @transform_8(%arg0: i32) -> (i32, i32) {
    %c0_i32 = arith.constant 0 : i32
    %c0_i32_0 = arith.constant 0 : i32
    %c0_i32_1 = arith.constant 0 : i32
    return %c0_i32, %c0_i32_0 : i32, i32
  }
  func.func @transform_9(%arg0: i32) -> (i32, i32, i32) {
    %c0_i32 = arith.constant 0 : i32
    %c0_i32_0 = arith.constant 0 : i32
    %c0_i32_1 = arith.constant 0 : i32
    return %arg0, %c0_i32, %c0_i32_0 : i32, i32, i32
  }
}

</mosaic_0001>

<llo_original>
// kernel: tpu_custom_call.1
$region0: #{tpu_custom_call.1}
  #allocation0 [shape = 'u32[]', space=smem, size = 0x4, offset = 0x4, fixed_abs, tag = 'smem constant byte address 0x4 - core index']
  #allocation1 [shape = 'u32[144,128]{1,0:T(1,128)}', space=vmem, size = 0x12000, scoped, tag = 'internal scratch']
  #allocation2 [shape = 'f32[4,10,256]{2,1,0:T(8,128)}', space=vmem, size = 0x10000, scoped, tag = 'scratch operand']
  %s0 = inlined_call_operand.vmem [shape: f32[2,32,64], index: 0, kind: input, shape index: {}]
  %s1 = inlined_call_operand.vmem [shape: f32[64,256], index: 1, kind: input, shape index: {}]
  %s2 = inlined_call_operand.vmem [shape: f32[1,256], index: 2, kind: input, shape index: {}]
  %s3 = inlined_call_operand.vmem [shape: f32[27,256], index: 3, kind: input, shape index: {}]
  %s4 = inlined_call_operand.vmem [shape: f32[1,256], index: 4, kind: input, shape index: {}]
  %s5 = inlined_call_operand.hbm [shape: f32[256,256], index: 5, kind: input, shape index: {}]
  %s6 = inlined_call_operand.hbm [shape: f32[256,256], index: 6, kind: input, shape index: {}]
  %s7 = inlined_call_operand.vmem [shape: f32[256,64], index: 7, kind: input, shape index: {}]
  %s8 = inlined_call_operand.vmem [shape: f32[1,64], index: 8, kind: input, shape index: {}]
  %s9 = inlined_call_operand.hbm [shape: f32[2,32,64], index: 9, kind: output, shape index: {}]
  %s10 = sld [smem:[#allocation0]]
  $region77: #{tpu_custom_call.1} parent=0
    _
  %s12 = ssub.s32 1, %s10
  %s13 = scalar_select 0, %s12, %s10
  $region1: #{tpu_custom_call.1} parent=0
    #allocation3 [shape = 'u8[262144]{0}', space=vmem, size = 0x40000, scoped, tag = 'input window, operand 5, single buffered']
    #allocation4 [shape = 's32[2]{0}', space=sflag, size = 0x8, scoped, tag = 'scoped memory for tpu_custom_call.1']
    #allocation5 [shape = 's32[2]{0}', space=sflag, size = 0x8, scoped, tag = 'scoped memory for tpu_custom_call.1']
    #allocation6 [shape = 'u8[262144]{0}', space=vmem, size = 0x40000, scoped, tag = 'input window, operand 6, single buffered']
    #allocation7 [shape = 's32[1]{0}', space=sflag, size = 0x4, scoped, tag = 'scoped memory for tpu_custom_call.1']
    #allocation8 [shape = 'u8[32768]{0}', space=vmem, size = 0x8000, scoped, tag = 'output window, operand 0']
    %14 = vsyncpa [#allocation4], 0
    %15 = vsyncpa [#allocation7], 0
    %16 = vsyncpa [#allocation5], 0
    %s17 = scalar_lea.sflag [#allocation5], 1
    %18 = vsyncpa %s17, 0
    loop: start=0, step=1, limit=4
    $region2: #{tpu_custom_call.1} parent=1 // loop_pre_header
      _
    $region3: #{tpu_custom_call.1} parent=1 // loop_header
      %s20 = sphi 0, %s24
      %p21 = scmp.ge.s32.totalorder %s20, 4
      %s30 = sphi 0, %s32
      %s33 = sphi 0, %s30
      %s34 = sphi 0, %s33
      %s50 = sphi 0, %s34
      %s54 = sphi 0, %s54
      %s56 = sphi 0, %s54
      %s57 = sphi 0, %s56
      %s71 = sphi 0, %s57
      %s75 = sphi 0, %s75
      %s77 = sphi 0, %s75
      %s78 = sphi 0, %s77
      %s92 = sphi 0, %s78
      %s96 = sphi 0, %s96
      %s98 = sphi 0, %s96
      %s99 = sphi 0, %s98
      %s113 = sphi 0, %s99
      %s117 = sphi 0, %s117
      %s119 = sphi 0, %s117
      %s120 = sphi 0, %s119
      %s134 = sphi 0, %s120
      %s138 = sphi 0, %s138
      %s140 = sphi 0, %s138
      %s141 = sphi 0, %s140
      %s155 = sphi 0, %s141
      %s159 = sphi 0, %s159
      %s161 = sphi 0, %s159
      %s162 = sphi 0, %s161
      %s176 = sphi 0, %s162
      %s180 = sphi 0, %s180
      %s182 = sphi 0, %s180
      %s183 = sphi 0, %s182
      %s197 = sphi 0, %s183
      %s201 = sphi 0, %s201
      %s203 = sphi 0, %s201
      %s204 = sphi 0, %s203
      %s218 = sphi 0, %s204
      %s224 = sphi 0, %s226
      %s227 = sphi 0, %s224
      %s228 = sphi 0, %s227
      %s244 = sphi 0, %s228
    $region4: #{tpu_custom_call.1} parent=1 // loop_header_branch
      %23 = sbr.rel (%p21) target = $region8
    $region5: #{tpu_custom_call.1} parent=1 // loop_body
      %s25 = ssub.s32 %s20, 1
      %s26 = ssub.s32 %s20, 2
      %s27 = sadd.s32 %s20, 1
      %s28 = ssub.s32 %s20, %s27
      %p29 = scmp.eq.s32.totalorder %s28, 0
      %s31 = sadd.s32 %s30, 1
      %s32 = scalar_select %p29, %s30, %s31
      %p35 = pneg %p29
      %p36 = scmp.eq.s32.totalorder %s20, 1
      %p37 = por %p35, %p36
      %p38 = scmp.ne.s32.totalorder %s30, %s33
      %p39 = scmp.eq.s32.totalorder %s20, 0
      %p40 = por %p38, %p39
      %p41 = scmp.ne.s32.totalorder %s30, %s33
      %p42 = scmp.eq.s32.totalorder %s25, 1
      %p43 = por %p41, %p42
      %p44 = scmp.ne.s32.totalorder %s33, %s34
      %p45 = scmp.eq.s32.totalorder %s25, 0
      %p46 = por %p44, %p45
      %p47 = scmp.ne.s32.totalorder %s33, %s34
      %p48 = scmp.eq.s32.totalorder %s26, 1
      %p49 = por %p47, %p48
      %p51 = scmp.ne.s32.totalorder %s34, %s50
      %p52 = scmp.eq.s32.totalorder %s26, 0
      %p53 = por %p51, %p52
      %s55 = sadd.s32 %s54, 1
      %p58 = scmp.eq.s32.totalorder %s20, 1
      %p59 = scmp.ne.s32.totalorder %s54, %s56
      %p60 = scmp.eq.s32.totalorder %s20, 0
      %p61 = por %p59, %p60
      %p62 = scmp.ne.s32.totalorder %s54, %s56
      %p63 = scmp.eq.s32.totalorder %s25, 1
      %p64 = por %p62, %p63
      %p65 = scmp.ne.s32.totalorder %s56, %s57
      %p66 = scmp.eq.s32.totalorder %s25, 0
      %p67 = por %p65, %p66
      %p68 = scmp.ne.s32.totalorder %s56, %s57
      %p69 = scmp.eq.s32.totalorder %s26, 1
      %p70 = por %p68, %p69
      %p72 = scmp.ne.s32.totalorder %s57, %s71
      %p73 = scmp.eq.s32.totalorder %s26, 0
      %p74 = por %p72, %p73
      %s76 = sadd.s32 %s75, 1
      %p79 = scmp.eq.s32.totalorder %s20, 1
      %p80 = scmp.ne.s32.totalorder %s75, %s77
      %p81 = scmp.eq.s32.totalorder %s20, 0
      %p82 = por %p80, %p81
      %p83 = scmp.ne.s32.totalorder %s75, %s77
      %p84 = scmp.eq.s32.totalorder %s25, 1
      %p85 = por %p83, %p84
      %p86 = scmp.ne.s32.totalorder %s77, %s78
      %p87 = scmp.eq.s32.totalorder %s25, 0
      %p88 = por %p86, %p87
      %p89 = scmp.ne.s32.totalorder %s77, %s78
      %p90 = scmp.eq.s32.totalorder %s26, 1
      %p91 = por %p89, %p90
      %p93 = scmp.ne.s32.totalorder %s78, %s92
      %p94 = scmp.eq.s32.totalorder %s26, 0
      %p95 = por %p93, %p94
      %s97 = sadd.s32 %s96, 1
      %p100 = scmp.eq.s32.totalorder %s20, 1
      %p101 = scmp.ne.s32.totalorder %s96, %s98
      %p102 = scmp.eq.s32.totalorder %s20, 0
      %p103 = por %p101, %p102
      %p104 = scmp.ne.s32.totalorder %s96, %s98
      %p105 = scmp.eq.s32.totalorder %s25, 1
      %p106 = por %p104, %p105
      %p107 = scmp.ne.s32.totalorder %s98, %s99
      %p108 = scmp.eq.s32.totalorder %s25, 0
      %p109 = por %p107, %p108
      %p110 = scmp.ne.s32.totalorder %s98, %s99
      %p111 = scmp.eq.s32.totalorder %s26, 1
      %p112 = por %p110, %p111
      %p114 = scmp.ne.s32.totalorder %s99, %s113
      %p115 = scmp.eq.s32.totalorder %s26, 0
      %p116 = por %p114, %p115
      %s118 = sadd.s32 %s117, 1
      %p121 = scmp.eq.s32.totalorder %s20, 1
      %p122 = scmp.ne.s32.totalorder %s117, %s119
      %p123 = scmp.eq.s32.totalorder %s20, 0
      %p124 = por %p122, %p123
      %p125 = scmp.ne.s32.totalorder %s117, %s119
      %p126 = scmp.eq.s32.totalorder %s25, 1
      %p127 = por %p125, %p126
      %p128 = scmp.ne.s32.totalorder %s119, %s120
      %p129 = scmp.eq.s32.totalorder %s25, 0
      %p130 = por %p128, %p129
      %p131 = scmp.ne.s32.totalorder %s119, %s120
      %p132 = scmp.eq.s32.totalorder %s26, 1
      %p133 = por %p131, %p132
      %p135 = scmp.ne.s32.totalorder %s120, %s134
      %p136 = scmp.eq.s32.totalorder %s26, 0
      %p137 = por %p135, %p136
      %s139 = sadd.s32 %s138, 1
      %p142 = scmp.eq.s32.totalorder %s20, 1
      %p143 = scmp.ne.s32.totalorder %s138, %s140
      %p144 = scmp.eq.s32.totalorder %s20, 0
      %p145 = por %p143, %p144
      %p146 = scmp.ne.s32.totalorder %s138, %s140
      %p147 = scmp.eq.s32.totalorder %s25, 1
      %p148 = por %p146, %p147
      %p149 = scmp.ne.s32.totalorder %s140, %s141
      %p150 = scmp.eq.s32.totalorder %s25, 0
      %p151 = por %p149, %p150
      %p152 = scmp.ne.s32.totalorder %s140, %s141
      %p153 = scmp.eq.s32.totalorder %s26, 1
      %p154 = por %p152, %p153
      %p156 = scmp.ne.s32.totalorder %s141, %s155
      %p157 = scmp.eq.s32.totalorder %s26, 0
      %p158 = por %p156, %p157
      %s160 = sadd.s32 %s159, 1
      %p163 = scmp.eq.s32.totalorder %s20, 1
      %p164 = scmp.ne.s32.totalorder %s159, %s161
      %p165 = scmp.eq.s32.totalorder %s20, 0
      %p166 = por %p164, %p165
      %p167 = scmp.ne.s32.totalorder %s159, %s161
      %p168 = scmp.eq.s32.totalorder %s25, 1
      %p169 = por %p167, %p168
      %p170 = scmp.ne.s32.totalorder %s161, %s162
      %p171 = scmp.eq.s32.totalorder %s25, 0
      %p172 = por %p170, %p171
      %p173 = scmp.ne.s32.totalorder %s161, %s162
      %p174 = scmp.eq.s32.totalorder %s26, 1
      %p175 = por %p173, %p174
      %p177 = scmp.ne.s32.totalorder %s162, %s176
      %p178 = scmp.eq.s32.totalorder %s26, 0
      %p179 = por %p177, %p178
      %s181 = sadd.s32 %s180, 1
      %p184 = scmp.eq.s32.totalorder %s20, 1
      %p185 = scmp.ne.s32.totalorder %s180, %s182
      %p186 = scmp.eq.s32.totalorder %s20, 0
      %p187 = por %p185, %p186
      %p188 = scmp.ne.s32.totalorder %s180, %s182
      %p189 = scmp.eq.s32.totalorder %s25, 1
      %p190 = por %p188, %p189
      %p191 = scmp.ne.s32.totalorder %s182, %s183
      %p192 = scmp.eq.s32.totalorder %s25, 0
      %p193 = por %p191, %p192
      %p194 = scmp.ne.s32.totalorder %s182, %s183
      %p195 = scmp.eq.s32.totalorder %s26, 1
      %p196 = por %p194, %p195
      %p198 = scmp.ne.s32.totalorder %s183, %s197
      %p199 = scmp.eq.s32.totalorder %s26, 0
      %p200 = por %p198, %p199
      %s202 = sadd.s32 %s201, 1
      %p205 = scmp.eq.s32.totalorder %s20, 1
      %p206 = scmp.ne.s32.totalorder %s201, %s203
      %p207 = scmp.eq.s32.totalorder %s20, 0
      %p208 = por %p206, %p207
      %p209 = scmp.ne.s32.totalorder %s201, %s203
      %p210 = scmp.eq.s32.totalorder %s25, 1
      %p211 = por %p209, %p210
      %p212 = scmp.ne.s32.totalorder %s203, %s204
      %p213 = scmp.eq.s32.totalorder %s25, 0
      %p214 = por %p212, %p213
      %p215 = scmp.ne.s32.totalorder %s203, %s204
      %p216 = scmp.eq.s32.totalorder %s26, 1
      %p217 = por %p215, %p216
      %p219 = scmp.ne.s32.totalorder %s204, %s218
      %p220 = scmp.eq.s32.totalorder %s26, 0
      %p221 = por %p219, %p220
      %s222 = ssub.s32 %s20, %s27
      %p223 = scmp.eq.s32.totalorder %s222, 0
      %s225 = sadd.s32 %s224, 1
      %s226 = scalar_select %p223, %s224, %s225
      %p229 = pneg %p223
      %p230 = scmp.eq.s32.totalorder %s20, 1
      %p231 = por %p229, %p230
      %p232 = scmp.ne.s32.totalorder %s224, %s227
      %p233 = scmp.eq.s32.totalorder %s20, 0
      %p234 = por %p232, %p233
      %p235 = scmp.ne.s32.totalorder %s224, %s227
      %p236 = scmp.eq.s32.totalorder %s25, 1
      %p237 = por %p235, %p236
      %p238 = scmp.ne.s32.totalorder %s227, %s228
      %p239 = scmp.eq.s32.totalorder %s25, 0
      %p240 = por %p238, %p239
      %p241 = scmp.ne.s32.totalorder %s227, %s228
      %p242 = scmp.eq.s32.totalorder %s26, 1
      %p243 = por %p241, %p242
      %p245 = scmp.ne.s32.totalorder %s228, %s244
      %p246 = scmp.eq.s32.totalorder %s26, 0
      %p247 = por %p245, %p246
      %p248 = scmp.le.s32.totalorder 1, %s20
      %p249 = scmp.lt.s32.totalorder %s20, 3
      %p250 = pnand %p248, %p249
      %p251 = pneg %p250
      // Predicated region
      $region9: #{tpu_custom_call.1} parent=5 // pred_check
        _
      $region10: #{tpu_custom_call.1} parent=5 // pred_check_branch
        %253 = sbr.rel (%p250) target = $region12
      $region11: #{tpu_custom_call.1} parent=5 // pred_region
        %s254 = ssub.s32 %s20, 1
        // Predicated region
        $region13: #{tpu_custom_call.1} parent=11 // pred_check
          %p255 = pneg %p67
        $region14: #{tpu_custom_call.1} parent=11 // pred_check_branch
          %257 = sbr.rel (%p255) target = $region16
        $region15: #{tpu_custom_call.1} parent=11 // pred_region
          _
        $region16: #{tpu_custom_call.1} parent=11 // pred_fallthru
          _
        // Predicated region
        $region17: #{tpu_custom_call.1} parent=11 // pred_check
          %p258 = pneg %p88
        $region18: #{tpu_custom_call.1} parent=11 // pred_check_branch
          %260 = sbr.rel (%p258) target = $region20
        $region19: #{tpu_custom_call.1} parent=11 // pred_region
          _
        $region20: #{tpu_custom_call.1} parent=11 // pred_fallthru
          _
        // Predicated region
        $region21: #{tpu_custom_call.1} parent=11 // pred_check
          %p261 = pneg %p109
        $region22: #{tpu_custom_call.1} parent=11 // pred_check_branch
          %263 = sbr.rel (%p261) target = $region24
        $region23: #{tpu_custom_call.1} parent=11 // pred_region
          _
        $region24: #{tpu_custom_call.1} parent=11 // pred_fallthru
          _
        // Predicated region
        $region25: #{tpu_custom_call.1} parent=11 // pred_check
          %p264 = pneg %p130
        $region26: #{tpu_custom_call.1} parent=11 // pred_check_branch
          %266 = sbr.rel (%p264) target = $region28
        $region27: #{tpu_custom_call.1} parent=11 // pred_region
          _
        $region28: #{tpu_custom_call.1} parent=11 // pred_fallthru
          _
        // Predicated region
        $region29: #{tpu_custom_call.1} parent=11 // pred_check
          %p267 = pneg %p151
        $region30: #{tpu_custom_call.1} parent=11 // pred_check_branch
          %269 = sbr.rel (%p267) target = $region32
        $region31: #{tpu_custom_call.1} parent=11 // pred_region
          %s271 = ssub.s32 8192, 8192
          %272 = vsyncadd [#allocation4], %s271
          %s273 = sshll.u32 [#allocation3], 4
          %s274 = int_to_ptr.vmem [resolvable:$true] %s273
          %279 = dma.hbm_to_vmem [thread:$0]  %s5, 8192, %s274, [#allocation4], 256, 256, 16
        $region32: #{tpu_custom_call.1} parent=11 // pred_fallthru
          _
        // Predicated region
        $region33: #{tpu_custom_call.1} parent=11 // pred_check
          %p280 = pneg %p172
        $region34: #{tpu_custom_call.1} parent=11 // pred_check_branch
          %282 = sbr.rel (%p280) target = $region36
        $region35: #{tpu_custom_call.1} parent=11 // pred_region
          %s284 = ssub.s32 8192, 8192
          %285 = vsyncadd [#allocation7], %s284
          %s286 = sshll.u32 [#allocation6], 4
          %s287 = int_to_ptr.vmem [resolvable:$true] %s286
          %292 = dma.hbm_to_vmem [thread:$0]  %s6, 8192, %s287, [#allocation7], 256, 256, 16
        $region36: #{tpu_custom_call.1} parent=11 // pred_fallthru
          _
        // Predicated region
        $region37: #{tpu_custom_call.1} parent=11 // pred_check
          %p293 = pneg %p193
        $region38: #{tpu_custom_call.1} parent=11 // pred_check_branch
          %295 = sbr.rel (%p293) target = $region40
        $region39: #{tpu_custom_call.1} parent=11 // pred_region
          _
        $region40: #{tpu_custom_call.1} parent=11 // pred_fallthru
          _
        // Predicated region
        $region41: #{tpu_custom_call.1} parent=11 // pred_check
          %p296 = pneg %p214
        $region42: #{tpu_custom_call.1} parent=11 // pred_check_branch
          %298 = sbr.rel (%p296) target = $region44
        $region43: #{tpu_custom_call.1} parent=11 // pred_region
          _
        $region44: #{tpu_custom_call.1} parent=11 // pred_fallthru
          _
      $region12: #{tpu_custom_call.1} parent=5 // pred_fallthru
        _
      %p299 = scmp.lt.s32.totalorder %s20, 2
      // Predicated region
      $region45: #{tpu_custom_call.1} parent=5 // pred_check
        %p300 = pneg %p299
      $region46: #{tpu_custom_call.1} parent=5 // pred_check_branch
        %302 = sbr.rel (%p300) target = $region48
      $region47: #{tpu_custom_call.1} parent=5 // pred_region
        // Predicated region
        $region49: #{tpu_custom_call.1} parent=47 // pred_check
          %p303 = pneg %p40
        $region50: #{tpu_custom_call.1} parent=47 // pred_check_branch
          %305 = sbr.rel (%p303) target = $region52
        $region51: #{tpu_custom_call.1} parent=47 // pred_region
          %p306 = scmp.lt.s32.totalorder %s20, 1
          %s307 = scalar_select %p306, %s20, 1
          %s308 = smul.addr %s307, 4
          %s309 = smul.addr %s308, 8
          %s310 = scalar_lea.vmem %s0, %s309
        $region52: #{tpu_custom_call.1} parent=47 // pred_fallthru
          _
      $region48: #{tpu_custom_call.1} parent=5 // pred_fallthru
        _
      %p311 = scmp.le.s32.totalorder 1, %s20
      %p312 = scmp.lt.s32.totalorder %s20, 3
      %p313 = pnand %p311, %p312
      %p314 = pneg %p313
      // Predicated region
      $region53: #{tpu_custom_call.1} parent=5 // pred_check
        _
      $region54: #{tpu_custom_call.1} parent=5 // pred_check_branch
        %316 = sbr.rel (%p313) target = $region56
      $region55: #{tpu_custom_call.1} parent=5 // pred_region
        %s317 = ssub.s32 %s20, 1
        // Predicated region
        $region57: #{tpu_custom_call.1} parent=55 // pred_check
          %p318 = pneg %p151
        $region58: #{tpu_custom_call.1} parent=55 // pred_check_branch
          %320 = sbr.rel (%p318) target = $region60
        $region59: #{tpu_custom_call.1} parent=55 // pred_region
          %321 = dma.done [#allocation4], 8192
        $region60: #{tpu_custom_call.1} parent=55 // pred_fallthru
          _
        // Predicated region
        $region61: #{tpu_custom_call.1} parent=55 // pred_check
          %p322 = pneg %p172
        $region62: #{tpu_custom_call.1} parent=55 // pred_check_branch
          %324 = sbr.rel (%p322) target = $region64
        $region63: #{tpu_custom_call.1} parent=55 // pred_region
          %325 = dma.done [#allocation7], 8192
        $region64: #{tpu_custom_call.1} parent=55 // pred_fallthru
          _
        %p326 = scmp.lt.s32.totalorder %s25, 1
        %s327 = scalar_select %p326, %s25, 1
        %s328 = smul.addr %s327, 4
        %s329 = smul.addr %s328, 8
        %s330 = scalar_lea.vmem %s0, %s329
        %p331 = pneg %p46
        %p332 = pneg %p43
        %p333 = pneg %p67
        %p334 = pneg %p64
        %p335 = pneg %p88
        %p336 = pneg %p85
        %p337 = pneg %p109
        %p338 = pneg %p106
        %p339 = pneg %p130
        %p340 = pneg %p127
        %p341 = pneg %p151
        %p342 = pneg %p148
        %p343 = pneg %p172
        %p344 = pneg %p169
        %p345 = pneg %p193
        %p346 = pneg %p190
        %p347 = pneg %p214
        %p348 = pneg %p211
        %p349 = pneg %p240
        %p350 = pneg %p237
        %s351 = sand.u32 %s227, 1
        %s352 = scalar_lea.sflag [#allocation5], %s351
        %s353 = sand.u32 %s227, 1
        %s354 = smul.addr %s353, 32
        %s355 = scalar_lea.vmem [#allocation8], %s354
        %p356 = scmp.lt.s32.totalorder %s25, 1
        %s357 = scalar_select %p356, %s25, 1
        %s358 = smul.addr %s357, 4
        %s359 = smul.addr %s358, 8
        %s360 = scalar_lea.vmem %s0, %s359
        %v361 = vlaneseq
        %vm362 = vcmp.ge.s32.totalorder %v361, 0
        %vm363 = vcmp.lt.s32.totalorder %v361, 256
        %vm364 = vmand %vm362, %vm363
        %365 = vst.msk [vmem:[#allocation2] ss:$8 sm:$0x3] %vm364, 0.0
        %366 = vst.msk [vmem:[#allocation2] ss:$8 sm:$0x0] %vm364, 0.0
        %s367 = scalar_lea.vmem [#allocation2], 32
        %368 = vst.msk [vmem:[%s367] ss:$8 sm:$0x3] %vm364, 0.0
        %369 = vst.msk [vmem:[%s367] ss:$8 sm:$0x0] %vm364, 0.0
        %s370 = scalar_lea.vmem [#allocation2], 64
        %371 = vst.msk [vmem:[%s370] ss:$8 sm:$0x3] %vm364, 0.0
        %372 = vst.msk [vmem:[%s370] ss:$8 sm:$0x0] %vm364, 0.0
        %s373 = scalar_lea.vmem [#allocation2], 96
        %374 = vst.msk [vmem:[%s373] ss:$8 sm:$0x3] %vm364, 0.0
        %375 = vst.msk [vmem:[%s373] ss:$8 sm:$0x0] %vm364, 0.0
        %s376 = scalar_lea.vmem [#allocation2], 17
        %377 = vst.msk [vmem:[%s376] ss:$8 sm:$0x3] %vm364, 0.0
        %378 = vst.msk [vmem:[%s376] ss:$8 sm:$0x0] %vm364, 0.0
        %s379 = scalar_lea.vmem [#allocation2], 49
        %380 = vst.msk [vmem:[%s379] ss:$8 sm:$0x3] %vm364, 0.0
        %381 = vst.msk [vmem:[%s379] ss:$8 sm:$0x0] %vm364, 0.0
        %s382 = scalar_lea.vmem [#allocation2], 81
        %383 = vst.msk [vmem:[%s382] ss:$8 sm:$0x3] %vm364, 0.0
        %384 = vst.msk [vmem:[%s382] ss:$8 sm:$0x0] %vm364, 0.0
        %s385 = scalar_lea.vmem [#allocation2], 113
        %386 = vst.msk [vmem:[%s385] ss:$8 sm:$0x3] %vm364, 0.0
        %387 = vst.msk [vmem:[%s385] ss:$8 sm:$0x0] %vm364, 0.0
        %v388 = vld [vmem:[%s360] sm:$0xff]
        %v389 = vld [vmem:[%s360 + $0x8] sm:$0xff]
        %v390 = vld [vmem:[%s360 + $0x10] sm:$0xff]
        %v391 = vld [vmem:[%s360 + $0x18] sm:$0xff]
        %v392 = vld [vmem:[%s1] sm:$0xff]
        %v393 = vld [vmem:[%s1 + $0x8] sm:$0xff]
        %v394 = vld [vmem:[%s1 + $0x10] sm:$0xff]
        %v395 = vld [vmem:[%s1 + $0x18] sm:$0xff]
        %v396 = vld [vmem:[%s1 + $0x20] sm:$0xff]
        %v397 = vld [vmem:[%s1 + $0x28] sm:$0xff]
        %v398 = vld [vmem:[%s1 + $0x30] sm:$0xff]
        %v399 = vld [vmem:[%s1 + $0x38] sm:$0xff]
        %v400 = vld [vmem:[%s1 + $0x40] sm:$0xff]
        %v401 = vld [vmem:[%s1 + $0x48] sm:$0xff]
        %v402 = vld [vmem:[%s1 + $0x50] sm:$0xff]
        %v403 = vld [vmem:[%s1 + $0x58] sm:$0xff]
        %v404 = vld [vmem:[%s1 + $0x60] sm:$0xff]
        %v405 = vld [vmem:[%s1 + $0x68] sm:$0xff]
        %v406 = vld [vmem:[%s1 + $0x70] sm:$0xff]
        %v407 = vld [vmem:[%s1 + $0x78] sm:$0xff]
        %v408 = vld [vmem:[%s2] sm:$0x3]
        %v410 = vlaneseq
        %v411 = vshrl.u32 %v410, 7
        %v412 = vsub.s32 0, %v411
        %v413 = vrot.slane %v408, %v412
        %v414 = vlaneseq
        %v415 = vshrl.u32 %v414, 7
        %v416 = vsub.s32 1, %v415
        %v417 = vrot.slane %v408, %v416
        %vm420 = vcmask 523264
        %v422 = vsel %vm420, %v388, 0
        %v425 = vsel %vm420, %v389, 0
        %v428 = vsel %vm420, %v390, 0
        %v431 = vsel %vm420, %v391, 0
        %v433 = vand.u32 %v393, 4294901760
        %434 = vmatprep.subr.mxu0 %v433
        %v435 = vand.u32 %v392, 4294901760
        %436 = vmatpush1.msra.mxu0 %v435
        %v437 = vand.u32 %v395, 4294901760
        %438 = vmatprep.subr.mxu0 %v437
        %v439 = vand.u32 %v394, 4294901760
        %440 = vmatpush1.msra.mxu0 %v439
        %v441 = vand.u32 %v397, 4294901760
        %442 = vmatprep.subr.mxu0 %v441
        %v443 = vand.u32 %v396, 4294901760
        %444 = vmatpush1.msra.mxu0 %v443
        %v445 = vand.u32 %v399, 4294901760
        %446 = vmatprep.subr.mxu0 %v445
        %v447 = vand.u32 %v398, 4294901760
        %448 = vmatpush1.msra.mxu0 %v447
        %v449 = vand.u32 %v401, 4294901760
        %450 = vmatprep.subr.mxu0 %v449
        %v451 = vand.u32 %v400, 4294901760
        %452 = vmatpush1.msra.mxu0 %v451
        %v453 = vand.u32 %v403, 4294901760
        %454 = vmatprep.subr.mxu0 %v453
        %v455 = vand.u32 %v402, 4294901760
        %456 = vmatpush1.msra.mxu0 %v455
        %v457 = vand.u32 %v405, 4294901760
        %458 = vmatprep.subr.mxu0 %v457
        %v459 = vand.u32 %v404, 4294901760
        %460 = vmatpush1.msra.mxu0 %v459
        %v461 = vand.u32 %v407, 4294901760
        %462 = vmatprep.subr.mxu0 %v461
        %v463 = vand.u32 %v406, 4294901760
        %464 = vmatpush1.msra.mxu0 %v463
        %465 = vmatprep.subr.mxu0 0.0
        %466 = vmatpush1.msra.mxu0 0.0
        %467 = vmatprep.subr.mxu0 0.0
        %468 = vmatpush1.msra.mxu0 0.0
        %469 = vmatprep.subr.mxu0 0.0
        %470 = vmatpush1.msra.mxu0 0.0
        %471 = vmatprep.subr.mxu0 0.0
        %472 = vmatpush1.msra.mxu0 0.0
        %473 = vmatprep.subr.mxu0 0.0
        %474 = vmatpush1.msra.mxu0 0.0
        %475 = vmatprep.subr.mxu0 0.0
        %476 = vmatpush1.msra.mxu0 0.0
        %477 = vmatprep.subr.mxu0 0.0
        %478 = vmatpush1.msra.mxu0 0.0
        %479 = vmatprep.subr.mxu0 0.0
        %480 = vmatpush1.msra.mxu0 0.0
        %481 = vmatprep.subr.mxu0 0.0
        %482 = vmatpush1.msra.mxu0 0.0
        %483 = vmatprep.subr.mxu0 0.0
        %484 = vmatpush1.msra.mxu0 0.0
        %485 = vmatprep.subr.mxu0 0.0
        %486 = vmatpush1.msra.mxu0 0.0
        %487 = vmatprep.subr.mxu0 0.0
        %488 = vmatpush1.msra.mxu0 0.0
        %489 = vmatprep.subr.mxu0 0.0
        %490 = vmatpush1.msra.mxu0 0.0
        %491 = vmatprep.subr.mxu0 0.0
        %492 = vmatpush1.msra.mxu0 0.0
        %493 = vmatprep.subr.mxu0 0.0
        %494 = vmatpush1.msra.mxu0 0.0
        %495 = vmatprep.subr.mxu0 0.0
        %496 = vmatpush1.msra.mxu0 0.0
        %497 = vmatprep.subr.mxu0 0.0
        %498 = vmatpush1.msra.mxu0 0.0
        %499 = vmatprep.subr.mxu0 0.0
        %500 = vmatpush1.msra.mxu0 0.0
        %501 = vmatprep.subr.mxu0 0.0
        %502 = vmatpush1.msra.mxu0 0.0
        %503 = vmatprep.subr.mxu0 0.0
        %504 = vmatpush1.msra.mxu0 0.0
        %505 = vmatprep.subr.mxu0 0.0
        %506 = vmatpush1.msra.mxu0 0.0
        %507 = vmatprep.subr.mxu0 0.0
        %508 = vmatpush1.msra.mxu0 0.0
        %509 = vmatprep.subr.mxu0 0.0
        %510 = vmatpush1.msra.mxu0 0.0
        %511 = vmatprep.subr.mxu0 0.0
        %512 = vmatpush1.msra.mxu0 0.0
        %513 = vmatprep.mubr.f32.mxu0 0.0
        %v514 = vand.u32 %v422, 4294901760
        %v515 = vsub.f32 %v422, %v514
        %v516 = vand.u32 %v515, 4294901760
        %v517 = vsub.f32 %v515, %v516
        %v518 = vand.u32 %v517, 4294901760
        %519 = vmatmul.mubr.f32.gmra.mrb[0].mxu0 %v518
        %v520 = vpop.f32.mrb[0].mxu0
        %v521 = vadd.f32 %v413, %v520
        %v522 = vpop.f32.mrb[0].mxu0
        %v523 = vadd.f32 %v417, %v522
        %524 = vmatprep.mubr.f32.mxu0 0.0
        %v525 = vand.u32 %v425, 4294901760
        %v526 = vsub.f32 %v425, %v525
        %v527 = vand.u32 %v526, 4294901760
        %v528 = vsub.f32 %v526, %v527
        %v529 = vand.u32 %v528, 4294901760
        %530 = vmatmul.mubr.f32.gmra.mrb[0].mxu0 %v529
        %v531 = vpop.f32.mrb[0].mxu0
        %v532 = vadd.f32 %v413, %v531
        %v533 = vpop.f32.mrb[0].mxu0
        %v534 = vadd.f32 %v417, %v533
        %535 = vmatprep.mubr.f32.mxu0 0.0
        %v536 = vand.u32 %v428, 4294901760
        %v537 = vsub.f32 %v428, %v536
        %v538 = vand.u32 %v537, 4294901760
        %v539 = vsub.f32 %v537, %v538
        %v540 = vand.u32 %v539, 4294901760
        %541 = vmatmul.mubr.f32.gmra.mrb[0].mxu0 %v540
        %v542 = vpop.f32.mrb[0].mxu0
        %v543 = vadd.f32 %v413, %v542
        %v544 = vpop.f32.mrb[0].mxu0
        %v545 = vadd.f32 %v417, %v544
        %546 = vmatprep.mubr.f32.mxu0 0.0
        %v547 = vand.u32 %v431, 4294901760
        %v548 = vsub.f32 %v431, %v547
        %v549 = vand.u32 %v548, 4294901760
        %v550 = vsub.f32 %v548, %v549
        %v551 = vand.u32 %v550, 4294901760
        %552 = vmatmul.mubr.f32.gmra.mrb[0].mxu0 %v551
        %v553 = vpop.f32.mrb[0].mxu0
        %v554 = vadd.f32 %v413, %v553
        %v555 = vpop.f32.mrb[0].mxu0
        %v556 = vadd.f32 %v417, %v555
        %557 = vdwg.mxu0
        %v558 = vand.u32 %v393, 4294901760
        %v559 = vsub.f32 %v393, %v558
        %v560 = vand.u32 %v559, 4294901760
        %v561 = vsub.f32 %v559, %v560
        %v562 = vand.u32 %v561, 4294901760
        %563 = vmatprep.subr.mxu0 %v562
        %v564 = vand.u32 %v392, 4294901760
        %v565 = vsub.f32 %v392, %v564
        %v566 = vand.u32 %v565, 4294901760
        %v567 = vsub.f32 %v565, %v566
        %v568 = vand.u32 %v567, 4294901760
        %569 = vmatpush1.msra.mxu0 %v568
        %v570 = vand.u32 %v395, 4294901760
        %v571 = vsub.f32 %v395, %v570
        %v572 = vand.u32 %v571, 4294901760
        %v573 = vsub.f32 %v571, %v572
        %v574 = vand.u32 %v573, 4294901760
        %575 = vmatprep.subr.mxu0 %v574
        %v576 = vand.u32 %v394, 4294901760
        %v577 = vsub.f32 %v394, %v576
        %v578 = vand.u32 %v577, 4294901760
        %v579 = vsub.f32 %v577, %v578
        %v580 = vand.u32 %v579, 4294901760
        %581 = vmatpush1.msra.mxu0 %v580
        %v582 = vand.u32 %v397, 4294901760
        %v583 = vsub.f32 %v397, %v582
        %v584 = vand.u32 %v583, 4294901760
        %v585 = vsub.f32 %v583, %v584
        %v586 = vand.u32 %v585, 4294901760
        %587 = vmatprep.subr.mxu0 %v586
        %v588 = vand.u32 %v396, 4294901760
        %v589 = vsub.f32 %v396, %v588
        %v590 = vand.u32 %v589, 4294901760
        %v591 = vsub.f32 %v589, %v590
        %v592 = vand.u32 %v591, 4294901760
        %593 = vmatpush1.msra.mxu0 %v592
        %v594 = vand.u32 %v399, 4294901760
        %v595 = vsub.f32 %v399, %v594
        %v596 = vand.u32 %v595, 4294901760
        %v597 = vsub.f32 %v595, %v596
        %v598 = vand.u32 %v597, 4294901760
        %599 = vmatprep.subr.mxu0 %v598
        %v600 = vand.u32 %v398, 4294901760
        %v601 = vsub.f32 %v398, %v600
        %v602 = vand.u32 %v601, 4294901760
        %v603 = vsub.f32 %v601, %v602
        %v604 = vand.u32 %v603, 4294901760
        %605 = vmatpush1.msra.mxu0 %v604
        %v606 = vand.u32 %v401, 4294901760
        %v607 = vsub.f32 %v401, %v606
        %v608 = vand.u32 %v607, 4294901760
        %v609 = vsub.f32 %v607, %v608
        %v610 = vand.u32 %v609, 4294901760
        %611 = vmatprep.subr.mxu0 %v610
        %v612 = vand.u32 %v400, 4294901760
        %v613 = vsub.f32 %v400, %v612
        %v614 = vand.u32 %v613, 4294901760
        %v615 = vsub.f32 %v613, %v614
        %v616 = vand.u32 %v615, 4294901760
        %617 = vmatpush1.msra.mxu0 %v616
        %v618 = vand.u32 %v403, 4294901760
        %v619 = vsub.f32 %v403, %v618
        %v620 = vand.u32 %v619, 4294901760
        %v621 = vsub.f32 %v619, %v620
        %v622 = vand.u32 %v621, 4294901760
        %623 = vmatprep.subr.mxu0 %v622
        %v624 = vand.u32 %v402, 4294901760
        %v625 = vsub.f32 %v402, %v624
        %v626 = vand.u32 %v625, 4294901760
        %v627 = vsub.f32 %v625, %v626
        %v628 = vand.u32 %v627, 4294901760
        %629 = vmatpush1.msra.mxu0 %v628
        %v630 = vand.u32 %v405, 4294901760
        %v631 = vsub.f32 %v405, %v630
        %v632 = vand.u32 %v631, 4294901760
        %v633 = vsub.f32 %v631, %v632
        %v634 = vand.u32 %v633, 4294901760
        %635 = vmatprep.subr.mxu0 %v634
        %v636 = vand.u32 %v404, 4294901760
        %v637 = vsub.f32 %v404, %v636
        %v638 = vand.u32 %v637, 4294901760
        %v639 = vsub.f32 %v637, %v638
        %v640 = vand.u32 %v639, 4294901760
        %641 = vmatpush1.msra.mxu0 %v640
        %v642 = vand.u32 %v407, 4294901760
        %v643 = vsub.f32 %v407, %v642
        %v644 = vand.u32 %v643, 4294901760
        %v645 = vsub.f32 %v643, %v644
        %v646 = vand.u32 %v645, 4294901760
        %647 = vmatprep.subr.mxu0 %v646
        %v648 = vand.u32 %v406, 4294901760
        %v649 = vsub.f32 %v406, %v648
        %v650 = vand.u32 %v649, 4294901760
        %v651 = vsub.f32 %v649, %v650
        %v652 = vand.u32 %v651, 4294901760
        %653 = vmatpush1.msra.mxu0 %v652
        %654 = vmatprep.subr.mxu0 0.0
        %655 = vmatpush1.msra.mxu0 0.0
        %656 = vmatprep.subr.mxu0 0.0
        %657 = vmatpush1.msra.mxu0 0.0
        %658 = vmatprep.subr.mxu0 0.0
        %659 = vmatpush1.msra.mxu0 0.0
        %660 = vmatprep.subr.mxu0 0.0
        %661 = vmatpush1.msra.mxu0 0.0
        %662 = vmatprep.subr.mxu0 0.0
        %663 = vmatpush1.msra.mxu0 0.0
        %664 = vmatprep.subr.mxu0 0.0
        %665 = vmatpush1.msra.mxu0 0.0
        %666 = vmatprep.subr.mxu0 0.0
        %667 = vmatpush1.msra.mxu0 0.0
        %668 = vmatprep.subr.mxu0 0.0
        %669 = vmatpush1.msra.mxu0 0.0
        %670 = vmatprep.subr.mxu0 0.0
        %671 = vmatpush1.msra.mxu0 0.0
        %672 = vmatprep.subr.mxu0 0.0
        %673 = vmatpush1.msra.mxu0 0.0
        %674 = vmatprep.subr.mxu0 0.0
        %675 = vmatpush1.msra.mxu0 0.0
        %676 = vmatprep.subr.mxu0 0.0
        %677 = vmatpush1.msra.mxu0 0.0
        %678 = vmatprep.subr.mxu0 0.0
        %679 = vmatpush1.msra.mxu0 0.0
        %680 = vmatprep.subr.mxu0 0.0
        %681 = vmatpush1.msra.mxu0 0.0
        %682 = vmatprep.subr.mxu0 0.0
        %683 = vmatpush1.msra.mxu0 0.0
        %684 = vmatprep.subr.mxu0 0.0
        %685 = vmatpush1.msra.mxu0 0.0
        %686 = vmatprep.subr.mxu0 0.0
        %687 = vmatpush1.msra.mxu0 0.0
        %688 = vmatprep.subr.mxu0 0.0
        %689 = vmatpush1.msra.mxu0 0.0
        %690 = vmatprep.subr.mxu0 0.0
        %691 = vmatpush1.msra.mxu0 0.0
        %692 = vmatprep.subr.mxu0 0.0
        %693 = vmatpush1.msra.mxu0 0.0
        %694 = vmatprep.subr.mxu0 0.0
        %695 = vmatpush1.msra.mxu0 0.0
        %696 = vmatprep.subr.mxu0 0.0
        %697 = vmatpush1.msra.mxu0 0.0
        %698 = vmatprep.subr.mxu0 0.0
        %699 = vmatpush1.msra.mxu0 0.0
        %700 = vmatprep.subr.mxu0 0.0
        %701 = vmatpush1.msra.mxu0 0.0
        %702 = vmatprep.mubr.f32.mxu0 0.0
        %v703 = vand.u32 %v422, 4294901760
        %704 = vmatmul.mubr.f32.gmra.mrb[0].mxu0 %v703
        %v705 = vpop.f32.mrb[0].mxu0
        %v706 = vadd.f32 %v521, %v705
        %v707 = vpop.f32.mrb[0].mxu0
        %v708 = vadd.f32 %v523, %v707
        %709 = vmatprep.mubr.f32.mxu0 0.0
        %v710 = vand.u32 %v425, 4294901760
        %711 = vmatmul.mubr.f32.gmra.mrb[0].mxu0 %v710
        %v712 = vpop.f32.mrb[0].mxu0
        %v713 = vadd.f32 %v532, %v712
        %v714 = vpop.f32.mrb[0].mxu0
        %v715 = vadd.f32 %v534, %v714
        %716 = vmatprep.mubr.f32.mxu0 0.0
        %v717 = vand.u32 %v428, 4294901760
        %718 = vmatmul.mubr.f32.gmra.mrb[0].mxu0 %v717
        %v719 = vpop.f32.mrb[0].mxu0
        %v720 = vadd.f32 %v543, %v719
        %v721 = vpop.f32.mrb[0].mxu0
        %v722 = vadd.f32 %v545, %v721
        %723 = vmatprep.mubr.f32.mxu0 0.0
        %v724 = vand.u32 %v431, 4294901760
        %725 = vmatmul.mubr.f32.gmra.mrb[0].mxu0 %v724
        %v726 = vpop.f32.mrb[0].mxu0
        %v727 = vadd.f32 %v554, %v726
        %v728 = vpop.f32.mrb[0].mxu0
        %v729 = vadd.f32 %v556, %v728
        %730 = vdwg.mxu0
        %v731 = vand.u32 %v393, 4294901760
        %v732 = vsub.f32 %v393, %v731
        %733 = vmatprep.subr.mxu0 %v732
        %v734 = vand.u32 %v392, 4294901760
        %v735 = vsub.f32 %v392, %v734
        %736 = vmatpush1.msra.mxu0 %v735
        %v737 = vand.u32 %v395, 4294901760
        %v738 = vsub.f32 %v395, %v737
        %739 = vmatprep.subr.mxu0 %v738
        %v740 = vand.u32 %v394, 4294901760
        %v741 = vsub.f32 %v394, %v740
        %742 = vmatpush1.msra.mxu0 %v741
        %v743 = vand.u32 %v397, 4294901760
        %v744 = vsub.f32 %v397, %v743
        %745 = vmatprep.subr.mxu0 %v744
        %v746 = vand.u32 %v396, 4294901760
        %v747 = vsub.f32 %v396, %v746
        %748 = vmatpush1.msra.mxu0 %v747
        %v749 = vand.u32 %v399, 4294901760
        %v750 = vsub.f32 %v399, %v749
        %751 = vmatprep.subr.mxu0 %v750
        %v752 = vand.u32 %v398, 4294901760
        %v753 = vsub.f32 %v398, %v752
        %754 = vmatpush1.msra.mxu0 %v753
        %v755 = vand.u32 %v401, 4294901760
        %v756 = vsub.f32 %v401, %v755
        %757 = vmatprep.subr.mxu0 %v756
        %v758 = vand.u32 %v400, 4294901760
        %v759 = vsub.f32 %v400, %v758
        %760 = vmatpush1.msra.mxu0 %v759
        %v761 = vand.u32 %v403, 4294901760
        %v762 = vsub.f32 %v403, %v761
        %763 = vmatprep.subr.mxu0 %v762
        %v764 = vand.u32 %v402, 4294901760
        %v765 = vsub.f32 %v402, %v764
        %766 = vmatpush1.msra.mxu0 %v765
        %v767 = vand.u32 %v405, 4294901760
        %v768 = vsub.f32 %v405, %v767
        %769 = vmatprep.subr.mxu0 %v768
        %v770 = vand.u32 %v404, 4294901760
        %v771 = vsub.f32 %v404, %v770
        %772 = vmatpush1.msra.mxu0 %v771
        %v773 = vand.u32 %v407, 4294901760
        %v774 = vsub.f32 %v407, %v773
        %775 = vmatprep.subr.mxu0 %v774
        %v776 = vand.u32 %v406, 4294901760
        %v777 = vsub.f32 %v406, %v776
        %778 = vmatpush1.msra.mxu0 %v777
        %779 = vmatprep.subr.mxu0 0.0
        %780 = vmatpush1.msra.mxu0 0.0
        %781 = vmatprep.subr.mxu0 0.0
        %782 = vmatpush1.msra.mxu0 0.0
        %783 = vmatprep.subr.mxu0 0.0
        %784 = vmatpush1.msra.mxu0 0.0
        %785 = vmatprep.subr.mxu0 0.0
        %786 = vmatpush1.msra.mxu0 0.0
        %787 = vmatprep.subr.mxu0 0.0
        %788 = vmatpush1.msra.mxu0 0.0
        %789 = vmatprep.subr.mxu0 0.0
        %790 = vmatpush1.msra.mxu0 0.0
        %791 = vmatprep.subr.mxu0 0.0
        %792 = vmatpush1.msra.mxu0 0.0
        %793 = vmatprep.subr.mxu0 0.0
        %794 = vmatpush1.msra.mxu0 0.0
        %795 = vmatprep.subr.mxu0 0.0
        %796 = vmatpush1.msra.mxu0 0.0
        %797 = vmatprep.subr.mxu0 0.0
        %798 = vmatpush1.msra.mxu0 0.0
        %799 = vmatprep.subr.mxu0 0.0
        %800 = vmatpush1.msra.mxu0 0.0
        %801 = vmatprep.subr.mxu0 0.0
        %802 = vmatpush1.msra.mxu0 0.0
        %803 = vmatprep.subr.mxu0 0.0
        %804 = vmatpush1.msra.mxu0 0.0
        %805 = vmatprep.subr.mxu0 0.0
        %806 = vmatpush1.msra.mxu0 0.0
        %807 = vmatprep.subr.mxu0 0.0
        %808 = vmatpush1.msra.mxu0 0.0
        %809 = vmatprep.subr.mxu0 0.0
        %810 = vmatpush1.msra.mxu0 0.0
        %811 = vmatprep.subr.mxu0 0.0
        %812 = vmatpush1.msra.mxu0 0.0
        %813 = vmatprep.subr.mxu0 0.0
        %814 = vmatpush1.msra.mxu0 0.0
        %815 = vmatprep.subr.mxu0 0.0
        %816 = vmatpush1.msra.mxu0 0.0
        %817 = vmatprep.subr.mxu0 0.0
        %818 = vmatpush1.msra.mxu0 0.0
        %819 = vmatprep.subr.mxu0 0.0
        %820 = vmatpush1.msra.mxu0 0.0
        %821 = vmatprep.subr.mxu0 0.0
        %822 = vmatpush1.msra.mxu0 0.0
        %823 = vmatprep.subr.mxu0 0.0
        %824 = vmatpush1.msra.mxu0 0.0
        %825 = vmatprep.subr.mxu0 0.0
        %826 = vmatpush1.msra.mxu0 0.0
        %827 = vmatprep.mubr.f32.mxu0 0.0
        %v828 = vand.u32 %v422, 4294901760
        %v829 = vsub.f32 %v422, %v828
        %830 = vmatmul.mubr.f32.gmra.mrb[0].mxu0 %v829
        %v831 = vpop.f32.mrb[0].mxu0
        %v832 = vadd.f32 %v706, %v831
        %v833 = vpop.f32.mrb[0].mxu0
        %v834 = vadd.f32 %v708, %v833
        %835 = vmatprep.mubr.f32.mxu0 0.0
        %v836 = vand.u32 %v425, 4294901760
        %v837 = vsub.f32 %v425, %v836
        %838 = vmatmul.mubr.f32.gmra.mrb[0].mxu0 %v837
        %v839 = vpop.f32.mrb[0].mxu0
        %v840 = vadd.f32 %v713, %v839
        %v841 = vpop.f32.mrb[0].mxu0
        %v842 = vadd.f32 %v715, %v841
        %843 = vmatprep.mubr.f32.mxu0 0.0
        %v844 = vand.u32 %v428, 4294901760
        %v845 = vsub.f32 %v428, %v844
        %846 = vmatmul.mubr.f32.gmra.mrb[0].mxu0 %v845
        %v847 = vpop.f32.mrb[0].mxu0
        %v848 = vadd.f32 %v720, %v847
        %v849 = vpop.f32.mrb[0].mxu0
        %v850 = vadd.f32 %v722, %v849
        %851 = vmatprep.mubr.f32.mxu0 0.0
        %v852 = vand.u32 %v431, 4294901760
        %v853 = vsub.f32 %v431, %v852
        %854 = vmatmul.mubr.f32.gmra.mrb[0].mxu0 %v853
        %v855 = vpop.f32.mrb[0].mxu0
        %v856 = vadd.f32 %v727, %v855
        %v857 = vpop.f32.mrb[0].mxu0
        %v858 = vadd.f32 %v729, %v857
        %859 = vdwg.mxu0
        %v860 = vand.u32 %v393, 4294901760
        %861 = vmatprep.subr.mxu0 %v860
        %v862 = vand.u32 %v392, 4294901760
        %863 = vmatpush1.msra.mxu0 %v862
        %v864 = vand.u32 %v395, 4294901760
        %865 = vmatprep.subr.mxu0 %v864
        %v866 = vand.u32 %v394, 4294901760
        %867 = vmatpush1.msra.mxu0 %v866
        %v868 = vand.u32 %v397, 4294901760
        %869 = vmatprep.subr.mxu0 %v868
        %v870 = vand.u32 %v396, 4294901760
        %871 = vmatpush1.msra.mxu0 %v870
        %v872 = vand.u32 %v399, 4294901760
        %873 = vmatprep.subr.mxu0 %v872
        %v874 = vand.u32 %v398, 4294901760
        %875 = vmatpush1.msra.mxu0 %v874
        %v876 = vand.u32 %v401, 4294901760
        %877 = vmatprep.subr.mxu0 %v876
        %v878 = vand.u32 %v400, 4294901760
        %879 = vmatpush1.msra.mxu0 %v878
        %v880 = vand.u32 %v403, 4294901760
        %881 = vmatprep.subr.mxu0 %v880
        %v882 = vand.u32 %v402, 4294901760
        %883 = vmatpush1.msra.mxu0 %v882
        %v884 = vand.u32 %v405, 4294901760
        %885 = vmatprep.subr.mxu0 %v884
        %v886 = vand.u32 %v404, 4294901760
        %887 = vmatpush1.msra.mxu0 %v886
        %v888 = vand.u32 %v407, 4294901760
        %889 = vmatprep.subr.mxu0 %v888
        %v890 = vand.u32 %v406, 4294901760
        %891 = vmatpush1.msra.mxu0 %v890
        %892 = vmatprep.subr.mxu0 0.0
        %893 = vmatpush1.msra.mxu0 0.0
        %894 = vmatprep.subr.mxu0 0.0
        %895 = vmatpush1.msra.mxu0 0.0
        %896 = vmatprep.subr.mxu0 0.0
        %897 = vmatpush1.msra.mxu0 0.0
        %898 = vmatprep.subr.mxu0 0.0
        %899 = vmatpush1.msra.mxu0 0.0
        %900 = vmatprep.subr.mxu0 0.0
        %901 = vmatpush1.msra.mxu0 0.0
        %902 = vmatprep.subr.mxu0 0.0
        %903 = vmatpush1.msra.mxu0 0.0
        %904 = vmatprep.subr.mxu0 0.0
        %905 = vmatpush1.msra.mxu0 0.0
        %906 = vmatprep.subr.mxu0 0.0
        %907 = vmatpush1.msra.mxu0 0.0
        %908 = vmatprep.subr.mxu0 0.0
        %909 = vmatpush1.msra.mxu0 0.0
        %910 = vmatprep.subr.mxu0 0.0
        %911 = vmatpush1.msra.mxu0 0.0
        %912 = vmatprep.subr.mxu0 0.0
        %913 = vmatpush1.msra.mxu0 0.0
        %914 = vmatprep.subr.mxu0 0.0
        %915 = vmatpush1.msra.mxu0 0.0
        %916 = vmatprep.subr.mxu0 0.0
        %917 = vmatpush1.msra.mxu0 0.0
        %918 = vmatprep.subr.mxu0 0.0
        %919 = vmatpush1.msra.mxu0 0.0
        %920 = vmatprep.subr.mxu0 0.0
        %921 = vmatpush1.msra.mxu0 0.0
        %922 = vmatprep.subr.mxu0 0.0
        %923 = vmatpush1.msra.mxu0 0.0
        %924 = vmatprep.subr.mxu0 0.0
        %925 = vmatpush1.msra.mxu0 0.0
        %926 = vmatprep.subr.mxu0 0.0
        %927 = vmatpush1.msra.mxu0 0.0
        %928 = vmatprep.subr.mxu0 0.0
        %929 = vmatpush1.msra.mxu0 0.0
        %930 = vmatprep.subr.mxu0 0.0
        %931 = vmatpush1.msra.mxu0 0.0
        %932 = vmatprep.subr.mxu0 0.0
        %933 = vmatpush1.msra.mxu0 0.0
        %934 = vmatprep.subr.mxu0 0.0
        %935 = vmatpush1.msra.mxu0 0.0
        %936 = vmatprep.subr.mxu0 0.0
        %937 = vmatpush1.msra.mxu0 0.0
        %938 = vmatprep.subr.mxu0 0.0
        %939 = vmatpush1.msra.mxu0 0.0
        %940 = vmatprep.mubr.f32.mxu0 0.0
        %v941 = vand.u32 %v422, 4294901760
        %v942 = vsub.f32 %v422, %v941
        %v943 = vand.u32 %v942, 4294901760
        %944 = vmatmul.mubr.f32.gmra.mrb[0].mxu0 %v943
        %v945 = vpop.f32.mrb[0].mxu0
        %v946 = vadd.f32 %v832, %v945
        %v947 = vpop.f32.mrb[0].mxu0
        %v948 = vadd.f32 %v834, %v947
        %949 = vmatprep.mubr.f32.mxu0 0.0
        %v950 = vand.u32 %v425, 4294901760
        %v951 = vsub.f32 %v425, %v950
        %v952 = vand.u32 %v951, 4294901760
        %953 = vmatmul.mubr.f32.gmra.mrb[0].mxu0 %v952
        %v954 = vpop.f32.mrb[0].mxu0
        %v955 = vadd.f32 %v840, %v954
        %v956 = vpop.f32.mrb[0].mxu0
        %v957 = vadd.f32 %v842, %v956
        %958 = vmatprep.mubr.f32.mxu0 0.0
        %v959 = vand.u32 %v428, 4294901760
        %v960 = vsub.f32 %v428, %v959
        %v961 = vand.u32 %v960, 4294901760
        %962 = vmatmul.mubr.f32.gmra.mrb[0].mxu0 %v961
        %v963 = vpop.f32.mrb[0].mxu0
        %v964 = vadd.f32 %v848, %v963
        %v965 = vpop.f32.mrb[0].mxu0
        %v966 = vadd.f32 %v850, %v965
        %967 = vmatprep.mubr.f32.mxu0 0.0
        %v968 = vand.u32 %v431, 4294901760
        %v969 = vsub.f32 %v431, %v968
        %v970 = vand.u32 %v969, 4294901760
        %971 = vmatmul.mubr.f32.gmra.mrb[0].mxu0 %v970
        %v972 = vpop.f32.mrb[0].mxu0
        %v973 = vadd.f32 %v856, %v972
        %v974 = vpop.f32.mrb[0].mxu0
        %v975 = vadd.f32 %v858, %v974
        %976 = vdwg.mxu0
        %v977 = vand.u32 %v393, 4294901760
        %v978 = vsub.f32 %v393, %v977
        %v979 = vand.u32 %v978, 4294901760
        %980 = vmatprep.subr.mxu0 %v979
        %v981 = vand.u32 %v392, 4294901760
        %v982 = vsub.f32 %v392, %v981
        %v983 = vand.u32 %v982, 4294901760
        %984 = vmatpush1.msra.mxu0 %v983
        %v985 = vand.u32 %v395, 4294901760
        %v986 = vsub.f32 %v395, %v985
        %v987 = vand.u32 %v986, 4294901760
        %988 = vmatprep.subr.mxu0 %v987
        %v989 = vand.u32 %v394, 4294901760
        %v990 = vsub.f32 %v394, %v989
        %v991 = vand.u32 %v990, 4294901760
        %992 = vmatpush1.msra.mxu0 %v991
        %v993 = vand.u32 %v397, 4294901760
        %v994 = vsub.f32 %v397, %v993
        %v995 = vand.u32 %v994, 4294901760
        %996 = vmatprep.subr.mxu0 %v995
        %v997 = vand.u32 %v396, 4294901760
        %v998 = vsub.f32 %v396, %v997
        %v999 = vand.u32 %v998, 4294901760
        %1000 = vmatpush1.msra.mxu0 %v999
        %v1001 = vand.u32 %v399, 4294901760
        %v1002 = vsub.f32 %v399, %v1001
        %v1003 = vand.u32 %v1002, 4294901760
        %1004 = vmatprep.subr.mxu0 %v1003
        %v1005 = vand.u32 %v398, 4294901760
        %v1006 = vsub.f32 %v398, %v1005
        %v1007 = vand.u32 %v1006, 4294901760
        %1008 = vmatpush1.msra.mxu0 %v1007
        %v1009 = vand.u32 %v401, 4294901760
        %v1010 = vsub.f32 %v401, %v1009
        %v1011 = vand.u32 %v1010, 4294901760
        %1012 = vmatprep.subr.mxu0 %v1011
        %v1013 = vand.u32 %v400, 4294901760
        %v1014 = vsub.f32 %v400, %v1013
        %v1015 = vand.u32 %v1014, 4294901760
        %1016 = vmatpush1.msra.mxu0 %v1015
        %v1017 = vand.u32 %v403, 4294901760
        %v1018 = vsub.f32 %v403, %v1017
        %v1019 = vand.u32 %v1018, 4294901760
        %1020 = vmatprep.subr.mxu0 %v1019
        %v1021 = vand.u32 %v402, 4294901760
        %v1022 = vsub.f32 %v402, %v1021
        %v1023 = vand.u32 %v1022, 4294901760
        %1024 = vmatpush1.msra.mxu0 %v1023
        %v1025 = vand.u32 %v405, 4294901760
        %v1026 = vsub.f32 %v405, %v1025
        %v1027 = vand.u32 %v1026, 4294901760
        %1028 = vmatprep.subr.mxu0 %v1027
        %v1029 = vand.u32 %v404, 4294901760
        %v1030 = vsub.f32 %v404, %v1029
        %v1031 = vand.u32 %v1030, 4294901760
        %1032 = vmatpush1.msra.mxu0 %v1031
        %v1033 = vand.u32 %v407, 4294901760
        %v1034 = vsub.f32 %v407, %v1033
        %v1035 = vand.u32 %v1034, 4294901760
        %1036 = vmatprep.subr.mxu0 %v1035
        %v1037 = vand.u32 %v406, 4294901760
        %v1038 = vsub.f32 %v406, %v1037
        %v1039 = vand.u32 %v1038, 4294901760
        %1040 = vmatpush1.msra.mxu0 %v1039
        %1041 = vmatprep.subr.mxu0 0.0
        %1042 = vmatpush1.msra.mxu0 0.0
        %1043 = vmatprep.subr.mxu0 0.0
        %1044 = vmatpush1.msra.mxu0 0.0
        %1045 = vmatprep.subr.mxu0 0.0
        %1046 = vmatpush1.msra.mxu0 0.0
        %1047 = vmatprep.subr.mxu0 0.0
        %1048 = vmatpush1.msra.mxu0 0.0
        %1049 = vmatprep.subr.mxu0 0.0
        %1050 = vmatpush1.msra.mxu0 0.0
        %1051 = vmatprep.subr.mxu0 0.0
        %1052 = vmatpush1.msra.mxu0 0.0
        %1053 = vmatprep.subr.mxu0 0.0
        %1054 = vmatpush1.msra.mxu0 0.0
        %1055 = vmatprep.subr.mxu0 0.0
        %1056 = vmatpush1.msra.mxu0 0.0
        %1057 = vmatprep.subr.mxu0 0.0
        %1058 = vmatpush1.msra.mxu0 0.0
        %1059 = vmatprep.subr.mxu0 0.0
        %1060 = vmatpush1.msra.mxu0 0.0
        %1061 = vmatprep.subr.mxu0 0.0
        %1062 = vmatpush1.msra.mxu0 0.0
        %1063 = vmatprep.subr.mxu0 0.0
        %1064 = vmatpush1.msra.mxu0 0.0
        %1065 = vmatprep.subr.mxu0 0.0
        %1066 = vmatpush1.msra.mxu0 0.0
        %1067 = vmatprep.subr.mxu0 0.0
        %1068 = vmatpush1.msra.mxu0 0.0
        %1069 = vmatprep.subr.mxu0 0.0
        %1070 = vmatpush1.msra.mxu0 0.0
        %1071 = vmatprep.subr.mxu0 0.0
        %1072 = vmatpush1.msra.mxu0 0.0
        %1073 = vmatprep.subr.mxu0 0.0
        %1074 = vmatpush1.msra.mxu0 0.0
        %1075 = vmatprep.subr.mxu0 0.0
        %1076 = vmatpush1.msra.mxu0 0.0
        %1077 = vmatprep.subr.mxu0 0.0
        %1078 = vmatpush1.msra.mxu0 0.0
        %1079 = vmatprep.subr.mxu0 0.0
        %1080 = vmatpush1.msra.mxu0 0.0
        %1081 = vmatprep.subr.mxu0 0.0
        %1082 = vmatpush1.msra.mxu0 0.0
        %1083 = vmatprep.subr.mxu0 0.0
        %1084 = vmatpush1.msra.mxu0 0.0
        %1085 = vmatprep.subr.mxu0 0.0
        %1086 = vmatpush1.msra.mxu0 0.0
        %1087 = vmatprep.subr.mxu0 0.0
        %1088 = vmatpush1.msra.mxu0 0.0
        %1089 = vmatprep.mubr.f32.mxu0 0.0
        %v1090 = vand.u32 %v422, 4294901760
        %1091 = vmatmul.mubr.f32.gmra.mrb[0].mxu0 %v1090
        %v1092 = vpop.f32.mrb[0].mxu0
        %v1093 = vadd.f32 %v946, %v1092
        %v1094 = vpop.f32.mrb[0].mxu0
        %v1095 = vadd.f32 %v948, %v1094
        %1096 = vmatprep.mubr.f32.mxu0 0.0
        %v1097 = vand.u32 %v425, 4294901760
        %1098 = vmatmul.mubr.f32.gmra.mrb[0].mxu0 %v1097
        %v1099 = vpop.f32.mrb[0].mxu0
        %v1100 = vadd.f32 %v955, %v1099
        %v1101 = vpop.f32.mrb[0].mxu0
        %v1102 = vadd.f32 %v957, %v1101
        %1103 = vmatprep.mubr.f32.mxu0 0.0
        %v1104 = vand.u32 %v428, 4294901760
        %1105 = vmatmul.mubr.f32.gmra.mrb[0].mxu0 %v1104
        %v1106 = vpop.f32.mrb[0].mxu0
        %v1107 = vadd.f32 %v964, %v1106
        %v1108 = vpop.f32.mrb[0].mxu0
        %v1109 = vadd.f32 %v966, %v1108
        %1110 = vmatprep.mubr.f32.mxu0 0.0
        %v1111 = vand.u32 %v431, 4294901760
        %1112 = vmatmul.mubr.f32.gmra.mrb[0].mxu0 %v1111
        %v1113 = vpop.f32.mrb[0].mxu0
        %v1114 = vadd.f32 %v973, %v1113
        %v1115 = vpop.f32.mrb[0].mxu0
        %v1116 = vadd.f32 %v975, %v1115
        %1117 = vdwg.mxu0
        %v1118 = vand.u32 %v393, 4294901760
        %1119 = vmatprep.subr.mxu0 %v1118
        %v1120 = vand.u32 %v392, 4294901760
        %1121 = vmatpush1.msra.mxu0 %v1120
        %v1122 = vand.u32 %v395, 4294901760
        %1123 = vmatprep.subr.mxu0 %v1122
        %v1124 = vand.u32 %v394, 4294901760
        %1125 = vmatpush1.msra.mxu0 %v1124
        %v1126 = vand.u32 %v397, 4294901760
        %1127 = vmatprep.subr.mxu0 %v1126
        %v1128 = vand.u32 %v396, 4294901760
        %1129 = vmatpush1.msra.mxu0 %v1128
        %v1130 = vand.u32 %v399, 4294901760
        %1131 = vmatprep.subr.mxu0 %v1130
        %v1132 = vand.u32 %v398, 4294901760
        %1133 = vmatpush1.msra.mxu0 %v1132
        %v1134 = vand.u32 %v401, 4294901760
        %1135 = vmatprep.subr.mxu0 %v1134
        %v1136 = vand.u32 %v400, 4294901760
        %1137 = vmatpush1.msra.mxu0 %v1136
        %v1138 = vand.u32 %v403, 4294901760
        %1139 = vmatprep.subr.mxu0 %v1138
        %v1140 = vand.u32 %v402, 4294901760
        %1141 = vmatpush1.msra.mxu0 %v1140
        %v1142 = vand.u32 %v405, 4294901760
        %1143 = vmatprep.subr.mxu0 %v1142
        %v1144 = vand.u32 %v404, 4294901760
        %1145 = vmatpush1.msra.mxu0 %v1144
        %v1146 = vand.u32 %v407, 4294901760
        %1147 = vmatprep.subr.mxu0 %v1146
        %v1148 = vand.u32 %v406, 4294901760
        %1149 = vmatpush1.msra.mxu0 %v1148
        %1150 = vmatprep.subr.mxu0 0.0
        %1151 = vmatpush1.msra.mxu0 0.0
        %1152 = vmatprep.subr.mxu0 0.0
        %1153 = vmatpush1.msra.mxu0 0.0
        %1154 = vmatprep.subr.mxu0 0.0
        %1155 = vmatpush1.msra.mxu0 0.0
        %1156 = vmatprep.subr.mxu0 0.0
        %1157 = vmatpush1.msra.mxu0 0.0
        %1158 = vmatprep.subr.mxu0 0.0
        %1159 = vmatpush1.msra.mxu0 0.0
        %1160 = vmatprep.subr.mxu0 0.0
        %1161 = vmatpush1.msra.mxu0 0.0
        %1162 = vmatprep.subr.mxu0 0.0
        %1163 = vmatpush1.msra.mxu0 0.0
        %1164 = vmatprep.subr.mxu0 0.0
        %1165 = vmatpush1.msra.mxu0 0.0
        %1166 = vmatprep.subr.mxu0 0.0
        %1167 = vmatpush1.msra.mxu0 0.0
        %1168 = vmatprep.subr.mxu0 0.0
        %1169 = vmatpush1.msra.mxu0 0.0
        %1170 = vmatprep.subr.mxu0 0.0
        %1171 = vmatpush1.msra.mxu0 0.0
        %1172 = vmatprep.subr.mxu0 0.0
        %1173 = vmatpush1.msra.mxu0 0.0
        %1174 = vmatprep.subr.mxu0 0.0
        %1175 = vmatpush1.msra.mxu0 0.0
        %1176 = vmatprep.subr.mxu0 0.0
        %1177 = vmatpush1.msra.mxu0 0.0
        %1178 = vmatprep.subr.mxu0 0.0
        %1179 = vmatpush1.msra.mxu0 0.0
        %1180 = vmatprep.subr.mxu0 0.0
        %1181 = vmatpush1.msra.mxu0 0.0
        %1182 = vmatprep.subr.mxu0 0.0
        %1183 = vmatpush1.msra.mxu0 0.0
        %1184 = vmatprep.subr.mxu0 0.0
        %1185 = vmatpush1.msra.mxu0 0.0
        %1186 = vmatprep.subr.mxu0 0.0
        %1187 = vmatpush1.msra.mxu0 0.0
        %1188 = vmatprep.subr.mxu0 0.0
        %1189 = vmatpush1.msra.mxu0 0.0
        %1190 = vmatprep.subr.mxu0 0.0
        %1191 = vmatpush1.msra.mxu0 0.0
        %1192 = vmatprep.subr.mxu0 0.0
        %1193 = vmatpush1.msra.mxu0 0.0
        %1194 = vmatprep.subr.mxu0 0.0
        %1195 = vmatpush1.msra.mxu0 0.0
        %1196 = vmatprep.subr.mxu0 0.0
        %1197 = vmatpush1.msra.mxu0 0.0
        %1198 = vmatprep.mubr.f32.mxu0 0.0
        %v1199 = vand.u32 %v422, 4294901760
        %1200 = vmatmul.mubr.f32.gmra.mrb[0].mxu0 %v1199
        %v1201 = vpop.f32.mrb[0].mxu0
        %v1202 = vadd.f32 %v1093, %v1201
        %v1203 = vpop.f32.mrb[0].mxu0
        %v1204 = vadd.f32 %v1095, %v1203
        %1205 = vmatprep.mubr.f32.mxu0 0.0
        %v1206 = vand.u32 %v425, 4294901760
        %1207 = vmatmul.mubr.f32.gmra.mrb[0].mxu0 %v1206
        %v1208 = vpop.f32.mrb[0].mxu0
        %v1209 = vadd.f32 %v1100, %v1208
        %v1210 = vpop.f32.mrb[0].mxu0
        %v1211 = vadd.f32 %v1102, %v1210
        %1212 = vmatprep.mubr.f32.mxu0 0.0
        %v1213 = vand.u32 %v428, 4294901760
        %1214 = vmatmul.mubr.f32.gmra.mrb[0].mxu0 %v1213
        %v1215 = vpop.f32.mrb[0].mxu0
        %v1216 = vadd.f32 %v1107, %v1215
        %v1217 = vpop.f32.mrb[0].mxu0
        %v1218 = vadd.f32 %v1109, %v1217
        %1219 = vmatprep.mubr.f32.mxu0 0.0
        %v1220 = vand.u32 %v431, 4294901760
        %1221 = vmatmul.mubr.f32.gmra.mrb[0].mxu0 %v1220
        %v1222 = vpop.f32.mrb[0].mxu0
        %v1223 = vadd.f32 %v1114, %v1222
        %v1224 = vpop.f32.mrb[0].mxu0
        %v1225 = vadd.f32 %v1116, %v1224
        %1226 = vdwg.mxu0
        %v1227 = vmax.f32 %v1202, 0.0
        %v1228 = vmax.f32 %v1204, 0.0
        %v1229 = vmax.f32 %v1209, 0.0
        %v1230 = vmax.f32 %v1211, 0.0
        %v1231 = vmax.f32 %v1216, 0.0
        %v1232 = vmax.f32 %v1218, 0.0
        %v1233 = vmax.f32 %v1223, 0.0
        %v1234 = vmax.f32 %v1225, 0.0
        %v1235 = vmin.f32 %v1227, 6.0
        %v1236 = vmin.f32 %v1228, 6.0
        %v1237 = vmin.f32 %v1229, 6.0
        %v1238 = vmin.f32 %v1230, 6.0
        %v1239 = vmin.f32 %v1231, 6.0
        %v1240 = vmin.f32 %v1232, 6.0
        %v1241 = vmin.f32 %v1233, 6.0
        %v1242 = vmin.f32 %v1234, 6.0
        %v1251 = vrot.slane %v1235, 7
        %v1252 = vrot.slane %v1236, 7
        %v1253 = vrot.slane %v1237, 7
        %v1254 = vrot.slane %v1238, 7
        %v1255 = vrot.slane %v1239, 7
        %v1256 = vrot.slane %v1240, 7
        %v1257 = vrot.slane %v1241, 7
        %v1258 = vrot.slane %v1242, 7
        %1267 = vst [vmem:[#allocation2] sm:$0xfe] %v1251
        %1268 = vst [vmem:[#allocation2 + $0x8] sm:$0xfe] %v1252
        %1269 = vst [vmem:[#allocation2 + $0x10] sm:$0x1] %v1251
        %1270 = vst [vmem:[#allocation2 + $0x18] sm:$0x1] %v1252
        %1271 = vst [vmem:[#allocation2 + $0x20] sm:$0xfe] %v1253
        %1272 = vst [vmem:[#allocation2 + $0x28] sm:$0xfe] %v1254
        %1273 = vst [vmem:[#allocation2 + $0x30] sm:$0x1] %v1253
        %1274 = vst [vmem:[#allocation2 + $0x38] sm:$0x1] %v1254
        %1275 = vst [vmem:[#allocation2 + $0x40] sm:$0xfe] %v1255
        %1276 = vst [vmem:[#allocation2 + $0x48] sm:$0xfe] %v1256
        %1277 = vst [vmem:[#allocation2 + $0x50] sm:$0x1] %v1255
        %1278 = vst [vmem:[#allocation2 + $0x58] sm:$0x1] %v1256
        %1279 = vst [vmem:[#allocation2 + $0x60] sm:$0xfe] %v1257
        %1280 = vst [vmem:[#allocation2 + $0x68] sm:$0xfe] %v1258
        %1281 = vst [vmem:[#allocation2 + $0x70] sm:$0x1] %v1257
        %1282 = vst [vmem:[#allocation2 + $0x78] sm:$0x1] %v1258
        %v1283 = vld [vmem:[%s3] sm:$0xff]
        %v1284 = vld [vmem:[%s3 + $0x8] sm:$0xff]
        %v1285 = vld [vmem:[%s3 + $0x10] sm:$0xff]
        %v1286 = vld [vmem:[%s3 + $0x18] sm:$0xff]
        %v1287 = vld [vmem:[%s3 + $0x20] sm:$0xff]
        %v1288 = vld [vmem:[%s3 + $0x28] sm:$0xff]
        %v1289 = vld [vmem:[%s3 + $0x30] sm:$0x7]
        %v1290 = vld [vmem:[%s3 + $0x38] sm:$0x7]
        %v1291 = vld [vmem:[%s4] sm:$0x3]
        %v1292 = vld [vmem:[#allocation2] sm:$0xff]
        %v1293 = vld [vmem:[#allocation2 + $0x8] sm:$0xff]
        %v1294 = vld [vmem:[#allocation2 + $0x10] sm:$0x3]
        %v1295 = vld [vmem:[#allocation2 + $0x18] sm:$0x3]
        %v1296 = vlaneseq
        %v1297 = vshrl.u32 %v1296, 7
        %v1298 = vsub.s32 1, %v1297
        %v1299 = vrot.slane %v1285, %v1298
        %v1300 = vlaneseq
        %v1301 = vshrl.u32 %v1300, 7
        %v1302 = vsub.s32 1, %v1301
        %v1303 = vrot.slane %v1286, %v1302
        %v1304 = vmul.f32 %v1292, %v1299
        %v1305 = vmul.f32 %v1293, %v1303
        %v1306 = vadd.f32 %v1304, 0.0
        %v1307 = vadd.f32 %v1305, 0.0
        %v1308 = vlaneseq
        %v1309 = vshrl.u32 %v1308, 7
        %v1310 = vsub.s32 2, %v1309
        %v1311 = vrot.slane %v1285, %v1310
        %v1312 = vlaneseq
        %v1313 = vshrl.u32 %v1312, 7
        %v1314 = vsub.s32 2, %v1313
        %v1315 = vrot.slane %v1286, %v1314
        %v1316 = vmul.f32 %v1292, %v1311
        %v1317 = vmul.f32 %v1293, %v1315
        %v1318 = vadd.f32 %v1316, 0.0
        %v1319 = vadd.f32 %v1317, 0.0
        %v1320 = vlaneseq
        %v1321 = vshrl.u32 %v1320, 7
        %v1322 = vsub.s32 3, %v1321
        %v1323 = vrot.slane %v1285, %v1322
        %v1324 = vlaneseq
        %v1325 = vshrl.u32 %v1324, 7
        %v1326 = vsub.s32 3, %v1325
        %v1327 = vrot.slane %v1286, %v1326
        %v1328 = vmul.f32 %v1292, %v1323
        %v1329 = vmul.f32 %v1293, %v1327
        %v1330 = vadd.f32 %v1328, 0.0
        %v1331 = vadd.f32 %v1329, 0.0
        %v1332 = vlaneseq
        %v1333 = vshrl.u32 %v1332, 7
        %v1334 = vsub.s32 4, %v1333
        %v1335 = vrot.slane %v1285, %v1334
        %v1336 = vlaneseq
        %v1337 = vshrl.u32 %v1336, 7
        %v1338 = vsub.s32 4, %v1337
        %v1339 = vrot.slane %v1286, %v1338
        %v1340 = vmul.f32 %v1292, %v1335
        %v1341 = vmul.f32 %v1293, %v1339
        %v1342 = vmul.f32 %v1294, %v1335
        %v1343 = vmul.f32 %v1295, %v1339
        %vm1348 = vcmask 1046528
        %v1349 = vrot.slane %v1340, 1
        %v1350 = vrot.slane %v1342, 1
        %v1351 = vsel %vm1348, %v1349, %v1350
        %v1352 = vrot.slane %v1341, 1
        %v1353 = vrot.slane %v1343, 1
        %v1354 = vsel %vm1348, %v1352, %v1353
        %v1357 = vadd.f32 %v1306, %v1351
        %v1358 = vadd.f32 %v1307, %v1354
        %v1359 = vlaneseq
        %v1360 = vshrl.u32 %v1359, 7
        %v1361 = vsub.s32 5, %v1360
        %v1362 = vrot.slane %v1285, %v1361
        %v1363 = vlaneseq
        %v1364 = vshrl.u32 %v1363, 7
        %v1365 = vsub.s32 5, %v1364
        %v1366 = vrot.slane %v1286, %v1365
        %v1367 = vmul.f32 %v1292, %v1362
        %v1368 = vmul.f32 %v1293, %v1366
        %v1369 = vmul.f32 %v1294, %v1362
        %v1370 = vmul.f32 %v1295, %v1366
        %v1375 = vrot.slane %v1367, 1
        %v1376 = vrot.slane %v1369, 1
        %v1377 = vsel %vm1348, %v1375, %v1376
        %v1378 = vrot.slane %v1368, 1
        %v1379 = vrot.slane %v1370, 1
        %v1380 = vsel %vm1348, %v1378, %v1379
        %v1383 = vadd.f32 %v1318, %v1377
        %v1384 = vadd.f32 %v1319, %v1380
        %v1385 = vlaneseq
        %v1386 = vshrl.u32 %v1385, 7
        %v1387 = vsub.s32 6, %v1386
        %v1388 = vrot.slane %v1285, %v1387
        %v1389 = vlaneseq
        %v1390 = vshrl.u32 %v1389, 7
        %v1391 = vsub.s32 6, %v1390
        %v1392 = vrot.slane %v1286, %v1391
        %v1393 = vmul.f32 %v1292, %v1388
        %v1394 = vmul.f32 %v1293, %v1392
        %v1395 = vmul.f32 %v1294, %v1388
        %v1396 = vmul.f32 %v1295, %v1392
        %v1401 = vrot.slane %v1393, 1
        %v1402 = vrot.slane %v1395, 1
        %v1403 = vsel %vm1348, %v1401, %v1402
        %v1404 = vrot.slane %v1394, 1
        %v1405 = vrot.slane %v1396, 1
        %v1406 = vsel %vm1348, %v1404, %v1405
        %v1409 = vadd.f32 %v1330, %v1403
        %v1410 = vadd.f32 %v1331, %v1406
        %v1411 = vlaneseq
        %v1412 = vshrl.u32 %v1411, 7
        %v1413 = vsub.s32 7, %v1412
        %v1414 = vrot.slane %v1285, %v1413
        %v1415 = vlaneseq
        %v1416 = vshrl.u32 %v1415, 7
        %v1417 = vsub.s32 7, %v1416
        %v1418 = vrot.slane %v1286, %v1417
        %v1419 = vmul.f32 %v1292, %v1414
        %v1420 = vmul.f32 %v1293, %v1418
        %v1421 = vmul.f32 %v1294, %v1414
        %v1422 = vmul.f32 %v1295, %v1418
        %vm1427 = vcmask 1045504
        %v1428 = vrot.slane %v1419, 2
        %v1429 = vrot.slane %v1421, 2
        %v1430 = vsel %vm1427, %v1428, %v1429
        %v1431 = vrot.slane %v1420, 2
        %v1432 = vrot.slane %v1422, 2
        %v1433 = vsel %vm1427, %v1431, %v1432
        %v1436 = vadd.f32 %v1357, %v1430
        %v1437 = vadd.f32 %v1358, %v1433
        %v1438 = vlaneseq
        %v1439 = vshrl.u32 %v1438, 7
        %v1440 = vsub.s32 0, %v1439
        %v1441 = vrot.slane %v1287, %v1440
        %v1442 = vlaneseq
        %v1443 = vshrl.u32 %v1442, 7
        %v1444 = vsub.s32 0, %v1443
        %v1445 = vrot.slane %v1288, %v1444
        %v1446 = vmul.f32 %v1292, %v1441
        %v1447 = vmul.f32 %v1293, %v1445
        %v1448 = vmul.f32 %v1294, %v1441
        %v1449 = vmul.f32 %v1295, %v1445
        %v1454 = vrot.slane %v1446, 2
        %v1455 = vrot.slane %v1448, 2
        %v1456 = vsel %vm1427, %v1454, %v1455
        %v1457 = vrot.slane %v1447, 2
        %v1458 = vrot.slane %v1449, 2
        %v1459 = vsel %vm1427, %v1457, %v1458
        %v1462 = vadd.f32 %v1383, %v1456
        %v1463 = vadd.f32 %v1384, %v1459
        %v1464 = vlaneseq
        %v1465 = vshrl.u32 %v1464, 7
        %v1466 = vsub.s32 1, %v1465
        %v1467 = vrot.slane %v1287, %v1466
        %v1468 = vlaneseq
        %v1469 = vshrl.u32 %v1468, 7
        %v1470 = vsub.s32 1, %v1469
        %v1471 = vrot.slane %v1288, %v1470
        %v1472 = vmul.f32 %v1292, %v1467
        %v1473 = vmul.f32 %v1293, %v1471
        %v1474 = vmul.f32 %v1294, %v1467
        %v1475 = vmul.f32 %v1295, %v1471
        %v1480 = vrot.slane %v1472, 2
        %v1481 = vrot.slane %v1474, 2
        %v1482 = vsel %vm1427, %v1480, %v1481
        %v1483 = vrot.slane %v1473, 2
        %v1484 = vrot.slane %v1475, 2
        %v1485 = vsel %vm1427, %v1483, %v1484
        %v1488 = vadd.f32 %v1409, %v1482
        %v1489 = vadd.f32 %v1410, %v1485
        %s1490 = scalar_lea.vmem [#allocation2], 32
        %v1491 = vld [vmem:[%s1490] sm:$0xff]
        %v1492 = vld [vmem:[%s1490 + $0x8] sm:$0xff]
        %v1493 = vld [vmem:[%s1490 + $0x10] sm:$0x3]
        %v1494 = vld [vmem:[%s1490 + $0x18] sm:$0x3]
        %v1495 = vlaneseq
        %v1496 = vshrl.u32 %v1495, 7
        %v1497 = vsub.s32 2, %v1496
        %v1498 = vrot.slane %v1287, %v1497
        %v1499 = vlaneseq
        %v1500 = vshrl.u32 %v1499, 7
        %v1501 = vsub.s32 2, %v1500
        %v1502 = vrot.slane %v1288, %v1501
        %v1503 = vmul.f32 %v1491, %v1498
        %v1504 = vmul.f32 %v1492, %v1502
        %v1505 = vadd.f32 %v1436, %v1503
        %v1506 = vadd.f32 %v1437, %v1504
        %v1507 = vlaneseq
        %v1508 = vshrl.u32 %v1507, 7
        %v1509 = vsub.s32 3, %v1508
        %v1510 = vrot.slane %v1287, %v1509
        %v1511 = vlaneseq
        %v1512 = vshrl.u32 %v1511, 7
        %v1513 = vsub.s32 3, %v1512
        %v1514 = vrot.slane %v1288, %v1513
        %v1515 = vmul.f32 %v1491, %v1510
        %v1516 = vmul.f32 %v1492, %v1514
        %v1517 = vadd.f32 %v1462, %v1515
        %v1518 = vadd.f32 %v1463, %v1516
        %v1519 = vlaneseq
        %v1520 = vshrl.u32 %v1519, 7
        %v1521 = vsub.s32 4, %v1520
        %v1522 = vrot.slane %v1287, %v1521
        %v1523 = vlaneseq
        %v1524 = vshrl.u32 %v1523, 7
        %v1525 = vsub.s32 4, %v1524
        %v1526 = vrot.slane %v1288, %v1525
        %v1527 = vmul.f32 %v1491, %v1522
        %v1528 = vmul.f32 %v1492, %v1526
        %v1529 = vadd.f32 %v1488, %v1527
        %v1530 = vadd.f32 %v1489, %v1528
        %v1531 = vlaneseq
        %v1532 = vshrl.u32 %v1531, 7
        %v1533 = vsub.s32 5, %v1532
        %v1534 = vrot.slane %v1287, %v1533
        %v1535 = vlaneseq
        %v1536 = vshrl.u32 %v1535, 7
        %v1537 = vsub.s32 5, %v1536
        %v1538 = vrot.slane %v1288, %v1537
        %v1539 = vmul.f32 %v1491, %v1534
        %v1540 = vmul.f32 %v1492, %v1538
        %v1541 = vmul.f32 %v1493, %v1534
        %v1542 = vmul.f32 %v1494, %v1538
        %v1547 = vrot.slane %v1539, 1
        %v1548 = vrot.slane %v1541, 1
        %v1549 = vsel %vm1348, %v1547, %v1548
        %v1550 = vrot.slane %v1540, 1
        %v1551 = vrot.slane %v1542, 1
        %v1552 = vsel %vm1348, %v1550, %v1551
        %v1555 = vadd.f32 %v1505, %v1549
        %v1556 = vadd.f32 %v1506, %v1552
        %v1557 = vlaneseq
        %v1558 = vshrl.u32 %v1557, 7
        %v1559 = vsub.s32 6, %v1558
        %v1560 = vrot.slane %v1287, %v1559
        %v1561 = vlaneseq
        %v1562 = vshrl.u32 %v1561, 7
        %v1563 = vsub.s32 6, %v1562
        %v1564 = vrot.slane %v1288, %v1563
        %v1565 = vmul.f32 %v1491, %v1560
        %v1566 = vmul.f32 %v1492, %v1564
        %v1567 = vmul.f32 %v1493, %v1560
        %v1568 = vmul.f32 %v1494, %v1564
        %v1573 = vrot.slane %v1565, 1
        %v1574 = vrot.slane %v1567, 1
        %v1575 = vsel %vm1348, %v1573, %v1574
        %v1576 = vrot.slane %v1566, 1
        %v1577 = vrot.slane %v1568, 1
        %v1578 = vsel %vm1348, %v1576, %v1577
        %v1581 = vadd.f32 %v1517, %v1575
        %v1582 = vadd.f32 %v1518, %v1578
        %v1583 = vlaneseq
        %v1584 = vshrl.u32 %v1583, 7
        %v1585 = vsub.s32 7, %v1584
        %v1586 = vrot.slane %v1287, %v1585
        %v1587 = vlaneseq
        %v1588 = vshrl.u32 %v1587, 7
        %v1589 = vsub.s32 7, %v1588
        %v1590 = vrot.slane %v1288, %v1589
        %v1591 = vmul.f32 %v1491, %v1586
        %v1592 = vmul.f32 %v1492, %v1590
        %v1593 = vmul.f32 %v1493, %v1586
        %v1594 = vmul.f32 %v1494, %v1590
        %v1599 = vrot.slane %v1591, 1
        %v1600 = vrot.slane %v1593, 1
        %v1601 = vsel %vm1348, %v1599, %v1600
        %v1602 = vrot.slane %v1592, 1
        %v1603 = vrot.slane %v1594, 1
        %v1604 = vsel %vm1348, %v1602, %v1603
        %v1607 = vadd.f32 %v1529, %v1601
        %v1608 = vadd.f32 %v1530, %v1604
        %v1609 = vlaneseq
        %v1610 = vshrl.u32 %v1609, 7
        %v1611 = vsub.s32 0, %v1610
        %v1612 = vrot.slane %v1289, %v1611
        %v1613 = vlaneseq
        %v1614 = vshrl.u32 %v1613, 7
        %v1615 = vsub.s32 0, %v1614
        %v1616 = vrot.slane %v1290, %v1615
        %v1617 = vmul.f32 %v1491, %v1612
        %v1618 = vmul.f32 %v1492, %v1616
        %v1619 = vmul.f32 %v1493, %v1612
        %v1620 = vmul.f32 %v1494, %v1616
        %v1625 = vrot.slane %v1617, 2
        %v1626 = vrot.slane %v1619, 2
        %v1627 = vsel %vm1427, %v1625, %v1626
        %v1628 = vrot.slane %v1618, 2
        %v1629 = vrot.slane %v1620, 2
        %v1630 = vsel %vm1427, %v1628, %v1629
        %v1633 = vadd.f32 %v1555, %v1627
        %v1634 = vadd.f32 %v1556, %v1630
        %v1635 = vlaneseq
        %v1636 = vshrl.u32 %v1635, 7
        %v1637 = vsub.s32 1, %v1636
        %v1638 = vrot.slane %v1289, %v1637
        %v1639 = vlaneseq
        %v1640 = vshrl.u32 %v1639, 7
        %v1641 = vsub.s32 1, %v1640
        %v1642 = vrot.slane %v1290, %v1641
        %v1643 = vmul.f32 %v1491, %v1638
        %v1644 = vmul.f32 %v1492, %v1642
        %v1645 = vmul.f32 %v1493, %v1638
        %v1646 = vmul.f32 %v1494, %v1642
        %v1651 = vrot.slane %v1643, 2
        %v1652 = vrot.slane %v1645, 2
        %v1653 = vsel %vm1427, %v1651, %v1652
        %v1654 = vrot.slane %v1644, 2
        %v1655 = vrot.slane %v1646, 2
        %v1656 = vsel %vm1427, %v1654, %v1655
        %v1659 = vadd.f32 %v1581, %v1653
        %v1660 = vadd.f32 %v1582, %v1656
        %v1661 = vlaneseq
        %v1662 = vshrl.u32 %v1661, 7
        %v1663 = vsub.s32 2, %v1662
        %v1664 = vrot.slane %v1289, %v1663
        %v1665 = vlaneseq
        %v1666 = vshrl.u32 %v1665, 7
        %v1667 = vsub.s32 2, %v1666
        %v1668 = vrot.slane %v1290, %v1667
        %v1669 = vmul.f32 %v1491, %v1664
        %v1670 = vmul.f32 %v1492, %v1668
        %v1671 = vmul.f32 %v1493, %v1664
        %v1672 = vmul.f32 %v1494, %v1668
        %v1677 = vrot.slane %v1669, 2
        %v1678 = vrot.slane %v1671, 2
        %v1679 = vsel %vm1427, %v1677, %v1678
        %v1680 = vrot.slane %v1670, 2
        %v1681 = vrot.slane %v1672, 2
        %v1682 = vsel %vm1427, %v1680, %v1681
        %v1685 = vadd.f32 %v1607, %v1679
        %v1686 = vadd.f32 %v1608, %v1682
        %v1687 = vlaneseq
        %v1688 = vshrl.u32 %v1687, 7
        %v1689 = vsub.s32 0, %v1688
        %v1690 = vrot.slane %v1283, %v1689
        %v1691 = vlaneseq
        %v1692 = vshrl.u32 %v1691, 7
        %v1693 = vsub.s32 0, %v1692
        %v1694 = vrot.slane %v1284, %v1693
        %v1695 = vmul.f32 %v1292, %v1690
        %v1696 = vmul.f32 %v1293, %v1694
        %v1697 = vadd.f32 %v1695, 0.0
        %v1698 = vadd.f32 %v1696, 0.0
        %v1699 = vlaneseq
        %v1700 = vshrl.u32 %v1699, 7
        %v1701 = vsub.s32 1, %v1700
        %v1702 = vrot.slane %v1283, %v1701
        %v1703 = vlaneseq
        %v1704 = vshrl.u32 %v1703, 7
        %v1705 = vsub.s32 1, %v1704
        %v1706 = vrot.slane %v1284, %v1705
        %v1707 = vmul.f32 %v1292, %v1702
        %v1708 = vmul.f32 %v1293, %v1706
        %v1709 = vadd.f32 %v1707, 0.0
        %v1710 = vadd.f32 %v1708, 0.0
        %v1711 = vlaneseq
        %v1712 = vshrl.u32 %v1711, 7
        %v1713 = vsub.s32 2, %v1712
        %v1714 = vrot.slane %v1283, %v1713
        %v1715 = vlaneseq
        %v1716 = vshrl.u32 %v1715, 7
        %v1717 = vsub.s32 2, %v1716
        %v1718 = vrot.slane %v1284, %v1717
        %v1719 = vmul.f32 %v1292, %v1714
        %v1720 = vmul.f32 %v1293, %v1718
        %v1721 = vadd.f32 %v1719, 0.0
        %v1722 = vadd.f32 %v1720, 0.0
        %v1723 = vlaneseq
        %v1724 = vshrl.u32 %v1723, 7
        %v1725 = vsub.s32 3, %v1724
        %v1726 = vrot.slane %v1283, %v1725
        %v1727 = vlaneseq
        %v1728 = vshrl.u32 %v1727, 7
        %v1729 = vsub.s32 3, %v1728
        %v1730 = vrot.slane %v1284, %v1729
        %v1731 = vmul.f32 %v1292, %v1726
        %v1732 = vmul.f32 %v1293, %v1730
        %v1733 = vmul.f32 %v1294, %v1726
        %v1734 = vmul.f32 %v1295, %v1730
        %v1739 = vrot.slane %v1731, 1
        %v1740 = vrot.slane %v1733, 1
        %v1741 = vsel %vm1348, %v1739, %v1740
        %v1742 = vrot.slane %v1732, 1
        %v1743 = vrot.slane %v1734, 1
        %v1744 = vsel %vm1348, %v1742, %v1743
        %v1747 = vadd.f32 %v1697, %v1741
        %v1748 = vadd.f32 %v1698, %v1744
        %v1749 = vlaneseq
        %v1750 = vshrl.u32 %v1749, 7
        %v1751 = vsub.s32 4, %v1750
        %v1752 = vrot.slane %v1283, %v1751
        %v1753 = vlaneseq
        %v1754 = vshrl.u32 %v1753, 7
        %v1755 = vsub.s32 4, %v1754
        %v1756 = vrot.slane %v1284, %v1755
        %v1757 = vmul.f32 %v1292, %v1752
        %v1758 = vmul.f32 %v1293, %v1756
        %v1759 = vmul.f32 %v1294, %v1752
        %v1760 = vmul.f32 %v1295, %v1756
        %v1765 = vrot.slane %v1757, 1
        %v1766 = vrot.slane %v1759, 1
        %v1767 = vsel %vm1348, %v1765, %v1766
        %v1768 = vrot.slane %v1758, 1
        %v1769 = vrot.slane %v1760, 1
        %v1770 = vsel %vm1348, %v1768, %v1769
        %v1773 = vadd.f32 %v1709, %v1767
        %v1774 = vadd.f32 %v1710, %v1770
        %v1775 = vlaneseq
        %v1776 = vshrl.u32 %v1775, 7
        %v1777 = vsub.s32 5, %v1776
        %v1778 = vrot.slane %v1283, %v1777
        %v1779 = vlaneseq
        %v1780 = vshrl.u32 %v1779, 7
        %v1781 = vsub.s32 5, %v1780
        %v1782 = vrot.slane %v1284, %v1781
        %v1783 = vmul.f32 %v1292, %v1778
        %v1784 = vmul.f32 %v1293, %v1782
        %v1785 = vmul.f32 %v1294, %v1778
        %v1786 = vmul.f32 %v1295, %v1782
        %v1791 = vrot.slane %v1783, 1
        %v1792 = vrot.slane %v1785, 1
        %v1793 = vsel %vm1348, %v1791, %v1792
        %v1794 = vrot.slane %v1784, 1
        %v1795 = vrot.slane %v1786, 1
        %v1796 = vsel %vm1348, %v1794, %v1795
        %v1799 = vadd.f32 %v1721, %v1793
        %v1800 = vadd.f32 %v1722, %v1796
        %v1801 = vlaneseq
        %v1802 = vshrl.u32 %v1801, 7
        %v1803 = vsub.s32 6, %v1802
        %v1804 = vrot.slane %v1283, %v1803
        %v1805 = vlaneseq
        %v1806 = vshrl.u32 %v1805, 7
        %v1807 = vsub.s32 6, %v1806
        %v1808 = vrot.slane %v1284, %v1807
        %v1809 = vmul.f32 %v1292, %v1804
        %v1810 = vmul.f32 %v1293, %v1808
        %v1811 = vmul.f32 %v1294, %v1804
        %v1812 = vmul.f32 %v1295, %v1808
        %v1817 = vrot.slane %v1809, 2
        %v1818 = vrot.slane %v1811, 2
        %v1819 = vsel %vm1427, %v1817, %v1818
        %v1820 = vrot.slane %v1810, 2
        %v1821 = vrot.slane %v1812, 2
        %v1822 = vsel %vm1427, %v1820, %v1821
        %v1825 = vadd.f32 %v1747, %v1819
        %v1826 = vadd.f32 %v1748, %v1822
        %v1827 = vlaneseq
        %v1828 = vshrl.u32 %v1827, 7
        %v1829 = vsub.s32 7, %v1828
        %v1830 = vrot.slane %v1283, %v1829
        %v1831 = vlaneseq
        %v1832 = vshrl.u32 %v1831, 7
        %v1833 = vsub.s32 7, %v1832
        %v1834 = vrot.slane %v1284, %v1833
        %v1835 = vmul.f32 %v1292, %v1830
        %v1836 = vmul.f32 %v1293, %v1834
        %v1837 = vmul.f32 %v1294, %v1830
        %v1838 = vmul.f32 %v1295, %v1834
        %v1843 = vrot.slane %v1835, 2
        %v1844 = vrot.slane %v1837, 2
        %v1845 = vsel %vm1427, %v1843, %v1844
        %v1846 = vrot.slane %v1836, 2
        %v1847 = vrot.slane %v1838, 2
        %v1848 = vsel %vm1427, %v1846, %v1847
        %v1851 = vadd.f32 %v1773, %v1845
        %v1852 = vadd.f32 %v1774, %v1848
        %v1853 = vlaneseq
        %v1854 = vshrl.u32 %v1853, 7
        %v1855 = vsub.s32 0, %v1854
        %v1856 = vrot.slane %v1285, %v1855
        %v1857 = vlaneseq
        %v1858 = vshrl.u32 %v1857, 7
        %v1859 = vsub.s32 0, %v1858
        %v1860 = vrot.slane %v1286, %v1859
        %v1861 = vmul.f32 %v1292, %v1856
        %v1862 = vmul.f32 %v1293, %v1860
        %v1863 = vmul.f32 %v1294, %v1856
        %v1864 = vmul.f32 %v1295, %v1860
        %v1869 = vrot.slane %v1861, 2
        %v1870 = vrot.slane %v1863, 2
        %v1871 = vsel %vm1427, %v1869, %v1870
        %v1872 = vrot.slane %v1862, 2
        %v1873 = vrot.slane %v1864, 2
        %v1874 = vsel %vm1427, %v1872, %v1873
        %v1877 = vadd.f32 %v1799, %v1871
        %v1878 = vadd.f32 %v1800, %v1874
        %v1879 = vmul.f32 %v1491, %v1299
        %v1880 = vmul.f32 %v1492, %v1303
        %v1881 = vadd.f32 %v1825, %v1879
        %v1882 = vadd.f32 %v1826, %v1880
        %v1883 = vmul.f32 %v1491, %v1311
        %v1884 = vmul.f32 %v1492, %v1315
        %v1885 = vadd.f32 %v1851, %v1883
        %v1886 = vadd.f32 %v1852, %v1884
        %v1887 = vmul.f32 %v1491, %v1323
        %v1888 = vmul.f32 %v1492, %v1327
        %v1889 = vadd.f32 %v1877, %v1887
        %v1890 = vadd.f32 %v1878, %v1888
        %v1891 = vmul.f32 %v1491, %v1335
        %v1892 = vmul.f32 %v1492, %v1339
        %v1893 = vmul.f32 %v1493, %v1335
        %v1894 = vmul.f32 %v1494, %v1339
        %v1899 = vrot.slane %v1891, 1
        %v1900 = vrot.slane %v1893, 1
        %v1901 = vsel %vm1348, %v1899, %v1900
        %v1902 = vrot.slane %v1892, 1
        %v1903 = vrot.slane %v1894, 1
        %v1904 = vsel %vm1348, %v1902, %v1903
        %v1907 = vadd.f32 %v1881, %v1901
        %v1908 = vadd.f32 %v1882, %v1904
        %v1909 = vmul.f32 %v1491, %v1362
        %v1910 = vmul.f32 %v1492, %v1366
        %v1911 = vmul.f32 %v1493, %v1362
        %v1912 = vmul.f32 %v1494, %v1366
        %v1917 = vrot.slane %v1909, 1
        %v1918 = vrot.slane %v1911, 1
        %v1919 = vsel %vm1348, %v1917, %v1918
        %v1920 = vrot.slane %v1910, 1
        %v1921 = vrot.slane %v1912, 1
        %v1922 = vsel %vm1348, %v1920, %v1921
        %v1925 = vadd.f32 %v1885, %v1919
        %v1926 = vadd.f32 %v1886, %v1922
        %v1927 = vmul.f32 %v1491, %v1388
        %v1928 = vmul.f32 %v1492, %v1392
        %v1929 = vmul.f32 %v1493, %v1388
        %v1930 = vmul.f32 %v1494, %v1392
        %v1935 = vrot.slane %v1927, 1
        %v1936 = vrot.slane %v1929, 1
        %v1937 = vsel %vm1348, %v1935, %v1936
        %v1938 = vrot.slane %v1928, 1
        %v1939 = vrot.slane %v1930, 1
        %v1940 = vsel %vm1348, %v1938, %v1939
        %v1943 = vadd.f32 %v1889, %v1937
        %v1944 = vadd.f32 %v1890, %v1940
        %v1945 = vmul.f32 %v1491, %v1414
        %v1946 = vmul.f32 %v1492, %v1418
        %v1947 = vmul.f32 %v1493, %v1414
        %v1948 = vmul.f32 %v1494, %v1418
        %v1953 = vrot.slane %v1945, 2
        %v1954 = vrot.slane %v1947, 2
        %v1955 = vsel %vm1427, %v1953, %v1954
        %v1956 = vrot.slane %v1946, 2
        %v1957 = vrot.slane %v1948, 2
        %v1958 = vsel %vm1427, %v1956, %v1957
        %v1961 = vadd.f32 %v1907, %v1955
        %v1962 = vadd.f32 %v1908, %v1958
        %v1963 = vmul.f32 %v1491, %v1441
        %v1964 = vmul.f32 %v1492, %v1445
        %v1965 = vmul.f32 %v1493, %v1441
        %v1966 = vmul.f32 %v1494, %v1445
        %v1971 = vrot.slane %v1963, 2
        %v1972 = vrot.slane %v1965, 2
        %v1973 = vsel %vm1427, %v1971, %v1972
        %v1974 = vrot.slane %v1964, 2
        %v1975 = vrot.slane %v1966, 2
        %v1976 = vsel %vm1427, %v1974, %v1975
        %v1979 = vadd.f32 %v1925, %v1973
        %v1980 = vadd.f32 %v1926, %v1976
        %v1981 = vmul.f32 %v1491, %v1467
        %v1982 = vmul.f32 %v1492, %v1471
        %v1983 = vmul.f32 %v1493, %v1467
        %v1984 = vmul.f32 %v1494, %v1471
        %v1989 = vrot.slane %v1981, 2
        %v1990 = vrot.slane %v1983, 2
        %v1991 = vsel %vm1427, %v1989, %v1990
        %v1992 = vrot.slane %v1982, 2
        %v1993 = vrot.slane %v1984, 2
        %v1994 = vsel %vm1427, %v1992, %v1993
        %v1997 = vadd.f32 %v1943, %v1991
        %v1998 = vadd.f32 %v1944, %v1994
        %s1999 = scalar_lea.vmem [#allocation2], 64
        %v2000 = vld [vmem:[%s1999] sm:$0xff]
        %v2001 = vld [vmem:[%s1999 + $0x8] sm:$0xff]
        %v2002 = vld [vmem:[%s1999 + $0x10] sm:$0x3]
        %v2003 = vld [vmem:[%s1999 + $0x18] sm:$0x3]
        %v2004 = vmul.f32 %v2000, %v1498
        %v2005 = vmul.f32 %v2001, %v1502
        %v2006 = vadd.f32 %v1961, %v2004
        %v2007 = vadd.f32 %v1962, %v2005
        %v2008 = vmul.f32 %v2000, %v1510
        %v2009 = vmul.f32 %v2001, %v1514
        %v2010 = vadd.f32 %v1979, %v2008
        %v2011 = vadd.f32 %v1980, %v2009
        %v2012 = vmul.f32 %v2000, %v1522
        %v2013 = vmul.f32 %v2001, %v1526
        %v2014 = vadd.f32 %v1997, %v2012
        %v2015 = vadd.f32 %v1998, %v2013
        %v2016 = vmul.f32 %v2000, %v1534
        %v2017 = vmul.f32 %v2001, %v1538
        %v2018 = vmul.f32 %v2002, %v1534
        %v2019 = vmul.f32 %v2003, %v1538
        %v2024 = vrot.slane %v2016, 1
        %v2025 = vrot.slane %v2018, 1
        %v2026 = vsel %vm1348, %v2024, %v2025
        %v2027 = vrot.slane %v2017, 1
        %v2028 = vrot.slane %v2019, 1
        %v2029 = vsel %vm1348, %v2027, %v2028
        %v2032 = vadd.f32 %v2006, %v2026
        %v2033 = vadd.f32 %v2007, %v2029
        %v2034 = vmul.f32 %v2000, %v1560
        %v2035 = vmul.f32 %v2001, %v1564
        %v2036 = vmul.f32 %v2002, %v1560
        %v2037 = vmul.f32 %v2003, %v1564
        %v2042 = vrot.slane %v2034, 1
        %v2043 = vrot.slane %v2036, 1
        %v2044 = vsel %vm1348, %v2042, %v2043
        %v2045 = vrot.slane %v2035, 1
        %v2046 = vrot.slane %v2037, 1
        %v2047 = vsel %vm1348, %v2045, %v2046
        %v2050 = vadd.f32 %v2010, %v2044
        %v2051 = vadd.f32 %v2011, %v2047
        %v2052 = vmul.f32 %v2000, %v1586
        %v2053 = vmul.f32 %v2001, %v1590
        %v2054 = vmul.f32 %v2002, %v1586
        %v2055 = vmul.f32 %v2003, %v1590
        %v2060 = vrot.slane %v2052, 1
        %v2061 = vrot.slane %v2054, 1
        %v2062 = vsel %vm1348, %v2060, %v2061
        %v2063 = vrot.slane %v2053, 1
        %v2064 = vrot.slane %v2055, 1
        %v2065 = vsel %vm1348, %v2063, %v2064
        %v2068 = vadd.f32 %v2014, %v2062
        %v2069 = vadd.f32 %v2015, %v2065
        %v2070 = vmul.f32 %v2000, %v1612
        %v2071 = vmul.f32 %v2001, %v1616
        %v2072 = vmul.f32 %v2002, %v1612
        %v2073 = vmul.f32 %v2003, %v1616
        %v2078 = vrot.slane %v2070, 2
        %v2079 = vrot.slane %v2072, 2
        %v2080 = vsel %vm1427, %v2078, %v2079
        %v2081 = vrot.slane %v2071, 2
        %v2082 = vrot.slane %v2073, 2
        %v2083 = vsel %vm1427, %v2081, %v2082
        %v2086 = vadd.f32 %v2032, %v2080
        %v2087 = vadd.f32 %v2033, %v2083
        %v2088 = vmul.f32 %v2000, %v1638
        %v2089 = vmul.f32 %v2001, %v1642
        %v2090 = vmul.f32 %v2002, %v1638
        %v2091 = vmul.f32 %v2003, %v1642
        %v2096 = vrot.slane %v2088, 2
        %v2097 = vrot.slane %v2090, 2
        %v2098 = vsel %vm1427, %v2096, %v2097
        %v2099 = vrot.slane %v2089, 2
        %v2100 = vrot.slane %v2091, 2
        %v2101 = vsel %vm1427, %v2099, %v2100
        %v2104 = vadd.f32 %v2050, %v2098
        %v2105 = vadd.f32 %v2051, %v2101
        %v2106 = vmul.f32 %v2000, %v1664
        %v2107 = vmul.f32 %v2001, %v1668
        %v2108 = vmul.f32 %v2002, %v1664
        %v2109 = vmul.f32 %v2003, %v1668
        %v2114 = vrot.slane %v2106, 2
        %v2115 = vrot.slane %v2108, 2
        %v2116 = vsel %vm1427, %v2114, %v2115
        %v2117 = vrot.slane %v2107, 2
        %v2118 = vrot.slane %v2109, 2
        %v2119 = vsel %vm1427, %v2117, %v2118
        %v2122 = vadd.f32 %v2068, %v2116
        %v2123 = vadd.f32 %v2069, %v2119
        %v2124 = vmul.f32 %v1491, %v1690
        %v2125 = vmul.f32 %v1492, %v1694
        %v2126 = vadd.f32 %v2124, 0.0
        %v2127 = vadd.f32 %v2125, 0.0
        %v2128 = vmul.f32 %v1491, %v1702
        %v2129 = vmul.f32 %v1492, %v1706
        %v2130 = vadd.f32 %v2128, 0.0
        %v2131 = vadd.f32 %v2129, 0.0
        %v2132 = vmul.f32 %v1491, %v1714
        %v2133 = vmul.f32 %v1492, %v1718
        %v2134 = vadd.f32 %v2132, 0.0
        %v2135 = vadd.f32 %v2133, 0.0
        %v2136 = vmul.f32 %v1491, %v1726
        %v2137 = vmul.f32 %v1492, %v1730
        %v2138 = vmul.f32 %v1493, %v1726
        %v2139 = vmul.f32 %v1494, %v1730
        %v2144 = vrot.slane %v2136, 1
        %v2145 = vrot.slane %v2138, 1
        %v2146 = vsel %vm1348, %v2144, %v2145
        %v2147 = vrot.slane %v2137, 1
        %v2148 = vrot.slane %v2139, 1
        %v2149 = vsel %vm1348, %v2147, %v2148
        %v2152 = vadd.f32 %v2126, %v2146
        %v2153 = vadd.f32 %v2127, %v2149
        %v2154 = vmul.f32 %v1491, %v1752
        %v2155 = vmul.f32 %v1492, %v1756
        %v2156 = vmul.f32 %v1493, %v1752
        %v2157 = vmul.f32 %v1494, %v1756
        %v2162 = vrot.slane %v2154, 1
        %v2163 = vrot.slane %v2156, 1
        %v2164 = vsel %vm1348, %v2162, %v2163
        %v2165 = vrot.slane %v2155, 1
        %v2166 = vrot.slane %v2157, 1
        %v2167 = vsel %vm1348, %v2165, %v2166
        %v2170 = vadd.f32 %v2130, %v2164
        %v2171 = vadd.f32 %v2131, %v2167
        %v2172 = vmul.f32 %v1491, %v1778
        %v2173 = vmul.f32 %v1492, %v1782
        %v2174 = vmul.f32 %v1493, %v1778
        %v2175 = vmul.f32 %v1494, %v1782
        %v2180 = vrot.slane %v2172, 1
        %v2181 = vrot.slane %v2174, 1
        %v2182 = vsel %vm1348, %v2180, %v2181
        %v2183 = vrot.slane %v2173, 1
        %v2184 = vrot.slane %v2175, 1
        %v2185 = vsel %vm1348, %v2183, %v2184
        %v2188 = vadd.f32 %v2134, %v2182
        %v2189 = vadd.f32 %v2135, %v2185
        %v2190 = vmul.f32 %v1491, %v1804
        %v2191 = vmul.f32 %v1492, %v1808
        %v2192 = vmul.f32 %v1493, %v1804
        %v2193 = vmul.f32 %v1494, %v1808
        %v2198 = vrot.slane %v2190, 2
        %v2199 = vrot.slane %v2192, 2
        %v2200 = vsel %vm1427, %v2198, %v2199
        %v2201 = vrot.slane %v2191, 2
        %v2202 = vrot.slane %v2193, 2
        %v2203 = vsel %vm1427, %v2201, %v2202
        %v2206 = vadd.f32 %v2152, %v2200
        %v2207 = vadd.f32 %v2153, %v2203
        %v2208 = vmul.f32 %v1491, %v1830
        %v2209 = vmul.f32 %v1492, %v1834
        %v2210 = vmul.f32 %v1493, %v1830
        %v2211 = vmul.f32 %v1494, %v1834
        %v2216 = vrot.slane %v2208, 2
        %v2217 = vrot.slane %v2210, 2
        %v2218 = vsel %vm1427, %v2216, %v2217
        %v2219 = vrot.slane %v2209, 2
        %v2220 = vrot.slane %v2211, 2
        %v2221 = vsel %vm1427, %v2219, %v2220
        %v2224 = vadd.f32 %v2170, %v2218
        %v2225 = vadd.f32 %v2171, %v2221
        %v2226 = vmul.f32 %v1491, %v1856
        %v2227 = vmul.f32 %v1492, %v1860
        %v2228 = vmul.f32 %v1493, %v1856
        %v2229 = vmul.f32 %v1494, %v1860
        %v2234 = vrot.slane %v2226, 2
        %v2235 = vrot.slane %v2228, 2
        %v2236 = vsel %vm1427, %v2234, %v2235
        %v2237 = vrot.slane %v2227, 2
        %v2238 = vrot.slane %v2229, 2
        %v2239 = vsel %vm1427, %v2237, %v2238
        %v2242 = vadd.f32 %v2188, %v2236
        %v2243 = vadd.f32 %v2189, %v2239
        %v2244 = vmul.f32 %v2000, %v1299
        %v2245 = vmul.f32 %v2001, %v1303
        %v2246 = vadd.f32 %v2206, %v2244
        %v2247 = vadd.f32 %v2207, %v2245
        %v2248 = vmul.f32 %v2000, %v1311
        %v2249 = vmul.f32 %v2001, %v1315
        %v2250 = vadd.f32 %v2224, %v2248
        %v2251 = vadd.f32 %v2225, %v2249
        %v2252 = vmul.f32 %v2000, %v1323
        %v2253 = vmul.f32 %v2001, %v1327
        %v2254 = vadd.f32 %v2242, %v2252
        %v2255 = vadd.f32 %v2243, %v2253
        %v2256 = vmul.f32 %v2000, %v1335
        %v2257 = vmul.f32 %v2001, %v1339
        %v2258 = vmul.f32 %v2002, %v1335
        %v2259 = vmul.f32 %v2003, %v1339
        %v2264 = vrot.slane %v2256, 1
        %v2265 = vrot.slane %v2258, 1
        %v2266 = vsel %vm1348, %v2264, %v2265
        %v2267 = vrot.slane %v2257, 1
        %v2268 = vrot.slane %v2259, 1
        %v2269 = vsel %vm1348, %v2267, %v2268
        %v2272 = vadd.f32 %v2246, %v2266
        %v2273 = vadd.f32 %v2247, %v2269
        %v2274 = vmul.f32 %v2000, %v1362
        %v2275 = vmul.f32 %v2001, %v1366
        %v2276 = vmul.f32 %v2002, %v1362
        %v2277 = vmul.f32 %v2003, %v1366
        %v2282 = vrot.slane %v2274, 1
        %v2283 = vrot.slane %v2276, 1
        %v2284 = vsel %vm1348, %v2282, %v2283
        %v2285 = vrot.slane %v2275, 1
        %v2286 = vrot.slane %v2277, 1
        %v2287 = vsel %vm1348, %v2285, %v2286
        %v2290 = vadd.f32 %v2250, %v2284
        %v2291 = vadd.f32 %v2251, %v2287
        %v2292 = vmul.f32 %v2000, %v1388
        %v2293 = vmul.f32 %v2001, %v1392
        %v2294 = vmul.f32 %v2002, %v1388
        %v2295 = vmul.f32 %v2003, %v1392
        %v2300 = vrot.slane %v2292, 1
        %v2301 = vrot.slane %v2294, 1
        %v2302 = vsel %vm1348, %v2300, %v2301
        %v2303 = vrot.slane %v2293, 1
        %v2304 = vrot.slane %v2295, 1
        %v2305 = vsel %vm1348, %v2303, %v2304
        %v2308 = vadd.f32 %v2254, %v2302
        %v2309 = vadd.f32 %v2255, %v2305
        %v2310 = vmul.f32 %v2000, %v1414
        %v2311 = vmul.f32 %v2001, %v1418
        %v2312 = vmul.f32 %v2002, %v1414
        %v2313 = vmul.f32 %v2003, %v1418
        %v2318 = vrot.slane %v2310, 2
        %v2319 = vrot.slane %v2312, 2
        %v2320 = vsel %vm1427, %v2318, %v2319
        %v2321 = vrot.slane %v2311, 2
        %v2322 = vrot.slane %v2313, 2
        %v2323 = vsel %vm1427, %v2321, %v2322
        %v2326 = vadd.f32 %v2272, %v2320
        %v2327 = vadd.f32 %v2273, %v2323
        %v2328 = vmul.f32 %v2000, %v1441
        %v2329 = vmul.f32 %v2001, %v1445
        %v2330 = vmul.f32 %v2002, %v1441
        %v2331 = vmul.f32 %v2003, %v1445
        %v2336 = vrot.slane %v2328, 2
        %v2337 = vrot.slane %v2330, 2
        %v2338 = vsel %vm1427, %v2336, %v2337
        %v2339 = vrot.slane %v2329, 2
        %v2340 = vrot.slane %v2331, 2
        %v2341 = vsel %vm1427, %v2339, %v2340
        %v2344 = vadd.f32 %v2290, %v2338
        %v2345 = vadd.f32 %v2291, %v2341
        %v2346 = vmul.f32 %v2000, %v1467
        %v2347 = vmul.f32 %v2001, %v1471
        %v2348 = vmul.f32 %v2002, %v1467
        %v2349 = vmul.f32 %v2003, %v1471
        %v2354 = vrot.slane %v2346, 2
        %v2355 = vrot.slane %v2348, 2
        %v2356 = vsel %vm1427, %v2354, %v2355
        %v2357 = vrot.slane %v2347, 2
        %v2358 = vrot.slane %v2349, 2
        %v2359 = vsel %vm1427, %v2357, %v2358
        %v2362 = vadd.f32 %v2308, %v2356
        %v2363 = vadd.f32 %v2309, %v2359
        %s2364 = scalar_lea.vmem [#allocation2], 96
        %v2365 = vld [vmem:[%s2364] sm:$0xff]
        %v2366 = vld [vmem:[%s2364 + $0x8] sm:$0xff]
        %v2367 = vld [vmem:[%s2364 + $0x10] sm:$0x3]
        %v2368 = vld [vmem:[%s2364 + $0x18] sm:$0x3]
        %v2369 = vmul.f32 %v2365, %v1498
        %v2370 = vmul.f32 %v2366, %v1502
        %v2371 = vadd.f32 %v2326, %v2369
        %v2372 = vadd.f32 %v2327, %v2370
        %v2373 = vmul.f32 %v2365, %v1510
        %v2374 = vmul.f32 %v2366, %v1514
        %v2375 = vadd.f32 %v2344, %v2373
        %v2376 = vadd.f32 %v2345, %v2374
        %v2377 = vmul.f32 %v2365, %v1522
        %v2378 = vmul.f32 %v2366, %v1526
        %v2379 = vadd.f32 %v2362, %v2377
        %v2380 = vadd.f32 %v2363, %v2378
        %v2381 = vmul.f32 %v2365, %v1534
        %v2382 = vmul.f32 %v2366, %v1538
        %v2383 = vmul.f32 %v2367, %v1534
        %v2384 = vmul.f32 %v2368, %v1538
        %v2389 = vrot.slane %v2381, 1
        %v2390 = vrot.slane %v2383, 1
        %v2391 = vsel %vm1348, %v2389, %v2390
        %v2392 = vrot.slane %v2382, 1
        %v2393 = vrot.slane %v2384, 1
        %v2394 = vsel %vm1348, %v2392, %v2393
        %v2397 = vadd.f32 %v2371, %v2391
        %v2398 = vadd.f32 %v2372, %v2394
        %v2399 = vmul.f32 %v2365, %v1560
        %v2400 = vmul.f32 %v2366, %v1564
        %v2401 = vmul.f32 %v2367, %v1560
        %v2402 = vmul.f32 %v2368, %v1564
        %v2407 = vrot.slane %v2399, 1
        %v2408 = vrot.slane %v2401, 1
        %v2409 = vsel %vm1348, %v2407, %v2408
        %v2410 = vrot.slane %v2400, 1
        %v2411 = vrot.slane %v2402, 1
        %v2412 = vsel %vm1348, %v2410, %v2411
        %v2415 = vadd.f32 %v2375, %v2409
        %v2416 = vadd.f32 %v2376, %v2412
        %v2417 = vmul.f32 %v2365, %v1586
        %v2418 = vmul.f32 %v2366, %v1590
        %v2419 = vmul.f32 %v2367, %v1586
        %v2420 = vmul.f32 %v2368, %v1590
        %v2425 = vrot.slane %v2417, 1
        %v2426 = vrot.slane %v2419, 1
        %v2427 = vsel %vm1348, %v2425, %v2426
        %v2428 = vrot.slane %v2418, 1
        %v2429 = vrot.slane %v2420, 1
        %v2430 = vsel %vm1348, %v2428, %v2429
        %v2433 = vadd.f32 %v2379, %v2427
        %v2434 = vadd.f32 %v2380, %v2430
        %v2435 = vmul.f32 %v2365, %v1612
        %v2436 = vmul.f32 %v2366, %v1616
        %v2437 = vmul.f32 %v2367, %v1612
        %v2438 = vmul.f32 %v2368, %v1616
        %v2443 = vrot.slane %v2435, 2
        %v2444 = vrot.slane %v2437, 2
        %v2445 = vsel %vm1427, %v2443, %v2444
        %v2446 = vrot.slane %v2436, 2
        %v2447 = vrot.slane %v2438, 2
        %v2448 = vsel %vm1427, %v2446, %v2447
        %v2451 = vadd.f32 %v2397, %v2445
        %v2452 = vadd.f32 %v2398, %v2448
        %v2453 = vmul.f32 %v2365, %v1638
        %v2454 = vmul.f32 %v2366, %v1642
        %v2455 = vmul.f32 %v2367, %v1638
        %v2456 = vmul.f32 %v2368, %v1642
        %v2461 = vrot.slane %v2453, 2
        %v2462 = vrot.slane %v2455, 2
        %v2463 = vsel %vm1427, %v2461, %v2462
        %v2464 = vrot.slane %v2454, 2
        %v2465 = vrot.slane %v2456, 2
        %v2466 = vsel %vm1427, %v2464, %v2465
        %v2469 = vadd.f32 %v2415, %v2463
        %v2470 = vadd.f32 %v2416, %v2466
        %v2471 = vmul.f32 %v2365, %v1664
        %v2472 = vmul.f32 %v2366, %v1668
        %v2473 = vmul.f32 %v2367, %v1664
        %v2474 = vmul.f32 %v2368, %v1668
        %v2479 = vrot.slane %v2471, 2
        %v2480 = vrot.slane %v2473, 2
        %v2481 = vsel %vm1427, %v2479, %v2480
        %v2482 = vrot.slane %v2472, 2
        %v2483 = vrot.slane %v2474, 2
        %v2484 = vsel %vm1427, %v2482, %v2483
        %v2487 = vadd.f32 %v2433, %v2481
        %v2488 = vadd.f32 %v2434, %v2484
        %v2489 = vmul.f32 %v2000, %v1690
        %v2490 = vmul.f32 %v2001, %v1694
        %v2491 = vadd.f32 %v2489, 0.0
        %v2492 = vadd.f32 %v2490, 0.0
        %v2493 = vmul.f32 %v2000, %v1702
        %v2494 = vmul.f32 %v2001, %v1706
        %v2495 = vadd.f32 %v2493, 0.0
        %v2496 = vadd.f32 %v2494, 0.0
        %v2497 = vmul.f32 %v2000, %v1714
        %v2498 = vmul.f32 %v2001, %v1718
        %v2499 = vadd.f32 %v2497, 0.0
        %v2500 = vadd.f32 %v2498, 0.0
        %v2501 = vmul.f32 %v2000, %v1726
        %v2502 = vmul.f32 %v2001, %v1730
        %v2503 = vmul.f32 %v2002, %v1726
        %v2504 = vmul.f32 %v2003, %v1730
        %v2509 = vrot.slane %v2501, 1
        %v2510 = vrot.slane %v2503, 1
        %v2511 = vsel %vm1348, %v2509, %v2510
        %v2512 = vrot.slane %v2502, 1
        %v2513 = vrot.slane %v2504, 1
        %v2514 = vsel %vm1348, %v2512, %v2513
        %v2517 = vadd.f32 %v2491, %v2511
        %v2518 = vadd.f32 %v2492, %v2514
        %v2519 = vmul.f32 %v2000, %v1752
        %v2520 = vmul.f32 %v2001, %v1756
        %v2521 = vmul.f32 %v2002, %v1752
        %v2522 = vmul.f32 %v2003, %v1756
        %v2527 = vrot.slane %v2519, 1
        %v2528 = vrot.slane %v2521, 1
        %v2529 = vsel %vm1348, %v2527, %v2528
        %v2530 = vrot.slane %v2520, 1
        %v2531 = vrot.slane %v2522, 1
        %v2532 = vsel %vm1348, %v2530, %v2531
        %v2535 = vadd.f32 %v2495, %v2529
        %v2536 = vadd.f32 %v2496, %v2532
        %v2537 = vmul.f32 %v2000, %v1778
        %v2538 = vmul.f32 %v2001, %v1782
        %v2539 = vmul.f32 %v2002, %v1778
        %v2540 = vmul.f32 %v2003, %v1782
        %v2545 = vrot.slane %v2537, 1
        %v2546 = vrot.slane %v2539, 1
        %v2547 = vsel %vm1348, %v2545, %v2546
        %v2548 = vrot.slane %v2538, 1
        %v2549 = vrot.slane %v2540, 1
        %v2550 = vsel %vm1348, %v2548, %v2549
        %v2553 = vadd.f32 %v2499, %v2547
        %v2554 = vadd.f32 %v2500, %v2550
        %v2555 = vmul.f32 %v2000, %v1804
        %v2556 = vmul.f32 %v2001, %v1808
        %v2557 = vmul.f32 %v2002, %v1804
        %v2558 = vmul.f32 %v2003, %v1808
        %v2563 = vrot.slane %v2555, 2
        %v2564 = vrot.slane %v2557, 2
        %v2565 = vsel %vm1427, %v2563, %v2564
        %v2566 = vrot.slane %v2556, 2
        %v2567 = vrot.slane %v2558, 2
        %v2568 = vsel %vm1427, %v2566, %v2567
        %v2571 = vadd.f32 %v2517, %v2565
        %v2572 = vadd.f32 %v2518, %v2568
        %v2573 = vmul.f32 %v2000, %v1830
        %v2574 = vmul.f32 %v2001, %v1834
        %v2575 = vmul.f32 %v2002, %v1830
        %v2576 = vmul.f32 %v2003, %v1834
        %v2581 = vrot.slane %v2573, 2
        %v2582 = vrot.slane %v2575, 2
        %v2583 = vsel %vm1427, %v2581, %v2582
        %v2584 = vrot.slane %v2574, 2
        %v2585 = vrot.slane %v2576, 2
        %v2586 = vsel %vm1427, %v2584, %v2585
        %v2589 = vadd.f32 %v2535, %v2583
        %v2590 = vadd.f32 %v2536, %v2586
        %v2591 = vmul.f32 %v2000, %v1856
        %v2592 = vmul.f32 %v2001, %v1860
        %v2593 = vmul.f32 %v2002, %v1856
        %v2594 = vmul.f32 %v2003, %v1860
        %v2599 = vrot.slane %v2591, 2
        %v2600 = vrot.slane %v2593, 2
        %v2601 = vsel %vm1427, %v2599, %v2600
        %v2602 = vrot.slane %v2592, 2
        %v2603 = vrot.slane %v2594, 2
        %v2604 = vsel %vm1427, %v2602, %v2603
        %v2607 = vadd.f32 %v2553, %v2601
        %v2608 = vadd.f32 %v2554, %v2604
        %v2609 = vmul.f32 %v2365, %v1299
        %v2610 = vmul.f32 %v2366, %v1303
        %v2611 = vadd.f32 %v2571, %v2609
        %v2612 = vadd.f32 %v2572, %v2610
        %v2613 = vmul.f32 %v2365, %v1311
        %v2614 = vmul.f32 %v2366, %v1315
        %v2615 = vadd.f32 %v2589, %v2613
        %v2616 = vadd.f32 %v2590, %v2614
        %v2617 = vmul.f32 %v2365, %v1323
        %v2618 = vmul.f32 %v2366, %v1327
        %v2619 = vadd.f32 %v2607, %v2617
        %v2620 = vadd.f32 %v2608, %v2618
        %v2621 = vmul.f32 %v2365, %v1335
        %v2622 = vmul.f32 %v2366, %v1339
        %v2623 = vmul.f32 %v2367, %v1335
        %v2624 = vmul.f32 %v2368, %v1339
        %v2629 = vrot.slane %v2621, 1
        %v2630 = vrot.slane %v2623, 1
        %v2631 = vsel %vm1348, %v2629, %v2630
        %v2632 = vrot.slane %v2622, 1
        %v2633 = vrot.slane %v2624, 1
        %v2634 = vsel %vm1348, %v2632, %v2633
        %v2637 = vadd.f32 %v2611, %v2631
        %v2638 = vadd.f32 %v2612, %v2634
        %v2639 = vmul.f32 %v2365, %v1362
        %v2640 = vmul.f32 %v2366, %v1366
        %v2641 = vmul.f32 %v2367, %v1362
        %v2642 = vmul.f32 %v2368, %v1366
        %v2647 = vrot.slane %v2639, 1
        %v2648 = vrot.slane %v2641, 1
        %v2649 = vsel %vm1348, %v2647, %v2648
        %v2650 = vrot.slane %v2640, 1
        %v2651 = vrot.slane %v2642, 1
        %v2652 = vsel %vm1348, %v2650, %v2651
        %v2655 = vadd.f32 %v2615, %v2649
        %v2656 = vadd.f32 %v2616, %v2652
        %v2657 = vmul.f32 %v2365, %v1388
        %v2658 = vmul.f32 %v2366, %v1392
        %v2659 = vmul.f32 %v2367, %v1388
        %v2660 = vmul.f32 %v2368, %v1392
        %v2665 = vrot.slane %v2657, 1
        %v2666 = vrot.slane %v2659, 1
        %v2667 = vsel %vm1348, %v2665, %v2666
        %v2668 = vrot.slane %v2658, 1
        %v2669 = vrot.slane %v2660, 1
        %v2670 = vsel %vm1348, %v2668, %v2669
        %v2673 = vadd.f32 %v2619, %v2667
        %v2674 = vadd.f32 %v2620, %v2670
        %v2675 = vmul.f32 %v2365, %v1414
        %v2676 = vmul.f32 %v2366, %v1418
        %v2677 = vmul.f32 %v2367, %v1414
        %v2678 = vmul.f32 %v2368, %v1418
        %v2683 = vrot.slane %v2675, 2
        %v2684 = vrot.slane %v2677, 2
        %v2685 = vsel %vm1427, %v2683, %v2684
        %v2686 = vrot.slane %v2676, 2
        %v2687 = vrot.slane %v2678, 2
        %v2688 = vsel %vm1427, %v2686, %v2687
        %v2691 = vadd.f32 %v2637, %v2685
        %v2692 = vadd.f32 %v2638, %v2688
        %v2693 = vmul.f32 %v2365, %v1441
        %v2694 = vmul.f32 %v2366, %v1445
        %v2695 = vmul.f32 %v2367, %v1441
        %v2696 = vmul.f32 %v2368, %v1445
        %v2701 = vrot.slane %v2693, 2
        %v2702 = vrot.slane %v2695, 2
        %v2703 = vsel %vm1427, %v2701, %v2702
        %v2704 = vrot.slane %v2694, 2
        %v2705 = vrot.slane %v2696, 2
        %v2706 = vsel %vm1427, %v2704, %v2705
        %v2709 = vadd.f32 %v2655, %v2703
        %v2710 = vadd.f32 %v2656, %v2706
        %v2711 = vmul.f32 %v2365, %v1467
        %v2712 = vmul.f32 %v2366, %v1471
        %v2713 = vmul.f32 %v2367, %v1467
        %v2714 = vmul.f32 %v2368, %v1471
        %v2719 = vrot.slane %v2711, 2
        %v2720 = vrot.slane %v2713, 2
        %v2721 = vsel %vm1427, %v2719, %v2720
        %v2722 = vrot.slane %v2712, 2
        %v2723 = vrot.slane %v2714, 2
        %v2724 = vsel %vm1427, %v2722, %v2723
        %v2727 = vadd.f32 %v2673, %v2721
        %v2728 = vadd.f32 %v2674, %v2724
        %v2729 = vld [vmem:[#allocation3] sm:$0xff]
        %v2730 = vld [vmem:[#allocation3 + $0x8] sm:$0xff]
        %v2731 = vld [vmem:[#allocation3 + $0x10] sm:$0xff]
        %v2732 = vld [vmem:[#allocation3 + $0x18] sm:$0xff]
        %v2733 = vld [vmem:[#allocation3 + $0x20] sm:$0xff]
        %v2734 = vld [vmem:[#allocation3 + $0x28] sm:$0xff]
        %v2735 = vld [vmem:[#allocation3 + $0x30] sm:$0xff]
        %v2736 = vld [vmem:[#allocation3 + $0x38] sm:$0xff]
        %v2737 = vld [vmem:[#allocation3 + $0x40] sm:$0xff]
        %v2738 = vld [vmem:[#allocation3 + $0x48] sm:$0xff]
        %v2739 = vld [vmem:[#allocation3 + $0x50] sm:$0xff]
        %v2740 = vld [vmem:[#allocation3 + $0x58] sm:$0xff]
        %v2741 = vld [vmem:[#allocation3 + $0x60] sm:$0xff]
        %v2742 = vld [vmem:[#allocation3 + $0x68] sm:$0xff]
        %v2743 = vld [vmem:[#allocation3 + $0x70] sm:$0xff]
        %v2744 = vld [vmem:[#allocation3 + $0x78] sm:$0xff]
        %v2745 = vld [vmem:[#allocation3 + $0x80] sm:$0xff]
        %v2746 = vld [vmem:[#allocation3 + $0x88] sm:$0xff]
        %v2747 = vld [vmem:[#allocation3 + $0x90] sm:$0xff]
        %v2748 = vld [vmem:[#allocation3 + $0x98] sm:$0xff]
        %v2749 = vld [vmem:[#allocation3 + $0xa0] sm:$0xff]
        %v2750 = vld [vmem:[#allocation3 + $0xa8] sm:$0xff]
        %v2751 = vld [vmem:[#allocation3 + $0xb0] sm:$0xff]
        %v2752 = vld [vmem:[#allocation3 + $0xb8] sm:$0xff]
        %v2753 = vld [vmem:[#allocation3 + $0xc0] sm:$0xff]
        %v2754 = vld [vmem:[#allocation3 + $0xc8] sm:$0xff]
        %v2755 = vld [vmem:[#allocation3 + $0xd0] sm:$0xff]
        %v2756 = vld [vmem:[#allocation3 + $0xd8] sm:$0xff]
        %v2757 = vld [vmem:[#allocation3 + $0xe0] sm:$0xff]
        %v2758 = vld [vmem:[#allocation3 + $0xe8] sm:$0xff]
        %v2759 = vld [vmem:[#allocation3 + $0xf0] sm:$0xff]
        %v2760 = vld [vmem:[#allocation3 + $0xf8] sm:$0xff]
        %v2761 = vld [vmem:[#allocation3 + $0x100] sm:$0xff]
        %v2762 = vld [vmem:[#allocation3 + $0x108] sm:$0xff]
        %v2763 = vld [vmem:[#allocation3 + $0x110] sm:$0xff]
        %v2764 = vld [vmem:[#allocation3 + $0x118] sm:$0xff]
        %v2765 = vld [vmem:[#allocation3 + $0x120] sm:$0xff]
        %v2766 = vld [vmem:[#allocation3 + $0x128] sm:$0xff]
        %v2767 = vld [vmem:[#allocation3 + $0x130] sm:$0xff]
        %v2768 = vld [vmem:[#allocation3 + $0x138] sm:$0xff]
        %v2769 = vld [vmem:[#allocation3 + $0x140] sm:$0xff]
        %v2770 = vld [vmem:[#allocation3 + $0x148] sm:$0xff]
        %v2771 = vld [vmem:[#allocation3 + $0x150] sm:$0xff]
        %v2772 = vld [vmem:[#allocation3 + $0x158] sm:$0xff]
        %v2773 = vld [vmem:[#allocation3 + $0x160] sm:$0xff]
        %v2774 = vld [vmem:[#allocation3 + $0x168] sm:$0xff]
        %v2775 = vld [vmem:[#allocation3 + $0x170] sm:$0xff]
        %v2776 = vld [vmem:[#allocation3 + $0x178] sm:$0xff]
        %v2777 = vld [vmem:[#allocation3 + $0x180] sm:$0xff]
        %v2778 = vld [vmem:[#allocation3 + $0x188] sm:$0xff]
        %v2779 = vld [vmem:[#allocation3 + $0x190] sm:$0xff]
        %v2780 = vld [vmem:[#allocation3 + $0x198] sm:$0xff]
        %v2781 = vld [vmem:[#allocation3 + $0x1a0] sm:$0xff]
        %v2782 = vld [vmem:[#allocation3 + $0x1a8] sm:$0xff]
        %v2783 = vld [vmem:[#allocation3 + $0x1b0] sm:$0xff]
        %v2784 = vld [vmem:[#allocation3 + $0x1b8] sm:$0xff]
        %v2785 = vld [vmem:[#allocation3 + $0x1c0] sm:$0xff]
        %v2786 = vld [vmem:[#allocation3 + $0x1c8] sm:$0xff]
        %v2787 = vld [vmem:[#allocation3 + $0x1d0] sm:$0xff]
        %v2788 = vld [vmem:[#allocation3 + $0x1d8] sm:$0xff]
        %v2789 = vld [vmem:[#allocation3 + $0x1e0] sm:$0xff]
        %v2790 = vld [vmem:[#allocation3 + $0x1e8] sm:$0xff]
        %v2791 = vld [vmem:[#allocation3 + $0x1f0] sm:$0xff]
        %v2792 = vld [vmem:[#allocation3 + $0x1f8] sm:$0xff]
        %v2793 = vand.u32 %v2730, 4294901760
        %2794 = vmatprep.subr.mxu0 %v2793
        %v2795 = vand.u32 %v2729, 4294901760
        %2796 = vmatpush1.msra.mxu0 %v2795
        %v2797 = vand.u32 %v2732, 4294901760
        %2798 = vmatprep.subr.mxu0 %v2797
        %v2799 = vand.u32 %v2731, 4294901760
        %2800 = vmatpush1.msra.mxu0 %v2799
        %v2801 = vand.u32 %v2734, 4294901760
        %2802 = vmatprep.subr.mxu0 %v2801
        %v2803 = vand.u32 %v2733, 4294901760
        %2804 = vmatpush1.msra.mxu0 %v2803
        %v2805 = vand.u32 %v2736, 4294901760
        %2806 = vmatprep.subr.mxu0 %v2805
        %v2807 = vand.u32 %v2735, 4294901760
        %2808 = vmatpush1.msra.mxu0 %v2807
        %v2809 = vand.u32 %v2738, 4294901760
        %2810 = vmatprep.subr.mxu0 %v2809
        %v2811 = vand.u32 %v2737, 4294901760
        %2812 = vmatpush1.msra.mxu0 %v2811
        %v2813 = vand.u32 %v2740, 4294901760
        %2814 = vmatprep.subr.mxu0 %v2813
        %v2815 = vand.u32 %v2739, 4294901760
        %2816 = vmatpush1.msra.mxu0 %v2815
        %v2817 = vand.u32 %v2742, 4294901760
        %2818 = vmatprep.subr.mxu0 %v2817
        %v2819 = vand.u32 %v2741, 4294901760
        %2820 = vmatpush1.msra.mxu0 %v2819
        %v2821 = vand.u32 %v2744, 4294901760
        %2822 = vmatprep.subr.mxu0 %v2821
        %v2823 = vand.u32 %v2743, 4294901760
        %2824 = vmatpush1.msra.mxu0 %v2823
        %v2825 = vand.u32 %v2746, 4294901760
        %2826 = vmatprep.subr.mxu0 %v2825
        %v2827 = vand.u32 %v2745, 4294901760
        %2828 = vmatpush1.msra.mxu0 %v2827
        %v2829 = vand.u32 %v2748, 4294901760
        %2830 = vmatprep.subr.mxu0 %v2829
        %v2831 = vand.u32 %v2747, 4294901760
        %2832 = vmatpush1.msra.mxu0 %v2831
        %v2833 = vand.u32 %v2750, 4294901760
        %2834 = vmatprep.subr.mxu0 %v2833
        %v2835 = vand.u32 %v2749, 4294901760
        %2836 = vmatpush1.msra.mxu0 %v2835
        %v2837 = vand.u32 %v2752, 4294901760
        %2838 = vmatprep.subr.mxu0 %v2837
        %v2839 = vand.u32 %v2751, 4294901760
        %2840 = vmatpush1.msra.mxu0 %v2839
        %v2841 = vand.u32 %v2754, 4294901760
        %2842 = vmatprep.subr.mxu0 %v2841
        %v2843 = vand.u32 %v2753, 4294901760
        %2844 = vmatpush1.msra.mxu0 %v2843
        %v2845 = vand.u32 %v2756, 4294901760
        %2846 = vmatprep.subr.mxu0 %v2845
        %v2847 = vand.u32 %v2755, 4294901760
        %2848 = vmatpush1.msra.mxu0 %v2847
        %v2849 = vand.u32 %v2758, 4294901760
        %2850 = vmatprep.subr.mxu0 %v2849
        %v2851 = vand.u32 %v2757, 4294901760
        %2852 = vmatpush1.msra.mxu0 %v2851
        %v2853 = vand.u32 %v2760, 4294901760
        %2854 = vmatprep.subr.mxu0 %v2853
        %v2855 = vand.u32 %v2759, 4294901760
        %2856 = vmatpush1.msra.mxu0 %v2855
        %v2857 = vand.u32 %v2762, 4294901760
        %2858 = vmatprep.subr.mxu0 %v2857
        %v2859 = vand.u32 %v2761, 4294901760
        %2860 = vmatpush1.msra.mxu0 %v2859
        %v2861 = vand.u32 %v2764, 4294901760
        %2862 = vmatprep.subr.mxu0 %v2861
        %v2863 = vand.u32 %v2763, 4294901760
        %2864 = vmatpush1.msra.mxu0 %v2863
        %v2865 = vand.u32 %v2766, 4294901760
        %2866 = vmatprep.subr.mxu0 %v2865
        %v2867 = vand.u32 %v2765, 4294901760
        %2868 = vmatpush1.msra.mxu0 %v2867
        %v2869 = vand.u32 %v2768, 4294901760
        %2870 = vmatprep.subr.mxu0 %v2869
        %v2871 = vand.u32 %v2767, 4294901760
        %2872 = vmatpush1.msra.mxu0 %v2871
        %v2873 = vand.u32 %v2770, 4294901760
        %2874 = vmatprep.subr.mxu0 %v2873
        %v2875 = vand.u32 %v2769, 4294901760
        %2876 = vmatpush1.msra.mxu0 %v2875
        %v2877 = vand.u32 %v2772, 4294901760
        %2878 = vmatprep.subr.mxu0 %v2877
        %v2879 = vand.u32 %v2771, 4294901760
        %2880 = vmatpush1.msra.mxu0 %v2879
        %v2881 = vand.u32 %v2774, 4294901760
        %2882 = vmatprep.subr.mxu0 %v2881
        %v2883 = vand.u32 %v2773, 4294901760
        %2884 = vmatpush1.msra.mxu0 %v2883
        %v2885 = vand.u32 %v2776, 4294901760
        %2886 = vmatprep.subr.mxu0 %v2885
        %v2887 = vand.u32 %v2775, 4294901760
        %2888 = vmatpush1.msra.mxu0 %v2887
        %v2889 = vand.u32 %v2778, 4294901760
        %2890 = vmatprep.subr.mxu0 %v2889
        %v2891 = vand.u32 %v2777, 4294901760
        %2892 = vmatpush1.msra.mxu0 %v2891
        %v2893 = vand.u32 %v2780, 4294901760
        %2894 = vmatprep.subr.mxu0 %v2893
        %v2895 = vand.u32 %v2779, 4294901760
        %2896 = vmatpush1.msra.mxu0 %v2895
        %v2897 = vand.u32 %v2782, 4294901760
        %2898 = vmatprep.subr.mxu0 %v2897
        %v2899 = vand.u32 %v2781, 4294901760
        %2900 = vmatpush1.msra.mxu0 %v2899
        %v2901 = vand.u32 %v2784, 4294901760
        %2902 = vmatprep.subr.mxu0 %v2901
        %v2903 = vand.u32 %v2783, 4294901760
        %2904 = vmatpush1.msra.mxu0 %v2903
        %v2905 = vand.u32 %v2786, 4294901760
        %2906 = vmatprep.subr.mxu0 %v2905
        %v2907 = vand.u32 %v2785, 4294901760
        %2908 = vmatpush1.msra.mxu0 %v2907
        %v2909 = vand.u32 %v2788, 4294901760
        %2910 = vmatprep.subr.mxu0 %v2909
        %v2911 = vand.u32 %v2787, 4294901760
        %2912 = vmatpush1.msra.mxu0 %v2911
        %v2913 = vand.u32 %v2790, 4294901760
        %2914 = vmatprep.subr.mxu0 %v2913
        %v2915 = vand.u32 %v2789, 4294901760
        %2916 = vmatpush1.msra.mxu0 %v2915
        %v2917 = vand.u32 %v2792, 4294901760
        %2918 = vmatprep.subr.mxu0 %v2917
        %v2919 = vand.u32 %v2791, 4294901760
        %2920 = vmatpush1.msra.mxu0 %v2919
        %v2921 = vand.u32 %v1634, 4294901760
        %v2922 = vsub.f32 %v1634, %v2921
        %v2923 = vand.u32 %v2922, 4294901760
        %v2924 = vsub.f32 %v2922, %v2923
        %v2925 = vand.u32 %v2924, 4294901760
        %2926 = vmatprep.mubr.f32.mxu0 %v2925
        %v2927 = vand.u32 %v1633, 4294901760
        %v2928 = vsub.f32 %v1633, %v2927
        %v2929 = vand.u32 %v2928, 4294901760
        %v2930 = vsub.f32 %v2928, %v2929
        %v2931 = vand.u32 %v2930, 4294901760
        %2932 = vmatmul.mubr.f32.gmra.mrb[0].mxu0 %v2931
        %v2933 = vpop.f32.mrb[0].mxu0
        %v2934 = vadd.f32 0.0, %v2933
        %v2935 = vpop.f32.mrb[0].mxu0
        %v2936 = vadd.f32 0.0, %v2935
        %v2937 = vand.u32 %v2087, 4294901760
        %v2938 = vsub.f32 %v2087, %v2937
        %v2939 = vand.u32 %v2938, 4294901760
        %v2940 = vsub.f32 %v2938, %v2939
        %v2941 = vand.u32 %v2940, 4294901760
        %2942 = vmatprep.mubr.f32.mxu0 %v2941
        %v2943 = vand.u32 %v2086, 4294901760
        %v2944 = vsub.f32 %v2086, %v2943
        %v2945 = vand.u32 %v2944, 4294901760
        %v2946 = vsub.f32 %v2944, %v2945
        %v2947 = vand.u32 %v2946, 4294901760
        %2948 = vmatmul.mubr.f32.gmra.mrb[0].mxu0 %v2947
        %v2949 = vpop.f32.mrb[0].mxu0
        %v2950 = vadd.f32 0.0, %v2949
        %v2951 = vpop.f32.mrb[0].mxu0
        %v2952 = vadd.f32 0.0, %v2951
        %v2953 = vand.u32 %v2452, 4294901760
        %v2954 = vsub.f32 %v2452, %v2953
        %v2955 = vand.u32 %v2954, 4294901760
        %v2956 = vsub.f32 %v2954, %v2955
        %v2957 = vand.u32 %v2956, 4294901760
        %2958 = vmatprep.mubr.f32.mxu0 %v2957
        %v2959 = vand.u32 %v2451, 4294901760
        %v2960 = vsub.f32 %v2451, %v2959
        %v2961 = vand.u32 %v2960, 4294901760
        %v2962 = vsub.f32 %v2960, %v2961
        %v2963 = vand.u32 %v2962, 4294901760
        %2964 = vmatmul.mubr.f32.gmra.mrb[0].mxu0 %v2963
        %v2965 = vpop.f32.mrb[0].mxu0
        %v2966 = vadd.f32 0.0, %v2965
        %v2967 = vpop.f32.mrb[0].mxu0
        %v2968 = vadd.f32 0.0, %v2967
        %v2969 = vand.u32 %v2692, 4294901760
        %v2970 = vsub.f32 %v2692, %v2969
        %v2971 = vand.u32 %v2970, 4294901760
        %v2972 = vsub.f32 %v2970, %v2971
        %v2973 = vand.u32 %v2972, 4294901760
        %2974 = vmatprep.mubr.f32.mxu0 %v2973
        %v2975 = vand.u32 %v2691, 4294901760
        %v2976 = vsub.f32 %v2691, %v2975
        %v2977 = vand.u32 %v2976, 4294901760
        %v2978 = vsub.f32 %v2976, %v2977
        %v2979 = vand.u32 %v2978, 4294901760
        %2980 = vmatmul.mubr.f32.gmra.mrb[0].mxu0 %v2979
        %v2981 = vpop.f32.mrb[0].mxu0
        %v2982 = vadd.f32 0.0, %v2981
        %v2983 = vpop.f32.mrb[0].mxu0
        %v2984 = vadd.f32 0.0, %v2983
        %2985 = vdwg.mxu0
        %v2986 = vand.u32 %v2730, 4294901760
        %v2987 = vsub.f32 %v2730, %v2986
        %v2988 = vand.u32 %v2987, 4294901760
        %v2989 = vsub.f32 %v2987, %v2988
        %v2990 = vand.u32 %v2989, 4294901760
        %2991 = vmatprep.subr.mxu0 %v2990
        %v2992 = vand.u32 %v2729, 4294901760
        %v2993 = vsub.f32 %v2729, %v2992
        %v2994 = vand.u32 %v2993, 4294901760
        %v2995 = vsub.f32 %v2993, %v2994
        %v2996 = vand.u32 %v2995, 4294901760
        %2997 = vmatpush1.msra.mxu0 %v2996
        %v2998 = vand.u32 %v2732, 4294901760
        %v2999 = vsub.f32 %v2732, %v2998
        %v3000 = vand.u32 %v2999, 4294901760
        %v3001 = vsub.f32 %v2999, %v3000
        %v3002 = vand.u32 %v3001, 4294901760
        %3003 = vmatprep.subr.mxu0 %v3002
        %v3004 = vand.u32 %v2731, 4294901760
        %v3005 = vsub.f32 %v2731, %v3004
        %v3006 = vand.u32 %v3005, 4294901760
        %v3007 = vsub.f32 %v3005, %v3006
        %v3008 = vand.u32 %v3007, 4294901760
        %3009 = vmatpush1.msra.mxu0 %v3008
        %v3010 = vand.u32 %v2734, 4294901760
        %v3011 = vsub.f32 %v2734, %v3010
        %v3012 = vand.u32 %v3011, 4294901760
        %v3013 = vsub.f32 %v3011, %v3012
        %v3014 = vand.u32 %v3013, 4294901760
        %3015 = vmatprep.subr.mxu0 %v3014
        %v3016 = vand.u32 %v2733, 4294901760
        %v3017 = vsub.f32 %v2733, %v3016
        %v3018 = vand.u32 %v3017, 4294901760
        %v3019 = vsub.f32 %v3017, %v3018
        %v3020 = vand.u32 %v3019, 4294901760
        %3021 = vmatpush1.msra.mxu0 %v3020
        %v3022 = vand.u32 %v2736, 4294901760
        %v3023 = vsub.f32 %v2736, %v3022
        %v3024 = vand.u32 %v3023, 4294901760
        %v3025 = vsub.f32 %v3023, %v3024
        %v3026 = vand.u32 %v3025, 4294901760
        %3027 = vmatprep.subr.mxu0 %v3026
        %v3028 = vand.u32 %v2735, 4294901760
        %v3029 = vsub.f32 %v2735, %v3028
        %v3030 = vand.u32 %v3029, 4294901760
        %v3031 = vsub.f32 %v3029, %v3030
        %v3032 = vand.u32 %v3031, 4294901760
        %3033 = vmatpush1.msra.mxu0 %v3032
        %v3034 = vand.u32 %v2738, 4294901760
        %v3035 = vsub.f32 %v2738, %v3034
        %v3036 = vand.u32 %v3035, 4294901760
        %v3037 = vsub.f32 %v3035, %v3036
        %v3038 = vand.u32 %v3037, 4294901760
        %3039 = vmatprep.subr.mxu0 %v3038
        %v3040 = vand.u32 %v2737, 4294901760
        %v3041 = vsub.f32 %v2737, %v3040
        %v3042 = vand.u32 %v3041, 4294901760
        %v3043 = vsub.f32 %v3041, %v3042
        %v3044 = vand.u32 %v3043, 4294901760
        %3045 = vmatpush1.msra.mxu0 %v3044
        %v3046 = vand.u32 %v2740, 4294901760
        %v3047 = vsub.f32 %v2740, %v3046
        %v3048 = vand.u32 %v3047, 4294901760
        %v3049 = vsub.f32 %v3047, %v3048
        %v3050 = vand.u32 %v3049, 4294901760
        %3051 = vmatprep.subr.mxu0 %v3050
        %v3052 = vand.u32 %v2739, 4294901760
        %v3053 = vsub.f32 %v2739, %v3052
        %v3054 = vand.u32 %v3053, 4294901760
        %v3055 = vsub.f32 %v3053, %v3054
        %v3056 = vand.u32 %v3055, 4294901760
        %3057 = vmatpush1.msra.mxu0 %v3056
        %v3058 = vand.u32 %v2742, 4294901760
        %v3059 = vsub.f32 %v2742, %v3058
        %v3060 = vand.u32 %v3059, 4294901760
        %v3061 = vsub.f32 %v3059, %v3060
        %v3062 = vand.u32 %v3061, 4294901760
        %3063 = vmatprep.subr.mxu0 %v3062
        %v3064 = vand.u32 %v2741, 4294901760
        %v3065 = vsub.f32 %v2741, %v3064
        %v3066 = vand.u32 %v3065, 4294901760
        %v3067 = vsub.f32 %v3065, %v3066
        %v3068 = vand.u32 %v3067, 4294901760
        %3069 = vmatpush1.msra.mxu0 %v3068
        %v3070 = vand.u32 %v2744, 4294901760
        %v3071 = vsub.f32 %v2744, %v3070
        %v3072 = vand.u32 %v3071, 4294901760
        %v3073 = vsub.f32 %v3071, %v3072
        %v3074 = vand.u32 %v3073, 4294901760
        %3075 = vmatprep.subr.mxu0 %v3074
        %v3076 = vand.u32 %v2743, 4294901760
        %v3077 = vsub.f32 %v2743, %v3076
        %v3078 = vand.u32 %v3077, 4294901760
        %v3079 = vsub.f32 %v3077, %v3078
        %v3080 = vand.u32 %v3079, 4294901760
        %3081 = vmatpush1.msra.mxu0 %v3080
        %v3082 = vand.u32 %v2746, 4294901760
        %v3083 = vsub.f32 %v2746, %v3082
        %v3084 = vand.u32 %v3083, 4294901760
        %v3085 = vsub.f32 %v3083, %v3084
        %v3086 = vand.u32 %v3085, 4294901760
        %3087 = vmatprep.subr.mxu0 %v3086
        %v3088 = vand.u32 %v2745, 4294901760
        %v3089 = vsub.f32 %v2745, %v3088
        %v3090 = vand.u32 %v3089, 4294901760
        %v3091 = vsub.f32 %v3089, %v3090
        %v3092 = vand.u32 %v3091, 4294901760
        %3093 = vmatpush1.msra.mxu0 %v3092
        %v3094 = vand.u32 %v2748, 4294901760
        %v3095 = vsub.f32 %v2748, %v3094
        %v3096 = vand.u32 %v3095, 4294901760
        %v3097 = vsub.f32 %v3095, %v3096
        %v3098 = vand.u32 %v3097, 4294901760
        %3099 = vmatprep.subr.mxu0 %v3098
        %v3100 = vand.u32 %v2747, 4294901760
        %v3101 = vsub.f32 %v2747, %v3100
        %v3102 = vand.u32 %v3101, 4294901760
        %v3103 = vsub.f32 %v3101, %v3102
        %v3104 = vand.u32 %v3103, 4294901760
        %3105 = vmatpush1.msra.mxu0 %v3104
        %v3106 = vand.u32 %v2750, 4294901760
        %v3107 = vsub.f32 %v2750, %v3106
        %v3108 = vand.u32 %v3107, 4294901760
        %v3109 = vsub.f32 %v3107, %v3108
        %v3110 = vand.u32 %v3109, 4294901760
        %3111 = vmatprep.subr.mxu0 %v3110
        %v3112 = vand.u32 %v2749, 4294901760
        %v3113 = vsub.f32 %v2749, %v3112
        %v3114 = vand.u32 %v3113, 4294901760
        %v3115 = vsub.f32 %v3113, %v3114
        %v3116 = vand.u32 %v3115, 4294901760
        %3117 = vmatpush1.msra.mxu0 %v3116
        %v3118 = vand.u32 %v2752, 4294901760
        %v3119 = vsub.f32 %v2752, %v3118
        %v3120 = vand.u32 %v3119, 4294901760
        %v3121 = vsub.f32 %v3119, %v3120
        %v3122 = vand.u32 %v3121, 4294901760
        %3123 = vmatprep.subr.mxu0 %v3122
        %v3124 = vand.u32 %v2751, 4294901760
        %v3125 = vsub.f32 %v2751, %v3124
        %v3126 = vand.u32 %v3125, 4294901760
        %v3127 = vsub.f32 %v3125, %v3126
        %v3128 = vand.u32 %v3127, 4294901760
        %3129 = vmatpush1.msra.mxu0 %v3128
        %v3130 = vand.u32 %v2754, 4294901760
        %v3131 = vsub.f32 %v2754, %v3130
        %v3132 = vand.u32 %v3131, 4294901760
        %v3133 = vsub.f32 %v3131, %v3132
        %v3134 = vand.u32 %v3133, 4294901760
        %3135 = vmatprep.subr.mxu0 %v3134
        %v3136 = vand.u32 %v2753, 4294901760
        %v3137 = vsub.f32 %v2753, %v3136
        %v3138 = vand.u32 %v3137, 4294901760
        %v3139 = vsub.f32 %v3137, %v3138
        %v3140 = vand.u32 %v3139, 4294901760
        %3141 = vmatpush1.msra.mxu0 %v3140
        %v3142 = vand.u32 %v2756, 4294901760
        %v3143 = vsub.f32 %v2756, %v3142
        %v3144 = vand.u32 %v3143, 4294901760
        %v3145 = vsub.f32 %v3143, %v3144
        %v3146 = vand.u32 %v3145, 4294901760
        %3147 = vmatprep.subr.mxu0 %v3146
        %v3148 = vand.u32 %v2755, 4294901760
        %v3149 = vsub.f32 %v2755, %v3148
        %v3150 = vand.u32 %v3149, 4294901760
        %v3151 = vsub.f32 %v3149, %v3150
        %v3152 = vand.u32 %v3151, 4294901760
        %3153 = vmatpush1.msra.mxu0 %v3152
        %v3154 = vand.u32 %v2758, 4294901760
        %v3155 = vsub.f32 %v2758, %v3154
        %v3156 = vand.u32 %v3155, 4294901760
        %v3157 = vsub.f32 %v3155, %v3156
        %v3158 = vand.u32 %v3157, 4294901760
        %3159 = vmatprep.subr.mxu0 %v3158
        %v3160 = vand.u32 %v2757, 4294901760
        %v3161 = vsub.f32 %v2757, %v3160
        %v3162 = vand.u32 %v3161, 4294901760
        %v3163 = vsub.f32 %v3161, %v3162
        %v3164 = vand.u32 %v3163, 4294901760
        %3165 = vmatpush1.msra.mxu0 %v3164
        %v3166 = vand.u32 %v2760, 4294901760
        %v3167 = vsub.f32 %v2760, %v3166
        %v3168 = vand.u32 %v3167, 4294901760
        %v3169 = vsub.f32 %v3167, %v3168
        %v3170 = vand.u32 %v3169, 4294901760
        %3171 = vmatprep.subr.mxu0 %v3170
        %v3172 = vand.u32 %v2759, 4294901760
        %v3173 = vsub.f32 %v2759, %v3172
        %v3174 = vand.u32 %v3173, 4294901760
        %v3175 = vsub.f32 %v3173, %v3174
        %v3176 = vand.u32 %v3175, 4294901760
        %3177 = vmatpush1.msra.mxu0 %v3176
        %v3178 = vand.u32 %v2762, 4294901760
        %v3179 = vsub.f32 %v2762, %v3178
        %v3180 = vand.u32 %v3179, 4294901760
        %v3181 = vsub.f32 %v3179, %v3180
        %v3182 = vand.u32 %v3181, 4294901760
        %3183 = vmatprep.subr.mxu0 %v3182
        %v3184 = vand.u32 %v2761, 4294901760
        %v3185 = vsub.f32 %v2761, %v3184
        %v3186 = vand.u32 %v3185, 4294901760
        %v3187 = vsub.f32 %v3185, %v3186
        %v3188 = vand.u32 %v3187, 4294901760
        %3189 = vmatpush1.msra.mxu0 %v3188
        %v3190 = vand.u32 %v2764, 4294901760
        %v3191 = vsub.f32 %v2764, %v3190
        %v3192 = vand.u32 %v3191, 4294901760
        %v3193 = vsub.f32 %v3191, %v3192
        %v3194 = vand.u32 %v3193, 4294901760
        %3195 = vmatprep.subr.mxu0 %v3194
        %v3196 = vand.u32 %v2763, 4294901760
        %v3197 = vsub.f32 %v2763, %v3196
        %v3198 = vand.u32 %v3197, 4294901760
        %v3199 = vsub.f32 %v3197, %v3198
        %v3200 = vand.u32 %v3199, 4294901760
        %3201 = vmatpush1.msra.mxu0 %v3200
        %v3202 = vand.u32 %v2766, 4294901760
        %v3203 = vsub.f32 %v2766, %v3202
        %v3204 = vand.u32 %v3203, 4294901760
        %v3205 = vsub.f32 %v3203, %v3204
        %v3206 = vand.u32 %v3205, 4294901760
        %3207 = vmatprep.subr.mxu0 %v3206
        %v3208 = vand.u32 %v2765, 4294901760
        %v3209 = vsub.f32 %v2765, %v3208
        %v3210 = vand.u32 %v3209, 4294901760
        %v3211 = vsub.f32 %v3209, %v3210
        %v3212 = vand.u32 %v3211, 4294901760
        %3213 = vmatpush1.msra.mxu0 %v3212
        %v3214 = vand.u32 %v2768, 4294901760
        %v3215 = vsub.f32 %v2768, %v3214
        %v3216 = vand.u32 %v3215, 4294901760
        %v3217 = vsub.f32 %v3215, %v3216
        %v3218 = vand.u32 %v3217, 4294901760
        %3219 = vmatprep.subr.mxu0 %v3218
        %v3220 = vand.u32 %v2767, 4294901760
        %v3221 = vsub.f32 %v2767, %v3220
        %v3222 = vand.u32 %v3221, 4294901760
        %v3223 = vsub.f32 %v3221, %v3222
        %v3224 = vand.u32 %v3223, 4294901760
        %3225 = vmatpush1.msra.mxu0 %v3224
        %v3226 = vand.u32 %v2770, 4294901760
        %v3227 = vsub.f32 %v2770, %v3226
        %v3228 = vand.u32 %v3227, 4294901760
        %v3229 = vsub.f32 %v3227, %v3228
        %v3230 = vand.u32 %v3229, 4294901760
        %3231 = vmatprep.subr.mxu0 %v3230
        %v3232 = vand.u32 %v2769, 4294901760
        %v3233 = vsub.f32 %v2769, %v3232
        %v3234 = vand.u32 %v3233, 4294901760
        %v3235 = vsub.f32 %v3233, %v3234
        %v3236 = vand.u32 %v3235, 4294901760
        %3237 = vmatpush1.msra.mxu0 %v3236
        %v3238 = vand.u32 %v2772, 4294901760
        %v3239 = vsub.f32 %v2772, %v3238
        %v3240 = vand.u32 %v3239, 4294901760
        %v3241 = vsub.f32 %v3239, %v3240
        %v3242 = vand.u32 %v3241, 4294901760
        %3243 = vmatprep.subr.mxu0 %v3242
        %v3244 = vand.u32 %v2771, 4294901760
        %v3245 = vsub.f32 %v2771, %v3244
        %v3246 = vand.u32 %v3245, 4294901760
        %v3247 = vsub.f32 %v3245, %v3246
        %v3248 = vand.u32 %v3247, 4294901760
        %3249 = vmatpush1.msra.mxu0 %v3248
        %v3250 = vand.u32 %v2774, 4294901760
        %v3251 = vsub.f32 %v2774, %v3250
        %v3252 = vand.u32 %v3251, 4294901760
        %v3253 = vsub.f32 %v3251, %v3252
        %v3254 = vand.u32 %v3253, 4294901760
        %3255 = vmatprep.subr.mxu0 %v3254
        %v3256 = vand.u32 %v2773, 4294901760
        %v3257 = vsub.f32 %v2773, %v3256
        %v3258 = vand.u32 %v3257, 4294901760
        %v3259 = vsub.f32 %v3257, %v3258
        %v3260 = vand.u32 %v3259, 4294901760
        %3261 = vmatpush1.msra.mxu0 %v3260
        %v3262 = vand.u32 %v2776, 4294901760
        %v3263 = vsub.f32 %v2776, %v3262
        %v3264 = vand.u32 %v3263, 4294901760
        %v3265 = vsub.f32 %v3263, %v3264
        %v3266 = vand.u32 %v3265, 4294901760
        %3267 = vmatprep.subr.mxu0 %v3266
        %v3268 = vand.u32 %v2775, 4294901760
        %v3269 = vsub.f32 %v2775, %v3268
        %v3270 = vand.u32 %v3269, 4294901760
        %v3271 = vsub.f32 %v3269, %v3270
        %v3272 = vand.u32 %v3271, 4294901760
        %3273 = vmatpush1.msra.mxu0 %v3272
        %v3274 = vand.u32 %v2778, 4294901760
        %v3275 = vsub.f32 %v2778, %v3274
        %v3276 = vand.u32 %v3275, 4294901760
        %v3277 = vsub.f32 %v3275, %v3276
        %v3278 = vand.u32 %v3277, 4294901760
        %3279 = vmatprep.subr.mxu0 %v3278
        %v3280 = vand.u32 %v2777, 4294901760
        %v3281 = vsub.f32 %v2777, %v3280
        %v3282 = vand.u32 %v3281, 4294901760
        %v3283 = vsub.f32 %v3281, %v3282
        %v3284 = vand.u32 %v3283, 4294901760
        %3285 = vmatpush1.msra.mxu0 %v3284
        %v3286 = vand.u32 %v2780, 4294901760
        %v3287 = vsub.f32 %v2780, %v3286
        %v3288 = vand.u32 %v3287, 4294901760
        %v3289 = vsub.f32 %v3287, %v3288
        %v3290 = vand.u32 %v3289, 4294901760
        %3291 = vmatprep.subr.mxu0 %v3290
        %v3292 = vand.u32 %v2779, 4294901760
        %v3293 = vsub.f32 %v2779, %v3292
        %v3294 = vand.u32 %v3293, 4294901760
        %v3295 = vsub.f32 %v3293, %v3294
        %v3296 = vand.u32 %v3295, 4294901760
        %3297 = vmatpush1.msra.mxu0 %v3296
        %v3298 = vand.u32 %v2782, 4294901760
        %v3299 = vsub.f32 %v2782, %v3298
        %v3300 = vand.u32 %v3299, 4294901760
        %v3301 = vsub.f32 %v3299, %v3300
        %v3302 = vand.u32 %v3301, 4294901760
        %3303 = vmatprep.subr.mxu0 %v3302
        %v3304 = vand.u32 %v2781, 4294901760
        %v3305 = vsub.f32 %v2781, %v3304
        %v3306 = vand.u32 %v3305, 4294901760
        %v3307 = vsub.f32 %v3305, %v3306
        %v3308 = vand.u32 %v3307, 4294901760
        %3309 = vmatpush1.msra.mxu0 %v3308
        %v3310 = vand.u32 %v2784, 4294901760
        %v3311 = vsub.f32 %v2784, %v3310
        %v3312 = vand.u32 %v3311, 4294901760
        %v3313 = vsub.f32 %v3311, %v3312
        %v3314 = vand.u32 %v3313, 4294901760
        %3315 = vmatprep.subr.mxu0 %v3314
        %v3316 = vand.u32 %v2783, 4294901760
        %v3317 = vsub.f32 %v2783, %v3316
        %v3318 = vand.u32 %v3317, 4294901760
        %v3319 = vsub.f32 %v3317, %v3318
        %v3320 = vand.u32 %v3319, 4294901760
        %3321 = vmatpush1.msra.mxu0 %v3320
        %v3322 = vand.u32 %v2786, 4294901760
        %v3323 = vsub.f32 %v2786, %v3322
        %v3324 = vand.u32 %v3323, 4294901760
        %v3325 = vsub.f32 %v3323, %v3324
        %v3326 = vand.u32 %v3325, 4294901760
        %3327 = vmatprep.subr.mxu0 %v3326
        %v3328 = vand.u32 %v2785, 4294901760
        %v3329 = vsub.f32 %v2785, %v3328
        %v3330 = vand.u32 %v3329, 4294901760
        %v3331 = vsub.f32 %v3329, %v3330
        %v3332 = vand.u32 %v3331, 4294901760
        %3333 = vmatpush1.msra.mxu0 %v3332
        %v3334 = vand.u32 %v2788, 4294901760
        %v3335 = vsub.f32 %v2788, %v3334
        %v3336 = vand.u32 %v3335, 4294901760
        %v3337 = vsub.f32 %v3335, %v3336
        %v3338 = vand.u32 %v3337, 4294901760
        %3339 = vmatprep.subr.mxu0 %v3338
        %v3340 = vand.u32 %v2787, 4294901760
        %v3341 = vsub.f32 %v2787, %v3340
        %v3342 = vand.u32 %v3341, 4294901760
        %v3343 = vsub.f32 %v3341, %v3342
        %v3344 = vand.u32 %v3343, 4294901760
        %3345 = vmatpush1.msra.mxu0 %v3344
        %v3346 = vand.u32 %v2790, 4294901760
        %v3347 = vsub.f32 %v2790, %v3346
        %v3348 = vand.u32 %v3347, 4294901760
        %v3349 = vsub.f32 %v3347, %v3348
        %v3350 = vand.u32 %v3349, 4294901760
        %3351 = vmatprep.subr.mxu0 %v3350
        %v3352 = vand.u32 %v2789, 4294901760
        %v3353 = vsub.f32 %v2789, %v3352
        %v3354 = vand.u32 %v3353, 4294901760
        %v3355 = vsub.f32 %v3353, %v3354
        %v3356 = vand.u32 %v3355, 4294901760
        %3357 = vmatpush1.msra.mxu0 %v3356
        %v3358 = vand.u32 %v2792, 4294901760
        %v3359 = vsub.f32 %v2792, %v3358
        %v3360 = vand.u32 %v3359, 4294901760
        %v3361 = vsub.f32 %v3359, %v3360
        %v3362 = vand.u32 %v3361, 4294901760
        %3363 = vmatprep.subr.mxu0 %v3362
        %v3364 = vand.u32 %v2791, 4294901760
        %v3365 = vsub.f32 %v2791, %v3364
        %v3366 = vand.u32 %v3365, 4294901760
        %v3367 = vsub.f32 %v3365, %v3366
        %v3368 = vand.u32 %v3367, 4294901760
        %3369 = vmatpush1.msra.mxu0 %v3368
        %v3370 = vand.u32 %v1634, 4294901760
        %3371 = vmatprep.mubr.f32.mxu0 %v3370
        %v3372 = vand.u32 %v1633, 4294901760
        %3373 = vmatmul.mubr.f32.gmra.mrb[0].mxu0 %v3372
        %v3374 = vpop.f32.mrb[0].mxu0
        %v3375 = vadd.f32 %v2934, %v3374
        %v3376 = vpop.f32.mrb[0].mxu0
        %v3377 = vadd.f32 %v2936, %v3376
        %v3378 = vand.u32 %v2087, 4294901760
        %3379 = vmatprep.mubr.f32.mxu0 %v3378
        %v3380 = vand.u32 %v2086, 4294901760
        %3381 = vmatmul.mubr.f32.gmra.mrb[0].mxu0 %v3380
        %v3382 = vpop.f32.mrb[0].mxu0
        %v3383 = vadd.f32 %v2950, %v3382
        %v3384 = vpop.f32.mrb[0].mxu0
        %v3385 = vadd.f32 %v2952, %v3384
        %v3386 = vand.u32 %v2452, 4294901760
        %3387 = vmatprep.mubr.f32.mxu0 %v3386
        %v3388 = vand.u32 %v2451, 4294901760
        %3389 = vmatmul.mubr.f32.gmra.mrb[0].mxu0 %v3388
        %v3390 = vpop.f32.mrb[0].mxu0
        %v3391 = vadd.f32 %v2966, %v3390
        %v3392 = vpop.f32.mrb[0].mxu0
        %v3393 = vadd.f32 %v2968, %v3392
        %v3394 = vand.u32 %v2692, 4294901760
        %3395 = vmatprep.mubr.f32.mxu0 %v3394
        %v3396 = vand.u32 %v2691, 4294901760
        %3397 = vmatmul.mubr.f32.gmra.mrb[0].mxu0 %v3396
        %v3398 = vpop.f32.mrb[0].mxu0
        %v3399 = vadd.f32 %v2982, %v3398
        %v3400 = vpop.f32.mrb[0].mxu0
        %v3401 = vadd.f32 %v2984, %v3400
        %3402 = vdwg.mxu0
        %v3403 = vand.u32 %v2730, 4294901760
        %v3404 = vsub.f32 %v2730, %v3403
        %3405 = vmatprep.subr.mxu0 %v3404
        %v3406 = vand.u32 %v2729, 4294901760
        %v3407 = vsub.f32 %v2729, %v3406
        %3408 = vmatpush1.msra.mxu0 %v3407
        %v3409 = vand.u32 %v2732, 4294901760
        %v3410 = vsub.f32 %v2732, %v3409
        %3411 = vmatprep.subr.mxu0 %v3410
        %v3412 = vand.u32 %v2731, 4294901760
        %v3413 = vsub.f32 %v2731, %v3412
        %3414 = vmatpush1.msra.mxu0 %v3413
        %v3415 = vand.u32 %v2734, 4294901760
        %v3416 = vsub.f32 %v2734, %v3415
        %3417 = vmatprep.subr.mxu0 %v3416
        %v3418 = vand.u32 %v2733, 4294901760
        %v3419 = vsub.f32 %v2733, %v3418
        %3420 = vmatpush1.msra.mxu0 %v3419
        %v3421 = vand.u32 %v2736, 4294901760
        %v3422 = vsub.f32 %v2736, %v3421
        %3423 = vmatprep.subr.mxu0 %v3422
        %v3424 = vand.u32 %v2735, 4294901760
        %v3425 = vsub.f32 %v2735, %v3424
        %3426 = vmatpush1.msra.mxu0 %v3425
        %v3427 = vand.u32 %v2738, 4294901760
        %v3428 = vsub.f32 %v2738, %v3427
        %3429 = vmatprep.subr.mxu0 %v3428
        %v3430 = vand.u32 %v2737, 4294901760
        %v3431 = vsub.f32 %v2737, %v3430
        %3432 = vmatpush1.msra.mxu0 %v3431
        %v3433 = vand.u32 %v2740, 4294901760
        %v3434 = vsub.f32 %v2740, %v3433
        %3435 = vmatprep.subr.mxu0 %v3434
        %v3436 = vand.u32 %v2739, 4294901760
        %v3437 = vsub.f32 %v2739, %v3436
        %3438 = vmatpush1.msra.mxu0 %v3437
        %v3439 = vand.u32 %v2742, 4294901760
        %v3440 = vsub.f32 %v2742, %v3439
        %3441 = vmatprep.subr.mxu0 %v3440
        %v3442 = vand.u32 %v2741, 4294901760
        %v3443 = vsub.f32 %v2741, %v3442
        %3444 = vmatpush1.msra.mxu0 %v3443
        %v3445 = vand.u32 %v2744, 4294901760
        %v3446 = vsub.f32 %v2744, %v3445
        %3447 = vmatprep.subr.mxu0 %v3446
        %v3448 = vand.u32 %v2743, 4294901760
        %v3449 = vsub.f32 %v2743, %v3448
        %3450 = vmatpush1.msra.mxu0 %v3449
        %v3451 = vand.u32 %v2746, 4294901760
        %v3452 = vsub.f32 %v2746, %v3451
        %3453 = vmatprep.subr.mxu0 %v3452
        %v3454 = vand.u32 %v2745, 4294901760
        %v3455 = vsub.f32 %v2745, %v3454
        %3456 = vmatpush1.msra.mxu0 %v3455
        %v3457 = vand.u32 %v2748, 4294901760
        %v3458 = vsub.f32 %v2748, %v3457
        %3459 = vmatprep.subr.mxu0 %v3458
        %v3460 = vand.u32 %v2747, 4294901760
        %v3461 = vsub.f32 %v2747, %v3460
        %3462 = vmatpush1.msra.mxu0 %v3461
        %v3463 = vand.u32 %v2750, 4294901760
        %v3464 = vsub.f32 %v2750, %v3463
        %3465 = vmatprep.subr.mxu0 %v3464
        %v3466 = vand.u32 %v2749, 4294901760
        %v3467 = vsub.f32 %v2749, %v3466
        %3468 = vmatpush1.msra.mxu0 %v3467
        %v3469 = vand.u32 %v2752, 4294901760
        %v3470 = vsub.f32 %v2752, %v3469
        %3471 = vmatprep.subr.mxu0 %v3470
        %v3472 = vand.u32 %v2751, 4294901760
        %v3473 = vsub.f32 %v2751, %v3472
        %3474 = vmatpush1.msra.mxu0 %v3473
        %v3475 = vand.u32 %v2754, 4294901760
        %v3476 = vsub.f32 %v2754, %v3475
        %3477 = vmatprep.subr.mxu0 %v3476
        %v3478 = vand.u32 %v2753, 4294901760
        %v3479 = vsub.f32 %v2753, %v3478
        %3480 = vmatpush1.msra.mxu0 %v3479
        %v3481 = vand.u32 %v2756, 4294901760
        %v3482 = vsub.f32 %v2756, %v3481
        %3483 = vmatprep.subr.mxu0 %v3482
        %v3484 = vand.u32 %v2755, 4294901760
        %v3485 = vsub.f32 %v2755, %v3484
        %3486 = vmatpush1.msra.mxu0 %v3485
        %v3487 = vand.u32 %v2758, 4294901760
        %v3488 = vsub.f32 %v2758, %v3487
        %3489 = vmatprep.subr.mxu0 %v3488
        %v3490 = vand.u32 %v2757, 4294901760
        %v3491 = vsub.f32 %v2757, %v3490
        %3492 = vmatpush1.msra.mxu0 %v3491
        %v3493 = vand.u32 %v2760, 4294901760
        %v3494 = vsub.f32 %v2760, %v3493
        %3495 = vmatprep.subr.mxu0 %v3494
        %v3496 = vand.u32 %v2759, 4294901760
        %v3497 = vsub.f32 %v2759, %v3496
        %3498 = vmatpush1.msra.mxu0 %v3497
        %v3499 = vand.u32 %v2762, 4294901760
        %v3500 = vsub.f32 %v2762, %v3499
        %3501 = vmatprep.subr.mxu0 %v3500
        %v3502 = vand.u32 %v2761, 4294901760
        %v3503 = vsub.f32 %v2761, %v3502
        %3504 = vmatpush1.msra.mxu0 %v3503
        %v3505 = vand.u32 %v2764, 4294901760
        %v3506 = vsub.f32 %v2764, %v3505
        %3507 = vmatprep.subr.mxu0 %v3506
        %v3508 = vand.u32 %v2763, 4294901760
        %v3509 = vsub.f32 %v2763, %v3508
        %3510 = vmatpush1.msra.mxu0 %v3509
        %v3511 = vand.u32 %v2766, 4294901760
        %v3512 = vsub.f32 %v2766, %v3511
        %3513 = vmatprep.subr.mxu0 %v3512
        %v3514 = vand.u32 %v2765, 4294901760
        %v3515 = vsub.f32 %v2765, %v3514
        %3516 = vmatpush1.msra.mxu0 %v3515
        %v3517 = vand.u32 %v2768, 4294901760
        %v3518 = vsub.f32 %v2768, %v3517
        %3519 = vmatprep.subr.mxu0 %v3518
        %v3520 = vand.u32 %v2767, 4294901760
        %v3521 = vsub.f32 %v2767, %v3520
        %3522 = vmatpush1.msra.mxu0 %v3521
        %v3523 = vand.u32 %v2770, 4294901760
        %v3524 = vsub.f32 %v2770, %v3523
        %3525 = vmatprep.subr.mxu0 %v3524
        %v3526 = vand.u32 %v2769, 4294901760
        %v3527 = vsub.f32 %v2769, %v3526
        %3528 = vmatpush1.msra.mxu0 %v3527
        %v3529 = vand.u32 %v2772, 4294901760
        %v3530 = vsub.f32 %v2772, %v3529
        %3531 = vmatprep.subr.mxu0 %v3530
        %v3532 = vand.u32 %v2771, 4294901760
        %v3533 = vsub.f32 %v2771, %v3532
        %3534 = vmatpush1.msra.mxu0 %v3533
        %v3535 = vand.u32 %v2774, 4294901760
        %v3536 = vsub.f32 %v2774, %v3535
        %3537 = vmatprep.subr.mxu0 %v3536
        %v3538 = vand.u32 %v2773, 4294901760
        %v3539 = vsub.f32 %v2773, %v3538
        %3540 = vmatpush1.msra.mxu0 %v3539
        %v3541 = vand.u32 %v2776, 4294901760
        %v3542 = vsub.f32 %v2776, %v3541
        %3543 = vmatprep.subr.mxu0 %v3542
        %v3544 = vand.u32 %v2775, 4294901760
        %v3545 = vsub.f32 %v2775, %v3544
        %3546 = vmatpush1.msra.mxu0 %v3545
        %v3547 = vand.u32 %v2778, 4294901760
        %v3548 = vsub.f32 %v2778, %v3547
        %3549 = vmatprep.subr.mxu0 %v3548
        %v3550 = vand.u32 %v2777, 4294901760
        %v3551 = vsub.f32 %v2777, %v3550
        %3552 = vmatpush1.msra.mxu0 %v3551
        %v3553 = vand.u32 %v2780, 4294901760
        %v3554 = vsub.f32 %v2780, %v3553
        %3555 = vmatprep.subr.mxu0 %v3554
        %v3556 = vand.u32 %v2779, 4294901760
        %v3557 = vsub.f32 %v2779, %v3556
        %3558 = vmatpush1.msra.mxu0 %v3557
        %v3559 = vand.u32 %v2782, 4294901760
        %v3560 = vsub.f32 %v2782, %v3559
        %3561 = vmatprep.subr.mxu0 %v3560
        %v3562 = vand.u32 %v2781, 4294901760
        %v3563 = vsub.f32 %v2781, %v3562
        %3564 = vmatpush1.msra.mxu0 %v3563
        %v3565 = vand.u32 %v2784, 4294901760
        %v3566 = vsub.f32 %v2784, %v3565
        %3567 = vmatprep.subr.mxu0 %v3566
        %v3568 = vand.u32 %v2783, 4294901760
        %v3569 = vsub.f32 %v2783, %v3568
        %3570 = vmatpush1.msra.mxu0 %v3569
        %v3571 = vand.u32 %v2786, 4294901760
        %v3572 = vsub.f32 %v2786, %v3571
        %3573 = vmatprep.subr.mxu0 %v3572
        %v3574 = vand.u32 %v2785, 4294901760
        %v3575 = vsub.f32 %v2785, %v3574
        %3576 = vmatpush1.msra.mxu0 %v3575
        %v3577 = vand.u32 %v2788, 4294901760
        %v3578 = vsub.f32 %v2788, %v3577
        %3579 = vmatprep.subr.mxu0 %v3578
        %v3580 = vand.u32 %v2787, 4294901760
        %v3581 = vsub.f32 %v2787, %v3580
        %3582 = vmatpush1.msra.mxu0 %v3581
        %v3583 = vand.u32 %v2790, 4294901760
        %v3584 = vsub.f32 %v2790, %v3583
        %3585 = vmatprep.subr.mxu0 %v3584
        %v3586 = vand.u32 %v2789, 4294901760
        %v3587 = vsub.f32 %v2789, %v3586
        %3588 = vmatpush1.msra.mxu0 %v3587
        %v3589 = vand.u32 %v2792, 4294901760
        %v3590 = vsub.f32 %v2792, %v3589
        %3591 = vmatprep.subr.mxu0 %v3590
        %v3592 = vand.u32 %v2791, 4294901760
        %v3593 = vsub.f32 %v2791, %v3592
        %3594 = vmatpush1.msra.mxu0 %v3593
        %v3595 = vand.u32 %v1634, 4294901760
        %v3596 = vsub.f32 %v1634, %v3595
        %3597 = vmatprep.mubr.f32.mxu0 %v3596
        %v3598 = vand.u32 %v1633, 4294901760
        %v3599 = vsub.f32 %v1633, %v3598
        %3600 = vmatmul.mubr.f32.gmra.mrb[0].mxu0 %v3599
        %v3601 = vpop.f32.mrb[0].mxu0
        %v3602 = vadd.f32 %v3375, %v3601
        %v3603 = vpop.f32.mrb[0].mxu0
        %v3604 = vadd.f32 %v3377, %v3603
        %v3605 = vand.u32 %v2087, 4294901760
        %v3606 = vsub.f32 %v2087, %v3605
        %3607 = vmatprep.mubr.f32.mxu0 %v3606
        %v3608 = vand.u32 %v2086, 4294901760
        %v3609 = vsub.f32 %v2086, %v3608
        %3610 = vmatmul.mubr.f32.gmra.mrb[0].mxu0 %v3609
        %v3611 = vpop.f32.mrb[0].mxu0
        %v3612 = vadd.f32 %v3383, %v3611
        %v3613 = vpop.f32.mrb[0].mxu0
        %v3614 = vadd.f32 %v3385, %v3613
        %v3615 = vand.u32 %v2452, 4294901760
        %v3616 = vsub.f32 %v2452, %v3615
        %3617 = vmatprep.mubr.f32.mxu0 %v3616
        %v3618 = vand.u32 %v2451, 4294901760
        %v3619 = vsub.f32 %v2451, %v3618
        %3620 = vmatmul.mubr.f32.gmra.mrb[0].mxu0 %v3619
        %v3621 = vpop.f32.mrb[0].mxu0
        %v3622 = vadd.f32 %v3391, %v3621
        %v3623 = vpop.f32.mrb[0].mxu0
        %v3624 = vadd.f32 %v3393, %v3623
        %v3625 = vand.u32 %v2692, 4294901760
        %v3626 = vsub.f32 %v2692, %v3625
        %3627 = vmatprep.mubr.f32.mxu0 %v3626
        %v3628 = vand.u32 %v2691, 4294901760
        %v3629 = vsub.f32 %v2691, %v3628
        %3630 = vmatmul.mubr.f32.gmra.mrb[0].mxu0 %v3629
        %v3631 = vpop.f32.mrb[0].mxu0
        %v3632 = vadd.f32 %v3399, %v3631
        %v3633 = vpop.f32.mrb[0].mxu0
        %v3634 = vadd.f32 %v3401, %v3633
        %3635 = vdwg.mxu0
        %v3636 = vand.u32 %v2730, 4294901760
        %3637 = vmatprep.subr.mxu0 %v3636
        %v3638 = vand.u32 %v2729, 4294901760
        %3639 = vmatpush1.msra.mxu0 %v3638
        %v3640 = vand.u32 %v2732, 4294901760
        %3641 = vmatprep.subr.mxu0 %v3640
        %v3642 = vand.u32 %v2731, 4294901760
        %3643 = vmatpush1.msra.mxu0 %v3642
        %v3644 = vand.u32 %v2734, 4294901760
        %3645 = vmatprep.subr.mxu0 %v3644
        %v3646 = vand.u32 %v2733, 4294901760
        %3647 = vmatpush1.msra.mxu0 %v3646
        %v3648 = vand.u32 %v2736, 4294901760
        %3649 = vmatprep.subr.mxu0 %v3648
        %v3650 = vand.u32 %v2735, 4294901760
        %3651 = vmatpush1.msra.mxu0 %v3650
        %v3652 = vand.u32 %v2738, 4294901760
        %3653 = vmatprep.subr.mxu0 %v3652
        %v3654 = vand.u32 %v2737, 4294901760
        %3655 = vmatpush1.msra.mxu0 %v3654
        %v3656 = vand.u32 %v2740, 4294901760
        %3657 = vmatprep.subr.mxu0 %v3656
        %v3658 = vand.u32 %v2739, 4294901760
        %3659 = vmatpush1.msra.mxu0 %v3658
        %v3660 = vand.u32 %v2742, 4294901760
        %3661 = vmatprep.subr.mxu0 %v3660
        %v3662 = vand.u32 %v2741, 4294901760
        %3663 = vmatpush1.msra.mxu0 %v3662
        %v3664 = vand.u32 %v2744, 4294901760
        %3665 = vmatprep.subr.mxu0 %v3664
        %v3666 = vand.u32 %v2743, 4294901760
        %3667 = vmatpush1.msra.mxu0 %v3666
        %v3668 = vand.u32 %v2746, 4294901760
        %3669 = vmatprep.subr.mxu0 %v3668
        %v3670 = vand.u32 %v2745, 4294901760
        %3671 = vmatpush1.msra.mxu0 %v3670
        %v3672 = vand.u32 %v2748, 4294901760
        %3673 = vmatprep.subr.mxu0 %v3672
        %v3674 = vand.u32 %v2747, 4294901760
        %3675 = vmatpush1.msra.mxu0 %v3674
        %v3676 = vand.u32 %v2750, 4294901760
        %3677 = vmatprep.subr.mxu0 %v3676
        %v3678 = vand.u32 %v2749, 4294901760
        %3679 = vmatpush1.msra.mxu0 %v3678
        %v3680 = vand.u32 %v2752, 4294901760
        %3681 = vmatprep.subr.mxu0 %v3680
        %v3682 = vand.u32 %v2751, 4294901760
        %3683 = vmatpush1.msra.mxu0 %v3682
        %v3684 = vand.u32 %v2754, 4294901760
        %3685 = vmatprep.subr.mxu0 %v3684
        %v3686 = vand.u32 %v2753, 4294901760
        %3687 = vmatpush1.msra.mxu0 %v3686
        %v3688 = vand.u32 %v2756, 4294901760
        %3689 = vmatprep.subr.mxu0 %v3688
        %v3690 = vand.u32 %v2755, 4294901760
        %3691 = vmatpush1.msra.mxu0 %v3690
        %v3692 = vand.u32 %v2758, 4294901760
        %3693 = vmatprep.subr.mxu0 %v3692
        %v3694 = vand.u32 %v2757, 4294901760
        %3695 = vmatpush1.msra.mxu0 %v3694
        %v3696 = vand.u32 %v2760, 4294901760
        %3697 = vmatprep.subr.mxu0 %v3696
        %v3698 = vand.u32 %v2759, 4294901760
        %3699 = vmatpush1.msra.mxu0 %v3698
        %v3700 = vand.u32 %v2762, 4294901760
        %3701 = vmatprep.subr.mxu0 %v3700
        %v3702 = vand.u32 %v2761, 4294901760
        %3703 = vmatpush1.msra.mxu0 %v3702
        %v3704 = vand.u32 %v2764, 4294901760
        %3705 = vmatprep.subr.mxu0 %v3704
        %v3706 = vand.u32 %v2763, 4294901760
        %3707 = vmatpush1.msra.mxu0 %v3706
        %v3708 = vand.u32 %v2766, 4294901760
        %3709 = vmatprep.subr.mxu0 %v3708
        %v3710 = vand.u32 %v2765, 4294901760
        %3711 = vmatpush1.msra.mxu0 %v3710
        %v3712 = vand.u32 %v2768, 4294901760
        %3713 = vmatprep.subr.mxu0 %v3712
        %v3714 = vand.u32 %v2767, 4294901760
        %3715 = vmatpush1.msra.mxu0 %v3714
        %v3716 = vand.u32 %v2770, 4294901760
        %3717 = vmatprep.subr.mxu0 %v3716
        %v3718 = vand.u32 %v2769, 4294901760
        %3719 = vmatpush1.msra.mxu0 %v3718
        %v3720 = vand.u32 %v2772, 4294901760
        %3721 = vmatprep.subr.mxu0 %v3720
        %v3722 = vand.u32 %v2771, 4294901760
        %3723 = vmatpush1.msra.mxu0 %v3722
        %v3724 = vand.u32 %v2774, 4294901760
        %3725 = vmatprep.subr.mxu0 %v3724
        %v3726 = vand.u32 %v2773, 4294901760
        %3727 = vmatpush1.msra.mxu0 %v3726
        %v3728 = vand.u32 %v2776, 4294901760
        %3729 = vmatprep.subr.mxu0 %v3728
        %v3730 = vand.u32 %v2775, 4294901760
        %3731 = vmatpush1.msra.mxu0 %v3730
        %v3732 = vand.u32 %v2778, 4294901760
        %3733 = vmatprep.subr.mxu0 %v3732
        %v3734 = vand.u32 %v2777, 4294901760
        %3735 = vmatpush1.msra.mxu0 %v3734
        %v3736 = vand.u32 %v2780, 4294901760
        %3737 = vmatprep.subr.mxu0 %v3736
        %v3738 = vand.u32 %v2779, 4294901760
        %3739 = vmatpush1.msra.mxu0 %v3738
        %v3740 = vand.u32 %v2782, 4294901760
        %3741 = vmatprep.subr.mxu0 %v3740
        %v3742 = vand.u32 %v2781, 4294901760
        %3743 = vmatpush1.msra.mxu0 %v3742
        %v3744 = vand.u32 %v2784, 4294901760
        %3745 = vmatprep.subr.mxu0 %v3744
        %v3746 = vand.u32 %v2783, 4294901760
        %3747 = vmatpush1.msra.mxu0 %v3746
        %v3748 = vand.u32 %v2786, 4294901760
        %3749 = vmatprep.subr.mxu0 %v3748
        %v3750 = vand.u32 %v2785, 4294901760
        %3751 = vmatpush1.msra.mxu0 %v3750
        %v3752 = vand.u32 %v2788, 4294901760
        %3753 = vmatprep.subr.mxu0 %v3752
        %v3754 = vand.u32 %v2787, 4294901760
        %3755 = vmatpush1.msra.mxu0 %v3754
        %v3756 = vand.u32 %v2790, 4294901760
        %3757 = vmatprep.subr.mxu0 %v3756
        %v3758 = vand.u32 %v2789, 4294901760
        %3759 = vmatpush1.msra.mxu0 %v3758
        %v3760 = vand.u32 %v2792, 4294901760
        %3761 = vmatprep.subr.mxu0 %v3760
        %v3762 = vand.u32 %v2791, 4294901760
        %3763 = vmatpush1.msra.mxu0 %v3762
        %v3764 = vand.u32 %v1634, 4294901760
        %v3765 = vsub.f32 %v1634, %v3764
        %v3766 = vand.u32 %v3765, 4294901760
        %3767 = vmatprep.mubr.f32.mxu0 %v3766
        %v3768 = vand.u32 %v1633, 4294901760
        %v3769 = vsub.f32 %v1633, %v3768
        %v3770 = vand.u32 %v3769, 4294901760
        %3771 = vmatmul.mubr.f32.gmra.mrb[0].mxu0 %v3770
        %v3772 = vpop.f32.mrb[0].mxu0
        %v3773 = vadd.f32 %v3602, %v3772
        %v3774 = vpop.f32.mrb[0].mxu0
        %v3775 = vadd.f32 %v3604, %v3774
        %v3776 = vand.u32 %v2087, 4294901760
        %v3777 = vsub.f32 %v2087, %v3776
        %v3778 = vand.u32 %v3777, 4294901760
        %3779 = vmatprep.mubr.f32.mxu0 %v3778
        %v3780 = vand.u32 %v2086, 4294901760
        %v3781 = vsub.f32 %v2086, %v3780
        %v3782 = vand.u32 %v3781, 4294901760
        %3783 = vmatmul.mubr.f32.gmra.mrb[0].mxu0 %v3782
        %v3784 = vpop.f32.mrb[0].mxu0
        %v3785 = vadd.f32 %v3612, %v3784
        %v3786 = vpop.f32.mrb[0].mxu0
        %v3787 = vadd.f32 %v3614, %v3786
        %v3788 = vand.u32 %v2452, 4294901760
        %v3789 = vsub.f32 %v2452, %v3788
        %v3790 = vand.u32 %v3789, 4294901760
        %3791 = vmatprep.mubr.f32.mxu0 %v3790
        %v3792 = vand.u32 %v2451, 4294901760
        %v3793 = vsub.f32 %v2451, %v3792
        %v3794 = vand.u32 %v3793, 4294901760
        %3795 = vmatmul.mubr.f32.gmra.mrb[0].mxu0 %v3794
        %v3796 = vpop.f32.mrb[0].mxu0
        %v3797 = vadd.f32 %v3622, %v3796
        %v3798 = vpop.f32.mrb[0].mxu0
        %v3799 = vadd.f32 %v3624, %v3798
        %v3800 = vand.u32 %v2692, 4294901760
        %v3801 = vsub.f32 %v2692, %v3800
        %v3802 = vand.u32 %v3801, 4294901760
        %3803 = vmatprep.mubr.f32.mxu0 %v3802
        %v3804 = vand.u32 %v2691, 4294901760
        %v3805 = vsub.f32 %v2691, %v3804
        %v3806 = vand.u32 %v3805, 4294901760
        %3807 = vmatmul.mubr.f32.gmra.mrb[0].mxu0 %v3806
        %v3808 = vpop.f32.mrb[0].mxu0
        %v3809 = vadd.f32 %v3632, %v3808
        %v3810 = vpop.f32.mrb[0].mxu0
        %v3811 = vadd.f32 %v3634, %v3810
        %3812 = vdwg.mxu0
        %v3813 = vand.u32 %v2730, 4294901760
        %v3814 = vsub.f32 %v2730, %v3813
        %v3815 = vand.u32 %v3814, 4294901760
        %3816 = vmatprep.subr.mxu0 %v3815
        %v3817 = vand.u32 %v2729, 4294901760
        %v3818 = vsub.f32 %v2729, %v3817
        %v3819 = vand.u32 %v3818, 4294901760
        %3820 = vmatpush1.msra.mxu0 %v3819
        %v3821 = vand.u32 %v2732, 4294901760
        %v3822 = vsub.f32 %v2732, %v3821
        %v3823 = vand.u32 %v3822, 4294901760
        %3824 = vmatprep.subr.mxu0 %v3823
        %v3825 = vand.u32 %v2731, 4294901760
        %v3826 = vsub.f32 %v2731, %v3825
        %v3827 = vand.u32 %v3826, 4294901760
        %3828 = vmatpush1.msra.mxu0 %v3827
        %v3829 = vand.u32 %v2734, 4294901760
        %v3830 = vsub.f32 %v2734, %v3829
        %v3831 = vand.u32 %v3830, 4294901760
        %3832 = vmatprep.subr.mxu0 %v3831
        %v3833 = vand.u32 %v2733, 4294901760
        %v3834 = vsub.f32 %v2733, %v3833
        %v3835 = vand.u32 %v3834, 4294901760
        %3836 = vmatpush1.msra.mxu0 %v3835
        %v3837 = vand.u32 %v2736, 4294901760
        %v3838 = vsub.f32 %v2736, %v3837
        %v3839 = vand.u32 %v3838, 4294901760
        %3840 = vmatprep.subr.mxu0 %v3839
        %v3841 = vand.u32 %v2735, 4294901760
        %v3842 = vsub.f32 %v2735, %v3841
        %v3843 = vand.u32 %v3842, 4294901760
        %3844 = vmatpush1.msra.mxu0 %v3843
        %v3845 = vand.u32 %v2738, 4294901760
        %v3846 = vsub.f32 %v2738, %v3845
        %v3847 = vand.u32 %v3846, 4294901760
        %3848 = vmatprep.subr.mxu0 %v3847
        %v3849 = vand.u32 %v2737, 4294901760
        %v3850 = vsub.f32 %v2737, %v3849
        %v3851 = vand.u32 %v3850, 4294901760
        %3852 = vmatpush1.msra.mxu0 %v3851
        %v3853 = vand.u32 %v2740, 4294901760
        %v3854 = vsub.f32 %v2740, %v3853
        %v3855 = vand.u32 %v3854, 4294901760
        %3856 = vmatprep.subr.mxu0 %v3855
        %v3857 = vand.u32 %v2739, 4294901760
        %v3858 = vsub.f32 %v2739, %v3857
        %v3859 = vand.u32 %v3858, 4294901760
        %3860 = vmatpush1.msra.mxu0 %v3859
        %v3861 = vand.u32 %v2742, 4294901760
        %v3862 = vsub.f32 %v2742, %v3861
        %v3863 = vand.u32 %v3862, 4294901760
        %3864 = vmatprep.subr.mxu0 %v3863
        %v3865 = vand.u32 %v2741, 4294901760
        %v3866 = vsub.f32 %v2741, %v3865
        %v3867 = vand.u32 %v3866, 4294901760
        %3868 = vmatpush1.msra.mxu0 %v3867
        %v3869 = vand.u32 %v2744, 4294901760
        %v3870 = vsub.f32 %v2744, %v3869
        %v3871 = vand.u32 %v3870, 4294901760
        %3872 = vmatprep.subr.mxu0 %v3871
        %v3873 = vand.u32 %v2743, 4294901760
        %v3874 = vsub.f32 %v2743, %v3873
        %v3875 = vand.u32 %v3874, 4294901760
        %3876 = vmatpush1.msra.mxu0 %v3875
        %v3877 = vand.u32 %v2746, 4294901760
        %v3878 = vsub.f32 %v2746, %v3877
        %v3879 = vand.u32 %v3878, 4294901760
        %3880 = vmatprep.subr.mxu0 %v3879
        %v3881 = vand.u32 %v2745, 4294901760
        %v3882 = vsub.f32 %v2745, %v3881
        %v3883 = vand.u32 %v3882, 4294901760
        %3884 = vmatpush1.msra.mxu0 %v3883
        %v3885 = vand.u32 %v2748, 4294901760
        %v3886 = vsub.f32 %v2748, %v3885
        %v3887 = vand.u32 %v3886, 4294901760
        %3888 = vmatprep.subr.mxu0 %v3887
        %v3889 = vand.u32 %v2747, 4294901760
        %v3890 = vsub.f32 %v2747, %v3889
        %v3891 = vand.u32 %v3890, 4294901760
        %3892 = vmatpush1.msra.mxu0 %v3891
        %v3893 = vand.u32 %v2750, 4294901760
        %v3894 = vsub.f32 %v2750, %v3893
        %v3895 = vand.u32 %v3894, 4294901760
        %3896 = vmatprep.subr.mxu0 %v3895
        %v3897 = vand.u32 %v2749, 4294901760
        %v3898 = vsub.f32 %v2749, %v3897
        %v3899 = vand.u32 %v3898, 4294901760
        %3900 = vmatpush1.msra.mxu0 %v3899
        %v3901 = vand.u32 %v2752, 4294901760
        %v3902 = vsub.f32 %v2752, %v3901
        %v3903 = vand.u32 %v3902, 4294901760
        %3904 = vmatprep.subr.mxu0 %v3903
        %v3905 = vand.u32 %v2751, 4294901760
        %v3906 = vsub.f32 %v2751, %v3905
        %v3907 = vand.u32 %v3906, 4294901760
        %3908 = vmatpush1.msra.mxu0 %v3907
        %v3909 = vand.u32 %v2754, 4294901760
        %v3910 = vsub.f32 %v2754, %v3909
        %v3911 = vand.u32 %v3910, 4294901760
        %3912 = vmatprep.subr.mxu0 %v3911
        %v3913 = vand.u32 %v2753, 4294901760
        %v3914 = vsub.f32 %v2753, %v3913
        %v3915 = vand.u32 %v3914, 4294901760
        %3916 = vmatpush1.msra.mxu0 %v3915
        %v3917 = vand.u32 %v2756, 4294901760
        %v3918 = vsub.f32 %v2756, %v3917
        %v3919 = vand.u32 %v3918, 4294901760
        %3920 = vmatprep.subr.mxu0 %v3919
        %v3921 = vand.u32 %v2755, 4294901760
        %v3922 = vsub.f32 %v2755, %v3921
        %v3923 = vand.u32 %v3922, 4294901760
        %3924 = vmatpush1.msra.mxu0 %v3923
        %v3925 = vand.u32 %v2758, 4294901760
        %v3926 = vsub.f32 %v2758, %v3925
        %v3927 = vand.u32 %v3926, 4294901760
        %3928 = vmatprep.subr.mxu0 %v3927
        %v3929 = vand.u32 %v2757, 4294901760
        %v3930 = vsub.f32 %v2757, %v3929
        %v3931 = vand.u32 %v3930, 4294901760
        %3932 = vmatpush1.msra.mxu0 %v3931
        %v3933 = vand.u32 %v2760, 4294901760
        %v3934 = vsub.f32 %v2760, %v3933
        %v3935 = vand.u32 %v3934, 4294901760
        %3936 = vmatprep.subr.mxu0 %v3935
        %v3937 = vand.u32 %v2759, 4294901760
        %v3938 = vsub.f32 %v2759, %v3937
        %v3939 = vand.u32 %v3938, 4294901760
        %3940 = vmatpush1.msra.mxu0 %v3939
        %v3941 = vand.u32 %v2762, 4294901760
        %v3942 = vsub.f32 %v2762, %v3941
        %v3943 = vand.u32 %v3942, 4294901760
        %3944 = vmatprep.subr.mxu0 %v3943
        %v3945 = vand.u32 %v2761, 4294901760
        %v3946 = vsub.f32 %v2761, %v3945
        %v3947 = vand.u32 %v3946, 4294901760
        %3948 = vmatpush1.msra.mxu0 %v3947
        %v3949 = vand.u32 %v2764, 4294901760
        %v3950 = vsub.f32 %v2764, %v3949
        %v3951 = vand.u32 %v3950, 4294901760
        %3952 = vmatprep.subr.mxu0 %v3951
        %v3953 = vand.u32 %v2763, 4294901760
        %v3954 = vsub.f32 %v2763, %v3953
        %v3955 = vand.u32 %v3954, 4294901760
        %3956 = vmatpush1.msra.mxu0 %v3955
        %v3957 = vand.u32 %v2766, 4294901760
        %v3958 = vsub.f32 %v2766, %v3957
        %v3959 = vand.u32 %v3958, 4294901760
        %3960 = vmatprep.subr.mxu0 %v3959
        %v3961 = vand.u32 %v2765, 4294901760
        %v3962 = vsub.f32 %v2765, %v3961
        %v3963 = vand.u32 %v3962, 4294901760
        %3964 = vmatpush1.msra.mxu0 %v3963
        %v3965 = vand.u32 %v2768, 4294901760
        %v3966 = vsub.f32 %v2768, %v3965
        %v3967 = vand.u32 %v3966, 4294901760
        %3968 = vmatprep.subr.mxu0 %v3967
        %v3969 = vand.u32 %v2767, 4294901760
        %v3970 = vsub.f32 %v2767, %v3969
        %v3971 = vand.u32 %v3970, 4294901760
        %3972 = vmatpush1.msra.mxu0 %v3971
        %v3973 = vand.u32 %v2770, 4294901760
        %v3974 = vsub.f32 %v2770, %v3973
        %v3975 = vand.u32 %v3974, 4294901760
        %3976 = vmatprep.subr.mxu0 %v3975
        %v3977 = vand.u32 %v2769, 4294901760
        %v3978 = vsub.f32 %v2769, %v3977
        %v3979 = vand.u32 %v3978, 4294901760
        %3980 = vmatpush1.msra.mxu0 %v3979
        %v3981 = vand.u32 %v2772, 4294901760
        %v3982 = vsub.f32 %v2772, %v3981
        %v3983 = vand.u32 %v3982, 4294901760
        %3984 = vmatprep.subr.mxu0 %v3983
        %v3985 = vand.u32 %v2771, 4294901760
        %v3986 = vsub.f32 %v2771, %v3985
        %v3987 = vand.u32 %v3986, 4294901760
        %3988 = vmatpush1.msra.mxu0 %v3987
        %v3989 = vand.u32 %v2774, 4294901760
        %v3990 = vsub.f32 %v2774, %v3989
        %v3991 = vand.u32 %v3990, 4294901760
        %3992 = vmatprep.subr.mxu0 %v3991
        %v3993 = vand.u32 %v2773, 4294901760
        %v3994 = vsub.f32 %v2773, %v3993
        %v3995 = vand.u32 %v3994, 4294901760
        %3996 = vmatpush1.msra.mxu0 %v3995
        %v3997 = vand.u32 %v2776, 4294901760
        %v3998 = vsub.f32 %v2776, %v3997
        %v3999 = vand.u32 %v3998, 4294901760
        %4000 = vmatprep.subr.mxu0 %v3999
        %v4001 = vand.u32 %v2775, 4294901760
        %v4002 = vsub.f32 %v2775, %v4001
        %v4003 = vand.u32 %v4002, 4294901760
        %4004 = vmatpush1.msra.mxu0 %v4003
        %v4005 = vand.u32 %v2778, 4294901760
        %v4006 = vsub.f32 %v2778, %v4005
        %v4007 = vand.u32 %v4006, 4294901760
        %4008 = vmatprep.subr.mxu0 %v4007
        %v4009 = vand.u32 %v2777, 4294901760
        %v4010 = vsub.f32 %v2777, %v4009
        %v4011 = vand.u32 %v4010, 4294901760
        %4012 = vmatpush1.msra.mxu0 %v4011
        %v4013 = vand.u32 %v2780, 4294901760
        %v4014 = vsub.f32 %v2780, %v4013
        %v4015 = vand.u32 %v4014, 4294901760
        %4016 = vmatprep.subr.mxu0 %v4015
        %v4017 = vand.u32 %v2779, 4294901760
        %v4018 = vsub.f32 %v2779, %v4017
        %v4019 = vand.u32 %v4018, 4294901760
        %4020 = vmatpush1.msra.mxu0 %v4019
        %v4021 = vand.u32 %v2782, 4294901760
        %v4022 = vsub.f32 %v2782, %v4021
        %v4023 = vand.u32 %v4022, 4294901760
        %4024 = vmatprep.subr.mxu0 %v4023
        %v4025 = vand.u32 %v2781, 4294901760
        %v4026 = vsub.f32 %v2781, %v4025
        %v4027 = vand.u32 %v4026, 4294901760
        %4028 = vmatpush1.msra.mxu0 %v4027
        %v4029 = vand.u32 %v2784, 4294901760
        %v4030 = vsub.f32 %v2784, %v4029
        %v4031 = vand.u32 %v4030, 4294901760
        %4032 = vmatprep.subr.mxu0 %v4031
        %v4033 = vand.u32 %v2783, 4294901760
        %v4034 = vsub.f32 %v2783, %v4033
        %v4035 = vand.u32 %v4034, 4294901760
        %4036 = vmatpush1.msra.mxu0 %v4035
        %v4037 = vand.u32 %v2786, 4294901760
        %v4038 = vsub.f32 %v2786, %v4037
        %v4039 = vand.u32 %v4038, 4294901760
        %4040 = vmatprep.subr.mxu0 %v4039
        %v4041 = vand.u32 %v2785, 4294901760
        %v4042 = vsub.f32 %v2785, %v4041
        %v4043 = vand.u32 %v4042, 4294901760
        %4044 = vmatpush1.msra.mxu0 %v4043
        %v4045 = vand.u32 %v2788, 4294901760
        %v4046 = vsub.f32 %v2788, %v4045
        %v4047 = vand.u32 %v4046, 4294901760
        %4048 = vmatprep.subr.mxu0 %v4047
        %v4049 = vand.u32 %v2787, 4294901760
        %v4050 = vsub.f32 %v2787, %v4049
        %v4051 = vand.u32 %v4050, 4294901760
        %4052 = vmatpush1.msra.mxu0 %v4051
        %v4053 = vand.u32 %v2790, 4294901760
        %v4054 = vsub.f32 %v2790, %v4053
        %v4055 = vand.u32 %v4054, 4294901760
        %4056 = vmatprep.subr.mxu0 %v4055
        %v4057 = vand.u32 %v2789, 4294901760
        %v4058 = vsub.f32 %v2789, %v4057
        %v4059 = vand.u32 %v4058, 4294901760
        %4060 = vmatpush1.msra.mxu0 %v4059
        %v4061 = vand.u32 %v2792, 4294901760
        %v4062 = vsub.f32 %v2792, %v4061
        %v4063 = vand.u32 %v4062, 4294901760
        %4064 = vmatprep.subr.mxu0 %v4063
        %v4065 = vand.u32 %v2791, 4294901760
        %v4066 = vsub.f32 %v2791, %v4065
        %v4067 = vand.u32 %v4066, 4294901760
        %4068 = vmatpush1.msra.mxu0 %v4067
        %v4069 = vand.u32 %v1634, 4294901760
        %4070 = vmatprep.mubr.f32.mxu0 %v4069
        %v4071 = vand.u32 %v1633, 4294901760
        %4072 = vmatmul.mubr.f32.gmra.mrb[0].mxu0 %v4071
        %v4073 = vpop.f32.mrb[0].mxu0
        %v4074 = vadd.f32 %v3773, %v4073
        %v4075 = vpop.f32.mrb[0].mxu0
        %v4076 = vadd.f32 %v3775, %v4075
        %v4077 = vand.u32 %v2087, 4294901760
        %4078 = vmatprep.mubr.f32.mxu0 %v4077
        %v4079 = vand.u32 %v2086, 4294901760
        %4080 = vmatmul.mubr.f32.gmra.mrb[0].mxu0 %v4079
        %v4081 = vpop.f32.mrb[0].mxu0
        %v4082 = vadd.f32 %v3785, %v4081
        %v4083 = vpop.f32.mrb[0].mxu0
        %v4084 = vadd.f32 %v3787, %v4083
        %v4085 = vand.u32 %v2452, 4294901760
        %4086 = vmatprep.mubr.f32.mxu0 %v4085
        %v4087 = vand.u32 %v2451, 4294901760
        %4088 = vmatmul.mubr.f32.gmra.mrb[0].mxu0 %v4087
        %v4089 = vpop.f32.mrb[0].mxu0
        %v4090 = vadd.f32 %v3797, %v4089
        %v4091 = vpop.f32.mrb[0].mxu0
        %v4092 = vadd.f32 %v3799, %v4091
        %v4093 = vand.u32 %v2692, 4294901760
        %4094 = vmatprep.mubr.f32.mxu0 %v4093
        %v4095 = vand.u32 %v2691, 4294901760
        %4096 = vmatmul.mubr.f32.gmra.mrb[0].mxu0 %v4095
        %v4097 = vpop.f32.mrb[0].mxu0
        %v4098 = vadd.f32 %v3809, %v4097
        %v4099 = vpop.f32.mrb[0].mxu0
        %v4100 = vadd.f32 %v3811, %v4099
        %4101 = vdwg.mxu0
        %v4102 = vand.u32 %v2730, 4294901760
        %4103 = vmatprep.subr.mxu0 %v4102
        %v4104 = vand.u32 %v2729, 4294901760
        %4105 = vmatpush1.msra.mxu0 %v4104
        %v4106 = vand.u32 %v2732, 4294901760
        %4107 = vmatprep.subr.mxu0 %v4106
        %v4108 = vand.u32 %v2731, 4294901760
        %4109 = vmatpush1.msra.mxu0 %v4108
        %v4110 = vand.u32 %v2734, 4294901760
        %4111 = vmatprep.subr.mxu0 %v4110
        %v4112 = vand.u32 %v2733, 4294901760
        %4113 = vmatpush1.msra.mxu0 %v4112
        %v4114 = vand.u32 %v2736, 4294901760
        %4115 = vmatprep.subr.mxu0 %v4114
        %v4116 = vand.u32 %v2735, 4294901760
        %4117 = vmatpush1.msra.mxu0 %v4116
        %v4118 = vand.u32 %v2738, 4294901760
        %4119 = vmatprep.subr.mxu0 %v4118
        %v4120 = vand.u32 %v2737, 4294901760
        %4121 = vmatpush1.msra.mxu0 %v4120
        %v4122 = vand.u32 %v2740, 4294901760
        %4123 = vmatprep.subr.mxu0 %v4122
        %v4124 = vand.u32 %v2739, 4294901760
        %4125 = vmatpush1.msra.mxu0 %v4124
        %v4126 = vand.u32 %v2742, 4294901760
        %4127 = vmatprep.subr.mxu0 %v4126
        %v4128 = vand.u32 %v2741, 4294901760
        %4129 = vmatpush1.msra.mxu0 %v4128
        %v4130 = vand.u32 %v2744, 4294901760
        %4131 = vmatprep.subr.mxu0 %v4130
        %v4132 = vand.u32 %v2743, 4294901760
        %4133 = vmatpush1.msra.mxu0 %v4132
        %v4134 = vand.u32 %v2746, 4294901760
        %4135 = vmatprep.subr.mxu0 %v4134
        %v4136 = vand.u32 %v2745, 4294901760
        %4137 = vmatpush1.msra.mxu0 %v4136
        %v4138 = vand.u32 %v2748, 4294901760
        %4139 = vmatprep.subr.mxu0 %v4138
        %v4140 = vand.u32 %v2747, 4294901760
        %4141 = vmatpush1.msra.mxu0 %v4140
        %v4142 = vand.u32 %v2750, 4294901760
        %4143 = vmatprep.subr.mxu0 %v4142
        %v4144 = vand.u32 %v2749, 4294901760
        %4145 = vmatpush1.msra.mxu0 %v4144
        %v4146 = vand.u32 %v2752, 4294901760
        %4147 = vmatprep.subr.mxu0 %v4146
        %v4148 = vand.u32 %v2751, 4294901760
        %4149 = vmatpush1.msra.mxu0 %v4148
        %v4150 = vand.u32 %v2754, 4294901760
        %4151 = vmatprep.subr.mxu0 %v4150
        %v4152 = vand.u32 %v2753, 4294901760
        %4153 = vmatpush1.msra.mxu0 %v4152
        %v4154 = vand.u32 %v2756, 4294901760
        %4155 = vmatprep.subr.mxu0 %v4154
        %v4156 = vand.u32 %v2755, 4294901760
        %4157 = vmatpush1.msra.mxu0 %v4156
        %v4158 = vand.u32 %v2758, 4294901760
        %4159 = vmatprep.subr.mxu0 %v4158
        %v4160 = vand.u32 %v2757, 4294901760
        %4161 = vmatpush1.msra.mxu0 %v4160
        %v4162 = vand.u32 %v2760, 4294901760
        %4163 = vmatprep.subr.mxu0 %v4162
        %v4164 = vand.u32 %v2759, 4294901760
        %4165 = vmatpush1.msra.mxu0 %v4164
        %v4166 = vand.u32 %v2762, 4294901760
        %4167 = vmatprep.subr.mxu0 %v4166
        %v4168 = vand.u32 %v2761, 4294901760
        %4169 = vmatpush1.msra.mxu0 %v4168
        %v4170 = vand.u32 %v2764, 4294901760
        %4171 = vmatprep.subr.mxu0 %v4170
        %v4172 = vand.u32 %v2763, 4294901760
        %4173 = vmatpush1.msra.mxu0 %v4172
        %v4174 = vand.u32 %v2766, 4294901760
        %4175 = vmatprep.subr.mxu0 %v4174
        %v4176 = vand.u32 %v2765, 4294901760
        %4177 = vmatpush1.msra.mxu0 %v4176
        %v4178 = vand.u32 %v2768, 4294901760
        %4179 = vmatprep.subr.mxu0 %v4178
        %v4180 = vand.u32 %v2767, 4294901760
        %4181 = vmatpush1.msra.mxu0 %v4180
        %v4182 = vand.u32 %v2770, 4294901760
        %4183 = vmatprep.subr.mxu0 %v4182
        %v4184 = vand.u32 %v2769, 4294901760
        %4185 = vmatpush1.msra.mxu0 %v4184
        %v4186 = vand.u32 %v2772, 4294901760
        %4187 = vmatprep.subr.mxu0 %v4186
        %v4188 = vand.u32 %v2771, 4294901760
        %4189 = vmatpush1.msra.mxu0 %v4188
        %v4190 = vand.u32 %v2774, 4294901760
        %4191 = vmatprep.subr.mxu0 %v4190
        %v4192 = vand.u32 %v2773, 4294901760
        %4193 = vmatpush1.msra.mxu0 %v4192
        %v4194 = vand.u32 %v2776, 4294901760
        %4195 = vmatprep.subr.mxu0 %v4194
        %v4196 = vand.u32 %v2775, 4294901760
        %4197 = vmatpush1.msra.mxu0 %v4196
        %v4198 = vand.u32 %v2778, 4294901760
        %4199 = vmatprep.subr.mxu0 %v4198
        %v4200 = vand.u32 %v2777, 4294901760
        %4201 = vmatpush1.msra.mxu0 %v4200
        %v4202 = vand.u32 %v2780, 4294901760
        %4203 = vmatprep.subr.mxu0 %v4202
        %v4204 = vand.u32 %v2779, 4294901760
        %4205 = vmatpush1.msra.mxu0 %v4204
        %v4206 = vand.u32 %v2782, 4294901760
        %4207 = vmatprep.subr.mxu0 %v4206
        %v4208 = vand.u32 %v2781, 4294901760
        %4209 = vmatpush1.msra.mxu0 %v4208
        %v4210 = vand.u32 %v2784, 4294901760
        %4211 = vmatprep.subr.mxu0 %v4210
        %v4212 = vand.u32 %v2783, 4294901760
        %4213 = vmatpush1.msra.mxu0 %v4212
        %v4214 = vand.u32 %v2786, 4294901760
        %4215 = vmatprep.subr.mxu0 %v4214
        %v4216 = vand.u32 %v2785, 4294901760
        %4217 = vmatpush1.msra.mxu0 %v4216
        %v4218 = vand.u32 %v2788, 4294901760
        %4219 = vmatprep.subr.mxu0 %v4218
        %v4220 = vand.u32 %v2787, 4294901760
        %4221 = vmatpush1.msra.mxu0 %v4220
        %v4222 = vand.u32 %v2790, 4294901760
        %4223 = vmatprep.subr.mxu0 %v4222
        %v4224 = vand.u32 %v2789, 4294901760
        %4225 = vmatpush1.msra.mxu0 %v4224
        %v4226 = vand.u32 %v2792, 4294901760
        %4227 = vmatprep.subr.mxu0 %v4226
        %v4228 = vand.u32 %v2791, 4294901760
        %4229 = vmatpush1.msra.mxu0 %v4228
        %v4230 = vand.u32 %v1634, 4294901760
        %4231 = vmatprep.mubr.f32.mxu0 %v4230
        %v4232 = vand.u32 %v1633, 4294901760
        %4233 = vmatmul.mubr.f32.gmra.mrb[0].mxu0 %v4232
        %v4234 = vpop.f32.mrb[0].mxu0
        %v4235 = vadd.f32 %v4074, %v4234
        %v4236 = vpop.f32.mrb[0].mxu0
        %v4237 = vadd.f32 %v4076, %v4236
        %v4238 = vand.u32 %v2087, 4294901760
        %4239 = vmatprep.mubr.f32.mxu0 %v4238
        %v4240 = vand.u32 %v2086, 4294901760
        %4241 = vmatmul.mubr.f32.gmra.mrb[0].mxu0 %v4240
        %v4242 = vpop.f32.mrb[0].mxu0
        %v4243 = vadd.f32 %v4082, %v4242
        %v4244 = vpop.f32.mrb[0].mxu0
        %v4245 = vadd.f32 %v4084, %v4244
        %v4246 = vand.u32 %v2452, 4294901760
        %4247 = vmatprep.mubr.f32.mxu0 %v4246
        %v4248 = vand.u32 %v2451, 4294901760
        %4249 = vmatmul.mubr.f32.gmra.mrb[0].mxu0 %v4248
        %v4250 = vpop.f32.mrb[0].mxu0
        %v4251 = vadd.f32 %v4090, %v4250
        %v4252 = vpop.f32.mrb[0].mxu0
        %v4253 = vadd.f32 %v4092, %v4252
        %v4254 = vand.u32 %v2692, 4294901760
        %4255 = vmatprep.mubr.f32.mxu0 %v4254
        %v4256 = vand.u32 %v2691, 4294901760
        %4257 = vmatmul.mubr.f32.gmra.mrb[0].mxu0 %v4256
        %v4258 = vpop.f32.mrb[0].mxu0
        %v4259 = vadd.f32 %v4098, %v4258
        %v4260 = vpop.f32.mrb[0].mxu0
        %v4261 = vadd.f32 %v4100, %v4260
        %4262 = vdwg.mxu0
        %v4263 = vadd.f32 %v1659, %v4235
        %v4264 = vadd.f32 %v1660, %v4237
        %v4265 = vadd.f32 %v2104, %v4243
        %v4266 = vadd.f32 %v2105, %v4245
        %v4267 = vadd.f32 %v2469, %v4251
        %v4268 = vadd.f32 %v2470, %v4253
        %v4269 = vadd.f32 %v2709, %v4259
        %v4270 = vadd.f32 %v2710, %v4261
        %v4271 = vld [vmem:[#allocation6] sm:$0xff]
        %v4272 = vld [vmem:[#allocation6 + $0x8] sm:$0xff]
        %v4273 = vld [vmem:[#allocation6 + $0x10] sm:$0xff]
        %v4274 = vld [vmem:[#allocation6 + $0x18] sm:$0xff]
        %v4275 = vld [vmem:[#allocation6 + $0x20] sm:$0xff]
        %v4276 = vld [vmem:[#allocation6 + $0x28] sm:$0xff]
        %v4277 = vld [vmem:[#allocation6 + $0x30] sm:$0xff]
        %v4278 = vld [vmem:[#allocation6 + $0x38] sm:$0xff]
        %v4279 = vld [vmem:[#allocation6 + $0x40] sm:$0xff]
        %v4280 = vld [vmem:[#allocation6 + $0x48] sm:$0xff]
        %v4281 = vld [vmem:[#allocation6 + $0x50] sm:$0xff]
        %v4282 = vld [vmem:[#allocation6 + $0x58] sm:$0xff]
        %v4283 = vld [vmem:[#allocation6 + $0x60] sm:$0xff]
        %v4284 = vld [vmem:[#allocation6 + $0x68] sm:$0xff]
        %v4285 = vld [vmem:[#allocation6 + $0x70] sm:$0xff]
        %v4286 = vld [vmem:[#allocation6 + $0x78] sm:$0xff]
        %v4287 = vld [vmem:[#allocation6 + $0x80] sm:$0xff]
        %v4288 = vld [vmem:[#allocation6 + $0x88] sm:$0xff]
        %v4289 = vld [vmem:[#allocation6 + $0x90] sm:$0xff]
        %v4290 = vld [vmem:[#allocation6 + $0x98] sm:$0xff]
        %v4291 = vld [vmem:[#allocation6 + $0xa0] sm:$0xff]
        %v4292 = vld [vmem:[#allocation6 + $0xa8] sm:$0xff]
        %v4293 = vld [vmem:[#allocation6 + $0xb0] sm:$0xff]
        %v4294 = vld [vmem:[#allocation6 + $0xb8] sm:$0xff]
        %v4295 = vld [vmem:[#allocation6 + $0xc0] sm:$0xff]
        %v4296 = vld [vmem:[#allocation6 + $0xc8] sm:$0xff]
        %v4297 = vld [vmem:[#allocation6 + $0xd0] sm:$0xff]
        %v4298 = vld [vmem:[#allocation6 + $0xd8] sm:$0xff]
        %v4299 = vld [vmem:[#allocation6 + $0xe0] sm:$0xff]
        %v4300 = vld [vmem:[#allocation6 + $0xe8] sm:$0xff]
        %v4301 = vld [vmem:[#allocation6 + $0xf0] sm:$0xff]
        %v4302 = vld [vmem:[#allocation6 + $0xf8] sm:$0xff]
        %v4303 = vld [vmem:[#allocation6 + $0x100] sm:$0xff]
        %v4304 = vld [vmem:[#allocation6 + $0x108] sm:$0xff]
        %v4305 = vld [vmem:[#allocation6 + $0x110] sm:$0xff]
        %v4306 = vld [vmem:[#allocation6 + $0x118] sm:$0xff]
        %v4307 = vld [vmem:[#allocation6 + $0x120] sm:$0xff]
        %v4308 = vld [vmem:[#allocation6 + $0x128] sm:$0xff]
        %v4309 = vld [vmem:[#allocation6 + $0x130] sm:$0xff]
        %v4310 = vld [vmem:[#allocation6 + $0x138] sm:$0xff]
        %v4311 = vld [vmem:[#allocation6 + $0x140] sm:$0xff]
        %v4312 = vld [vmem:[#allocation6 + $0x148] sm:$0xff]
        %v4313 = vld [vmem:[#allocation6 + $0x150] sm:$0xff]
        %v4314 = vld [vmem:[#allocation6 + $0x158] sm:$0xff]
        %v4315 = vld [vmem:[#allocation6 + $0x160] sm:$0xff]
        %v4316 = vld [vmem:[#allocation6 + $0x168] sm:$0xff]
        %v4317 = vld [vmem:[#allocation6 + $0x170] sm:$0xff]
        %v4318 = vld [vmem:[#allocation6 + $0x178] sm:$0xff]
        %v4319 = vld [vmem:[#allocation6 + $0x180] sm:$0xff]
        %v4320 = vld [vmem:[#allocation6 + $0x188] sm:$0xff]
        %v4321 = vld [vmem:[#allocation6 + $0x190] sm:$0xff]
        %v4322 = vld [vmem:[#allocation6 + $0x198] sm:$0xff]
        %v4323 = vld [vmem:[#allocation6 + $0x1a0] sm:$0xff]
        %v4324 = vld [vmem:[#allocation6 + $0x1a8] sm:$0xff]
        %v4325 = vld [vmem:[#allocation6 + $0x1b0] sm:$0xff]
        %v4326 = vld [vmem:[#allocation6 + $0x1b8] sm:$0xff]
        %v4327 = vld [vmem:[#allocation6 + $0x1c0] sm:$0xff]
        %v4328 = vld [vmem:[#allocation6 + $0x1c8] sm:$0xff]
        %v4329 = vld [vmem:[#allocation6 + $0x1d0] sm:$0xff]
        %v4330 = vld [vmem:[#allocation6 + $0x1d8] sm:$0xff]
        %v4331 = vld [vmem:[#allocation6 + $0x1e0] sm:$0xff]
        %v4332 = vld [vmem:[#allocation6 + $0x1e8] sm:$0xff]
        %v4333 = vld [vmem:[#allocation6 + $0x1f0] sm:$0xff]
        %v4334 = vld [vmem:[#allocation6 + $0x1f8] sm:$0xff]
        %v4335 = vand.u32 %v4272, 4294901760
        %4336 = vmatprep.subr.mxu0 %v4335
        %v4337 = vand.u32 %v4271, 4294901760
        %4338 = vmatpush1.msra.mxu0 %v4337
        %v4339 = vand.u32 %v4274, 4294901760
        %4340 = vmatprep.subr.mxu0 %v4339
        %v4341 = vand.u32 %v4273, 4294901760
        %4342 = vmatpush1.msra.mxu0 %v4341
        %v4343 = vand.u32 %v4276, 4294901760
        %4344 = vmatprep.subr.mxu0 %v4343
        %v4345 = vand.u32 %v4275, 4294901760
        %4346 = vmatpush1.msra.mxu0 %v4345
        %v4347 = vand.u32 %v4278, 4294901760
        %4348 = vmatprep.subr.mxu0 %v4347
        %v4349 = vand.u32 %v4277, 4294901760
        %4350 = vmatpush1.msra.mxu0 %v4349
        %v4351 = vand.u32 %v4280, 4294901760
        %4352 = vmatprep.subr.mxu0 %v4351
        %v4353 = vand.u32 %v4279, 4294901760
        %4354 = vmatpush1.msra.mxu0 %v4353
        %v4355 = vand.u32 %v4282, 4294901760
        %4356 = vmatprep.subr.mxu0 %v4355
        %v4357 = vand.u32 %v4281, 4294901760
        %4358 = vmatpush1.msra.mxu0 %v4357
        %v4359 = vand.u32 %v4284, 4294901760
        %4360 = vmatprep.subr.mxu0 %v4359
        %v4361 = vand.u32 %v4283, 4294901760
        %4362 = vmatpush1.msra.mxu0 %v4361
        %v4363 = vand.u32 %v4286, 4294901760
        %4364 = vmatprep.subr.mxu0 %v4363
        %v4365 = vand.u32 %v4285, 4294901760
        %4366 = vmatpush1.msra.mxu0 %v4365
        %v4367 = vand.u32 %v4288, 4294901760
        %4368 = vmatprep.subr.mxu0 %v4367
        %v4369 = vand.u32 %v4287, 4294901760
        %4370 = vmatpush1.msra.mxu0 %v4369
        %v4371 = vand.u32 %v4290, 4294901760
        %4372 = vmatprep.subr.mxu0 %v4371
        %v4373 = vand.u32 %v4289, 4294901760
        %4374 = vmatpush1.msra.mxu0 %v4373
        %v4375 = vand.u32 %v4292, 4294901760
        %4376 = vmatprep.subr.mxu0 %v4375
        %v4377 = vand.u32 %v4291, 4294901760
        %4378 = vmatpush1.msra.mxu0 %v4377
        %v4379 = vand.u32 %v4294, 4294901760
        %4380 = vmatprep.subr.mxu0 %v4379
        %v4381 = vand.u32 %v4293, 4294901760
        %4382 = vmatpush1.msra.mxu0 %v4381
        %v4383 = vand.u32 %v4296, 4294901760
        %4384 = vmatprep.subr.mxu0 %v4383
        %v4385 = vand.u32 %v4295, 4294901760
        %4386 = vmatpush1.msra.mxu0 %v4385
        %v4387 = vand.u32 %v4298, 4294901760
        %4388 = vmatprep.subr.mxu0 %v4387
        %v4389 = vand.u32 %v4297, 4294901760
        %4390 = vmatpush1.msra.mxu0 %v4389
        %v4391 = vand.u32 %v4300, 4294901760
        %4392 = vmatprep.subr.mxu0 %v4391
        %v4393 = vand.u32 %v4299, 4294901760
        %4394 = vmatpush1.msra.mxu0 %v4393
        %v4395 = vand.u32 %v4302, 4294901760
        %4396 = vmatprep.subr.mxu0 %v4395
        %v4397 = vand.u32 %v4301, 4294901760
        %4398 = vmatpush1.msra.mxu0 %v4397
        %v4399 = vand.u32 %v4304, 4294901760
        %4400 = vmatprep.subr.mxu0 %v4399
        %v4401 = vand.u32 %v4303, 4294901760
        %4402 = vmatpush1.msra.mxu0 %v4401
        %v4403 = vand.u32 %v4306, 4294901760
        %4404 = vmatprep.subr.mxu0 %v4403
        %v4405 = vand.u32 %v4305, 4294901760
        %4406 = vmatpush1.msra.mxu0 %v4405
        %v4407 = vand.u32 %v4308, 4294901760
        %4408 = vmatprep.subr.mxu0 %v4407
        %v4409 = vand.u32 %v4307, 4294901760
        %4410 = vmatpush1.msra.mxu0 %v4409
        %v4411 = vand.u32 %v4310, 4294901760
        %4412 = vmatprep.subr.mxu0 %v4411
        %v4413 = vand.u32 %v4309, 4294901760
        %4414 = vmatpush1.msra.mxu0 %v4413
        %v4415 = vand.u32 %v4312, 4294901760
        %4416 = vmatprep.subr.mxu0 %v4415
        %v4417 = vand.u32 %v4311, 4294901760
        %4418 = vmatpush1.msra.mxu0 %v4417
        %v4419 = vand.u32 %v4314, 4294901760
        %4420 = vmatprep.subr.mxu0 %v4419
        %v4421 = vand.u32 %v4313, 4294901760
        %4422 = vmatpush1.msra.mxu0 %v4421
        %v4423 = vand.u32 %v4316, 4294901760
        %4424 = vmatprep.subr.mxu0 %v4423
        %v4425 = vand.u32 %v4315, 4294901760
        %4426 = vmatpush1.msra.mxu0 %v4425
        %v4427 = vand.u32 %v4318, 4294901760
        %4428 = vmatprep.subr.mxu0 %v4427
        %v4429 = vand.u32 %v4317, 4294901760
        %4430 = vmatpush1.msra.mxu0 %v4429
        %v4431 = vand.u32 %v4320, 4294901760
        %4432 = vmatprep.subr.mxu0 %v4431
        %v4433 = vand.u32 %v4319, 4294901760
        %4434 = vmatpush1.msra.mxu0 %v4433
        %v4435 = vand.u32 %v4322, 4294901760
        %4436 = vmatprep.subr.mxu0 %v4435
        %v4437 = vand.u32 %v4321, 4294901760
        %4438 = vmatpush1.msra.mxu0 %v4437
        %v4439 = vand.u32 %v4324, 4294901760
        %4440 = vmatprep.subr.mxu0 %v4439
        %v4441 = vand.u32 %v4323, 4294901760
        %4442 = vmatpush1.msra.mxu0 %v4441
        %v4443 = vand.u32 %v4326, 4294901760
        %4444 = vmatprep.subr.mxu0 %v4443
        %v4445 = vand.u32 %v4325, 4294901760
        %4446 = vmatpush1.msra.mxu0 %v4445
        %v4447 = vand.u32 %v4328, 4294901760
        %4448 = vmatprep.subr.mxu0 %v4447
        %v4449 = vand.u32 %v4327, 4294901760
        %4450 = vmatpush1.msra.mxu0 %v4449
        %v4451 = vand.u32 %v4330, 4294901760
        %4452 = vmatprep.subr.mxu0 %v4451
        %v4453 = vand.u32 %v4329, 4294901760
        %4454 = vmatpush1.msra.mxu0 %v4453
        %v4455 = vand.u32 %v4332, 4294901760
        %4456 = vmatprep.subr.mxu0 %v4455
        %v4457 = vand.u32 %v4331, 4294901760
        %4458 = vmatpush1.msra.mxu0 %v4457
        %v4459 = vand.u32 %v4334, 4294901760
        %4460 = vmatprep.subr.mxu0 %v4459
        %v4461 = vand.u32 %v4333, 4294901760
        %4462 = vmatpush1.msra.mxu0 %v4461
        %v4463 = vand.u32 %v1686, 4294901760
        %v4464 = vsub.f32 %v1686, %v4463
        %v4465 = vand.u32 %v4464, 4294901760
        %v4466 = vsub.f32 %v4464, %v4465
        %v4467 = vand.u32 %v4466, 4294901760
        %4468 = vmatprep.mubr.f32.mxu0 %v4467
        %v4469 = vand.u32 %v1685, 4294901760
        %v4470 = vsub.f32 %v1685, %v4469
        %v4471 = vand.u32 %v4470, 4294901760
        %v4472 = vsub.f32 %v4470, %v4471
        %v4473 = vand.u32 %v4472, 4294901760
        %4474 = vmatmul.mubr.f32.gmra.mrb[0].mxu0 %v4473
        %v4475 = vpop.f32.mrb[0].mxu0
        %v4476 = vadd.f32 0.0, %v4475
        %v4477 = vpop.f32.mrb[0].mxu0
        %v4478 = vadd.f32 0.0, %v4477
        %v4479 = vand.u32 %v2123, 4294901760
        %v4480 = vsub.f32 %v2123, %v4479
        %v4481 = vand.u32 %v4480, 4294901760
        %v4482 = vsub.f32 %v4480, %v4481
        %v4483 = vand.u32 %v4482, 4294901760
        %4484 = vmatprep.mubr.f32.mxu0 %v4483
        %v4485 = vand.u32 %v2122, 4294901760
        %v4486 = vsub.f32 %v2122, %v4485
        %v4487 = vand.u32 %v4486, 4294901760
        %v4488 = vsub.f32 %v4486, %v4487
        %v4489 = vand.u32 %v4488, 4294901760
        %4490 = vmatmul.mubr.f32.gmra.mrb[0].mxu0 %v4489
        %v4491 = vpop.f32.mrb[0].mxu0
        %v4492 = vadd.f32 0.0, %v4491
        %v4493 = vpop.f32.mrb[0].mxu0
        %v4494 = vadd.f32 0.0, %v4493
        %v4495 = vand.u32 %v2488, 4294901760
        %v4496 = vsub.f32 %v2488, %v4495
        %v4497 = vand.u32 %v4496, 4294901760
        %v4498 = vsub.f32 %v4496, %v4497
        %v4499 = vand.u32 %v4498, 4294901760
        %4500 = vmatprep.mubr.f32.mxu0 %v4499
        %v4501 = vand.u32 %v2487, 4294901760
        %v4502 = vsub.f32 %v2487, %v4501
        %v4503 = vand.u32 %v4502, 4294901760
        %v4504 = vsub.f32 %v4502, %v4503
        %v4505 = vand.u32 %v4504, 4294901760
        %4506 = vmatmul.mubr.f32.gmra.mrb[0].mxu0 %v4505
        %v4507 = vpop.f32.mrb[0].mxu0
        %v4508 = vadd.f32 0.0, %v4507
        %v4509 = vpop.f32.mrb[0].mxu0
        %v4510 = vadd.f32 0.0, %v4509
        %v4511 = vand.u32 %v2728, 4294901760
        %v4512 = vsub.f32 %v2728, %v4511
        %v4513 = vand.u32 %v4512, 4294901760
        %v4514 = vsub.f32 %v4512, %v4513
        %v4515 = vand.u32 %v4514, 4294901760
        %4516 = vmatprep.mubr.f32.mxu0 %v4515
        %v4517 = vand.u32 %v2727, 4294901760
        %v4518 = vsub.f32 %v2727, %v4517
        %v4519 = vand.u32 %v4518, 4294901760
        %v4520 = vsub.f32 %v4518, %v4519
        %v4521 = vand.u32 %v4520, 4294901760
        %4522 = vmatmul.mubr.f32.gmra.mrb[0].mxu0 %v4521
        %v4523 = vpop.f32.mrb[0].mxu0
        %v4524 = vadd.f32 0.0, %v4523
        %v4525 = vpop.f32.mrb[0].mxu0
        %v4526 = vadd.f32 0.0, %v4525
        %4527 = vdwg.mxu0
        %v4528 = vand.u32 %v4272, 4294901760
        %v4529 = vsub.f32 %v4272, %v4528
        %v4530 = vand.u32 %v4529, 4294901760
        %v4531 = vsub.f32 %v4529, %v4530
        %v4532 = vand.u32 %v4531, 4294901760
        %4533 = vmatprep.subr.mxu0 %v4532
        %v4534 = vand.u32 %v4271, 4294901760
        %v4535 = vsub.f32 %v4271, %v4534
        %v4536 = vand.u32 %v4535, 4294901760
        %v4537 = vsub.f32 %v4535, %v4536
        %v4538 = vand.u32 %v4537, 4294901760
        %4539 = vmatpush1.msra.mxu0 %v4538
        %v4540 = vand.u32 %v4274, 4294901760
        %v4541 = vsub.f32 %v4274, %v4540
        %v4542 = vand.u32 %v4541, 4294901760
        %v4543 = vsub.f32 %v4541, %v4542
        %v4544 = vand.u32 %v4543, 4294901760
        %4545 = vmatprep.subr.mxu0 %v4544
        %v4546 = vand.u32 %v4273, 4294901760
        %v4547 = vsub.f32 %v4273, %v4546
        %v4548 = vand.u32 %v4547, 4294901760
        %v4549 = vsub.f32 %v4547, %v4548
        %v4550 = vand.u32 %v4549, 4294901760
        %4551 = vmatpush1.msra.mxu0 %v4550
        %v4552 = vand.u32 %v4276, 4294901760
        %v4553 = vsub.f32 %v4276, %v4552
        %v4554 = vand.u32 %v4553, 4294901760
        %v4555 = vsub.f32 %v4553, %v4554
        %v4556 = vand.u32 %v4555, 4294901760
        %4557 = vmatprep.subr.mxu0 %v4556
        %v4558 = vand.u32 %v4275, 4294901760
        %v4559 = vsub.f32 %v4275, %v4558
        %v4560 = vand.u32 %v4559, 4294901760
        %v4561 = vsub.f32 %v4559, %v4560
        %v4562 = vand.u32 %v4561, 4294901760
        %4563 = vmatpush1.msra.mxu0 %v4562
        %v4564 = vand.u32 %v4278, 4294901760
        %v4565 = vsub.f32 %v4278, %v4564
        %v4566 = vand.u32 %v4565, 4294901760
        %v4567 = vsub.f32 %v4565, %v4566
        %v4568 = vand.u32 %v4567, 4294901760
        %4569 = vmatprep.subr.mxu0 %v4568
        %v4570 = vand.u32 %v4277, 4294901760
        %v4571 = vsub.f32 %v4277, %v4570
        %v4572 = vand.u32 %v4571, 4294901760
        %v4573 = vsub.f32 %v4571, %v4572
        %v4574 = vand.u32 %v4573, 4294901760
        %4575 = vmatpush1.msra.mxu0 %v4574
        %v4576 = vand.u32 %v4280, 4294901760
        %v4577 = vsub.f32 %v4280, %v4576
        %v4578 = vand.u32 %v4577, 4294901760
        %v4579 = vsub.f32 %v4577, %v4578
        %v4580 = vand.u32 %v4579, 4294901760
        %4581 = vmatprep.subr.mxu0 %v4580
        %v4582 = vand.u32 %v4279, 4294901760
        %v4583 = vsub.f32 %v4279, %v4582
        %v4584 = vand.u32 %v4583, 4294901760
        %v4585 = vsub.f32 %v4583, %v4584
        %v4586 = vand.u32 %v4585, 4294901760
        %4587 = vmatpush1.msra.mxu0 %v4586
        %v4588 = vand.u32 %v4282, 4294901760
        %v4589 = vsub.f32 %v4282, %v4588
        %v4590 = vand.u32 %v4589, 4294901760
        %v4591 = vsub.f32 %v4589, %v4590
        %v4592 = vand.u32 %v4591, 4294901760
        %4593 = vmatprep.subr.mxu0 %v4592
        %v4594 = vand.u32 %v4281, 4294901760
        %v4595 = vsub.f32 %v4281, %v4594
        %v4596 = vand.u32 %v4595, 4294901760
        %v4597 = vsub.f32 %v4595, %v4596
        %v4598 = vand.u32 %v4597, 4294901760
        %4599 = vmatpush1.msra.mxu0 %v4598
        %v4600 = vand.u32 %v4284, 4294901760
        %v4601 = vsub.f32 %v4284, %v4600
        %v4602 = vand.u32 %v4601, 4294901760
        %v4603 = vsub.f32 %v4601, %v4602
        %v4604 = vand.u32 %v4603, 4294901760
        %4605 = vmatprep.subr.mxu0 %v4604
        %v4606 = vand.u32 %v4283, 4294901760
        %v4607 = vsub.f32 %v4283, %v4606
        %v4608 = vand.u32 %v4607, 4294901760
        %v4609 = vsub.f32 %v4607, %v4608
        %v4610 = vand.u32 %v4609, 4294901760
        %4611 = vmatpush1.msra.mxu0 %v4610
        %v4612 = vand.u32 %v4286, 4294901760
        %v4613 = vsub.f32 %v4286, %v4612
        %v4614 = vand.u32 %v4613, 4294901760
        %v4615 = vsub.f32 %v4613, %v4614
        %v4616 = vand.u32 %v4615, 4294901760
        %4617 = vmatprep.subr.mxu0 %v4616
        %v4618 = vand.u32 %v4285, 4294901760
        %v4619 = vsub.f32 %v4285, %v4618
        %v4620 = vand.u32 %v4619, 4294901760
        %v4621 = vsub.f32 %v4619, %v4620
        %v4622 = vand.u32 %v4621, 4294901760
        %4623 = vmatpush1.msra.mxu0 %v4622
        %v4624 = vand.u32 %v4288, 4294901760
        %v4625 = vsub.f32 %v4288, %v4624
        %v4626 = vand.u32 %v4625, 4294901760
        %v4627 = vsub.f32 %v4625, %v4626
        %v4628 = vand.u32 %v4627, 4294901760
        %4629 = vmatprep.subr.mxu0 %v4628
        %v4630 = vand.u32 %v4287, 4294901760
        %v4631 = vsub.f32 %v4287, %v4630
        %v4632 = vand.u32 %v4631, 4294901760
        %v4633 = vsub.f32 %v4631, %v4632
        %v4634 = vand.u32 %v4633, 4294901760
        %4635 = vmatpush1.msra.mxu0 %v4634
        %v4636 = vand.u32 %v4290, 4294901760
        %v4637 = vsub.f32 %v4290, %v4636
        %v4638 = vand.u32 %v4637, 4294901760
        %v4639 = vsub.f32 %v4637, %v4638
        %v4640 = vand.u32 %v4639, 4294901760
        %4641 = vmatprep.subr.mxu0 %v4640
        %v4642 = vand.u32 %v4289, 4294901760
        %v4643 = vsub.f32 %v4289, %v4642
        %v4644 = vand.u32 %v4643, 4294901760
        %v4645 = vsub.f32 %v4643, %v4644
        %v4646 = vand.u32 %v4645, 4294901760
        %4647 = vmatpush1.msra.mxu0 %v4646
        %v4648 = vand.u32 %v4292, 4294901760
        %v4649 = vsub.f32 %v4292, %v4648
        %v4650 = vand.u32 %v4649, 4294901760
        %v4651 = vsub.f32 %v4649, %v4650
        %v4652 = vand.u32 %v4651, 4294901760
        %4653 = vmatprep.subr.mxu0 %v4652
        %v4654 = vand.u32 %v4291, 4294901760
        %v4655 = vsub.f32 %v4291, %v4654
        %v4656 = vand.u32 %v4655, 4294901760
        %v4657 = vsub.f32 %v4655, %v4656
        %v4658 = vand.u32 %v4657, 4294901760
        %4659 = vmatpush1.msra.mxu0 %v4658
        %v4660 = vand.u32 %v4294, 4294901760
        %v4661 = vsub.f32 %v4294, %v4660
        %v4662 = vand.u32 %v4661, 4294901760
        %v4663 = vsub.f32 %v4661, %v4662
        %v4664 = vand.u32 %v4663, 4294901760
        %4665 = vmatprep.subr.mxu0 %v4664
        %v4666 = vand.u32 %v4293, 4294901760
        %v4667 = vsub.f32 %v4293, %v4666
        %v4668 = vand.u32 %v4667, 4294901760
        %v4669 = vsub.f32 %v4667, %v4668
        %v4670 = vand.u32 %v4669, 4294901760
        %4671 = vmatpush1.msra.mxu0 %v4670
        %v4672 = vand.u32 %v4296, 4294901760
        %v4673 = vsub.f32 %v4296, %v4672
        %v4674 = vand.u32 %v4673, 4294901760
        %v4675 = vsub.f32 %v4673, %v4674
        %v4676 = vand.u32 %v4675, 4294901760
        %4677 = vmatprep.subr.mxu0 %v4676
        %v4678 = vand.u32 %v4295, 4294901760
        %v4679 = vsub.f32 %v4295, %v4678
        %v4680 = vand.u32 %v4679, 4294901760
        %v4681 = vsub.f32 %v4679, %v4680
        %v4682 = vand.u32 %v4681, 4294901760
        %4683 = vmatpush1.msra.mxu0 %v4682
        %v4684 = vand.u32 %v4298, 4294901760
        %v4685 = vsub.f32 %v4298, %v4684
        %v4686 = vand.u32 %v4685, 4294901760
        %v4687 = vsub.f32 %v4685, %v4686
        %v4688 = vand.u32 %v4687, 4294901760
        %4689 = vmatprep.subr.mxu0 %v4688
        %v4690 = vand.u32 %v4297, 4294901760
        %v4691 = vsub.f32 %v4297, %v4690
        %v4692 = vand.u32 %v4691, 4294901760
        %v4693 = vsub.f32 %v4691, %v4692
        %v4694 = vand.u32 %v4693, 4294901760
        %4695 = vmatpush1.msra.mxu0 %v4694
        %v4696 = vand.u32 %v4300, 4294901760
        %v4697 = vsub.f32 %v4300, %v4696
        %v4698 = vand.u32 %v4697, 4294901760
        %v4699 = vsub.f32 %v4697, %v4698
        %v4700 = vand.u32 %v4699, 4294901760
        %4701 = vmatprep.subr.mxu0 %v4700
        %v4702 = vand.u32 %v4299, 4294901760
        %v4703 = vsub.f32 %v4299, %v4702
        %v4704 = vand.u32 %v4703, 4294901760
        %v4705 = vsub.f32 %v4703, %v4704
        %v4706 = vand.u32 %v4705, 4294901760
        %4707 = vmatpush1.msra.mxu0 %v4706
        %v4708 = vand.u32 %v4302, 4294901760
        %v4709 = vsub.f32 %v4302, %v4708
        %v4710 = vand.u32 %v4709, 4294901760
        %v4711 = vsub.f32 %v4709, %v4710
        %v4712 = vand.u32 %v4711, 4294901760
        %4713 = vmatprep.subr.mxu0 %v4712
        %v4714 = vand.u32 %v4301, 4294901760
        %v4715 = vsub.f32 %v4301, %v4714
        %v4716 = vand.u32 %v4715, 4294901760
        %v4717 = vsub.f32 %v4715, %v4716
        %v4718 = vand.u32 %v4717, 4294901760
        %4719 = vmatpush1.msra.mxu0 %v4718
        %v4720 = vand.u32 %v4304, 4294901760
        %v4721 = vsub.f32 %v4304, %v4720
        %v4722 = vand.u32 %v4721, 4294901760
        %v4723 = vsub.f32 %v4721, %v4722
        %v4724 = vand.u32 %v4723, 4294901760
        %4725 = vmatprep.subr.mxu0 %v4724
        %v4726 = vand.u32 %v4303, 4294901760
        %v4727 = vsub.f32 %v4303, %v4726
        %v4728 = vand.u32 %v4727, 4294901760
        %v4729 = vsub.f32 %v4727, %v4728
        %v4730 = vand.u32 %v4729, 4294901760
        %4731 = vmatpush1.msra.mxu0 %v4730
        %v4732 = vand.u32 %v4306, 4294901760
        %v4733 = vsub.f32 %v4306, %v4732
        %v4734 = vand.u32 %v4733, 4294901760
        %v4735 = vsub.f32 %v4733, %v4734
        %v4736 = vand.u32 %v4735, 4294901760
        %4737 = vmatprep.subr.mxu0 %v4736
        %v4738 = vand.u32 %v4305, 4294901760
        %v4739 = vsub.f32 %v4305, %v4738
        %v4740 = vand.u32 %v4739, 4294901760
        %v4741 = vsub.f32 %v4739, %v4740
        %v4742 = vand.u32 %v4741, 4294901760
        %4743 = vmatpush1.msra.mxu0 %v4742
        %v4744 = vand.u32 %v4308, 4294901760
        %v4745 = vsub.f32 %v4308, %v4744
        %v4746 = vand.u32 %v4745, 4294901760
        %v4747 = vsub.f32 %v4745, %v4746
        %v4748 = vand.u32 %v4747, 4294901760
        %4749 = vmatprep.subr.mxu0 %v4748
        %v4750 = vand.u32 %v4307, 4294901760
        %v4751 = vsub.f32 %v4307, %v4750
        %v4752 = vand.u32 %v4751, 4294901760
        %v4753 = vsub.f32 %v4751, %v4752
        %v4754 = vand.u32 %v4753, 4294901760
        %4755 = vmatpush1.msra.mxu0 %v4754
        %v4756 = vand.u32 %v4310, 4294901760
        %v4757 = vsub.f32 %v4310, %v4756
        %v4758 = vand.u32 %v4757, 4294901760
        %v4759 = vsub.f32 %v4757, %v4758
        %v4760 = vand.u32 %v4759, 4294901760
        %4761 = vmatprep.subr.mxu0 %v4760
        %v4762 = vand.u32 %v4309, 4294901760
        %v4763 = vsub.f32 %v4309, %v4762
        %v4764 = vand.u32 %v4763, 4294901760
        %v4765 = vsub.f32 %v4763, %v4764
        %v4766 = vand.u32 %v4765, 4294901760
        %4767 = vmatpush1.msra.mxu0 %v4766
        %v4768 = vand.u32 %v4312, 4294901760
        %v4769 = vsub.f32 %v4312, %v4768
        %v4770 = vand.u32 %v4769, 4294901760
        %v4771 = vsub.f32 %v4769, %v4770
        %v4772 = vand.u32 %v4771, 4294901760
        %4773 = vmatprep.subr.mxu0 %v4772
        %v4774 = vand.u32 %v4311, 4294901760
        %v4775 = vsub.f32 %v4311, %v4774
        %v4776 = vand.u32 %v4775, 4294901760
        %v4777 = vsub.f32 %v4775, %v4776
        %v4778 = vand.u32 %v4777, 4294901760
        %4779 = vmatpush1.msra.mxu0 %v4778
        %v4780 = vand.u32 %v4314, 4294901760
        %v4781 = vsub.f32 %v4314, %v4780
        %v4782 = vand.u32 %v4781, 4294901760
        %v4783 = vsub.f32 %v4781, %v4782
        %v4784 = vand.u32 %v4783, 4294901760
        %4785 = vmatprep.subr.mxu0 %v4784
        %v4786 = vand.u32 %v4313, 4294901760
        %v4787 = vsub.f32 %v4313, %v4786
        %v4788 = vand.u32 %v4787, 4294901760
        %v4789 = vsub.f32 %v4787, %v4788
        %v4790 = vand.u32 %v4789, 4294901760
        %4791 = vmatpush1.msra.mxu0 %v4790
        %v4792 = vand.u32 %v4316, 4294901760
        %v4793 = vsub.f32 %v4316, %v4792
        %v4794 = vand.u32 %v4793, 4294901760
        %v4795 = vsub.f32 %v4793, %v4794
        %v4796 = vand.u32 %v4795, 4294901760
        %4797 = vmatprep.subr.mxu0 %v4796
        %v4798 = vand.u32 %v4315, 4294901760
        %v4799 = vsub.f32 %v4315, %v4798
        %v4800 = vand.u32 %v4799, 4294901760
        %v4801 = vsub.f32 %v4799, %v4800
        %v4802 = vand.u32 %v4801, 4294901760
        %4803 = vmatpush1.msra.mxu0 %v4802
        %v4804 = vand.u32 %v4318, 4294901760
        %v4805 = vsub.f32 %v4318, %v4804
        %v4806 = vand.u32 %v4805, 4294901760
        %v4807 = vsub.f32 %v4805, %v4806
        %v4808 = vand.u32 %v4807, 4294901760
        %4809 = vmatprep.subr.mxu0 %v4808
        %v4810 = vand.u32 %v4317, 4294901760
        %v4811 = vsub.f32 %v4317, %v4810
        %v4812 = vand.u32 %v4811, 4294901760
        %v4813 = vsub.f32 %v4811, %v4812
        %v4814 = vand.u32 %v4813, 4294901760
        %4815 = vmatpush1.msra.mxu0 %v4814
        %v4816 = vand.u32 %v4320, 4294901760
        %v4817 = vsub.f32 %v4320, %v4816
        %v4818 = vand.u32 %v4817, 4294901760
        %v4819 = vsub.f32 %v4817, %v4818
        %v4820 = vand.u32 %v4819, 4294901760
        %4821 = vmatprep.subr.mxu0 %v4820
        %v4822 = vand.u32 %v4319, 4294901760
        %v4823 = vsub.f32 %v4319, %v4822
        %v4824 = vand.u32 %v4823, 4294901760
        %v4825 = vsub.f32 %v4823, %v4824
        %v4826 = vand.u32 %v4825, 4294901760
        %4827 = vmatpush1.msra.mxu0 %v4826
        %v4828 = vand.u32 %v4322, 4294901760
        %v4829 = vsub.f32 %v4322, %v4828
        %v4830 = vand.u32 %v4829, 4294901760
        %v4831 = vsub.f32 %v4829, %v4830
        %v4832 = vand.u32 %v4831, 4294901760
        %4833 = vmatprep.subr.mxu0 %v4832
        %v4834 = vand.u32 %v4321, 4294901760
        %v4835 = vsub.f32 %v4321, %v4834
        %v4836 = vand.u32 %v4835, 4294901760
        %v4837 = vsub.f32 %v4835, %v4836
        %v4838 = vand.u32 %v4837, 4294901760
        %4839 = vmatpush1.msra.mxu0 %v4838
        %v4840 = vand.u32 %v4324, 4294901760
        %v4841 = vsub.f32 %v4324, %v4840
        %v4842 = vand.u32 %v4841, 4294901760
        %v4843 = vsub.f32 %v4841, %v4842
        %v4844 = vand.u32 %v4843, 4294901760
        %4845 = vmatprep.subr.mxu0 %v4844
        %v4846 = vand.u32 %v4323, 4294901760
        %v4847 = vsub.f32 %v4323, %v4846
        %v4848 = vand.u32 %v4847, 4294901760
        %v4849 = vsub.f32 %v4847, %v4848
        %v4850 = vand.u32 %v4849, 4294901760
        %4851 = vmatpush1.msra.mxu0 %v4850
        %v4852 = vand.u32 %v4326, 4294901760
        %v4853 = vsub.f32 %v4326, %v4852
        %v4854 = vand.u32 %v4853, 4294901760
        %v4855 = vsub.f32 %v4853, %v4854
        %v4856 = vand.u32 %v4855, 4294901760
        %4857 = vmatprep.subr.mxu0 %v4856
        %v4858 = vand.u32 %v4325, 4294901760
        %v4859 = vsub.f32 %v4325, %v4858
        %v4860 = vand.u32 %v4859, 4294901760
        %v4861 = vsub.f32 %v4859, %v4860
        %v4862 = vand.u32 %v4861, 4294901760
        %4863 = vmatpush1.msra.mxu0 %v4862
        %v4864 = vand.u32 %v4328, 4294901760
        %v4865 = vsub.f32 %v4328, %v4864
        %v4866 = vand.u32 %v4865, 4294901760
        %v4867 = vsub.f32 %v4865, %v4866
        %v4868 = vand.u32 %v4867, 4294901760
        %4869 = vmatprep.subr.mxu0 %v4868
        %v4870 = vand.u32 %v4327, 4294901760
        %v4871 = vsub.f32 %v4327, %v4870
        %v4872 = vand.u32 %v4871, 4294901760
        %v4873 = vsub.f32 %v4871, %v4872
        %v4874 = vand.u32 %v4873, 4294901760
        %4875 = vmatpush1.msra.mxu0 %v4874
        %v4876 = vand.u32 %v4330, 4294901760
        %v4877 = vsub.f32 %v4330, %v4876
        %v4878 = vand.u32 %v4877, 4294901760
        %v4879 = vsub.f32 %v4877, %v4878
        %v4880 = vand.u32 %v4879, 4294901760
        %4881 = vmatprep.subr.mxu0 %v4880
        %v4882 = vand.u32 %v4329, 4294901760
        %v4883 = vsub.f32 %v4329, %v4882
        %v4884 = vand.u32 %v4883, 4294901760
        %v4885 = vsub.f32 %v4883, %v4884
        %v4886 = vand.u32 %v4885, 4294901760
        %4887 = vmatpush1.msra.mxu0 %v4886
        %v4888 = vand.u32 %v4332, 4294901760
        %v4889 = vsub.f32 %v4332, %v4888
        %v4890 = vand.u32 %v4889, 4294901760
        %v4891 = vsub.f32 %v4889, %v4890
        %v4892 = vand.u32 %v4891, 4294901760
        %4893 = vmatprep.subr.mxu0 %v4892
        %v4894 = vand.u32 %v4331, 4294901760
        %v4895 = vsub.f32 %v4331, %v4894
        %v4896 = vand.u32 %v4895, 4294901760
        %v4897 = vsub.f32 %v4895, %v4896
        %v4898 = vand.u32 %v4897, 4294901760
        %4899 = vmatpush1.msra.mxu0 %v4898
        %v4900 = vand.u32 %v4334, 4294901760
        %v4901 = vsub.f32 %v4334, %v4900
        %v4902 = vand.u32 %v4901, 4294901760
        %v4903 = vsub.f32 %v4901, %v4902
        %v4904 = vand.u32 %v4903, 4294901760
        %4905 = vmatprep.subr.mxu0 %v4904
        %v4906 = vand.u32 %v4333, 4294901760
        %v4907 = vsub.f32 %v4333, %v4906
        %v4908 = vand.u32 %v4907, 4294901760
        %v4909 = vsub.f32 %v4907, %v4908
        %v4910 = vand.u32 %v4909, 4294901760
        %4911 = vmatpush1.msra.mxu0 %v4910
        %v4912 = vand.u32 %v1686, 4294901760
        %4913 = vmatprep.mubr.f32.mxu0 %v4912
        %v4914 = vand.u32 %v1685, 4294901760
        %4915 = vmatmul.mubr.f32.gmra.mrb[0].mxu0 %v4914
        %v4916 = vpop.f32.mrb[0].mxu0
        %v4917 = vadd.f32 %v4476, %v4916
        %v4918 = vpop.f32.mrb[0].mxu0
        %v4919 = vadd.f32 %v4478, %v4918
        %v4920 = vand.u32 %v2123, 4294901760
        %4921 = vmatprep.mubr.f32.mxu0 %v4920
        %v4922 = vand.u32 %v2122, 4294901760
        %4923 = vmatmul.mubr.f32.gmra.mrb[0].mxu0 %v4922
        %v4924 = vpop.f32.mrb[0].mxu0
        %v4925 = vadd.f32 %v4492, %v4924
        %v4926 = vpop.f32.mrb[0].mxu0
        %v4927 = vadd.f32 %v4494, %v4926
        %v4928 = vand.u32 %v2488, 4294901760
        %4929 = vmatprep.mubr.f32.mxu0 %v4928
        %v4930 = vand.u32 %v2487, 4294901760
        %4931 = vmatmul.mubr.f32.gmra.mrb[0].mxu0 %v4930
        %v4932 = vpop.f32.mrb[0].mxu0
        %v4933 = vadd.f32 %v4508, %v4932
        %v4934 = vpop.f32.mrb[0].mxu0
        %v4935 = vadd.f32 %v4510, %v4934
        %v4936 = vand.u32 %v2728, 4294901760
        %4937 = vmatprep.mubr.f32.mxu0 %v4936
        %v4938 = vand.u32 %v2727, 4294901760
        %4939 = vmatmul.mubr.f32.gmra.mrb[0].mxu0 %v4938
        %v4940 = vpop.f32.mrb[0].mxu0
        %v4941 = vadd.f32 %v4524, %v4940
        %v4942 = vpop.f32.mrb[0].mxu0
        %v4943 = vadd.f32 %v4526, %v4942
        %4944 = vdwg.mxu0
        %v4945 = vand.u32 %v4272, 4294901760
        %v4946 = vsub.f32 %v4272, %v4945
        %4947 = vmatprep.subr.mxu0 %v4946
        %v4948 = vand.u32 %v4271, 4294901760
        %v4949 = vsub.f32 %v4271, %v4948
        %4950 = vmatpush1.msra.mxu0 %v4949
        %v4951 = vand.u32 %v4274, 4294901760
        %v4952 = vsub.f32 %v4274, %v4951
        %4953 = vmatprep.subr.mxu0 %v4952
        %v4954 = vand.u32 %v4273, 4294901760
        %v4955 = vsub.f32 %v4273, %v4954
        %4956 = vmatpush1.msra.mxu0 %v4955
        %v4957 = vand.u32 %v4276, 4294901760
        %v4958 = vsub.f32 %v4276, %v4957
        %4959 = vmatprep.subr.mxu0 %v4958
        %v4960 = vand.u32 %v4275, 4294901760
        %v4961 = vsub.f32 %v4275, %v4960
        %4962 = vmatpush1.msra.mxu0 %v4961
        %v4963 = vand.u32 %v4278, 4294901760
        %v4964 = vsub.f32 %v4278, %v4963
        %4965 = vmatprep.subr.mxu0 %v4964
        %v4966 = vand.u32 %v4277, 4294901760
        %v4967 = vsub.f32 %v4277, %v4966
        %4968 = vmatpush1.msra.mxu0 %v4967
        %v4969 = vand.u32 %v4280, 4294901760
        %v4970 = vsub.f32 %v4280, %v4969
        %4971 = vmatprep.subr.mxu0 %v4970
        %v4972 = vand.u32 %v4279, 4294901760
        %v4973 = vsub.f32 %v4279, %v4972
        %4974 = vmatpush1.msra.mxu0 %v4973
        %v4975 = vand.u32 %v4282, 4294901760
        %v4976 = vsub.f32 %v4282, %v4975
        %4977 = vmatprep.subr.mxu0 %v4976
        %v4978 = vand.u32 %v4281, 4294901760
        %v4979 = vsub.f32 %v4281, %v4978
        %4980 = vmatpush1.msra.mxu0 %v4979
        %v4981 = vand.u32 %v4284, 4294901760
        %v4982 = vsub.f32 %v4284, %v4981
        %4983 = vmatprep.subr.mxu0 %v4982
        %v4984 = vand.u32 %v4283, 4294901760
        %v4985 = vsub.f32 %v4283, %v4984
        %4986 = vmatpush1.msra.mxu0 %v4985
        %v4987 = vand.u32 %v4286, 4294901760
        %v4988 = vsub.f32 %v4286, %v4987
        %4989 = vmatprep.subr.mxu0 %v4988
        %v4990 = vand.u32 %v4285, 4294901760
        %v4991 = vsub.f32 %v4285, %v4990
        %4992 = vmatpush1.msra.mxu0 %v4991
        %v4993 = vand.u32 %v4288, 4294901760
        %v4994 = vsub.f32 %v4288, %v4993
        %4995 = vmatprep.subr.mxu0 %v4994
        %v4996 = vand.u32 %v4287, 4294901760
        %v4997 = vsub.f32 %v4287, %v4996
        %4998 = vmatpush1.msra.mxu0 %v4997
        %v4999 = vand.u32 %v4290, 4294901760
        %v5000 = vsub.f32 %v4290, %v4999
        %5001 = vmatprep.subr.mxu0 %v5000
        %v5002 = vand.u32 %v4289, 4294901760
        %v5003 = vsub.f32 %v4289, %v5002
        %5004 = vmatpush1.msra.mxu0 %v5003
        %v5005 = vand.u32 %v4292, 4294901760
        %v5006 = vsub.f32 %v4292, %v5005
        %5007 = vmatprep.subr.mxu0 %v5006
        %v5008 = vand.u32 %v4291, 4294901760
        %v5009 = vsub.f32 %v4291, %v5008
        %5010 = vmatpush1.msra.mxu0 %v5009
        %v5011 = vand.u32 %v4294, 4294901760
        %v5012 = vsub.f32 %v4294, %v5011
        %5013 = vmatprep.subr.mxu0 %v5012
        %v5014 = vand.u32 %v4293, 4294901760
        %v5015 = vsub.f32 %v4293, %v5014
        %5016 = vmatpush1.msra.mxu0 %v5015
        %v5017 = vand.u32 %v4296, 4294901760
        %v5018 = vsub.f32 %v4296, %v5017
        %5019 = vmatprep.subr.mxu0 %v5018
        %v5020 = vand.u32 %v4295, 4294901760
        %v5021 = vsub.f32 %v4295, %v5020
        %5022 = vmatpush1.msra.mxu0 %v5021
        %v5023 = vand.u32 %v4298, 4294901760
        %v5024 = vsub.f32 %v4298, %v5023
        %5025 = vmatprep.subr.mxu0 %v5024
        %v5026 = vand.u32 %v4297, 4294901760
        %v5027 = vsub.f32 %v4297, %v5026
        %5028 = vmatpush1.msra.mxu0 %v5027
        %v5029 = vand.u32 %v4300, 4294901760
        %v5030 = vsub.f32 %v4300, %v5029
        %5031 = vmatprep.subr.mxu0 %v5030
        %v5032 = vand.u32 %v4299, 4294901760
        %v5033 = vsub.f32 %v4299, %v5032
        %5034 = vmatpush1.msra.mxu0 %v5033
        %v5035 = vand.u32 %v4302, 4294901760
        %v5036 = vsub.f32 %v4302, %v5035
        %5037 = vmatprep.subr.mxu0 %v5036
        %v5038 = vand.u32 %v4301, 4294901760
        %v5039 = vsub.f32 %v4301, %v5038
        %5040 = vmatpush1.msra.mxu0 %v5039
        %v5041 = vand.u32 %v4304, 4294901760
        %v5042 = vsub.f32 %v4304, %v5041
        %5043 = vmatprep.subr.mxu0 %v5042
        %v5044 = vand.u32 %v4303, 4294901760
        %v5045 = vsub.f32 %v4303, %v5044
        %5046 = vmatpush1.msra.mxu0 %v5045
        %v5047 = vand.u32 %v4306, 4294901760
        %v5048 = vsub.f32 %v4306, %v5047
        %5049 = vmatprep.subr.mxu0 %v5048
        %v5050 = vand.u32 %v4305, 4294901760
        %v5051 = vsub.f32 %v4305, %v5050
        %5052 = vmatpush1.msra.mxu0 %v5051
        %v5053 = vand.u32 %v4308, 4294901760
        %v5054 = vsub.f32 %v4308, %v5053
        %5055 = vmatprep.subr.mxu0 %v5054
        %v5056 = vand.u32 %v4307, 4294901760
        %v5057 = vsub.f32 %v4307, %v5056
        %5058 = vmatpush1.msra.mxu0 %v5057
        %v5059 = vand.u32 %v4310, 4294901760
        %v5060 = vsub.f32 %v4310, %v5059
        %5061 = vmatprep.subr.mxu0 %v5060
        %v5062 = vand.u32 %v4309, 4294901760
        %v5063 = vsub.f32 %v4309, %v5062
        %5064 = vmatpush1.msra.mxu0 %v5063
        %v5065 = vand.u32 %v4312, 4294901760
        %v5066 = vsub.f32 %v4312, %v5065
        %5067 = vmatprep.subr.mxu0 %v5066
        %v5068 = vand.u32 %v4311, 4294901760
        %v5069 = vsub.f32 %v4311, %v5068
        %5070 = vmatpush1.msra.mxu0 %v5069
        %v5071 = vand.u32 %v4314, 4294901760
        %v5072 = vsub.f32 %v4314, %v5071
        %5073 = vmatprep.subr.mxu0 %v5072
        %v5074 = vand.u32 %v4313, 4294901760
        %v5075 = vsub.f32 %v4313, %v5074
        %5076 = vmatpush1.msra.mxu0 %v5075
        %v5077 = vand.u32 %v4316, 4294901760
        %v5078 = vsub.f32 %v4316, %v5077
        %5079 = vmatprep.subr.mxu0 %v5078
        %v5080 = vand.u32 %v4315, 4294901760
        %v5081 = vsub.f32 %v4315, %v5080
        %5082 = vmatpush1.msra.mxu0 %v5081
        %v5083 = vand.u32 %v4318, 4294901760
        %v5084 = vsub.f32 %v4318, %v5083
        %5085 = vmatprep.subr.mxu0 %v5084
        %v5086 = vand.u32 %v4317, 4294901760
        %v5087 = vsub.f32 %v4317, %v5086
        %5088 = vmatpush1.msra.mxu0 %v5087
        %v5089 = vand.u32 %v4320, 4294901760
        %v5090 = vsub.f32 %v4320, %v5089
        %5091 = vmatprep.subr.mxu0 %v5090
        %v5092 = vand.u32 %v4319, 4294901760
        %v5093 = vsub.f32 %v4319, %v5092
        %5094 = vmatpush1.msra.mxu0 %v5093
        %v5095 = vand.u32 %v4322, 4294901760
        %v5096 = vsub.f32 %v4322, %v5095
        %5097 = vmatprep.subr.mxu0 %v5096
        %v5098 = vand.u32 %v4321, 4294901760
        %v5099 = vsub.f32 %v4321, %v5098
        %5100 = vmatpush1.msra.mxu0 %v5099
        %v5101 = vand.u32 %v4324, 4294901760
        %v5102 = vsub.f32 %v4324, %v5101
        %5103 = vmatprep.subr.mxu0 %v5102
        %v5104 = vand.u32 %v4323, 4294901760
        %v5105 = vsub.f32 %v4323, %v5104
        %5106 = vmatpush1.msra.mxu0 %v5105
        %v5107 = vand.u32 %v4326, 4294901760
        %v5108 = vsub.f32 %v4326, %v5107
        %5109 = vmatprep.subr.mxu0 %v5108
        %v5110 = vand.u32 %v4325, 4294901760
        %v5111 = vsub.f32 %v4325, %v5110
        %5112 = vmatpush1.msra.mxu0 %v5111
        %v5113 = vand.u32 %v4328, 4294901760
        %v5114 = vsub.f32 %v4328, %v5113
        %5115 = vmatprep.subr.mxu0 %v5114
        %v5116 = vand.u32 %v4327, 4294901760
        %v5117 = vsub.f32 %v4327, %v5116
        %5118 = vmatpush1.msra.mxu0 %v5117
        %v5119 = vand.u32 %v4330, 4294901760
        %v5120 = vsub.f32 %v4330, %v5119
        %5121 = vmatprep.subr.mxu0 %v5120
        %v5122 = vand.u32 %v4329, 4294901760
        %v5123 = vsub.f32 %v4329, %v5122
        %5124 = vmatpush1.msra.mxu0 %v5123
        %v5125 = vand.u32 %v4332, 4294901760
        %v5126 = vsub.f32 %v4332, %v5125
        %5127 = vmatprep.subr.mxu0 %v5126
        %v5128 = vand.u32 %v4331, 4294901760
        %v5129 = vsub.f32 %v4331, %v5128
        %5130 = vmatpush1.msra.mxu0 %v5129
        %v5131 = vand.u32 %v4334, 4294901760
        %v5132 = vsub.f32 %v4334, %v5131
        %5133 = vmatprep.subr.mxu0 %v5132
        %v5134 = vand.u32 %v4333, 4294901760
        %v5135 = vsub.f32 %v4333, %v5134
        %5136 = vmatpush1.msra.mxu0 %v5135
        %v5137 = vand.u32 %v1686, 4294901760
        %v5138 = vsub.f32 %v1686, %v5137
        %5139 = vmatprep.mubr.f32.mxu0 %v5138
        %v5140 = vand.u32 %v1685, 4294901760
        %v5141 = vsub.f32 %v1685, %v5140
        %5142 = vmatmul.mubr.f32.gmra.mrb[0].mxu0 %v5141
        %v5143 = vpop.f32.mrb[0].mxu0
        %v5144 = vadd.f32 %v4917, %v5143
        %v5145 = vpop.f32.mrb[0].mxu0
        %v5146 = vadd.f32 %v4919, %v5145
        %v5147 = vand.u32 %v2123, 4294901760
        %v5148 = vsub.f32 %v2123, %v5147
        %5149 = vmatprep.mubr.f32.mxu0 %v5148
        %v5150 = vand.u32 %v2122, 4294901760
        %v5151 = vsub.f32 %v2122, %v5150
        %5152 = vmatmul.mubr.f32.gmra.mrb[0].mxu0 %v5151
        %v5153 = vpop.f32.mrb[0].mxu0
        %v5154 = vadd.f32 %v4925, %v5153
        %v5155 = vpop.f32.mrb[0].mxu0
        %v5156 = vadd.f32 %v4927, %v5155
        %v5157 = vand.u32 %v2488, 4294901760
        %v5158 = vsub.f32 %v2488, %v5157
        %5159 = vmatprep.mubr.f32.mxu0 %v5158
        %v5160 = vand.u32 %v2487, 4294901760
        %v5161 = vsub.f32 %v2487, %v5160
        %5162 = vmatmul.mubr.f32.gmra.mrb[0].mxu0 %v5161
        %v5163 = vpop.f32.mrb[0].mxu0
        %v5164 = vadd.f32 %v4933, %v5163
        %v5165 = vpop.f32.mrb[0].mxu0
        %v5166 = vadd.f32 %v4935, %v5165
        %v5167 = vand.u32 %v2728, 4294901760
        %v5168 = vsub.f32 %v2728, %v5167
        %5169 = vmatprep.mubr.f32.mxu0 %v5168
        %v5170 = vand.u32 %v2727, 4294901760
        %v5171 = vsub.f32 %v2727, %v5170
        %5172 = vmatmul.mubr.f32.gmra.mrb[0].mxu0 %v5171
        %v5173 = vpop.f32.mrb[0].mxu0
        %v5174 = vadd.f32 %v4941, %v5173
        %v5175 = vpop.f32.mrb[0].mxu0
        %v5176 = vadd.f32 %v4943, %v5175
        %5177 = vdwg.mxu0
        %v5178 = vand.u32 %v4272, 4294901760
        %5179 = vmatprep.subr.mxu0 %v5178
        %v5180 = vand.u32 %v4271, 4294901760
        %5181 = vmatpush1.msra.mxu0 %v5180
        %v5182 = vand.u32 %v4274, 4294901760
        %5183 = vmatprep.subr.mxu0 %v5182
        %v5184 = vand.u32 %v4273, 4294901760
        %5185 = vmatpush1.msra.mxu0 %v5184
        %v5186 = vand.u32 %v4276, 4294901760
        %5187 = vmatprep.subr.mxu0 %v5186
        %v5188 = vand.u32 %v4275, 4294901760
        %5189 = vmatpush1.msra.mxu0 %v5188
        %v5190 = vand.u32 %v4278, 4294901760
        %5191 = vmatprep.subr.mxu0 %v5190
        %v5192 = vand.u32 %v4277, 4294901760
        %5193 = vmatpush1.msra.mxu0 %v5192
        %v5194 = vand.u32 %v4280, 4294901760
        %5195 = vmatprep.subr.mxu0 %v5194
        %v5196 = vand.u32 %v4279, 4294901760
        %5197 = vmatpush1.msra.mxu0 %v5196
        %v5198 = vand.u32 %v4282, 4294901760
        %5199 = vmatprep.subr.mxu0 %v5198
        %v5200 = vand.u32 %v4281, 4294901760
        %5201 = vmatpush1.msra.mxu0 %v5200
        %v5202 = vand.u32 %v4284, 4294901760
        %5203 = vmatprep.subr.mxu0 %v5202
        %v5204 = vand.u32 %v4283, 4294901760
        %5205 = vmatpush1.msra.mxu0 %v5204
        %v5206 = vand.u32 %v4286, 4294901760
        %5207 = vmatprep.subr.mxu0 %v5206
        %v5208 = vand.u32 %v4285, 4294901760
        %5209 = vmatpush1.msra.mxu0 %v5208
        %v5210 = vand.u32 %v4288, 4294901760
        %5211 = vmatprep.subr.mxu0 %v5210
        %v5212 = vand.u32 %v4287, 4294901760
        %5213 = vmatpush1.msra.mxu0 %v5212
        %v5214 = vand.u32 %v4290, 4294901760
        %5215 = vmatprep.subr.mxu0 %v5214
        %v5216 = vand.u32 %v4289, 4294901760
        %5217 = vmatpush1.msra.mxu0 %v5216
        %v5218 = vand.u32 %v4292, 4294901760
        %5219 = vmatprep.subr.mxu0 %v5218
        %v5220 = vand.u32 %v4291, 4294901760
        %5221 = vmatpush1.msra.mxu0 %v5220
        %v5222 = vand.u32 %v4294, 4294901760
        %5223 = vmatprep.subr.mxu0 %v5222
        %v5224 = vand.u32 %v4293, 4294901760
        %5225 = vmatpush1.msra.mxu0 %v5224
        %v5226 = vand.u32 %v4296, 4294901760
        %5227 = vmatprep.subr.mxu0 %v5226
        %v5228 = vand.u32 %v4295, 4294901760
        %5229 = vmatpush1.msra.mxu0 %v5228
        %v5230 = vand.u32 %v4298, 4294901760
        %5231 = vmatprep.subr.mxu0 %v5230
        %v5232 = vand.u32 %v4297, 4294901760
        %5233 = vmatpush1.msra.mxu0 %v5232
        %v5234 = vand.u32 %v4300, 4294901760
        %5235 = vmatprep.subr.mxu0 %v5234
        %v5236 = vand.u32 %v4299, 4294901760
        %5237 = vmatpush1.msra.mxu0 %v5236
        %v5238 = vand.u32 %v4302, 4294901760
        %5239 = vmatprep.subr.mxu0 %v5238
        %v5240 = vand.u32 %v4301, 4294901760
        %5241 = vmatpush1.msra.mxu0 %v5240
        %v5242 = vand.u32 %v4304, 4294901760
        %5243 = vmatprep.subr.mxu0 %v5242
        %v5244 = vand.u32 %v4303, 4294901760
        %5245 = vmatpush1.msra.mxu0 %v5244
        %v5246 = vand.u32 %v4306, 4294901760
        %5247 = vmatprep.subr.mxu0 %v5246
        %v5248 = vand.u32 %v4305, 4294901760
        %5249 = vmatpush1.msra.mxu0 %v5248
        %v5250 = vand.u32 %v4308, 4294901760
        %5251 = vmatprep.subr.mxu0 %v5250
        %v5252 = vand.u32 %v4307, 4294901760
        %5253 = vmatpush1.msra.mxu0 %v5252
        %v5254 = vand.u32 %v4310, 4294901760
        %5255 = vmatprep.subr.mxu0 %v5254
        %v5256 = vand.u32 %v4309, 4294901760
        %5257 = vmatpush1.msra.mxu0 %v5256
        %v5258 = vand.u32 %v4312, 4294901760
        %5259 = vmatprep.subr.mxu0 %v5258
        %v5260 = vand.u32 %v4311, 4294901760
        %5261 = vmatpush1.msra.mxu0 %v5260
        %v5262 = vand.u32 %v4314, 4294901760
        %5263 = vmatprep.subr.mxu0 %v5262
        %v5264 = vand.u32 %v4313, 4294901760
        %5265 = vmatpush1.msra.mxu0 %v5264
        %v5266 = vand.u32 %v4316, 4294901760
        %5267 = vmatprep.subr.mxu0 %v5266
        %v5268 = vand.u32 %v4315, 4294901760
        %5269 = vmatpush1.msra.mxu0 %v5268
        %v5270 = vand.u32 %v4318, 4294901760
        %5271 = vmatprep.subr.mxu0 %v5270
        %v5272 = vand.u32 %v4317, 4294901760
        %5273 = vmatpush1.msra.mxu0 %v5272
        %v5274 = vand.u32 %v4320, 4294901760
        %5275 = vmatprep.subr.mxu0 %v5274
        %v5276 = vand.u32 %v4319, 4294901760
        %5277 = vmatpush1.msra.mxu0 %v5276
        %v5278 = vand.u32 %v4322, 4294901760
        %5279 = vmatprep.subr.mxu0 %v5278
        %v5280 = vand.u32 %v4321, 4294901760
        %5281 = vmatpush1.msra.mxu0 %v5280
        %v5282 = vand.u32 %v4324, 4294901760
        %5283 = vmatprep.subr.mxu0 %v5282
        %v5284 = vand.u32 %v4323, 4294901760
        %5285 = vmatpush1.msra.mxu0 %v5284
        %v5286 = vand.u32 %v4326, 4294901760
        %5287 = vmatprep.subr.mxu0 %v5286
        %v5288 = vand.u32 %v4325, 4294901760
        %5289 = vmatpush1.msra.mxu0 %v5288
        %v5290 = vand.u32 %v4328, 4294901760
        %5291 = vmatprep.subr.mxu0 %v5290
        %v5292 = vand.u32 %v4327, 4294901760
        %5293 = vmatpush1.msra.mxu0 %v5292
        %v5294 = vand.u32 %v4330, 4294901760
        %5295 = vmatprep.subr.mxu0 %v5294
        %v5296 = vand.u32 %v4329, 4294901760
        %5297 = vmatpush1.msra.mxu0 %v5296
        %v5298 = vand.u32 %v4332, 4294901760
        %5299 = vmatprep.subr.mxu0 %v5298
        %v5300 = vand.u32 %v4331, 4294901760
        %5301 = vmatpush1.msra.mxu0 %v5300
        %v5302 = vand.u32 %v4334, 4294901760
        %5303 = vmatprep.subr.mxu0 %v5302
        %v5304 = vand.u32 %v4333, 4294901760
        %5305 = vmatpush1.msra.mxu0 %v5304
        %v5306 = vand.u32 %v1686, 4294901760
        %v5307 = vsub.f32 %v1686, %v5306
        %v5308 = vand.u32 %v5307, 4294901760
        %5309 = vmatprep.mubr.f32.mxu0 %v5308
        %v5310 = vand.u32 %v1685, 4294901760
        %v5311 = vsub.f32 %v1685, %v5310
        %v5312 = vand.u32 %v5311, 4294901760
        %5313 = vmatmul.mubr.f32.gmra.mrb[0].mxu0 %v5312
        %v5314 = vpop.f32.mrb[0].mxu0
        %v5315 = vadd.f32 %v5144, %v5314
        %v5316 = vpop.f32.mrb[0].mxu0
        %v5317 = vadd.f32 %v5146, %v5316
        %v5318 = vand.u32 %v2123, 4294901760
        %v5319 = vsub.f32 %v2123, %v5318
        %v5320 = vand.u32 %v5319, 4294901760
        %5321 = vmatprep.mubr.f32.mxu0 %v5320
        %v5322 = vand.u32 %v2122, 4294901760
        %v5323 = vsub.f32 %v2122, %v5322
        %v5324 = vand.u32 %v5323, 4294901760
        %5325 = vmatmul.mubr.f32.gmra.mrb[0].mxu0 %v5324
        %v5326 = vpop.f32.mrb[0].mxu0
        %v5327 = vadd.f32 %v5154, %v5326
        %v5328 = vpop.f32.mrb[0].mxu0
        %v5329 = vadd.f32 %v5156, %v5328
        %v5330 = vand.u32 %v2488, 4294901760
        %v5331 = vsub.f32 %v2488, %v5330
        %v5332 = vand.u32 %v5331, 4294901760
        %5333 = vmatprep.mubr.f32.mxu0 %v5332
        %v5334 = vand.u32 %v2487, 4294901760
        %v5335 = vsub.f32 %v2487, %v5334
        %v5336 = vand.u32 %v5335, 4294901760
        %5337 = vmatmul.mubr.f32.gmra.mrb[0].mxu0 %v5336
        %v5338 = vpop.f32.mrb[0].mxu0
        %v5339 = vadd.f32 %v5164, %v5338
        %v5340 = vpop.f32.mrb[0].mxu0
        %v5341 = vadd.f32 %v5166, %v5340
        %v5342 = vand.u32 %v2728, 4294901760
        %v5343 = vsub.f32 %v2728, %v5342
        %v5344 = vand.u32 %v5343, 4294901760
        %5345 = vmatprep.mubr.f32.mxu0 %v5344
        %v5346 = vand.u32 %v2727, 4294901760
        %v5347 = vsub.f32 %v2727, %v5346
        %v5348 = vand.u32 %v5347, 4294901760
        %5349 = vmatmul.mubr.f32.gmra.mrb[0].mxu0 %v5348
        %v5350 = vpop.f32.mrb[0].mxu0
        %v5351 = vadd.f32 %v5174, %v5350
        %v5352 = vpop.f32.mrb[0].mxu0
        %v5353 = vadd.f32 %v5176, %v5352
        %5354 = vdwg.mxu0
        %v5355 = vand.u32 %v4272, 4294901760
        %v5356 = vsub.f32 %v4272, %v5355
        %v5357 = vand.u32 %v5356, 4294901760
        %5358 = vmatprep.subr.mxu0 %v5357
        %v5359 = vand.u32 %v4271, 4294901760
        %v5360 = vsub.f32 %v4271, %v5359
        %v5361 = vand.u32 %v5360, 4294901760
        %5362 = vmatpush1.msra.mxu0 %v5361
        %v5363 = vand.u32 %v4274, 4294901760
        %v5364 = vsub.f32 %v4274, %v5363
        %v5365 = vand.u32 %v5364, 4294901760
        %5366 = vmatprep.subr.mxu0 %v5365
        %v5367 = vand.u32 %v4273, 4294901760
        %v5368 = vsub.f32 %v4273, %v5367
        %v5369 = vand.u32 %v5368, 4294901760
        %5370 = vmatpush1.msra.mxu0 %v5369
        %v5371 = vand.u32 %v4276, 4294901760
        %v5372 = vsub.f32 %v4276, %v5371
        %v5373 = vand.u32 %v5372, 4294901760
        %5374 = vmatprep.subr.mxu0 %v5373
        %v5375 = vand.u32 %v4275, 4294901760
        %v5376 = vsub.f32 %v4275, %v5375
        %v5377 = vand.u32 %v5376, 4294901760
        %5378 = vmatpush1.msra.mxu0 %v5377
        %v5379 = vand.u32 %v4278, 4294901760
        %v5380 = vsub.f32 %v4278, %v5379
        %v5381 = vand.u32 %v5380, 4294901760
        %5382 = vmatprep.subr.mxu0 %v5381
        %v5383 = vand.u32 %v4277, 4294901760
        %v5384 = vsub.f32 %v4277, %v5383
        %v5385 = vand.u32 %v5384, 4294901760
        %5386 = vmatpush1.msra.mxu0 %v5385
        %v5387 = vand.u32 %v4280, 4294901760
        %v5388 = vsub.f32 %v4280, %v5387
        %v5389 = vand.u32 %v5388, 4294901760
        %5390 = vmatprep.subr.mxu0 %v5389
        %v5391 = vand.u32 %v4279, 4294901760
        %v5392 = vsub.f32 %v4279, %v5391
        %v5393 = vand.u32 %v5392, 4294901760
        %5394 = vmatpush1.msra.mxu0 %v5393
        %v5395 = vand.u32 %v4282, 4294901760
        %v5396 = vsub.f32 %v4282, %v5395
        %v5397 = vand.u32 %v5396, 4294901760
        %5398 = vmatprep.subr.mxu0 %v5397
        %v5399 = vand.u32 %v4281, 4294901760
        %v5400 = vsub.f32 %v4281, %v5399
        %v5401 = vand.u32 %v5400, 4294901760
        %5402 = vmatpush1.msra.mxu0 %v5401
        %v5403 = vand.u32 %v4284, 4294901760
        %v5404 = vsub.f32 %v4284, %v5403
        %v5405 = vand.u32 %v5404, 4294901760
        %5406 = vmatprep.subr.mxu0 %v5405
        %v5407 = vand.u32 %v4283, 4294901760
        %v5408 = vsub.f32 %v4283, %v5407
        %v5409 = vand.u32 %v5408, 4294901760
        %5410 = vmatpush1.msra.mxu0 %v5409
        %v5411 = vand.u32 %v4286, 4294901760
        %v5412 = vsub.f32 %v4286, %v5411
        %v5413 = vand.u32 %v5412, 4294901760
        %5414 = vmatprep.subr.mxu0 %v5413
        %v5415 = vand.u32 %v4285, 4294901760
        %v5416 = vsub.f32 %v4285, %v5415
        %v5417 = vand.u32 %v5416, 4294901760
        %5418 = vmatpush1.msra.mxu0 %v5417
        %v5419 = vand.u32 %v4288, 4294901760
        %v5420 = vsub.f32 %v4288, %v5419
        %v5421 = vand.u32 %v5420, 4294901760
        %5422 = vmatprep.subr.mxu0 %v5421
        %v5423 = vand.u32 %v4287, 4294901760
        %v5424 = vsub.f32 %v4287, %v5423
        %v5425 = vand.u32 %v5424, 4294901760
        %5426 = vmatpush1.msra.mxu0 %v5425
        %v5427 = vand.u32 %v4290, 4294901760
        %v5428 = vsub.f32 %v4290, %v5427
        %v5429 = vand.u32 %v5428, 4294901760
        %5430 = vmatprep.subr.mxu0 %v5429
        %v5431 = vand.u32 %v4289, 4294901760
        %v5432 = vsub.f32 %v4289, %v5431
        %v5433 = vand.u32 %v5432, 4294901760
        %5434 = vmatpush1.msra.mxu0 %v5433
        %v5435 = vand.u32 %v4292, 4294901760
        %v5436 = vsub.f32 %v4292, %v5435
        %v5437 = vand.u32 %v5436, 4294901760
        %5438 = vmatprep.subr.mxu0 %v5437
        %v5439 = vand.u32 %v4291, 4294901760
        %v5440 = vsub.f32 %v4291, %v5439
        %v5441 = vand.u32 %v5440, 4294901760
        %5442 = vmatpush1.msra.mxu0 %v5441
        %v5443 = vand.u32 %v4294, 4294901760
        %v5444 = vsub.f32 %v4294, %v5443
        %v5445 = vand.u32 %v5444, 4294901760
        %5446 = vmatprep.subr.mxu0 %v5445
        %v5447 = vand.u32 %v4293, 4294901760
        %v5448 = vsub.f32 %v4293, %v5447
        %v5449 = vand.u32 %v5448, 4294901760
        %5450 = vmatpush1.msra.mxu0 %v5449
        %v5451 = vand.u32 %v4296, 4294901760
        %v5452 = vsub.f32 %v4296, %v5451
        %v5453 = vand.u32 %v5452, 4294901760
        %5454 = vmatprep.subr.mxu0 %v5453
        %v5455 = vand.u32 %v4295, 4294901760
        %v5456 = vsub.f32 %v4295, %v5455
        %v5457 = vand.u32 %v5456, 4294901760
        %5458 = vmatpush1.msra.mxu0 %v5457
        %v5459 = vand.u32 %v4298, 4294901760
        %v5460 = vsub.f32 %v4298, %v5459
        %v5461 = vand.u32 %v5460, 4294901760
        %5462 = vmatprep.subr.mxu0 %v5461
        %v5463 = vand.u32 %v4297, 4294901760
        %v5464 = vsub.f32 %v4297, %v5463
        %v5465 = vand.u32 %v5464, 4294901760
        %5466 = vmatpush1.msra.mxu0 %v5465
        %v5467 = vand.u32 %v4300, 4294901760
        %v5468 = vsub.f32 %v4300, %v5467
        %v5469 = vand.u32 %v5468, 4294901760
        %5470 = vmatprep.subr.mxu0 %v5469
        %v5471 = vand.u32 %v4299, 4294901760
        %v5472 = vsub.f32 %v4299, %v5471
        %v5473 = vand.u32 %v5472, 4294901760
        %5474 = vmatpush1.msra.mxu0 %v5473
        %v5475 = vand.u32 %v4302, 4294901760
        %v5476 = vsub.f32 %v4302, %v5475
        %v5477 = vand.u32 %v5476, 4294901760
        %5478 = vmatprep.subr.mxu0 %v5477
        %v5479 = vand.u32 %v4301, 4294901760
        %v5480 = vsub.f32 %v4301, %v5479
        %v5481 = vand.u32 %v5480, 4294901760
        %5482 = vmatpush1.msra.mxu0 %v5481
        %v5483 = vand.u32 %v4304, 4294901760
        %v5484 = vsub.f32 %v4304, %v5483
        %v5485 = vand.u32 %v5484, 4294901760
        %5486 = vmatprep.subr.mxu0 %v5485
        %v5487 = vand.u32 %v4303, 4294901760
        %v5488 = vsub.f32 %v4303, %v5487
        %v5489 = vand.u32 %v5488, 4294901760
        %5490 = vmatpush1.msra.mxu0 %v5489
        %v5491 = vand.u32 %v4306, 4294901760
        %v5492 = vsub.f32 %v4306, %v5491
        %v5493 = vand.u32 %v5492, 4294901760
        %5494 = vmatprep.subr.mxu0 %v5493
        %v5495 = vand.u32 %v4305, 4294901760
        %v5496 = vsub.f32 %v4305, %v5495
        %v5497 = vand.u32 %v5496, 4294901760
        %5498 = vmatpush1.msra.mxu0 %v5497
        %v5499 = vand.u32 %v4308, 4294901760
        %v5500 = vsub.f32 %v4308, %v5499
        %v5501 = vand.u32 %v5500, 4294901760
        %5502 = vmatprep.subr.mxu0 %v5501
        %v5503 = vand.u32 %v4307, 4294901760
        %v5504 = vsub.f32 %v4307, %v5503
        %v5505 = vand.u32 %v5504, 4294901760
        %5506 = vmatpush1.msra.mxu0 %v5505
        %v5507 = vand.u32 %v4310, 4294901760
        %v5508 = vsub.f32 %v4310, %v5507
        %v5509 = vand.u32 %v5508, 4294901760
        %5510 = vmatprep.subr.mxu0 %v5509
        %v5511 = vand.u32 %v4309, 4294901760
        %v5512 = vsub.f32 %v4309, %v5511
        %v5513 = vand.u32 %v5512, 4294901760
        %5514 = vmatpush1.msra.mxu0 %v5513
        %v5515 = vand.u32 %v4312, 4294901760
        %v5516 = vsub.f32 %v4312, %v5515
        %v5517 = vand.u32 %v5516, 4294901760
        %5518 = vmatprep.subr.mxu0 %v5517
        %v5519 = vand.u32 %v4311, 4294901760
        %v5520 = vsub.f32 %v4311, %v5519
        %v5521 = vand.u32 %v5520, 4294901760
        %5522 = vmatpush1.msra.mxu0 %v5521
        %v5523 = vand.u32 %v4314, 4294901760
        %v5524 = vsub.f32 %v4314, %v5523
        %v5525 = vand.u32 %v5524, 4294901760
        %5526 = vmatprep.subr.mxu0 %v5525
        %v5527 = vand.u32 %v4313, 4294901760
        %v5528 = vsub.f32 %v4313, %v5527
        %v5529 = vand.u32 %v5528, 4294901760
        %5530 = vmatpush1.msra.mxu0 %v5529
        %v5531 = vand.u32 %v4316, 4294901760
        %v5532 = vsub.f32 %v4316, %v5531
        %v5533 = vand.u32 %v5532, 4294901760
        %5534 = vmatprep.subr.mxu0 %v5533
        %v5535 = vand.u32 %v4315, 4294901760
        %v5536 = vsub.f32 %v4315, %v5535
        %v5537 = vand.u32 %v5536, 4294901760
        %5538 = vmatpush1.msra.mxu0 %v5537
        %v5539 = vand.u32 %v4318, 4294901760
        %v5540 = vsub.f32 %v4318, %v5539
        %v5541 = vand.u32 %v5540, 4294901760
        %5542 = vmatprep.subr.mxu0 %v5541
        %v5543 = vand.u32 %v4317, 4294901760
        %v5544 = vsub.f32 %v4317, %v5543
        %v5545 = vand.u32 %v5544, 4294901760
        %5546 = vmatpush1.msra.mxu0 %v5545
        %v5547 = vand.u32 %v4320, 4294901760
        %v5548 = vsub.f32 %v4320, %v5547
        %v5549 = vand.u32 %v5548, 4294901760
        %5550 = vmatprep.subr.mxu0 %v5549
        %v5551 = vand.u32 %v4319, 4294901760
        %v5552 = vsub.f32 %v4319, %v5551
        %v5553 = vand.u32 %v5552, 4294901760
        %5554 = vmatpush1.msra.mxu0 %v5553
        %v5555 = vand.u32 %v4322, 4294901760
        %v5556 = vsub.f32 %v4322, %v5555
        %v5557 = vand.u32 %v5556, 4294901760
        %5558 = vmatprep.subr.mxu0 %v5557
        %v5559 = vand.u32 %v4321, 4294901760
        %v5560 = vsub.f32 %v4321, %v5559
        %v5561 = vand.u32 %v5560, 4294901760
        %5562 = vmatpush1.msra.mxu0 %v5561
        %v5563 = vand.u32 %v4324, 4294901760
        %v5564 = vsub.f32 %v4324, %v5563
        %v5565 = vand.u32 %v5564, 4294901760
        %5566 = vmatprep.subr.mxu0 %v5565
        %v5567 = vand.u32 %v4323, 4294901760
        %v5568 = vsub.f32 %v4323, %v5567
        %v5569 = vand.u32 %v5568, 4294901760
        %5570 = vmatpush1.msra.mxu0 %v5569
        %v5571 = vand.u32 %v4326, 4294901760
        %v5572 = vsub.f32 %v4326, %v5571
        %v5573 = vand.u32 %v5572, 4294901760
        %5574 = vmatprep.subr.mxu0 %v5573
        %v5575 = vand.u32 %v4325, 4294901760
        %v5576 = vsub.f32 %v4325, %v5575
        %v5577 = vand.u32 %v5576, 4294901760
        %5578 = vmatpush1.msra.mxu0 %v5577
        %v5579 = vand.u32 %v4328, 4294901760
        %v5580 = vsub.f32 %v4328, %v5579
        %v5581 = vand.u32 %v5580, 4294901760
        %5582 = vmatprep.subr.mxu0 %v5581
        %v5583 = vand.u32 %v4327, 4294901760
        %v5584 = vsub.f32 %v4327, %v5583
        %v5585 = vand.u32 %v5584, 4294901760
        %5586 = vmatpush1.msra.mxu0 %v5585
        %v5587 = vand.u32 %v4330, 4294901760
        %v5588 = vsub.f32 %v4330, %v5587
        %v5589 = vand.u32 %v5588, 4294901760
        %5590 = vmatprep.subr.mxu0 %v5589
        %v5591 = vand.u32 %v4329, 4294901760
        %v5592 = vsub.f32 %v4329, %v5591
        %v5593 = vand.u32 %v5592, 4294901760
        %5594 = vmatpush1.msra.mxu0 %v5593
        %v5595 = vand.u32 %v4332, 4294901760
        %v5596 = vsub.f32 %v4332, %v5595
        %v5597 = vand.u32 %v5596, 4294901760
        %5598 = vmatprep.subr.mxu0 %v5597
        %v5599 = vand.u32 %v4331, 4294901760
        %v5600 = vsub.f32 %v4331, %v5599
        %v5601 = vand.u32 %v5600, 4294901760
        %5602 = vmatpush1.msra.mxu0 %v5601
        %v5603 = vand.u32 %v4334, 4294901760
        %v5604 = vsub.f32 %v4334, %v5603
        %v5605 = vand.u32 %v5604, 4294901760
        %5606 = vmatprep.subr.mxu0 %v5605
        %v5607 = vand.u32 %v4333, 4294901760
        %v5608 = vsub.f32 %v4333, %v5607
        %v5609 = vand.u32 %v5608, 4294901760
        %5610 = vmatpush1.msra.mxu0 %v5609
        %v5611 = vand.u32 %v1686, 4294901760
        %5612 = vmatprep.mubr.f32.mxu0 %v5611
        %v5613 = vand.u32 %v1685, 4294901760
        %5614 = vmatmul.mubr.f32.gmra.mrb[0].mxu0 %v5613
        %v5615 = vpop.f32.mrb[0].mxu0
        %v5616 = vadd.f32 %v5315, %v5615
        %v5617 = vpop.f32.mrb[0].mxu0
        %v5618 = vadd.f32 %v5317, %v5617
        %v5619 = vand.u32 %v2123, 4294901760
        %5620 = vmatprep.mubr.f32.mxu0 %v5619
        %v5621 = vand.u32 %v2122, 4294901760
        %5622 = vmatmul.mubr.f32.gmra.mrb[0].mxu0 %v5621
        %v5623 = vpop.f32.mrb[0].mxu0
        %v5624 = vadd.f32 %v5327, %v5623
        %v5625 = vpop.f32.mrb[0].mxu0
        %v5626 = vadd.f32 %v5329, %v5625
        %v5627 = vand.u32 %v2488, 4294901760
        %5628 = vmatprep.mubr.f32.mxu0 %v5627
        %v5629 = vand.u32 %v2487, 4294901760
        %5630 = vmatmul.mubr.f32.gmra.mrb[0].mxu0 %v5629
        %v5631 = vpop.f32.mrb[0].mxu0
        %v5632 = vadd.f32 %v5339, %v5631
        %v5633 = vpop.f32.mrb[0].mxu0
        %v5634 = vadd.f32 %v5341, %v5633
        %v5635 = vand.u32 %v2728, 4294901760
        %5636 = vmatprep.mubr.f32.mxu0 %v5635
        %v5637 = vand.u32 %v2727, 4294901760
        %5638 = vmatmul.mubr.f32.gmra.mrb[0].mxu0 %v5637
        %v5639 = vpop.f32.mrb[0].mxu0
        %v5640 = vadd.f32 %v5351, %v5639
        %v5641 = vpop.f32.mrb[0].mxu0
        %v5642 = vadd.f32 %v5353, %v5641
        %5643 = vdwg.mxu0
        %v5644 = vand.u32 %v4272, 4294901760
        %5645 = vmatprep.subr.mxu0 %v5644
        %v5646 = vand.u32 %v4271, 4294901760
        %5647 = vmatpush1.msra.mxu0 %v5646
        %v5648 = vand.u32 %v4274, 4294901760
        %5649 = vmatprep.subr.mxu0 %v5648
        %v5650 = vand.u32 %v4273, 4294901760
        %5651 = vmatpush1.msra.mxu0 %v5650
        %v5652 = vand.u32 %v4276, 4294901760
        %5653 = vmatprep.subr.mxu0 %v5652
        %v5654 = vand.u32 %v4275, 4294901760
        %5655 = vmatpush1.msra.mxu0 %v5654
        %v5656 = vand.u32 %v4278, 4294901760
        %5657 = vmatprep.subr.mxu0 %v5656
        %v5658 = vand.u32 %v4277, 4294901760
        %5659 = vmatpush1.msra.mxu0 %v5658
        %v5660 = vand.u32 %v4280, 4294901760
        %5661 = vmatprep.subr.mxu0 %v5660
        %v5662 = vand.u32 %v4279, 4294901760
        %5663 = vmatpush1.msra.mxu0 %v5662
        %v5664 = vand.u32 %v4282, 4294901760
        %5665 = vmatprep.subr.mxu0 %v5664
        %v5666 = vand.u32 %v4281, 4294901760
        %5667 = vmatpush1.msra.mxu0 %v5666
        %v5668 = vand.u32 %v4284, 4294901760
        %5669 = vmatprep.subr.mxu0 %v5668
        %v5670 = vand.u32 %v4283, 4294901760
        %5671 = vmatpush1.msra.mxu0 %v5670
        %v5672 = vand.u32 %v4286, 4294901760
        %5673 = vmatprep.subr.mxu0 %v5672
        %v5674 = vand.u32 %v4285, 4294901760
        %5675 = vmatpush1.msra.mxu0 %v5674
        %v5676 = vand.u32 %v4288, 4294901760
        %5677 = vmatprep.subr.mxu0 %v5676
        %v5678 = vand.u32 %v4287, 4294901760
        %5679 = vmatpush1.msra.mxu0 %v5678
        %v5680 = vand.u32 %v4290, 4294901760
        %5681 = vmatprep.subr.mxu0 %v5680
        %v5682 = vand.u32 %v4289, 4294901760
        %5683 = vmatpush1.msra.mxu0 %v5682
        %v5684 = vand.u32 %v4292, 4294901760
        %5685 = vmatprep.subr.mxu0 %v5684
        %v5686 = vand.u32 %v4291, 4294901760
        %5687 = vmatpush1.msra.mxu0 %v5686
        %v5688 = vand.u32 %v4294, 4294901760
        %5689 = vmatprep.subr.mxu0 %v5688
        %v5690 = vand.u32 %v4293, 4294901760
        %5691 = vmatpush1.msra.mxu0 %v5690
        %v5692 = vand.u32 %v4296, 4294901760
        %5693 = vmatprep.subr.mxu0 %v5692
        %v5694 = vand.u32 %v4295, 4294901760
        %5695 = vmatpush1.msra.mxu0 %v5694
        %v5696 = vand.u32 %v4298, 4294901760
        %5697 = vmatprep.subr.mxu0 %v5696
        %v5698 = vand.u32 %v4297, 4294901760
        %5699 = vmatpush1.msra.mxu0 %v5698
        %v5700 = vand.u32 %v4300, 4294901760
        %5701 = vmatprep.subr.mxu0 %v5700
        %v5702 = vand.u32 %v4299, 4294901760
        %5703 = vmatpush1.msra.mxu0 %v5702
        %v5704 = vand.u32 %v4302, 4294901760
        %5705 = vmatprep.subr.mxu0 %v5704
        %v5706 = vand.u32 %v4301, 4294901760
        %5707 = vmatpush1.msra.mxu0 %v5706
        %v5708 = vand.u32 %v4304, 4294901760
        %5709 = vmatprep.subr.mxu0 %v5708
        %v5710 = vand.u32 %v4303, 4294901760
        %5711 = vmatpush1.msra.mxu0 %v5710
        %v5712 = vand.u32 %v4306, 4294901760
        %5713 = vmatprep.subr.mxu0 %v5712
        %v5714 = vand.u32 %v4305, 4294901760
        %5715 = vmatpush1.msra.mxu0 %v5714
        %v5716 = vand.u32 %v4308, 4294901760
        %5717 = vmatprep.subr.mxu0 %v5716
        %v5718 = vand.u32 %v4307, 4294901760
        %5719 = vmatpush1.msra.mxu0 %v5718
        %v5720 = vand.u32 %v4310, 4294901760
        %5721 = vmatprep.subr.mxu0 %v5720
        %v5722 = vand.u32 %v4309, 4294901760
        %5723 = vmatpush1.msra.mxu0 %v5722
        %v5724 = vand.u32 %v4312, 4294901760
        %5725 = vmatprep.subr.mxu0 %v5724
        %v5726 = vand.u32 %v4311, 4294901760
        %5727 = vmatpush1.msra.mxu0 %v5726
        %v5728 = vand.u32 %v4314, 4294901760
        %5729 = vmatprep.subr.mxu0 %v5728
        %v5730 = vand.u32 %v4313, 4294901760
        %5731 = vmatpush1.msra.mxu0 %v5730
        %v5732 = vand.u32 %v4316, 4294901760
        %5733 = vmatprep.subr.mxu0 %v5732
        %v5734 = vand.u32 %v4315, 4294901760
        %5735 = vmatpush1.msra.mxu0 %v5734
        %v5736 = vand.u32 %v4318, 4294901760
        %5737 = vmatprep.subr.mxu0 %v5736
        %v5738 = vand.u32 %v4317, 4294901760
        %5739 = vmatpush1.msra.mxu0 %v5738
        %v5740 = vand.u32 %v4320, 4294901760
        %5741 = vmatprep.subr.mxu0 %v5740
        %v5742 = vand.u32 %v4319, 4294901760
        %5743 = vmatpush1.msra.mxu0 %v5742
        %v5744 = vand.u32 %v4322, 4294901760
        %5745 = vmatprep.subr.mxu0 %v5744
        %v5746 = vand.u32 %v4321, 4294901760
        %5747 = vmatpush1.msra.mxu0 %v5746
        %v5748 = vand.u32 %v4324, 4294901760
        %5749 = vmatprep.subr.mxu0 %v5748
        %v5750 = vand.u32 %v4323, 4294901760
        %5751 = vmatpush1.msra.mxu0 %v5750
        %v5752 = vand.u32 %v4326, 4294901760
        %5753 = vmatprep.subr.mxu0 %v5752
        %v5754 = vand.u32 %v4325, 4294901760
        %5755 = vmatpush1.msra.mxu0 %v5754
        %v5756 = vand.u32 %v4328, 4294901760
        %5757 = vmatprep.subr.mxu0 %v5756
        %v5758 = vand.u32 %v4327, 4294901760
        %5759 = vmatpush1.msra.mxu0 %v5758
        %v5760 = vand.u32 %v4330, 4294901760
        %5761 = vmatprep.subr.mxu0 %v5760
        %v5762 = vand.u32 %v4329, 4294901760
        %5763 = vmatpush1.msra.mxu0 %v5762
        %v5764 = vand.u32 %v4332, 4294901760
        %5765 = vmatprep.subr.mxu0 %v5764
        %v5766 = vand.u32 %v4331, 4294901760
        %5767 = vmatpush1.msra.mxu0 %v5766
        %v5768 = vand.u32 %v4334, 4294901760
        %5769 = vmatprep.subr.mxu0 %v5768
        %v5770 = vand.u32 %v4333, 4294901760
        %5771 = vmatpush1.msra.mxu0 %v5770
        %v5772 = vand.u32 %v1686, 4294901760
        %5773 = vmatprep.mubr.f32.mxu0 %v5772
        %v5774 = vand.u32 %v1685, 4294901760
        %5775 = vmatmul.mubr.f32.gmra.mrb[0].mxu0 %v5774
        %v5776 = vpop.f32.mrb[0].mxu0
        %v5777 = vadd.f32 %v5616, %v5776
        %v5778 = vpop.f32.mrb[0].mxu0
        %v5779 = vadd.f32 %v5618, %v5778
        %v5780 = vand.u32 %v2123, 4294901760
        %5781 = vmatprep.mubr.f32.mxu0 %v5780
        %v5782 = vand.u32 %v2122, 4294901760
        %5783 = vmatmul.mubr.f32.gmra.mrb[0].mxu0 %v5782
        %v5784 = vpop.f32.mrb[0].mxu0
        %v5785 = vadd.f32 %v5624, %v5784
        %v5786 = vpop.f32.mrb[0].mxu0
        %v5787 = vadd.f32 %v5626, %v5786
        %v5788 = vand.u32 %v2488, 4294901760
        %5789 = vmatprep.mubr.f32.mxu0 %v5788
        %v5790 = vand.u32 %v2487, 4294901760
        %5791 = vmatmul.mubr.f32.gmra.mrb[0].mxu0 %v5790
        %v5792 = vpop.f32.mrb[0].mxu0
        %v5793 = vadd.f32 %v5632, %v5792
        %v5794 = vpop.f32.mrb[0].mxu0
        %v5795 = vadd.f32 %v5634, %v5794
        %v5796 = vand.u32 %v2728, 4294901760
        %5797 = vmatprep.mubr.f32.mxu0 %v5796
        %v5798 = vand.u32 %v2727, 4294901760
        %5799 = vmatmul.mubr.f32.gmra.mrb[0].mxu0 %v5798
        %v5800 = vpop.f32.mrb[0].mxu0
        %v5801 = vadd.f32 %v5640, %v5800
        %v5802 = vpop.f32.mrb[0].mxu0
        %v5803 = vadd.f32 %v5642, %v5802
        %5804 = vdwg.mxu0
        %v5805 = vadd.f32 %v4263, %v5777
        %v5806 = vadd.f32 %v4264, %v5779
        %v5807 = vadd.f32 %v4265, %v5785
        %v5808 = vadd.f32 %v4266, %v5787
        %v5809 = vadd.f32 %v4267, %v5793
        %v5810 = vadd.f32 %v4268, %v5795
        %v5811 = vadd.f32 %v4269, %v5801
        %v5812 = vadd.f32 %v4270, %v5803
        %v5814 = vlaneseq
        %v5815 = vshrl.u32 %v5814, 7
        %v5816 = vsub.s32 0, %v5815
        %v5817 = vrot.slane %v1291, %v5816
        %v5818 = vlaneseq
        %v5819 = vshrl.u32 %v5818, 7
        %v5820 = vsub.s32 1, %v5819
        %v5821 = vrot.slane %v1291, %v5820
        %v5824 = vadd.f32 %v5805, %v5817
        %v5825 = vadd.f32 %v5806, %v5821
        %v5826 = vadd.f32 %v5807, %v5817
        %v5827 = vadd.f32 %v5808, %v5821
        %v5828 = vadd.f32 %v5809, %v5817
        %v5829 = vadd.f32 %v5810, %v5821
        %v5830 = vadd.f32 %v5811, %v5817
        %v5831 = vadd.f32 %v5812, %v5821
        %v5832 = vmax.f32 %v5824, 0.0
        %v5833 = vmax.f32 %v5825, 0.0
        %v5834 = vmax.f32 %v5826, 0.0
        %v5835 = vmax.f32 %v5827, 0.0
        %v5836 = vmax.f32 %v5828, 0.0
        %v5837 = vmax.f32 %v5829, 0.0
        %v5838 = vmax.f32 %v5830, 0.0
        %v5839 = vmax.f32 %v5831, 0.0
        %v5840 = vmin.f32 %v5832, 6.0
        %v5841 = vmin.f32 %v5833, 6.0
        %v5842 = vmin.f32 %v5834, 6.0
        %v5843 = vmin.f32 %v5835, 6.0
        %v5844 = vmin.f32 %v5836, 6.0
        %v5845 = vmin.f32 %v5837, 6.0
        %v5846 = vmin.f32 %v5838, 6.0
        %v5847 = vmin.f32 %v5839, 6.0
        %v5848 = vld [vmem:[%s7] sm:$0xff]
        %v5849 = vld [vmem:[%s7 + $0x8] sm:$0xff]
        %v5850 = vld [vmem:[%s7 + $0x10] sm:$0xff]
        %v5851 = vld [vmem:[%s7 + $0x18] sm:$0xff]
        %v5852 = vld [vmem:[%s7 + $0x20] sm:$0xff]
        %v5853 = vld [vmem:[%s7 + $0x28] sm:$0xff]
        %v5854 = vld [vmem:[%s7 + $0x30] sm:$0xff]
        %v5855 = vld [vmem:[%s7 + $0x38] sm:$0xff]
        %v5856 = vld [vmem:[%s7 + $0x40] sm:$0xff]
        %v5857 = vld [vmem:[%s7 + $0x48] sm:$0xff]
        %v5858 = vld [vmem:[%s7 + $0x50] sm:$0xff]
        %v5859 = vld [vmem:[%s7 + $0x58] sm:$0xff]
        %v5860 = vld [vmem:[%s7 + $0x60] sm:$0xff]
        %v5861 = vld [vmem:[%s7 + $0x68] sm:$0xff]
        %v5862 = vld [vmem:[%s7 + $0x70] sm:$0xff]
        %v5863 = vld [vmem:[%s7 + $0x78] sm:$0xff]
        %v5864 = vld [vmem:[%s7 + $0x80] sm:$0xff]
        %v5865 = vld [vmem:[%s7 + $0x88] sm:$0xff]
        %v5866 = vld [vmem:[%s7 + $0x90] sm:$0xff]
        %v5867 = vld [vmem:[%s7 + $0x98] sm:$0xff]
        %v5868 = vld [vmem:[%s7 + $0xa0] sm:$0xff]
        %v5869 = vld [vmem:[%s7 + $0xa8] sm:$0xff]
        %v5870 = vld [vmem:[%s7 + $0xb0] sm:$0xff]
        %v5871 = vld [vmem:[%s7 + $0xb8] sm:$0xff]
        %v5872 = vld [vmem:[%s7 + $0xc0] sm:$0xff]
        %v5873 = vld [vmem:[%s7 + $0xc8] sm:$0xff]
        %v5874 = vld [vmem:[%s7 + $0xd0] sm:$0xff]
        %v5875 = vld [vmem:[%s7 + $0xd8] sm:$0xff]
        %v5876 = vld [vmem:[%s7 + $0xe0] sm:$0xff]
        %v5877 = vld [vmem:[%s7 + $0xe8] sm:$0xff]
        %v5878 = vld [vmem:[%s7 + $0xf0] sm:$0xff]
        %v5879 = vld [vmem:[%s7 + $0xf8] sm:$0xff]
        %v5880 = vld [vmem:[%s8] sm:$0x1]
        %v5882 = vlaneseq
        %v5883 = vshrl.u32 %v5882, 7
        %v5884 = vsub.s32 0, %v5883
        %v5885 = vrot.slane %v5880, %v5884
        %5887 = vmatprep.subr.mxu0 0.0
        %v5888 = vand.u32 %v5848, 4294901760
        %5889 = vmatpush1.msra.mxu0 %v5888
        %5890 = vmatprep.subr.mxu0 0.0
        %v5891 = vand.u32 %v5849, 4294901760
        %5892 = vmatpush1.msra.mxu0 %v5891
        %5893 = vmatprep.subr.mxu0 0.0
        %v5894 = vand.u32 %v5850, 4294901760
        %5895 = vmatpush1.msra.mxu0 %v5894
        %5896 = vmatprep.subr.mxu0 0.0
        %v5897 = vand.u32 %v5851, 4294901760
        %5898 = vmatpush1.msra.mxu0 %v5897
        %5899 = vmatprep.subr.mxu0 0.0
        %v5900 = vand.u32 %v5852, 4294901760
        %5901 = vmatpush1.msra.mxu0 %v5900
        %5902 = vmatprep.subr.mxu0 0.0
        %v5903 = vand.u32 %v5853, 4294901760
        %5904 = vmatpush1.msra.mxu0 %v5903
        %5905 = vmatprep.subr.mxu0 0.0
        %v5906 = vand.u32 %v5854, 4294901760
        %5907 = vmatpush1.msra.mxu0 %v5906
        %5908 = vmatprep.subr.mxu0 0.0
        %v5909 = vand.u32 %v5855, 4294901760
        %5910 = vmatpush1.msra.mxu0 %v5909
        %5911 = vmatprep.subr.mxu0 0.0
        %v5912 = vand.u32 %v5856, 4294901760
        %5913 = vmatpush1.msra.mxu0 %v5912
        %5914 = vmatprep.subr.mxu0 0.0
        %v5915 = vand.u32 %v5857, 4294901760
        %5916 = vmatpush1.msra.mxu0 %v5915
        %5917 = vmatprep.subr.mxu0 0.0
        %v5918 = vand.u32 %v5858, 4294901760
        %5919 = vmatpush1.msra.mxu0 %v5918
        %5920 = vmatprep.subr.mxu0 0.0
        %v5921 = vand.u32 %v5859, 4294901760
        %5922 = vmatpush1.msra.mxu0 %v5921
        %5923 = vmatprep.subr.mxu0 0.0
        %v5924 = vand.u32 %v5860, 4294901760
        %5925 = vmatpush1.msra.mxu0 %v5924
        %5926 = vmatprep.subr.mxu0 0.0
        %v5927 = vand.u32 %v5861, 4294901760
        %5928 = vmatpush1.msra.mxu0 %v5927
        %5929 = vmatprep.subr.mxu0 0.0
        %v5930 = vand.u32 %v5862, 4294901760
        %5931 = vmatpush1.msra.mxu0 %v5930
        %5932 = vmatprep.subr.mxu0 0.0
        %v5933 = vand.u32 %v5863, 4294901760
        %5934 = vmatpush1.msra.mxu0 %v5933
        %5935 = vmatprep.subr.mxu0 0.0
        %v5936 = vand.u32 %v5864, 4294901760
        %5937 = vmatpush1.msra.mxu0 %v5936
        %5938 = vmatprep.subr.mxu0 0.0
        %v5939 = vand.u32 %v5865, 4294901760
        %5940 = vmatpush1.msra.mxu0 %v5939
        %5941 = vmatprep.subr.mxu0 0.0
        %v5942 = vand.u32 %v5866, 4294901760
        %5943 = vmatpush1.msra.mxu0 %v5942
        %5944 = vmatprep.subr.mxu0 0.0
        %v5945 = vand.u32 %v5867, 4294901760
        %5946 = vmatpush1.msra.mxu0 %v5945
        %5947 = vmatprep.subr.mxu0 0.0
        %v5948 = vand.u32 %v5868, 4294901760
        %5949 = vmatpush1.msra.mxu0 %v5948
        %5950 = vmatprep.subr.mxu0 0.0
        %v5951 = vand.u32 %v5869, 4294901760
        %5952 = vmatpush1.msra.mxu0 %v5951
        %5953 = vmatprep.subr.mxu0 0.0
        %v5954 = vand.u32 %v5870, 4294901760
        %5955 = vmatpush1.msra.mxu0 %v5954
        %5956 = vmatprep.subr.mxu0 0.0
        %v5957 = vand.u32 %v5871, 4294901760
        %5958 = vmatpush1.msra.mxu0 %v5957
        %5959 = vmatprep.subr.mxu0 0.0
        %v5960 = vand.u32 %v5872, 4294901760
        %5961 = vmatpush1.msra.mxu0 %v5960
        %5962 = vmatprep.subr.mxu0 0.0
        %v5963 = vand.u32 %v5873, 4294901760
        %5964 = vmatpush1.msra.mxu0 %v5963
        %5965 = vmatprep.subr.mxu0 0.0
        %v5966 = vand.u32 %v5874, 4294901760
        %5967 = vmatpush1.msra.mxu0 %v5966
        %5968 = vmatprep.subr.mxu0 0.0
        %v5969 = vand.u32 %v5875, 4294901760
        %5970 = vmatpush1.msra.mxu0 %v5969
        %5971 = vmatprep.subr.mxu0 0.0
        %v5972 = vand.u32 %v5876, 4294901760
        %5973 = vmatpush1.msra.mxu0 %v5972
        %5974 = vmatprep.subr.mxu0 0.0
        %v5975 = vand.u32 %v5877, 4294901760
        %5976 = vmatpush1.msra.mxu0 %v5975
        %5977 = vmatprep.subr.mxu0 0.0
        %v5978 = vand.u32 %v5878, 4294901760
        %5979 = vmatpush1.msra.mxu0 %v5978
        %5980 = vmatprep.subr.mxu0 0.0
        %v5981 = vand.u32 %v5879, 4294901760
        %5982 = vmatpush1.msra.mxu0 %v5981
        %v5983 = vand.u32 %v5841, 4294901760
        %v5984 = vsub.f32 %v5841, %v5983
        %v5985 = vand.u32 %v5984, 4294901760
        %v5986 = vsub.f32 %v5984, %v5985
        %v5987 = vand.u32 %v5986, 4294901760
        %5988 = vmatprep.mubr.f32.mxu0 %v5987
        %v5989 = vand.u32 %v5840, 4294901760
        %v5990 = vsub.f32 %v5840, %v5989
        %v5991 = vand.u32 %v5990, 4294901760
        %v5992 = vsub.f32 %v5990, %v5991
        %v5993 = vand.u32 %v5992, 4294901760
        %5994 = vmatmul.mubr.f32.gmra.mrb[0].mxu0 %v5993
        %v5995 = vpop.f32.mrb[0].mxu0
        %v5996 = vadd.f32 %v5885, %v5995
        %v5997 = vpop.f32.mrb[0].mxu0
        %v5998 = vand.u32 %v5843, 4294901760
        %v5999 = vsub.f32 %v5843, %v5998
        %v6000 = vand.u32 %v5999, 4294901760
        %v6001 = vsub.f32 %v5999, %v6000
        %v6002 = vand.u32 %v6001, 4294901760
        %6003 = vmatprep.mubr.f32.mxu0 %v6002
        %v6004 = vand.u32 %v5842, 4294901760
        %v6005 = vsub.f32 %v5842, %v6004
        %v6006 = vand.u32 %v6005, 4294901760
        %v6007 = vsub.f32 %v6005, %v6006
        %v6008 = vand.u32 %v6007, 4294901760
        %6009 = vmatmul.mubr.f32.gmra.mrb[0].mxu0 %v6008
        %v6010 = vpop.f32.mrb[0].mxu0
        %v6011 = vadd.f32 %v5885, %v6010
        %v6012 = vpop.f32.mrb[0].mxu0
        %v6013 = vand.u32 %v5845, 4294901760
        %v6014 = vsub.f32 %v5845, %v6013
        %v6015 = vand.u32 %v6014, 4294901760
        %v6016 = vsub.f32 %v6014, %v6015
        %v6017 = vand.u32 %v6016, 4294901760
        %6018 = vmatprep.mubr.f32.mxu0 %v6017
        %v6019 = vand.u32 %v5844, 4294901760
        %v6020 = vsub.f32 %v5844, %v6019
        %v6021 = vand.u32 %v6020, 4294901760
        %v6022 = vsub.f32 %v6020, %v6021
        %v6023 = vand.u32 %v6022, 4294901760
        %6024 = vmatmul.mubr.f32.gmra.mrb[0].mxu0 %v6023
        %v6025 = vpop.f32.mrb[0].mxu0
        %v6026 = vadd.f32 %v5885, %v6025
        %v6027 = vpop.f32.mrb[0].mxu0
        %v6028 = vand.u32 %v5847, 4294901760
        %v6029 = vsub.f32 %v5847, %v6028
        %v6030 = vand.u32 %v6029, 4294901760
        %v6031 = vsub.f32 %v6029, %v6030
        %v6032 = vand.u32 %v6031, 4294901760
        %6033 = vmatprep.mubr.f32.mxu0 %v6032
        %v6034 = vand.u32 %v5846, 4294901760
        %v6035 = vsub.f32 %v5846, %v6034
        %v6036 = vand.u32 %v6035, 4294901760
        %v6037 = vsub.f32 %v6035, %v6036
        %v6038 = vand.u32 %v6037, 4294901760
        %6039 = vmatmul.mubr.f32.gmra.mrb[0].mxu0 %v6038
        %v6040 = vpop.f32.mrb[0].mxu0
        %v6041 = vadd.f32 %v5885, %v6040
        %v6042 = vpop.f32.mrb[0].mxu0
        %6043 = vdwg.mxu0
        %6044 = vmatprep.subr.mxu0 0.0
        %v6045 = vand.u32 %v5848, 4294901760
        %v6046 = vsub.f32 %v5848, %v6045
        %v6047 = vand.u32 %v6046, 4294901760
        %v6048 = vsub.f32 %v6046, %v6047
        %v6049 = vand.u32 %v6048, 4294901760
        %6050 = vmatpush1.msra.mxu0 %v6049
        %6051 = vmatprep.subr.mxu0 0.0
        %v6052 = vand.u32 %v5849, 4294901760
        %v6053 = vsub.f32 %v5849, %v6052
        %v6054 = vand.u32 %v6053, 4294901760
        %v6055 = vsub.f32 %v6053, %v6054
        %v6056 = vand.u32 %v6055, 4294901760
        %6057 = vmatpush1.msra.mxu0 %v6056
        %6058 = vmatprep.subr.mxu0 0.0
        %v6059 = vand.u32 %v5850, 4294901760
        %v6060 = vsub.f32 %v5850, %v6059
        %v6061 = vand.u32 %v6060, 4294901760
        %v6062 = vsub.f32 %v6060, %v6061
        %v6063 = vand.u32 %v6062, 4294901760
        %6064 = vmatpush1.msra.mxu0 %v6063
        %6065 = vmatprep.subr.mxu0 0.0
        %v6066 = vand.u32 %v5851, 4294901760
        %v6067 = vsub.f32 %v5851, %v6066
        %v6068 = vand.u32 %v6067, 4294901760
        %v6069 = vsub.f32 %v6067, %v6068
        %v6070 = vand.u32 %v6069, 4294901760
        %6071 = vmatpush1.msra.mxu0 %v6070
        %6072 = vmatprep.subr.mxu0 0.0
        %v6073 = vand.u32 %v5852, 4294901760
        %v6074 = vsub.f32 %v5852, %v6073
        %v6075 = vand.u32 %v6074, 4294901760
        %v6076 = vsub.f32 %v6074, %v6075
        %v6077 = vand.u32 %v6076, 4294901760
        %6078 = vmatpush1.msra.mxu0 %v6077
        %6079 = vmatprep.subr.mxu0 0.0
        %v6080 = vand.u32 %v5853, 4294901760
        %v6081 = vsub.f32 %v5853, %v6080
        %v6082 = vand.u32 %v6081, 4294901760
        %v6083 = vsub.f32 %v6081, %v6082
        %v6084 = vand.u32 %v6083, 4294901760
        %6085 = vmatpush1.msra.mxu0 %v6084
        %6086 = vmatprep.subr.mxu0 0.0
        %v6087 = vand.u32 %v5854, 4294901760
        %v6088 = vsub.f32 %v5854, %v6087
        %v6089 = vand.u32 %v6088, 4294901760
        %v6090 = vsub.f32 %v6088, %v6089
        %v6091 = vand.u32 %v6090, 4294901760
        %6092 = vmatpush1.msra.mxu0 %v6091
        %6093 = vmatprep.subr.mxu0 0.0
        %v6094 = vand.u32 %v5855, 4294901760
        %v6095 = vsub.f32 %v5855, %v6094
        %v6096 = vand.u32 %v6095, 4294901760
        %v6097 = vsub.f32 %v6095, %v6096
        %v6098 = vand.u32 %v6097, 4294901760
        %6099 = vmatpush1.msra.mxu0 %v6098
        %6100 = vmatprep.subr.mxu0 0.0
        %v6101 = vand.u32 %v5856, 4294901760
        %v6102 = vsub.f32 %v5856, %v6101
        %v6103 = vand.u32 %v6102, 4294901760
        %v6104 = vsub.f32 %v6102, %v6103
        %v6105 = vand.u32 %v6104, 4294901760
        %6106 = vmatpush1.msra.mxu0 %v6105
        %6107 = vmatprep.subr.mxu0 0.0
        %v6108 = vand.u32 %v5857, 4294901760
        %v6109 = vsub.f32 %v5857, %v6108
        %v6110 = vand.u32 %v6109, 4294901760
        %v6111 = vsub.f32 %v6109, %v6110
        %v6112 = vand.u32 %v6111, 4294901760
        %6113 = vmatpush1.msra.mxu0 %v6112
        %6114 = vmatprep.subr.mxu0 0.0
        %v6115 = vand.u32 %v5858, 4294901760
        %v6116 = vsub.f32 %v5858, %v6115
        %v6117 = vand.u32 %v6116, 4294901760
        %v6118 = vsub.f32 %v6116, %v6117
        %v6119 = vand.u32 %v6118, 4294901760
        %6120 = vmatpush1.msra.mxu0 %v6119
        %6121 = vmatprep.subr.mxu0 0.0
        %v6122 = vand.u32 %v5859, 4294901760
        %v6123 = vsub.f32 %v5859, %v6122
        %v6124 = vand.u32 %v6123, 4294901760
        %v6125 = vsub.f32 %v6123, %v6124
        %v6126 = vand.u32 %v6125, 4294901760
        %6127 = vmatpush1.msra.mxu0 %v6126
        %6128 = vmatprep.subr.mxu0 0.0
        %v6129 = vand.u32 %v5860, 4294901760
        %v6130 = vsub.f32 %v5860, %v6129
        %v6131 = vand.u32 %v6130, 4294901760
        %v6132 = vsub.f32 %v6130, %v6131
        %v6133 = vand.u32 %v6132, 4294901760
        %6134 = vmatpush1.msra.mxu0 %v6133
        %6135 = vmatprep.subr.mxu0 0.0
        %v6136 = vand.u32 %v5861, 4294901760
        %v6137 = vsub.f32 %v5861, %v6136
        %v6138 = vand.u32 %v6137, 4294901760
        %v6139 = vsub.f32 %v6137, %v6138
        %v6140 = vand.u32 %v6139, 4294901760
        %6141 = vmatpush1.msra.mxu0 %v6140
        %6142 = vmatprep.subr.mxu0 0.0
        %v6143 = vand.u32 %v5862, 4294901760
        %v6144 = vsub.f32 %v5862, %v6143
        %v6145 = vand.u32 %v6144, 4294901760
        %v6146 = vsub.f32 %v6144, %v6145
        %v6147 = vand.u32 %v6146, 4294901760
        %6148 = vmatpush1.msra.mxu0 %v6147
        %6149 = vmatprep.subr.mxu0 0.0
        %v6150 = vand.u32 %v5863, 4294901760
        %v6151 = vsub.f32 %v5863, %v6150
        %v6152 = vand.u32 %v6151, 4294901760
        %v6153 = vsub.f32 %v6151, %v6152
        %v6154 = vand.u32 %v6153, 4294901760
        %6155 = vmatpush1.msra.mxu0 %v6154
        %6156 = vmatprep.subr.mxu0 0.0
        %v6157 = vand.u32 %v5864, 4294901760
        %v6158 = vsub.f32 %v5864, %v6157
        %v6159 = vand.u32 %v6158, 4294901760
        %v6160 = vsub.f32 %v6158, %v6159
        %v6161 = vand.u32 %v6160, 4294901760
        %6162 = vmatpush1.msra.mxu0 %v6161
        %6163 = vmatprep.subr.mxu0 0.0
        %v6164 = vand.u32 %v5865, 4294901760
        %v6165 = vsub.f32 %v5865, %v6164
        %v6166 = vand.u32 %v6165, 4294901760
        %v6167 = vsub.f32 %v6165, %v6166
        %v6168 = vand.u32 %v6167, 4294901760
        %6169 = vmatpush1.msra.mxu0 %v6168
        %6170 = vmatprep.subr.mxu0 0.0
        %v6171 = vand.u32 %v5866, 4294901760
        %v6172 = vsub.f32 %v5866, %v6171
        %v6173 = vand.u32 %v6172, 4294901760
        %v6174 = vsub.f32 %v6172, %v6173
        %v6175 = vand.u32 %v6174, 4294901760
        %6176 = vmatpush1.msra.mxu0 %v6175
        %6177 = vmatprep.subr.mxu0 0.0
        %v6178 = vand.u32 %v5867, 4294901760
        %v6179 = vsub.f32 %v5867, %v6178
        %v6180 = vand.u32 %v6179, 4294901760
        %v6181 = vsub.f32 %v6179, %v6180
        %v6182 = vand.u32 %v6181, 4294901760
        %6183 = vmatpush1.msra.mxu0 %v6182
        %6184 = vmatprep.subr.mxu0 0.0
        %v6185 = vand.u32 %v5868, 4294901760
        %v6186 = vsub.f32 %v5868, %v6185
        %v6187 = vand.u32 %v6186, 4294901760
        %v6188 = vsub.f32 %v6186, %v6187
        %v6189 = vand.u32 %v6188, 4294901760
        %6190 = vmatpush1.msra.mxu0 %v6189
        %6191 = vmatprep.subr.mxu0 0.0
        %v6192 = vand.u32 %v5869, 4294901760
        %v6193 = vsub.f32 %v5869, %v6192
        %v6194 = vand.u32 %v6193, 4294901760
        %v6195 = vsub.f32 %v6193, %v6194
        %v6196 = vand.u32 %v6195, 4294901760
        %6197 = vmatpush1.msra.mxu0 %v6196
        %6198 = vmatprep.subr.mxu0 0.0
        %v6199 = vand.u32 %v5870, 4294901760
        %v6200 = vsub.f32 %v5870, %v6199
        %v6201 = vand.u32 %v6200, 4294901760
        %v6202 = vsub.f32 %v6200, %v6201
        %v6203 = vand.u32 %v6202, 4294901760
        %6204 = vmatpush1.msra.mxu0 %v6203
        %6205 = vmatprep.subr.mxu0 0.0
        %v6206 = vand.u32 %v5871, 4294901760
        %v6207 = vsub.f32 %v5871, %v6206
        %v6208 = vand.u32 %v6207, 4294901760
        %v6209 = vsub.f32 %v6207, %v6208
        %v6210 = vand.u32 %v6209, 4294901760
        %6211 = vmatpush1.msra.mxu0 %v6210
        %6212 = vmatprep.subr.mxu0 0.0
        %v6213 = vand.u32 %v5872, 4294901760
        %v6214 = vsub.f32 %v5872, %v6213
        %v6215 = vand.u32 %v6214, 4294901760
        %v6216 = vsub.f32 %v6214, %v6215
        %v6217 = vand.u32 %v6216, 4294901760
        %6218 = vmatpush1.msra.mxu0 %v6217
        %6219 = vmatprep.subr.mxu0 0.0
        %v6220 = vand.u32 %v5873, 4294901760
        %v6221 = vsub.f32 %v5873, %v6220
        %v6222 = vand.u32 %v6221, 4294901760
        %v6223 = vsub.f32 %v6221, %v6222
        %v6224 = vand.u32 %v6223, 4294901760
        %6225 = vmatpush1.msra.mxu0 %v6224
        %6226 = vmatprep.subr.mxu0 0.0
        %v6227 = vand.u32 %v5874, 4294901760
        %v6228 = vsub.f32 %v5874, %v6227
        %v6229 = vand.u32 %v6228, 4294901760
        %v6230 = vsub.f32 %v6228, %v6229
        %v6231 = vand.u32 %v6230, 4294901760
        %6232 = vmatpush1.msra.mxu0 %v6231
        %6233 = vmatprep.subr.mxu0 0.0
        %v6234 = vand.u32 %v5875, 4294901760
        %v6235 = vsub.f32 %v5875, %v6234
        %v6236 = vand.u32 %v6235, 4294901760
        %v6237 = vsub.f32 %v6235, %v6236
        %v6238 = vand.u32 %v6237, 4294901760
        %6239 = vmatpush1.msra.mxu0 %v6238
        %6240 = vmatprep.subr.mxu0 0.0
        %v6241 = vand.u32 %v5876, 4294901760
        %v6242 = vsub.f32 %v5876, %v6241
        %v6243 = vand.u32 %v6242, 4294901760
        %v6244 = vsub.f32 %v6242, %v6243
        %v6245 = vand.u32 %v6244, 4294901760
        %6246 = vmatpush1.msra.mxu0 %v6245
        %6247 = vmatprep.subr.mxu0 0.0
        %v6248 = vand.u32 %v5877, 4294901760
        %v6249 = vsub.f32 %v5877, %v6248
        %v6250 = vand.u32 %v6249, 4294901760
        %v6251 = vsub.f32 %v6249, %v6250
        %v6252 = vand.u32 %v6251, 4294901760
        %6253 = vmatpush1.msra.mxu0 %v6252
        %6254 = vmatprep.subr.mxu0 0.0
        %v6255 = vand.u32 %v5878, 4294901760
        %v6256 = vsub.f32 %v5878, %v6255
        %v6257 = vand.u32 %v6256, 4294901760
        %v6258 = vsub.f32 %v6256, %v6257
        %v6259 = vand.u32 %v6258, 4294901760
        %6260 = vmatpush1.msra.mxu0 %v6259
        %6261 = vmatprep.subr.mxu0 0.0
        %v6262 = vand.u32 %v5879, 4294901760
        %v6263 = vsub.f32 %v5879, %v6262
        %v6264 = vand.u32 %v6263, 4294901760
        %v6265 = vsub.f32 %v6263, %v6264
        %v6266 = vand.u32 %v6265, 4294901760
        %6267 = vmatpush1.msra.mxu0 %v6266
        %v6268 = vand.u32 %v5841, 4294901760
        %6269 = vmatprep.mubr.f32.mxu0 %v6268
        %v6270 = vand.u32 %v5840, 4294901760
        %6271 = vmatmul.mubr.f32.gmra.mrb[0].mxu0 %v6270
        %v6272 = vpop.f32.mrb[0].mxu0
        %v6273 = vadd.f32 %v5996, %v6272
        %v6274 = vpop.f32.mrb[0].mxu0
        %v6275 = vand.u32 %v5843, 4294901760
        %6276 = vmatprep.mubr.f32.mxu0 %v6275
        %v6277 = vand.u32 %v5842, 4294901760
        %6278 = vmatmul.mubr.f32.gmra.mrb[0].mxu0 %v6277
        %v6279 = vpop.f32.mrb[0].mxu0
        %v6280 = vadd.f32 %v6011, %v6279
        %v6281 = vpop.f32.mrb[0].mxu0
        %v6282 = vand.u32 %v5845, 4294901760
        %6283 = vmatprep.mubr.f32.mxu0 %v6282
        %v6284 = vand.u32 %v5844, 4294901760
        %6285 = vmatmul.mubr.f32.gmra.mrb[0].mxu0 %v6284
        %v6286 = vpop.f32.mrb[0].mxu0
        %v6287 = vadd.f32 %v6026, %v6286
        %v6288 = vpop.f32.mrb[0].mxu0
        %v6289 = vand.u32 %v5847, 4294901760
        %6290 = vmatprep.mubr.f32.mxu0 %v6289
        %v6291 = vand.u32 %v5846, 4294901760
        %6292 = vmatmul.mubr.f32.gmra.mrb[0].mxu0 %v6291
        %v6293 = vpop.f32.mrb[0].mxu0
        %v6294 = vadd.f32 %v6041, %v6293
        %v6295 = vpop.f32.mrb[0].mxu0
        %6296 = vdwg.mxu0
        %6297 = vmatprep.subr.mxu0 0.0
        %v6298 = vand.u32 %v5848, 4294901760
        %v6299 = vsub.f32 %v5848, %v6298
        %6300 = vmatpush1.msra.mxu0 %v6299
        %6301 = vmatprep.subr.mxu0 0.0
        %v6302 = vand.u32 %v5849, 4294901760
        %v6303 = vsub.f32 %v5849, %v6302
        %6304 = vmatpush1.msra.mxu0 %v6303
        %6305 = vmatprep.subr.mxu0 0.0
        %v6306 = vand.u32 %v5850, 4294901760
        %v6307 = vsub.f32 %v5850, %v6306
        %6308 = vmatpush1.msra.mxu0 %v6307
        %6309 = vmatprep.subr.mxu0 0.0
        %v6310 = vand.u32 %v5851, 4294901760
        %v6311 = vsub.f32 %v5851, %v6310
        %6312 = vmatpush1.msra.mxu0 %v6311
        %6313 = vmatprep.subr.mxu0 0.0
        %v6314 = vand.u32 %v5852, 4294901760
        %v6315 = vsub.f32 %v5852, %v6314
        %6316 = vmatpush1.msra.mxu0 %v6315
        %6317 = vmatprep.subr.mxu0 0.0
        %v6318 = vand.u32 %v5853, 4294901760
        %v6319 = vsub.f32 %v5853, %v6318
        %6320 = vmatpush1.msra.mxu0 %v6319
        %6321 = vmatprep.subr.mxu0 0.0
        %v6322 = vand.u32 %v5854, 4294901760
        %v6323 = vsub.f32 %v5854, %v6322
        %6324 = vmatpush1.msra.mxu0 %v6323
        %6325 = vmatprep.subr.mxu0 0.0
        %v6326 = vand.u32 %v5855, 4294901760
        %v6327 = vsub.f32 %v5855, %v6326
        %6328 = vmatpush1.msra.mxu0 %v6327
        %6329 = vmatprep.subr.mxu0 0.0
        %v6330 = vand.u32 %v5856, 4294901760
        %v6331 = vsub.f32 %v5856, %v6330
        %6332 = vmatpush1.msra.mxu0 %v6331
        %6333 = vmatprep.subr.mxu0 0.0
        %v6334 = vand.u32 %v5857, 4294901760
        %v6335 = vsub.f32 %v5857, %v6334
        %6336 = vmatpush1.msra.mxu0 %v6335
        %6337 = vmatprep.subr.mxu0 0.0
        %v6338 = vand.u32 %v5858, 4294901760
        %v6339 = vsub.f32 %v5858, %v6338
        %6340 = vmatpush1.msra.mxu0 %v6339
        %6341 = vmatprep.subr.mxu0 0.0
        %v6342 = vand.u32 %v5859, 4294901760
        %v6343 = vsub.f32 %v5859, %v6342
        %6344 = vmatpush1.msra.mxu0 %v6343
        %6345 = vmatprep.subr.mxu0 0.0
        %v6346 = vand.u32 %v5860, 4294901760
        %v6347 = vsub.f32 %v5860, %v6346
        %6348 = vmatpush1.msra.mxu0 %v6347
        %6349 = vmatprep.subr.mxu0 0.0
        %v6350 = vand.u32 %v5861, 4294901760
        %v6351 = vsub.f32 %v5861, %v6350
        %6352 = vmatpush1.msra.mxu0 %v6351
        %6353 = vmatprep.subr.mxu0 0.0
        %v6354 = vand.u32 %v5862, 4294901760
        %v6355 = vsub.f32 %v5862, %v6354
        %6356 = vmatpush1.msra.mxu0 %v6355
        %6357 = vmatprep.subr.mxu0 0.0
        %v6358 = vand.u32 %v5863, 4294901760
        %v6359 = vsub.f32 %v5863, %v6358
        %6360 = vmatpush1.msra.mxu0 %v6359
        %6361 = vmatprep.subr.mxu0 0.0
        %v6362 = vand.u32 %v5864, 4294901760
        %v6363 = vsub.f32 %v5864, %v6362
        %6364 = vmatpush1.msra.mxu0 %v6363
        %6365 = vmatprep.subr.mxu0 0.0
        %v6366 = vand.u32 %v5865, 4294901760
        %v6367 = vsub.f32 %v5865, %v6366
        %6368 = vmatpush1.msra.mxu0 %v6367
        %6369 = vmatprep.subr.mxu0 0.0
        %v6370 = vand.u32 %v5866, 4294901760
        %v6371 = vsub.f32 %v5866, %v6370
        %6372 = vmatpush1.msra.mxu0 %v6371
        %6373 = vmatprep.subr.mxu0 0.0
        %v6374 = vand.u32 %v5867, 4294901760
        %v6375 = vsub.f32 %v5867, %v6374
        %6376 = vmatpush1.msra.mxu0 %v6375
        %6377 = vmatprep.subr.mxu0 0.0
        %v6378 = vand.u32 %v5868, 4294901760
        %v6379 = vsub.f32 %v5868, %v6378
        %6380 = vmatpush1.msra.mxu0 %v6379
        %6381 = vmatprep.subr.mxu0 0.0
        %v6382 = vand.u32 %v5869, 4294901760
        %v6383 = vsub.f32 %v5869, %v6382
        %6384 = vmatpush1.msra.mxu0 %v6383
        %6385 = vmatprep.subr.mxu0 0.0
        %v6386 = vand.u32 %v5870, 4294901760
        %v6387 = vsub.f32 %v5870, %v6386
        %6388 = vmatpush1.msra.mxu0 %v6387
        %6389 = vmatprep.subr.mxu0 0.0
        %v6390 = vand.u32 %v5871, 4294901760
        %v6391 = vsub.f32 %v5871, %v6390
        %6392 = vmatpush1.msra.mxu0 %v6391
        %6393 = vmatprep.subr.mxu0 0.0
        %v6394 = vand.u32 %v5872, 4294901760
        %v6395 = vsub.f32 %v5872, %v6394
        %6396 = vmatpush1.msra.mxu0 %v6395
        %6397 = vmatprep.subr.mxu0 0.0
        %v6398 = vand.u32 %v5873, 4294901760
        %v6399 = vsub.f32 %v5873, %v6398
        %6400 = vmatpush1.msra.mxu0 %v6399
        %6401 = vmatprep.subr.mxu0 0.0
        %v6402 = vand.u32 %v5874, 4294901760
        %v6403 = vsub.f32 %v5874, %v6402
        %6404 = vmatpush1.msra.mxu0 %v6403
        %6405 = vmatprep.subr.mxu0 0.0
        %v6406 = vand.u32 %v5875, 4294901760
        %v6407 = vsub.f32 %v5875, %v6406
        %6408 = vmatpush1.msra.mxu0 %v6407
        %6409 = vmatprep.subr.mxu0 0.0
        %v6410 = vand.u32 %v5876, 4294901760
        %v6411 = vsub.f32 %v5876, %v6410
        %6412 = vmatpush1.msra.mxu0 %v6411
        %6413 = vmatprep.subr.mxu0 0.0
        %v6414 = vand.u32 %v5877, 4294901760
        %v6415 = vsub.f32 %v5877, %v6414
        %6416 = vmatpush1.msra.mxu0 %v6415
        %6417 = vmatprep.subr.mxu0 0.0
        %v6418 = vand.u32 %v5878, 4294901760
        %v6419 = vsub.f32 %v5878, %v6418
        %6420 = vmatpush1.msra.mxu0 %v6419
        %6421 = vmatprep.subr.mxu0 0.0
        %v6422 = vand.u32 %v5879, 4294901760
        %v6423 = vsub.f32 %v5879, %v6422
        %6424 = vmatpush1.msra.mxu0 %v6423
        %v6425 = vand.u32 %v5841, 4294901760
        %v6426 = vsub.f32 %v5841, %v6425
        %6427 = vmatprep.mubr.f32.mxu0 %v6426
        %v6428 = vand.u32 %v5840, 4294901760
        %v6429 = vsub.f32 %v5840, %v6428
        %6430 = vmatmul.mubr.f32.gmra.mrb[0].mxu0 %v6429
        %v6431 = vpop.f32.mrb[0].mxu0
        %v6432 = vadd.f32 %v6273, %v6431
        %v6433 = vpop.f32.mrb[0].mxu0
        %v6434 = vand.u32 %v5843, 4294901760
        %v6435 = vsub.f32 %v5843, %v6434
        %6436 = vmatprep.mubr.f32.mxu0 %v6435
        %v6437 = vand.u32 %v5842, 4294901760
        %v6438 = vsub.f32 %v5842, %v6437
        %6439 = vmatmul.mubr.f32.gmra.mrb[0].mxu0 %v6438
        %v6440 = vpop.f32.mrb[0].mxu0
        %v6441 = vadd.f32 %v6280, %v6440
        %v6442 = vpop.f32.mrb[0].mxu0
        %v6443 = vand.u32 %v5845, 4294901760
        %v6444 = vsub.f32 %v5845, %v6443
        %6445 = vmatprep.mubr.f32.mxu0 %v6444
        %v6446 = vand.u32 %v5844, 4294901760
        %v6447 = vsub.f32 %v5844, %v6446
        %6448 = vmatmul.mubr.f32.gmra.mrb[0].mxu0 %v6447
        %v6449 = vpop.f32.mrb[0].mxu0
        %v6450 = vadd.f32 %v6287, %v6449
        %v6451 = vpop.f32.mrb[0].mxu0
        %v6452 = vand.u32 %v5847, 4294901760
        %v6453 = vsub.f32 %v5847, %v6452
        %6454 = vmatprep.mubr.f32.mxu0 %v6453
        %v6455 = vand.u32 %v5846, 4294901760
        %v6456 = vsub.f32 %v5846, %v6455
        %6457 = vmatmul.mubr.f32.gmra.mrb[0].mxu0 %v6456
        %v6458 = vpop.f32.mrb[0].mxu0
        %v6459 = vadd.f32 %v6294, %v6458
        %v6460 = vpop.f32.mrb[0].mxu0
        %6461 = vdwg.mxu0
        %6462 = vmatprep.subr.mxu0 0.0
        %v6463 = vand.u32 %v5848, 4294901760
        %6464 = vmatpush1.msra.mxu0 %v6463
        %6465 = vmatprep.subr.mxu0 0.0
        %v6466 = vand.u32 %v5849, 4294901760
        %6467 = vmatpush1.msra.mxu0 %v6466
        %6468 = vmatprep.subr.mxu0 0.0
        %v6469 = vand.u32 %v5850, 4294901760
        %6470 = vmatpush1.msra.mxu0 %v6469
        %6471 = vmatprep.subr.mxu0 0.0
        %v6472 = vand.u32 %v5851, 4294901760
        %6473 = vmatpush1.msra.mxu0 %v6472
        %6474 = vmatprep.subr.mxu0 0.0
        %v6475 = vand.u32 %v5852, 4294901760
        %6476 = vmatpush1.msra.mxu0 %v6475
        %6477 = vmatprep.subr.mxu0 0.0
        %v6478 = vand.u32 %v5853, 4294901760
        %6479 = vmatpush1.msra.mxu0 %v6478
        %6480 = vmatprep.subr.mxu0 0.0
        %v6481 = vand.u32 %v5854, 4294901760
        %6482 = vmatpush1.msra.mxu0 %v6481
        %6483 = vmatprep.subr.mxu0 0.0
        %v6484 = vand.u32 %v5855, 4294901760
        %6485 = vmatpush1.msra.mxu0 %v6484
        %6486 = vmatprep.subr.mxu0 0.0
        %v6487 = vand.u32 %v5856, 4294901760
        %6488 = vmatpush1.msra.mxu0 %v6487
        %6489 = vmatprep.subr.mxu0 0.0
        %v6490 = vand.u32 %v5857, 4294901760
        %6491 = vmatpush1.msra.mxu0 %v6490
        %6492 = vmatprep.subr.mxu0 0.0
        %v6493 = vand.u32 %v5858, 4294901760
        %6494 = vmatpush1.msra.mxu0 %v6493
        %6495 = vmatprep.subr.mxu0 0.0
        %v6496 = vand.u32 %v5859, 4294901760
        %6497 = vmatpush1.msra.mxu0 %v6496
        %6498 = vmatprep.subr.mxu0 0.0
        %v6499 = vand.u32 %v5860, 4294901760
        %6500 = vmatpush1.msra.mxu0 %v6499
        %6501 = vmatprep.subr.mxu0 0.0
        %v6502 = vand.u32 %v5861, 4294901760
        %6503 = vmatpush1.msra.mxu0 %v6502
        %6504 = vmatprep.subr.mxu0 0.0
        %v6505 = vand.u32 %v5862, 4294901760
        %6506 = vmatpush1.msra.mxu0 %v6505
        %6507 = vmatprep.subr.mxu0 0.0
        %v6508 = vand.u32 %v5863, 4294901760
        %6509 = vmatpush1.msra.mxu0 %v6508
        %6510 = vmatprep.subr.mxu0 0.0
        %v6511 = vand.u32 %v5864, 4294901760
        %6512 = vmatpush1.msra.mxu0 %v6511
        %6513 = vmatprep.subr.mxu0 0.0
        %v6514 = vand.u32 %v5865, 4294901760
        %6515 = vmatpush1.msra.mxu0 %v6514
        %6516 = vmatprep.subr.mxu0 0.0
        %v6517 = vand.u32 %v5866, 4294901760
        %6518 = vmatpush1.msra.mxu0 %v6517
        %6519 = vmatprep.subr.mxu0 0.0
        %v6520 = vand.u32 %v5867, 4294901760
        %6521 = vmatpush1.msra.mxu0 %v6520
        %6522 = vmatprep.subr.mxu0 0.0
        %v6523 = vand.u32 %v5868, 4294901760
        %6524 = vmatpush1.msra.mxu0 %v6523
        %6525 = vmatprep.subr.mxu0 0.0
        %v6526 = vand.u32 %v5869, 4294901760
        %6527 = vmatpush1.msra.mxu0 %v6526
        %6528 = vmatprep.subr.mxu0 0.0
        %v6529 = vand.u32 %v5870, 4294901760
        %6530 = vmatpush1.msra.mxu0 %v6529
        %6531 = vmatprep.subr.mxu0 0.0
        %v6532 = vand.u32 %v5871, 4294901760
        %6533 = vmatpush1.msra.mxu0 %v6532
        %6534 = vmatprep.subr.mxu0 0.0
        %v6535 = vand.u32 %v5872, 4294901760
        %6536 = vmatpush1.msra.mxu0 %v6535
        %6537 = vmatprep.subr.mxu0 0.0
        %v6538 = vand.u32 %v5873, 4294901760
        %6539 = vmatpush1.msra.mxu0 %v6538
        %6540 = vmatprep.subr.mxu0 0.0
        %v6541 = vand.u32 %v5874, 4294901760
        %6542 = vmatpush1.msra.mxu0 %v6541
        %6543 = vmatprep.subr.mxu0 0.0
        %v6544 = vand.u32 %v5875, 4294901760
        %6545 = vmatpush1.msra.mxu0 %v6544
        %6546 = vmatprep.subr.mxu0 0.0
        %v6547 = vand.u32 %v5876, 4294901760
        %6548 = vmatpush1.msra.mxu0 %v6547
        %6549 = vmatprep.subr.mxu0 0.0
        %v6550 = vand.u32 %v5877, 4294901760
        %6551 = vmatpush1.msra.mxu0 %v6550
        %6552 = vmatprep.subr.mxu0 0.0
        %v6553 = vand.u32 %v5878, 4294901760
        %6554 = vmatpush1.msra.mxu0 %v6553
        %6555 = vmatprep.subr.mxu0 0.0
        %v6556 = vand.u32 %v5879, 4294901760
        %6557 = vmatpush1.msra.mxu0 %v6556
        %v6558 = vand.u32 %v5841, 4294901760
        %v6559 = vsub.f32 %v5841, %v6558
        %v6560 = vand.u32 %v6559, 4294901760
        %6561 = vmatprep.mubr.f32.mxu0 %v6560
        %v6562 = vand.u32 %v5840, 4294901760
        %v6563 = vsub.f32 %v5840, %v6562
        %v6564 = vand.u32 %v6563, 4294901760
        %6565 = vmatmul.mubr.f32.gmra.mrb[0].mxu0 %v6564
        %v6566 = vpop.f32.mrb[0].mxu0
        %v6567 = vadd.f32 %v6432, %v6566
        %v6568 = vpop.f32.mrb[0].mxu0
        %v6569 = vand.u32 %v5843, 4294901760
        %v6570 = vsub.f32 %v5843, %v6569
        %v6571 = vand.u32 %v6570, 4294901760
        %6572 = vmatprep.mubr.f32.mxu0 %v6571
        %v6573 = vand.u32 %v5842, 4294901760
        %v6574 = vsub.f32 %v5842, %v6573
        %v6575 = vand.u32 %v6574, 4294901760
        %6576 = vmatmul.mubr.f32.gmra.mrb[0].mxu0 %v6575
        %v6577 = vpop.f32.mrb[0].mxu0
        %v6578 = vadd.f32 %v6441, %v6577
        %v6579 = vpop.f32.mrb[0].mxu0
        %v6580 = vand.u32 %v5845, 4294901760
        %v6581 = vsub.f32 %v5845, %v6580
        %v6582 = vand.u32 %v6581, 4294901760
        %6583 = vmatprep.mubr.f32.mxu0 %v6582
        %v6584 = vand.u32 %v5844, 4294901760
        %v6585 = vsub.f32 %v5844, %v6584
        %v6586 = vand.u32 %v6585, 4294901760
        %6587 = vmatmul.mubr.f32.gmra.mrb[0].mxu0 %v6586
        %v6588 = vpop.f32.mrb[0].mxu0
        %v6589 = vadd.f32 %v6450, %v6588
        %v6590 = vpop.f32.mrb[0].mxu0
        %v6591 = vand.u32 %v5847, 4294901760
        %v6592 = vsub.f32 %v5847, %v6591
        %v6593 = vand.u32 %v6592, 4294901760
        %6594 = vmatprep.mubr.f32.mxu0 %v6593
        %v6595 = vand.u32 %v5846, 4294901760
        %v6596 = vsub.f32 %v5846, %v6595
        %v6597 = vand.u32 %v6596, 4294901760
        %6598 = vmatmul.mubr.f32.gmra.mrb[0].mxu0 %v6597
        %v6599 = vpop.f32.mrb[0].mxu0
        %v6600 = vadd.f32 %v6459, %v6599
        %v6601 = vpop.f32.mrb[0].mxu0
        %6602 = vdwg.mxu0
        %6603 = vmatprep.subr.mxu0 0.0
        %v6604 = vand.u32 %v5848, 4294901760
        %v6605 = vsub.f32 %v5848, %v6604
        %v6606 = vand.u32 %v6605, 4294901760
        %6607 = vmatpush1.msra.mxu0 %v6606
        %6608 = vmatprep.subr.mxu0 0.0
        %v6609 = vand.u32 %v5849, 4294901760
        %v6610 = vsub.f32 %v5849, %v6609
        %v6611 = vand.u32 %v6610, 4294901760
        %6612 = vmatpush1.msra.mxu0 %v6611
        %6613 = vmatprep.subr.mxu0 0.0
        %v6614 = vand.u32 %v5850, 4294901760
        %v6615 = vsub.f32 %v5850, %v6614
        %v6616 = vand.u32 %v6615, 4294901760
        %6617 = vmatpush1.msra.mxu0 %v6616
        %6618 = vmatprep.subr.mxu0 0.0
        %v6619 = vand.u32 %v5851, 4294901760
        %v6620 = vsub.f32 %v5851, %v6619
        %v6621 = vand.u32 %v6620, 4294901760
        %6622 = vmatpush1.msra.mxu0 %v6621
        %6623 = vmatprep.subr.mxu0 0.0
        %v6624 = vand.u32 %v5852, 4294901760
        %v6625 = vsub.f32 %v5852, %v6624
        %v6626 = vand.u32 %v6625, 4294901760
        %6627 = vmatpush1.msra.mxu0 %v6626
        %6628 = vmatprep.subr.mxu0 0.0
        %v6629 = vand.u32 %v5853, 4294901760
        %v6630 = vsub.f32 %v5853, %v6629
        %v6631 = vand.u32 %v6630, 4294901760
        %6632 = vmatpush1.msra.mxu0 %v6631
        %6633 = vmatprep.subr.mxu0 0.0
        %v6634 = vand.u32 %v5854, 4294901760
        %v6635 = vsub.f32 %v5854, %v6634
        %v6636 = vand.u32 %v6635, 4294901760
        %6637 = vmatpush1.msra.mxu0 %v6636
        %6638 = vmatprep.subr.mxu0 0.0
        %v6639 = vand.u32 %v5855, 4294901760
        %v6640 = vsub.f32 %v5855, %v6639
        %v6641 = vand.u32 %v6640, 4294901760
        %6642 = vmatpush1.msra.mxu0 %v6641
        %6643 = vmatprep.subr.mxu0 0.0
        %v6644 = vand.u32 %v5856, 4294901760
        %v6645 = vsub.f32 %v5856, %v6644
        %v6646 = vand.u32 %v6645, 4294901760
        %6647 = vmatpush1.msra.mxu0 %v6646
        %6648 = vmatprep.subr.mxu0 0.0
        %v6649 = vand.u32 %v5857, 4294901760
        %v6650 = vsub.f32 %v5857, %v6649
        %v6651 = vand.u32 %v6650, 4294901760
        %6652 = vmatpush1.msra.mxu0 %v6651
        %6653 = vmatprep.subr.mxu0 0.0
        %v6654 = vand.u32 %v5858, 4294901760
        %v6655 = vsub.f32 %v5858, %v6654
        %v6656 = vand.u32 %v6655, 4294901760
        %6657 = vmatpush1.msra.mxu0 %v6656
        %6658 = vmatprep.subr.mxu0 0.0
        %v6659 = vand.u32 %v5859, 4294901760
        %v6660 = vsub.f32 %v5859, %v6659
        %v6661 = vand.u32 %v6660, 4294901760
        %6662 = vmatpush1.msra.mxu0 %v6661
        %6663 = vmatprep.subr.mxu0 0.0
        %v6664 = vand.u32 %v5860, 4294901760
        %v6665 = vsub.f32 %v5860, %v6664
        %v6666 = vand.u32 %v6665, 4294901760
        %6667 = vmatpush1.msra.mxu0 %v6666
        %6668 = vmatprep.subr.mxu0 0.0
        %v6669 = vand.u32 %v5861, 4294901760
        %v6670 = vsub.f32 %v5861, %v6669
        %v6671 = vand.u32 %v6670, 4294901760
        %6672 = vmatpush1.msra.mxu0 %v6671
        %6673 = vmatprep.subr.mxu0 0.0
        %v6674 = vand.u32 %v5862, 4294901760
        %v6675 = vsub.f32 %v5862, %v6674
        %v6676 = vand.u32 %v6675, 4294901760
        %6677 = vmatpush1.msra.mxu0 %v6676
        %6678 = vmatprep.subr.mxu0 0.0
        %v6679 = vand.u32 %v5863, 4294901760
        %v6680 = vsub.f32 %v5863, %v6679
        %v6681 = vand.u32 %v6680, 4294901760
        %6682 = vmatpush1.msra.mxu0 %v6681
        %6683 = vmatprep.subr.mxu0 0.0
        %v6684 = vand.u32 %v5864, 4294901760
        %v6685 = vsub.f32 %v5864, %v6684
        %v6686 = vand.u32 %v6685, 4294901760
        %6687 = vmatpush1.msra.mxu0 %v6686
        %6688 = vmatprep.subr.mxu0 0.0
        %v6689 = vand.u32 %v5865, 4294901760
        %v6690 = vsub.f32 %v5865, %v6689
        %v6691 = vand.u32 %v6690, 4294901760
        %6692 = vmatpush1.msra.mxu0 %v6691
        %6693 = vmatprep.subr.mxu0 0.0
        %v6694 = vand.u32 %v5866, 4294901760
        %v6695 = vsub.f32 %v5866, %v6694
        %v6696 = vand.u32 %v6695, 4294901760
        %6697 = vmatpush1.msra.mxu0 %v6696
        %6698 = vmatprep.subr.mxu0 0.0
        %v6699 = vand.u32 %v5867, 4294901760
        %v6700 = vsub.f32 %v5867, %v6699
        %v6701 = vand.u32 %v6700, 4294901760
        %6702 = vmatpush1.msra.mxu0 %v6701
        %6703 = vmatprep.subr.mxu0 0.0
        %v6704 = vand.u32 %v5868, 4294901760
        %v6705 = vsub.f32 %v5868, %v6704
        %v6706 = vand.u32 %v6705, 4294901760
        %6707 = vmatpush1.msra.mxu0 %v6706
        %6708 = vmatprep.subr.mxu0 0.0
        %v6709 = vand.u32 %v5869, 4294901760
        %v6710 = vsub.f32 %v5869, %v6709
        %v6711 = vand.u32 %v6710, 4294901760
        %6712 = vmatpush1.msra.mxu0 %v6711
        %6713 = vmatprep.subr.mxu0 0.0
        %v6714 = vand.u32 %v5870, 4294901760
        %v6715 = vsub.f32 %v5870, %v6714
        %v6716 = vand.u32 %v6715, 4294901760
        %6717 = vmatpush1.msra.mxu0 %v6716
        %6718 = vmatprep.subr.mxu0 0.0
        %v6719 = vand.u32 %v5871, 4294901760
        %v6720 = vsub.f32 %v5871, %v6719
        %v6721 = vand.u32 %v6720, 4294901760
        %6722 = vmatpush1.msra.mxu0 %v6721
        %6723 = vmatprep.subr.mxu0 0.0
        %v6724 = vand.u32 %v5872, 4294901760
        %v6725 = vsub.f32 %v5872, %v6724
        %v6726 = vand.u32 %v6725, 4294901760
        %6727 = vmatpush1.msra.mxu0 %v6726
        %6728 = vmatprep.subr.mxu0 0.0
        %v6729 = vand.u32 %v5873, 4294901760
        %v6730 = vsub.f32 %v5873, %v6729
        %v6731 = vand.u32 %v6730, 4294901760
        %6732 = vmatpush1.msra.mxu0 %v6731
        %6733 = vmatprep.subr.mxu0 0.0
        %v6734 = vand.u32 %v5874, 4294901760
        %v6735 = vsub.f32 %v5874, %v6734
        %v6736 = vand.u32 %v6735, 4294901760
        %6737 = vmatpush1.msra.mxu0 %v6736
        %6738 = vmatprep.subr.mxu0 0.0
        %v6739 = vand.u32 %v5875, 4294901760
        %v6740 = vsub.f32 %v5875, %v6739
        %v6741 = vand.u32 %v6740, 4294901760
        %6742 = vmatpush1.msra.mxu0 %v6741
        %6743 = vmatprep.subr.mxu0 0.0
        %v6744 = vand.u32 %v5876, 4294901760
        %v6745 = vsub.f32 %v5876, %v6744
        %v6746 = vand.u32 %v6745, 4294901760
        %6747 = vmatpush1.msra.mxu0 %v6746
        %6748 = vmatprep.subr.mxu0 0.0
        %v6749 = vand.u32 %v5877, 4294901760
        %v6750 = vsub.f32 %v5877, %v6749
        %v6751 = vand.u32 %v6750, 4294901760
        %6752 = vmatpush1.msra.mxu0 %v6751
        %6753 = vmatprep.subr.mxu0 0.0
        %v6754 = vand.u32 %v5878, 4294901760
        %v6755 = vsub.f32 %v5878, %v6754
        %v6756 = vand.u32 %v6755, 4294901760
        %6757 = vmatpush1.msra.mxu0 %v6756
        %6758 = vmatprep.subr.mxu0 0.0
        %v6759 = vand.u32 %v5879, 4294901760
        %v6760 = vsub.f32 %v5879, %v6759
        %v6761 = vand.u32 %v6760, 4294901760
        %6762 = vmatpush1.msra.mxu0 %v6761
        %v6763 = vand.u32 %v5841, 4294901760
        %6764 = vmatprep.mubr.f32.mxu0 %v6763
        %v6765 = vand.u32 %v5840, 4294901760
        %6766 = vmatmul.mubr.f32.gmra.mrb[0].mxu0 %v6765
        %v6767 = vpop.f32.mrb[0].mxu0
        %v6768 = vadd.f32 %v6567, %v6767
        %v6769 = vpop.f32.mrb[0].mxu0
        %v6770 = vand.u32 %v5843, 4294901760
        %6771 = vmatprep.mubr.f32.mxu0 %v6770
        %v6772 = vand.u32 %v5842, 4294901760
        %6773 = vmatmul.mubr.f32.gmra.mrb[0].mxu0 %v6772
        %v6774 = vpop.f32.mrb[0].mxu0
        %v6775 = vadd.f32 %v6578, %v6774
        %v6776 = vpop.f32.mrb[0].mxu0
        %v6777 = vand.u32 %v5845, 4294901760
        %6778 = vmatprep.mubr.f32.mxu0 %v6777
        %v6779 = vand.u32 %v5844, 4294901760
        %6780 = vmatmul.mubr.f32.gmra.mrb[0].mxu0 %v6779
        %v6781 = vpop.f32.mrb[0].mxu0
        %v6782 = vadd.f32 %v6589, %v6781
        %v6783 = vpop.f32.mrb[0].mxu0
        %v6784 = vand.u32 %v5847, 4294901760
        %6785 = vmatprep.mubr.f32.mxu0 %v6784
        %v6786 = vand.u32 %v5846, 4294901760
        %6787 = vmatmul.mubr.f32.gmra.mrb[0].mxu0 %v6786
        %v6788 = vpop.f32.mrb[0].mxu0
        %v6789 = vadd.f32 %v6600, %v6788
        %v6790 = vpop.f32.mrb[0].mxu0
        %6791 = vdwg.mxu0
        %6792 = vmatprep.subr.mxu0 0.0
        %v6793 = vand.u32 %v5848, 4294901760
        %6794 = vmatpush1.msra.mxu0 %v6793
        %6795 = vmatprep.subr.mxu0 0.0
        %v6796 = vand.u32 %v5849, 4294901760
        %6797 = vmatpush1.msra.mxu0 %v6796
        %6798 = vmatprep.subr.mxu0 0.0
        %v6799 = vand.u32 %v5850, 4294901760
        %6800 = vmatpush1.msra.mxu0 %v6799
        %6801 = vmatprep.subr.mxu0 0.0
        %v6802 = vand.u32 %v5851, 4294901760
        %6803 = vmatpush1.msra.mxu0 %v6802
        %6804 = vmatprep.subr.mxu0 0.0
        %v6805 = vand.u32 %v5852, 4294901760
        %6806 = vmatpush1.msra.mxu0 %v6805
        %6807 = vmatprep.subr.mxu0 0.0
        %v6808 = vand.u32 %v5853, 4294901760
        %6809 = vmatpush1.msra.mxu0 %v6808
        %6810 = vmatprep.subr.mxu0 0.0
        %v6811 = vand.u32 %v5854, 4294901760
        %6812 = vmatpush1.msra.mxu0 %v6811
        %6813 = vmatprep.subr.mxu0 0.0
        %v6814 = vand.u32 %v5855, 4294901760
        %6815 = vmatpush1.msra.mxu0 %v6814
        %6816 = vmatprep.subr.mxu0 0.0
        %v6817 = vand.u32 %v5856, 4294901760
        %6818 = vmatpush1.msra.mxu0 %v6817
        %6819 = vmatprep.subr.mxu0 0.0
        %v6820 = vand.u32 %v5857, 4294901760
        %6821 = vmatpush1.msra.mxu0 %v6820
        %6822 = vmatprep.subr.mxu0 0.0
        %v6823 = vand.u32 %v5858, 4294901760
        %6824 = vmatpush1.msra.mxu0 %v6823
        %6825 = vmatprep.subr.mxu0 0.0
        %v6826 = vand.u32 %v5859, 4294901760
        %6827 = vmatpush1.msra.mxu0 %v6826
        %6828 = vmatprep.subr.mxu0 0.0
        %v6829 = vand.u32 %v5860, 4294901760
        %6830 = vmatpush1.msra.mxu0 %v6829
        %6831 = vmatprep.subr.mxu0 0.0
        %v6832 = vand.u32 %v5861, 4294901760
        %6833 = vmatpush1.msra.mxu0 %v6832
        %6834 = vmatprep.subr.mxu0 0.0
        %v6835 = vand.u32 %v5862, 4294901760
        %6836 = vmatpush1.msra.mxu0 %v6835
        %6837 = vmatprep.subr.mxu0 0.0
        %v6838 = vand.u32 %v5863, 4294901760
        %6839 = vmatpush1.msra.mxu0 %v6838
        %6840 = vmatprep.subr.mxu0 0.0
        %v6841 = vand.u32 %v5864, 4294901760
        %6842 = vmatpush1.msra.mxu0 %v6841
        %6843 = vmatprep.subr.mxu0 0.0
        %v6844 = vand.u32 %v5865, 4294901760
        %6845 = vmatpush1.msra.mxu0 %v6844
        %6846 = vmatprep.subr.mxu0 0.0
        %v6847 = vand.u32 %v5866, 4294901760
        %6848 = vmatpush1.msra.mxu0 %v6847
        %6849 = vmatprep.subr.mxu0 0.0
        %v6850 = vand.u32 %v5867, 4294901760
        %6851 = vmatpush1.msra.mxu0 %v6850
        %6852 = vmatprep.subr.mxu0 0.0
        %v6853 = vand.u32 %v5868, 4294901760
        %6854 = vmatpush1.msra.mxu0 %v6853
        %6855 = vmatprep.subr.mxu0 0.0
        %v6856 = vand.u32 %v5869, 4294901760
        %6857 = vmatpush1.msra.mxu0 %v6856
        %6858 = vmatprep.subr.mxu0 0.0
        %v6859 = vand.u32 %v5870, 4294901760
        %6860 = vmatpush1.msra.mxu0 %v6859
        %6861 = vmatprep.subr.mxu0 0.0
        %v6862 = vand.u32 %v5871, 4294901760
        %6863 = vmatpush1.msra.mxu0 %v6862
        %6864 = vmatprep.subr.mxu0 0.0
        %v6865 = vand.u32 %v5872, 4294901760
        %6866 = vmatpush1.msra.mxu0 %v6865
        %6867 = vmatprep.subr.mxu0 0.0
        %v6868 = vand.u32 %v5873, 4294901760
        %6869 = vmatpush1.msra.mxu0 %v6868
        %6870 = vmatprep.subr.mxu0 0.0
        %v6871 = vand.u32 %v5874, 4294901760
        %6872 = vmatpush1.msra.mxu0 %v6871
        %6873 = vmatprep.subr.mxu0 0.0
        %v6874 = vand.u32 %v5875, 4294901760
        %6875 = vmatpush1.msra.mxu0 %v6874
        %6876 = vmatprep.subr.mxu0 0.0
        %v6877 = vand.u32 %v5876, 4294901760
        %6878 = vmatpush1.msra.mxu0 %v6877
        %6879 = vmatprep.subr.mxu0 0.0
        %v6880 = vand.u32 %v5877, 4294901760
        %6881 = vmatpush1.msra.mxu0 %v6880
        %6882 = vmatprep.subr.mxu0 0.0
        %v6883 = vand.u32 %v5878, 4294901760
        %6884 = vmatpush1.msra.mxu0 %v6883
        %6885 = vmatprep.subr.mxu0 0.0
        %v6886 = vand.u32 %v5879, 4294901760
        %6887 = vmatpush1.msra.mxu0 %v6886
        %v6888 = vand.u32 %v5841, 4294901760
        %6889 = vmatprep.mubr.f32.mxu0 %v6888
        %v6890 = vand.u32 %v5840, 4294901760
        %6891 = vmatmul.mubr.f32.gmra.mrb[0].mxu0 %v6890
        %v6892 = vpop.f32.mrb[0].mxu0
        %v6893 = vadd.f32 %v6768, %v6892
        %v6894 = vpop.f32.mrb[0].mxu0
        %v6895 = vand.u32 %v5843, 4294901760
        %6896 = vmatprep.mubr.f32.mxu0 %v6895
        %v6897 = vand.u32 %v5842, 4294901760
        %6898 = vmatmul.mubr.f32.gmra.mrb[0].mxu0 %v6897
        %v6899 = vpop.f32.mrb[0].mxu0
        %v6900 = vadd.f32 %v6775, %v6899
        %v6901 = vpop.f32.mrb[0].mxu0
        %v6902 = vand.u32 %v5845, 4294901760
        %6903 = vmatprep.mubr.f32.mxu0 %v6902
        %v6904 = vand.u32 %v5844, 4294901760
        %6905 = vmatmul.mubr.f32.gmra.mrb[0].mxu0 %v6904
        %v6906 = vpop.f32.mrb[0].mxu0
        %v6907 = vadd.f32 %v6782, %v6906
        %v6908 = vpop.f32.mrb[0].mxu0
        %v6909 = vand.u32 %v5847, 4294901760
        %6910 = vmatprep.mubr.f32.mxu0 %v6909
        %v6911 = vand.u32 %v5846, 4294901760
        %6912 = vmatmul.mubr.f32.gmra.mrb[0].mxu0 %v6911
        %v6913 = vpop.f32.mrb[0].mxu0
        %v6914 = vadd.f32 %v6789, %v6913
        %v6915 = vpop.f32.mrb[0].mxu0
        %6916 = vdwg.mxu0
        %v6917 = vadd.f32 %v6893, %v388
        %v6918 = vadd.f32 %v6900, %v389
        %v6919 = vadd.f32 %v6907, %v390
        %v6920 = vadd.f32 %v6914, %v391
        %6921 = vst.msk [vmem:[%s355] sm:$0xff] %vm420, %v6917
        %6922 = vst.msk [vmem:[%s355 + $0x8] sm:$0xff] %vm420, %v6918
        %6923 = vst.msk [vmem:[%s355 + $0x10] sm:$0xff] %vm420, %v6919
        %6924 = vst.msk [vmem:[%s355 + $0x18] sm:$0xff] %vm420, %v6920
        %s6925 = sand.u32 %s227, 1
        %s6926 = scalar_lea.sflag [#allocation5], %s6925
        %s6927 = sand.u32 %s227, 1
        %s6928 = smul.addr %s6927, 32
        %s6929 = scalar_lea.vmem [#allocation8], %s6928
        // Predicated region
        $region65: #{tpu_custom_call.1} parent=55 // pred_check
          %p6930 = pneg %p237
        $region66: #{tpu_custom_call.1} parent=55 // pred_check_branch
          %6932 = sbr.rel (%p6930) target = $region68
        $region67: #{tpu_custom_call.1} parent=55 // pred_region
          %s6934 = ssub.s32 512, 512
          %6935 = vsyncadd %s6926, %s6934
          %s6936 = smul.addr %s25, 4
          %s6937 = smul.addr %s6936, 128
          %s6938 = scalar_lea.hbm %s9, %s6937
          %s6939 = sshll.u32 %s6929, 4
          %s6940 = int_to_ptr.vmem [resolvable:$true] %s6939
          %6945 = dma.vmem_to_hbm [thread:$0]  %s6940, 512, %s6938, %s6926, 128, 128, 8
        $region68: #{tpu_custom_call.1} parent=55 // pred_fallthru
          _
      $region56: #{tpu_custom_call.1} parent=5 // pred_fallthru
        _
      %p6946 = scmp.le.s32.totalorder 2, %s20
      // Predicated region
      $region69: #{tpu_custom_call.1} parent=5 // pred_check
        %p6947 = pneg %p6946
      $region70: #{tpu_custom_call.1} parent=5 // pred_check_branch
        %6949 = sbr.rel (%p6947) target = $region72
      $region71: #{tpu_custom_call.1} parent=5 // pred_region
        %s6950 = ssub.s32 %s20, 2
        // Predicated region
        $region73: #{tpu_custom_call.1} parent=71 // pred_check
          %p6951 = pneg %p243
        $region74: #{tpu_custom_call.1} parent=71 // pred_check_branch
          %6953 = sbr.rel (%p6951) target = $region76
        $region75: #{tpu_custom_call.1} parent=71 // pred_region
          %s6954 = sand.u32 %s228, 1
          %s6955 = scalar_lea.sflag [#allocation5], %s6954
          %s6956 = sand.u32 %s228, 1
          %s6957 = smul.addr %s6956, 32
          %s6958 = scalar_lea.vmem [#allocation8], %s6957
          %6959 = dma.done %s6955, 512
        $region76: #{tpu_custom_call.1} parent=71 // pred_fallthru
          _
      $region72: #{tpu_custom_call.1} parent=5 // pred_fallthru
        _
    $region6: #{tpu_custom_call.1} parent=1 // loop_footer
      %s24 = sadd.s32 1, %s20
    $region7: #{tpu_custom_call.1} parent=1 // loop_footer_branch
      %19 = sbr.rel target = $region3
    $region8: #{tpu_custom_call.1} parent=1 // loop_exit
      _
    %6960 = vsyncpa [#allocation4], 1
    %s6961 = scalar_lea.sflag [#allocation4], 1
    %6962 = vsyncpa %s6961, 1
    %6963 = vsyncpa [#allocation7], 1
    %6964 = vsyncpa [#allocation5], 1
    %s6965 = scalar_lea.sflag [#allocation5], 1
    %6966 = vsyncpa %s6965, 1

</llo_original>
